<compile_context>
chip_gen: v7x
topology: tpu7x:2x2x1
jax: 0.10.0
libtpu: 0.0.40
codegen_flags: <defaults>
</compile_context>

<pallas_src>
import functools

import jax
import jax.numpy as jnp
from jax.experimental import pallas as pl
from jax.experimental.pallas import tpu as pltpu


# ----------------------------------------------------------------------------- #
# Pallas kernels
# ----------------------------------------------------------------------------- #
def mlp_kernel(x_ref, w1_ref, b1_ref, w2_ref, b2_ref, o_ref):
    """Channels-major 2-layer MLP.  X: (Din, T), output: (Dout, T), T lane-dense."""
    x = x_ref[...]
    h = jnp.dot(w1_ref[...], x, preferred_element_type=jnp.float32) + b1_ref[...]
    h = jnp.maximum(h, 0.0)
    o = jnp.dot(w2_ref[...], h, preferred_element_type=jnp.float32) + b2_ref[...]
    o_ref[...] = jnp.maximum(o, 0.0)


def mlp_pallas(x_ct, w1_ct, b1_ct, w2_ct, b2_ct):
    """x_ct: (Din, T) float32 -> (Dout, T)."""
    din, t = x_ct.shape
    dh = w1_ct.shape[0]
    dout = w2_ct.shape[0]
    return pl.pallas_call(
        mlp_kernel,
        out_shape=jax.ShapeDtypeStruct((dout, t), jnp.float32),
        grid=(1,),
        in_specs=[
            pl.BlockSpec((din, t), lambda i: (0, 0)),
            pl.BlockSpec((dh, din), lambda i: (0, 0)),
            pl.BlockSpec((dh, 1), lambda i: (0, 0)),
            pl.BlockSpec((dout, dh), lambda i: (0, 0)),
            pl.BlockSpec((dout, 1), lambda i: (0, 0)),
        ],
        out_specs=pl.BlockSpec((dout, t), lambda i: (0, 0)),
    )(x_ct, w1_ct, b1_ct, w2_ct, b2_ct)


def pixel_mlp(x_nchw, w1_ct, b1_ct, w2_ct, b2_ct):
    """Per-pixel MLP applied channels-major (lane axis = tokens)."""
    n, cin, h, w = x_nchw.shape
    x_ct = x_nchw.transpose(1, 0, 2, 3).reshape(cin, n * h * w)
    out_ct = mlp_pallas(x_ct, w1_ct, b1_ct, w2_ct, b2_ct)
    dout = out_ct.shape[0]
    return out_ct.reshape(dout, n, h, w).transpose(1, 0, 2, 3)


def mha_kernel(q_ref, k_ref, v_ref, wq_ref, bq_ref, wk_ref, bk_ref,
               wvo_ref, bvo_ref, bo_ref, out_ref, map_ref, *, nheads):
    """nn.MultiheadAttention (dropout=0, need_weights=True, average_attn_weights=True).

    One batch element per grid step, everything channel-major:
      q_ref/k_ref/v_ref : (E, L)
      wq/wk             : (E, E)   (1/sqrt(d) already folded into wq, bq)
      wvo               : (nheads*E, E)   per-head (Wv_h @ Wo_h)^T stacked on rows
    Head slicing happens on the sublane (row) axis only."""
    E, Lq = q_ref.shape
    Lk = k_ref.shape[1]
    d = E // nheads

    xq = q_ref[...]
    xk = k_ref[...]
    xv = v_ref[...]

    qp = jnp.dot(wq_ref[...], xq, preferred_element_type=jnp.float32) + bq_ref[...]
    kp = jnp.dot(wk_ref[...], xk, preferred_element_type=jnp.float32) + bk_ref[...]
    vproj = jnp.dot(wvo_ref[...], xv, preferred_element_type=jnp.float32) + bvo_ref[...]

    acc = jnp.zeros((E, Lq), jnp.float32) + bo_ref[...]
    amap = jnp.zeros((Lq, Lk), jnp.float32)

    for h in range(nheads):
        qh = qp[h * d:(h + 1) * d, :]          # (d, Lq)  sublane slice
        kh = kp[h * d:(h + 1) * d, :]          # (d, Lk)
        # scores[i, j] = q_i . k_j  (scale already folded into wq/bq)
        s = jax.lax.dot_general(qh, kh, (((0,), (0,)), ((), ())),
                                preferred_element_type=jnp.float32)   # (Lq, Lk)
        s = s - jnp.max(s, axis=-1, keepdims=True)
        e = jnp.exp(s)
        p = e * pl.reciprocal(jnp.sum(e, axis=-1, keepdims=True), approx=True)
        amap = amap + p
        vh = vproj[h * E:(h + 1) * E, :]       # (E, Lk)  sublane slice (aligned)
        acc = acc + jax.lax.dot_general(vh, p, (((1,), (1,)), ((), ())),
                                        preferred_element_type=jnp.float32)  # (E, Lq)

    out_ref[...] = acc
    # TODO(synk): lane-dense (L*L/128, 128) map store skipped — the lane-changing
    # in-kernel reshape is not reliably lowerable; map is only 16 KB per batch here.
    map_ref[...] = amap * (1.0 / nheads)


def mha_pallas(q, k, v, *, nheads, wq_t, bq, wk_t, bk, wv_t, bv, wo_t, bo):
    """q, k, v: (N, E, L) channel-major.  Returns (attn_out (N, E, Lq),
    attn_map (N, Lq, Lk)) with the map averaged over heads (PyTorch semantics)."""
    N, E, Lq = q.shape
    Lk = k.shape[2]
    d = E // nheads
    scale = 1.0 / float(d) ** 0.5

    # Fold the softmax scale into the Q projection and Wv@Wo per head (done once,
    # outside the kernel).
    wq_ct = (wq_t * scale).T
    bq_ct = (bq * scale).reshape(E, 1)
    wk_ct = wk_t.T
    bk_ct = bk.reshape(E, 1)
    wvo_ct = jnp.concatenate(
        [(wv_t[:, h * d:(h + 1) * d] @ wo_t[h * d:(h + 1) * d, :]).T
         for h in range(nheads)], axis=0)                      # (nheads*E, E)
    bvo_ct = jnp.concatenate(
        [(bv[h * d:(h + 1) * d] @ wo_t[h * d:(h + 1) * d, :]).reshape(E, 1)
         for h in range(nheads)], axis=0)                      # (nheads*E, 1)
    bo_ct = bo.reshape(E, 1)

    kernel = functools.partial(mha_kernel, nheads=nheads)
    out, amap = pl.pallas_call(
        kernel,
        out_shape=(jax.ShapeDtypeStruct((N, E, Lq), jnp.float32),
                   jax.ShapeDtypeStruct((N, Lq, Lk), jnp.float32)),
        grid=(N,),
        in_specs=[
            pl.BlockSpec((None, E, Lq), lambda b: (b, 0, 0)),
            pl.BlockSpec((None, E, Lk), lambda b: (b, 0, 0)),
            pl.BlockSpec((None, E, Lk), lambda b: (b, 0, 0)),
            pl.BlockSpec((E, E), lambda b: (0, 0)),
            pl.BlockSpec((E, 1), lambda b: (0, 0)),
            pl.BlockSpec((E, E), lambda b: (0, 0)),
            pl.BlockSpec((E, 1), lambda b: (0, 0)),
            pl.BlockSpec((nheads * E, E), lambda b: (0, 0)),
            pl.BlockSpec((nheads * E, 1), lambda b: (0, 0)),
            pl.BlockSpec((E, 1), lambda b: (0, 0)),
        ],
        out_specs=(
            pl.BlockSpec((None, E, Lq), lambda b: (b, 0, 0)),
            pl.BlockSpec((None, Lq, Lk), lambda b: (b, 0, 0)),
        ),
        compiler_params=pltpu.CompilerParams(dimension_semantics=("parallel",)),
    )(q, k, v, wq_ct, bq_ct, wk_ct, bk_ct, wvo_ct, bvo_ct, bo_ct)
    return out, amap


def conv3x3_kernel(xp_ref, w_ref, b_ref, o_ref):
    """3x3 conv, stride 1; input pre-padded by 1.  One batch element per grid step.

    The 9 taps are realized with pltpu.roll on the padded plane (sublane roll for kh,
    lane roll for kw) and accumulated at the padded size; a single aligned [:H, :W]
    slice is taken at the end.  Shifted views are hoisted out of the co loop."""
    cin, hp, wp = xp_ref.shape
    cout, h, w = o_ref.shape

    acc = [jnp.full((hp, wp), b_ref[co], dtype=jnp.float32) for co in range(cout)]
    for ci in range(cin):
        xc = xp_ref[ci]                                      # (hp, wp)
        for kh in range(3):
            xr = xc if kh == 0 else pltpu.roll(xc, shift=hp - kh, axis=0)
            for kw in range(3):
                xs = xr if kw == 0 else pltpu.roll(xr, shift=wp - kw, axis=1)
                # xs[i, j] == xpad[ci, i+kh, j+kw] for i < h, j < w (no wrap there)
                for co in range(cout):
                    wv = w_ref[((co * cin + ci) * 3 + kh) * 3 + kw]
                    acc[co] = acc[co] + wv * xs
    for co in range(cout):
        o_ref[co, :, :] = acc[co][:h, :w]


def conv3x3_pallas(x, w, b):
    """x: (N, Cin, H, W); w: (Cout, Cin, 3, 3); b: (Cout,)  ->  (N, Cout, H, W)."""
    N, Cin, H, W = x.shape
    Cout = w.shape[0]
    xp = jnp.pad(x, ((0, 0), (0, 0), (1, 1), (1, 1)))
    return pl.pallas_call(
        conv3x3_kernel,
        out_shape=jax.ShapeDtypeStruct((N, Cout, H, W), jnp.float32),
        grid=(N,),
        in_specs=[
            pl.BlockSpec((None, Cin, H + 2, W + 2), lambda n: (n, 0, 0, 0)),
            pl.BlockSpec(memory_space=pltpu.MemorySpace.SMEM),
            pl.BlockSpec(memory_space=pltpu.MemorySpace.SMEM),
        ],
        out_specs=pl.BlockSpec((None, Cout, H, W), lambda n: (n, 0, 0, 0)),
        compiler_params=pltpu.CompilerParams(dimension_semantics=("parallel",)),
    )(xp, w.reshape(-1), b)


def combine_kernel(a_ref, b_ref, c_ref, o_ref):
    o_ref[...] = 0.4 * a_ref[...] + 0.2 * b_ref[...] + 0.4 * c_ref[...]


def combine_pallas(a, b, c):
    """Lane-dense elementwise blend on a flat (rows, 128) view."""
    shape = a.shape
    total = a.size
    if total % 128 == 0:
        rows = total // 128
        af, bf, cf = (t.reshape(rows, 128) for t in (a, b, c))
        spec = pl.BlockSpec((rows, 128), lambda i: (0, 0))
        out = pl.pallas_call(
            combine_kernel,
            out_shape=jax.ShapeDtypeStruct((rows, 128), jnp.float32),
            grid=(1,),
            in_specs=[spec, spec, spec],
            out_specs=spec,
        )(af, bf, cf)
        return out.reshape(shape)
    # TODO(synk): shapes not divisible by the lane width fall back to XLA fusion.
    return 0.4 * a + 0.2 * b + 0.4 * c


# ----------------------------------------------------------------------------- #
# Plain-JAX glue (posemb constant, gather-based interpolation / grid_sample,
# argmax bookkeeping).
# ----------------------------------------------------------------------------- #
def posemb_sincos_2d(dim, h, w, temperature=1000.0):
    assert dim % 4 == 0, "feature dimension must be multiple of 4 for sincos emb"
    y, x = jnp.meshgrid(jnp.arange(h), jnp.arange(w), indexing="ij")
    omega = jnp.arange(dim // 4, dtype=jnp.float32) / (dim // 4 - 1)
    omega = 1.0 / temperature ** omega
    yf = y.reshape(-1).astype(jnp.float32)[:, None] * omega[None, :]
    xf = x.reshape(-1).astype(jnp.float32)[:, None] * omega[None, :]
    pe = jnp.concatenate([jnp.sin(xf), jnp.cos(xf), jnp.sin(yf), jnp.cos(yf)], axis=1)
    pe = pe.reshape(1, h, w, dim).transpose(0, 3, 1, 2)
    return pe.astype(jnp.float32)


def interpolate_bilinear(x, out_h, out_w):
    """F.interpolate(mode='bilinear', align_corners=True)."""
    n, c, h, w = x.shape
    ys = jnp.arange(out_h, dtype=jnp.float32) * ((h - 1) / (out_h - 1)) if out_h > 1 \
        else jnp.zeros((out_h,), jnp.float32)
    xs = jnp.arange(out_w, dtype=jnp.float32) * ((w - 1) / (out_w - 1)) if out_w > 1 \
        else jnp.zeros((out_w,), jnp.float32)
    y0 = jnp.floor(ys).astype(jnp.int32)
    x0 = jnp.floor(xs).astype(jnp.int32)
    y1 = jnp.minimum(y0 + 1, h - 1)
    x1 = jnp.minimum(x0 + 1, w - 1)
    wy = (ys - y0.astype(jnp.float32))[:, None]
    wx = (xs - x0.astype(jnp.float32))[None, :]

    def g(yi, xi):
        return x[:, :, yi[:, None], xi[None, :]]

    top = g(y0, x0) * (1 - wx) + g(y0, x1) * wx
    bot = g(y1, x0) * (1 - wx) + g(y1, x1) * wx
    return top * (1 - wy) + bot * wy


def grid_sample_bilinear(img, grid):
    """torch.F.grid_sample(bilinear, padding_mode='zeros', align_corners=True)."""
    # TODO(synk): gather-based grid_sample kept in plain JAX (no clean Pallas TPU gather).
    n, c, h, w = img.shape
    gx = (grid[..., 0] + 1.0) * 0.5 * (w - 1)
    gy = (grid[..., 1] + 1.0) * 0.5 * (h - 1)
    x0f = jnp.floor(gx)
    y0f = jnp.floor(gy)
    x1f = x0f + 1.0
    y1f = y0f + 1.0
    wx = gx - x0f
    wy = gy - y0f
    bidx = jnp.arange(n)[:, None, None]

    def g(yf, xf):
        valid = (xf >= 0) & (xf <= w - 1) & (yf >= 0) & (yf <= h - 1)
        yi = jnp.clip(yf, 0, h - 1).astype(jnp.int32)
        xi = jnp.clip(xf, 0, w - 1).astype(jnp.int32)
        vals = img[bidx, :, yi, xi]                      # (N, Hg, Wg, C)
        vals = vals * valid[..., None].astype(img.dtype)
        return jnp.moveaxis(vals, -1, 1)                 # (N, C, Hg, Wg)

    w00 = ((1 - wy) * (1 - wx))[:, None]
    w01 = ((1 - wy) * wx)[:, None]
    w10 = (wy * (1 - wx))[:, None]
    w11 = (wy * wx)[:, None]
    return g(y0f, x0f) * w00 + g(y0f, x1f) * w01 + g(y1f, x0f) * w10 + g(y1f, x1f) * w11


def warp(features, flow):
    n, c, h, w = features.shape
    xx = jnp.broadcast_to(jnp.arange(w, dtype=jnp.float32)[None, None, None, :],
                          (n, 1, h, w))
    yy = jnp.broadcast_to(jnp.arange(h, dtype=jnp.float32)[None, None, :, None],
                          (n, 1, h, w))
    grid = jnp.concatenate([xx, yy], axis=1)
    vgrid = grid + flow
    vx = 2.0 * vgrid[:, 0] / max(w - 1, 1) - 1.0
    vy = 2.0 * vgrid[:, 1] / max(h - 1, 1) - 1.0
    vgrid_n = jnp.stack([vx, vy], axis=-1)
    out = grid_sample_bilinear(features, vgrid_n)
    mask = grid_sample_bilinear(jnp.ones_like(features), vgrid_n)
    mask = (mask >= 0.9999).astype(features.dtype)
    return out * mask


# ----------------------------------------------------------------------------- #
# Model: parameters + forward
# ----------------------------------------------------------------------------- #
def init_params(key, C, te, nheads):
    input_channels = C + C + te + 1
    sampler_in = C + te + 1
    ks = jax.random.split(key, 9)

    def mlp_p(k, din, dh, dout, scale=0.1):
        k1, k2, k3, k4 = jax.random.split(k, 4)
        # stored kernel-ready: channels-major W^T and column biases
        return (jax.random.normal(k1, (dh, din), jnp.float32) * scale,
                jax.random.normal(k2, (dh, 1), jnp.float32) * scale,
                jax.random.normal(k3, (dout, dh), jnp.float32) * scale,
                jax.random.normal(k4, (dout, 1), jnp.float32) * scale)

    def mha_p(k, s=0.1):
        kk = jax.random.split(k, 8)
        return dict(wq_t=jax.random.normal(kk[0], (C, C), jnp.float32) * s,
                    bq=jax.random.normal(kk[1], (C,), jnp.float32) * s,
                    wk_t=jax.random.normal(kk[2], (C, C), jnp.float32) * s,
                    bk=jax.random.normal(kk[3], (C,), jnp.float32) * s,
                    wv_t=jax.random.normal(kk[4], (C, C), jnp.float32) * s,
                    bv=jax.random.normal(kk[5], (C,), jnp.float32) * s,
                    wo_t=jax.random.normal(kk[6], (C, C), jnp.float32) * s,
                    bo=jax.random.normal(kk[7], (C,), jnp.float32) * s)

    def conv_p(k):
        k1, k2 = jax.random.split(k)
        return (jax.random.normal(k1, (2, 2, 3, 3), jnp.float32) * 0.1,
                jax.random.normal(k2, (2,), jnp.float32) * 0.1)

    return {
        "blur_proj": mlp_p(ks[0], C, 2 * C, C),
        "sharp_proj": mlp_p(ks[1], input_channels, 2 * C, C),
        "sampler_proj": mlp_p(ks[2], sampler_in, 2 * C, C),
        "blur_attn": mha_p(ks[3]),
        "sharp_attn": mha_p(ks[4]),
        "cross_attn": mha_p(ks[5]),
        "flow_conv1": conv_p(ks[6]),
        "flow_conv2": conv_p(ks[7]),
        "flow_conv3": conv_p(ks[8]),
    }


def feature_predictor_forward(params, blur_feature, blur_feature_scale,
                              sharp_feature, sharp_feature_scale,
                              time_encoding, nheads):
    N, C, H, W = blur_feature.shape
    L = H * W
    pe = posemb_sincos_2d(C, H, W)                      # (1, C, H, W)

    # --- blur branch ---
    features = pe + blur_feature
    projected_blur = pixel_mlp(features, *params["blur_proj"])
    q1 = projected_blur.reshape(N, C, L)                # (N, E, L) — pure reshape
    blur_attn_ct, blur_attn_map = mha_pallas(q1, q1, q1,
                                             nheads=nheads, **params["blur_attn"])
    blur_attn_features = blur_attn_ct.reshape(N, C, H, W)

    y = jnp.max(blur_attn_map, axis=1).reshape(N, H, W)     # max over queries per key
    range_variation = (1.0 / y) * (1.0 / (2 * 3.1415)) * (1.0 / H)
    range_variation = range_variation[:, None, :, :]

    # --- sharp (predictor) branch ---
    latent_features = jnp.concatenate(
        [pe + sharp_feature, blur_attn_features, time_encoding, range_variation], axis=1)
    projected_latent = pixel_mlp(latent_features, *params["sharp_proj"])
    q2 = projected_latent.reshape(N, C, L)
    v1 = sharp_feature.reshape(N, C, L)
    pred_ct, predictor_map = mha_pallas(q2, q2, v1,
                                        nheads=nheads, **params["sharp_attn"])
    new_features_predicted = pred_ct.reshape(N, C, H, W)

    # --- sampler (cross-attention) branch ---
    key_ct = (pe + sharp_feature).reshape(N, C, L)
    sampled_feature = jnp.concatenate(
        [pe + blur_attn_features, time_encoding, range_variation], axis=1)
    projected_sampled = pixel_mlp(sampled_feature, *params["sampler_proj"])
    q3 = projected_sampled.reshape(N, C, L)
    sampled_ct, sampled_map = mha_pallas(q3, key_ct, v1,
                                         nheads=nheads, **params["cross_attn"])
    new_sampled_features = sampled_ct.reshape(N, C, H, W)

    # --- mutual matching / flow ---
    final_transformation_map = predictor_map * sampled_map          # (N, L, L)
    match12 = jnp.max(final_transformation_map, axis=2)
    match_idx12 = jnp.argmax(final_transformation_map, axis=2)
    match21 = jnp.max(final_transformation_map, axis=1)
    match21 = jnp.take_along_axis(match21, match_idx12, axis=1)
    matched = (match12 - match21) == 0
    coords_index = jnp.where(matched, match_idx12,
                             jnp.arange(L, dtype=match_idx12.dtype)[None, :])
    coords_index = coords_index.reshape(N, H, W)
    coords_x = coords_index % W
    coords_y = coords_index // W
    coords_xy = jnp.stack([coords_x, coords_y], axis=1).astype(jnp.float32)

    sfs = list(sharp_feature_scale)
    c3 = 2.0 * interpolate_bilinear(coords_xy, 2 * H, 2 * W)
    c3 = conv3x3_pallas(c3, *params["flow_conv1"])
    sfs[2] = warp(sfs[2], -1.0 * c3)

    c2 = 2.0 * interpolate_bilinear(c3, 4 * H, 4 * W)
    c2 = conv3x3_pallas(c2, *params["flow_conv2"])
    sfs[1] = warp(sfs[1], -1.0 * c2)

    c3b = 2.0 * interpolate_bilinear(c2, 8 * H, 8 * W)
    c3b = conv3x3_pallas(c3b, *params["flow_conv3"])
    sfs[0] = warp(sfs[0], -1.0 * c3b)

    final_features = combine_pallas(new_sampled_features, sharp_feature,
                                    new_features_predicted)
    return blur_attn_features, final_transformation_map, final_features, sfs


# ----------------------------------------------------------------------------- #
if __name__ == "__main__":
    key = jax.random.PRNGKey(0)
    N, C, TE, NHEADS, H, W = 2, 8, 3, 2, 8, 8   # sharp_ch = blurred_ch = 8, time_enc_ch = 3

    k = jax.random.split(key, 10)
    blur_feature = jax.random.normal(k[0], (N, C, H, W), jnp.float32)
    sharp_feature = jax.random.normal(k[1], (N, C, H, W), jnp.float32)
    time_encoding = jax.random.normal(k[2], (N, TE, H, W), jnp.float32)
    blur_feature_scale = [
        jax.random.normal(k[3], (N, C, 8 * H, 8 * W), jnp.float32),
        jax.random.normal(k[4], (N, C, 4 * H, 4 * W), jnp.float32),
        jax.random.normal(k[5], (N, C, 2 * H, 2 * W), jnp.float32),
    ]
    sharp_feature_scale = [
        jax.random.normal(k[6], (N, C, 8 * H, 8 * W), jnp.float32),
        jax.random.normal(k[7], (N, C, 4 * H, 4 * W), jnp.float32),
        jax.random.normal(k[8], (N, C, 2 * H, 2 * W), jnp.float32),
    ]
    params = init_params(k[9], C, TE, NHEADS)

    fwd = jax.jit(functools.partial(feature_predictor_forward, nheads=NHEADS))
    outs = fwd(params, blur_feature, blur_feature_scale,
               sharp_feature, sharp_feature_scale, time_encoding)
    jax.block_until_ready(outs)

    blur_attn_features, final_map, final_features, warped_scales = outs
    assert blur_attn_features.shape == (N, C, H, W)
    assert final_map.shape == (N, H * W, H * W)
    assert final_features.shape == (N, C, H, W)
    assert warped_scales[0].shape == (N, C, 8 * H, 8 * W)
    print("KERNEL_OK")
</pallas_src>

<mosaic_0001>
module attributes {stable_mosaic.version = 11 : i64} {
  func.func private @main(%arg0: i32) attributes {dimension_semantics = [#tpu.dimension_semantics<core_parallel>], iteration_bounds = array<i64: 2>, tpu.core_type = #tpu.core_type<sc_scalar_subcore>, window_params = []} {
    return
  }
}

module attributes {stable_mosaic.version = 11 : i64} {
  func.func private @main(%arg0: i32) attributes {dimension_semantics = [#tpu.dimension_semantics<core_parallel>], iteration_bounds = array<i64: 2>, tpu.core_type = #tpu.core_type<sc_scalar_subcore>, window_params = []} {
    return
  }
}

module attributes {stable_mosaic.version = 11 : i64} {
  func.func @mlp_kernel(%arg0: i32, %arg1: memref<8x128xf32, #tpu.memory_space<vmem>>, %arg2: memref<16x8xf32, #tpu.memory_space<vmem>>, %arg3: memref<16x1xf32, #tpu.memory_space<vmem>>, %arg4: memref<8x16xf32, #tpu.memory_space<vmem>>, %arg5: memref<8x1xf32, #tpu.memory_space<vmem>>, %arg6: memref<8x128xf32, #tpu.memory_space<vmem>>) attributes {dimension_semantics = [#tpu.dimension_semantics<arbitrary>], iteration_bounds = array<i64: 1>, scalar_prefetch = 0 : i64, scratch_operands = 0 : i64, tpu.core_type = #tpu.core_type<tc>, window_params = [{pipeline_mode = #tpu.pipeline_mode<synchronous>, transform_indices = @transform_0, window_bounds = array<i64: 8, 128>}, {pipeline_mode = #tpu.pipeline_mode<synchronous>, transform_indices = @transform_1, window_bounds = array<i64: 16, 8>}, {pipeline_mode = #tpu.pipeline_mode<synchronous>, transform_indices = @transform_2, window_bounds = array<i64: 16, 1>}, {pipeline_mode = #tpu.pipeline_mode<synchronous>, transform_indices = @transform_3, window_bounds = array<i64: 8, 16>}, {pipeline_mode = #tpu.pipeline_mode<synchronous>, transform_indices = @transform_4, window_bounds = array<i64: 8, 1>}, {pipeline_mode = #tpu.pipeline_mode<synchronous>, transform_indices = @transform_5, window_bounds = array<i64: 8, 128>}]} {
    %c0 = arith.constant 0 : index
    %c0_0 = arith.constant 0 : index
    %0 = vector.load %arg1[%c0, %c0_0] : memref<8x128xf32, #tpu.memory_space<vmem>>, vector<8x128xf32>
    %c0_1 = arith.constant 0 : index
    %c0_2 = arith.constant 0 : index
    %1 = vector.load %arg2[%c0_1, %c0_2] : memref<16x8xf32, #tpu.memory_space<vmem>>, vector<16x8xf32>
    %cst = arith.constant dense<0.000000e+00> : vector<16x128xf32>
    %2 = tpu.matmul %1, %0, %cst {dimension_numbers = #tpu.dot_dimension_numbers<[1], [0], [0], [1], [0, 0, 1, 1], [], []>} : vector<16x8xf32>, vector<8x128xf32>, vector<16x128xf32> -> vector<16x128xf32>
    %c0_3 = arith.constant 0 : index
    %c0_4 = arith.constant 0 : index
    %3 = vector.load %arg3[%c0_3, %c0_4] : memref<16x1xf32, #tpu.memory_space<vmem>>, vector<16x1xf32>
    %4 = vector.broadcast %3 : vector<16x1xf32> to vector<16x128xf32>
    %5 = arith.addf %2, %4 : vector<16x128xf32>
    %cst_5 = arith.constant 0.000000e+00 : f32
    %6 = vector.broadcast %cst_5 : f32 to vector<16x128xf32>
    %7 = arith.maximumf %5, %6 : vector<16x128xf32>
    %c0_6 = arith.constant 0 : index
    %c0_7 = arith.constant 0 : index
    %8 = vector.load %arg4[%c0_6, %c0_7] : memref<8x16xf32, #tpu.memory_space<vmem>>, vector<8x16xf32>
    %cst_8 = arith.constant dense<0.000000e+00> : vector<8x128xf32>
    %9 = tpu.matmul %8, %7, %cst_8 {dimension_numbers = #tpu.dot_dimension_numbers<[1], [0], [0], [1], [0, 0, 1, 1], [], []>} : vector<8x16xf32>, vector<16x128xf32>, vector<8x128xf32> -> vector<8x128xf32>
    %c0_9 = arith.constant 0 : index
    %c0_10 = arith.constant 0 : index
    %10 = vector.load %arg5[%c0_9, %c0_10] : memref<8x1xf32, #tpu.memory_space<vmem>>, vector<8x1xf32>
    %11 = vector.broadcast %10 : vector<8x1xf32> to vector<8x128xf32>
    %12 = arith.addf %9, %11 : vector<8x128xf32>
    %cst_11 = arith.constant 0.000000e+00 : f32
    %13 = vector.broadcast %cst_11 : f32 to vector<8x128xf32>
    %14 = arith.maximumf %12, %13 : vector<8x128xf32>
    %c0_12 = arith.constant 0 : index
    %c0_13 = arith.constant 0 : index
    %15 = vector.load %arg6[%c0_12, %c0_13] : memref<8x128xf32, #tpu.memory_space<vmem>>, vector<8x128xf32>
    tpu.vector_store %arg6[%c0_12, %c0_13], %14 {strides = array<i32>} : memref<8x128xf32, #tpu.memory_space<vmem>>, vector<8x128xf32>,
    return
  }
  func.func @transform_0(%arg0: i32) -> (i32, i32) {
    %c0_i32 = arith.constant 0 : i32
    %c0_i32_0 = arith.constant 0 : i32
    %c0_i32_1 = arith.constant 0 : i32
    return %c0_i32, %c0_i32_0 : i32, i32
  }
  func.func @transform_1(%arg0: i32) -> (i32, i32) {
    %c0_i32 = arith.constant 0 : i32
    %c0_i32_0 = arith.constant 0 : i32
    %c0_i32_1 = arith.constant 0 : i32
    return %c0_i32, %c0_i32_0 : i32, i32
  }
  func.func @transform_2(%arg0: i32) -> (i32, i32) {
    %c0_i32 = arith.constant 0 : i32
    %c0_i32_0 = arith.constant 0 : i32
    %c0_i32_1 = arith.constant 0 : i32
    return %c0_i32, %c0_i32_0 : i32, i32
  }
  func.func @transform_3(%arg0: i32) -> (i32, i32) {
    %c0_i32 = arith.constant 0 : i32
    %c0_i32_0 = arith.constant 0 : i32
    %c0_i32_1 = arith.constant 0 : i32
    return %c0_i32, %c0_i32_0 : i32, i32
  }
  func.func @transform_4(%arg0: i32) -> (i32, i32) {
    %c0_i32 = arith.constant 0 : i32
    %c0_i32_0 = arith.constant 0 : i32
    %c0_i32_1 = arith.constant 0 : i32
    return %c0_i32, %c0_i32_0 : i32, i32
  }
  func.func @transform_5(%arg0: i32) -> (i32, i32) {
    %c0_i32 = arith.constant 0 : i32
    %c0_i32_0 = arith.constant 0 : i32
    %c0_i32_1 = arith.constant 0 : i32
    return %c0_i32, %c0_i32_0 : i32, i32
  }
}

module attributes {stable_mosaic.version = 11 : i64} {
  func.func @mha_kernel(%arg0: i32, %arg1: memref<1x8x64xf32, #tpu.memory_space<vmem>>, %arg2: memref<1x8x64xf32, #tpu.memory_space<vmem>>, %arg3: memref<1x8x64xf32, #tpu.memory_space<vmem>>, %arg4: memref<8x8xf32, #tpu.memory_space<vmem>>, %arg5: memref<8x1xf32, #tpu.memory_space<vmem>>, %arg6: memref<8x8xf32, #tpu.memory_space<vmem>>, %arg7: memref<8x1xf32, #tpu.memory_space<vmem>>, %arg8: memref<16x8xf32, #tpu.memory_space<vmem>>, %arg9: memref<16x1xf32, #tpu.memory_space<vmem>>, %arg10: memref<8x1xf32, #tpu.memory_space<vmem>>, %arg11: memref<1x8x64xf32, #tpu.memory_space<vmem>>, %arg12: memref<1x64x64xf32, #tpu.memory_space<vmem>>) attributes {dimension_semantics = [#tpu.dimension_semantics<parallel>], iteration_bounds = array<i64: 2>, scalar_prefetch = 0 : i64, scratch_operands = 0 : i64, tpu.core_type = #tpu.core_type<tc>, window_params = [{transform_indices = @transform_0, window_bounds = array<i64: 1, 8, 64>}, {transform_indices = @transform_1, window_bounds = array<i64: 1, 8, 64>}, {transform_indices = @transform_2, window_bounds = array<i64: 1, 8, 64>}, {pipeline_mode = #tpu.pipeline_mode<synchronous>, transform_indices = @transform_3, window_bounds = array<i64: 8, 8>}, {pipeline_mode = #tpu.pipeline_mode<synchronous>, transform_indices = @transform_4, window_bounds = array<i64: 8, 1>}, {pipeline_mode = #tpu.pipeline_mode<synchronous>, transform_indices = @transform_5, window_bounds = array<i64: 8, 8>}, {pipeline_mode = #tpu.pipeline_mode<synchronous>, transform_indices = @transform_6, window_bounds = array<i64: 8, 1>}, {pipeline_mode = #tpu.pipeline_mode<synchronous>, transform_indices = @transform_7, window_bounds = array<i64: 16, 8>}, {pipeline_mode = #tpu.pipeline_mode<synchronous>, transform_indices = @transform_8, window_bounds = array<i64: 16, 1>}, {pipeline_mode = #tpu.pipeline_mode<synchronous>, transform_indices = @transform_9, window_bounds = array<i64: 8, 1>}, {transform_indices = @transform_10, window_bounds = array<i64: 1, 8, 64>}, {transform_indices = @transform_11, window_bounds = array<i64: 1, 64, 64>}]} {
    %c0 = arith.constant 0 : index
    %c0_0 = arith.constant 0 : index
    %c0_1 = arith.constant 0 : index
    %0 = vector.load %arg1[%c0, %c0_0, %c0_1] : memref<1x8x64xf32, #tpu.memory_space<vmem>>, vector<1x8x64xf32>
    %1 = vector.shape_cast %0 : vector<1x8x64xf32> to vector<8x64xf32>
    %c0_2 = arith.constant 0 : index
    %c0_3 = arith.constant 0 : index
    %c0_4 = arith.constant 0 : index
    %2 = vector.load %arg2[%c0_2, %c0_3, %c0_4] : memref<1x8x64xf32, #tpu.memory_space<vmem>>, vector<1x8x64xf32>
    %3 = vector.shape_cast %2 : vector<1x8x64xf32> to vector<8x64xf32>
    %c0_5 = arith.constant 0 : index
    %c0_6 = arith.constant 0 : index
    %c0_7 = arith.constant 0 : index
    %4 = vector.load %arg3[%c0_5, %c0_6, %c0_7] : memref<1x8x64xf32, #tpu.memory_space<vmem>>, vector<1x8x64xf32>
    %5 = vector.shape_cast %4 : vector<1x8x64xf32> to vector<8x64xf32>
    %c0_8 = arith.constant 0 : index
    %c0_9 = arith.constant 0 : index
    %6 = vector.load %arg4[%c0_8, %c0_9] : memref<8x8xf32, #tpu.memory_space<vmem>>, vector<8x8xf32>
    %cst = arith.constant dense<0.000000e+00> : vector<8x64xf32>
    %7 = tpu.matmul %6, %1, %cst {dimension_numbers = #tpu.dot_dimension_numbers<[1], [0], [0], [1], [0, 0, 1, 1], [], []>} : vector<8x8xf32>, vector<8x64xf32>, vector<8x64xf32> -> vector<8x64xf32>
    %c0_10 = arith.constant 0 : index
    %c0_11 = arith.constant 0 : index
    %8 = vector.load %arg5[%c0_10, %c0_11] : memref<8x1xf32, #tpu.memory_space<vmem>>, vector<8x1xf32>
    %9 = vector.broadcast %8 : vector<8x1xf32> to vector<8x64xf32>
    %10 = arith.addf %7, %9 : vector<8x64xf32>
    %c0_12 = arith.constant 0 : index
    %c0_13 = arith.constant 0 : index
    %11 = vector.load %arg6[%c0_12, %c0_13] : memref<8x8xf32, #tpu.memory_space<vmem>>, vector<8x8xf32>
    %cst_14 = arith.constant dense<0.000000e+00> : vector<8x64xf32>
    %12 = tpu.matmul %11, %3, %cst_14 {dimension_numbers = #tpu.dot_dimension_numbers<[1], [0], [0], [1], [0, 0, 1, 1], [], []>} : vector<8x8xf32>, vector<8x64xf32>, vector<8x64xf32> -> vector<8x64xf32>
    %c0_15 = arith.constant 0 : index
    %c0_16 = arith.constant 0 : index
    %13 = vector.load %arg7[%c0_15, %c0_16] : memref<8x1xf32, #tpu.memory_space<vmem>>, vector<8x1xf32>
    %14 = vector.broadcast %13 : vector<8x1xf32> to vector<8x64xf32>
    %15 = arith.addf %12, %14 : vector<8x64xf32>
    %c0_17 = arith.constant 0 : index
    %c0_18 = arith.constant 0 : index
    %16 = vector.load %arg8[%c0_17, %c0_18] : memref<16x8xf32, #tpu.memory_space<vmem>>, vector<16x8xf32>
    %cst_19 = arith.constant dense<0.000000e+00> : vector<16x64xf32>
    %17 = tpu.matmul %16, %5, %cst_19 {dimension_numbers = #tpu.dot_dimension_numbers<[1], [0], [0], [1], [0, 0, 1, 1], [], []>} : vector<16x8xf32>, vector<8x64xf32>, vector<16x64xf32> -> vector<16x64xf32>
    %c0_20 = arith.constant 0 : index
    %c0_21 = arith.constant 0 : index
    %18 = vector.load %arg9[%c0_20, %c0_21] : memref<16x1xf32, #tpu.memory_space<vmem>>, vector<16x1xf32>
    %19 = vector.broadcast %18 : vector<16x1xf32> to vector<16x64xf32>
    %20 = arith.addf %17, %19 : vector<16x64xf32>
    %cst_22 = arith.constant 0.000000e+00 : f32
    %21 = vector.broadcast %cst_22 : f32 to vector<8x64xf32>
    %c0_23 = arith.constant 0 : index
    %c0_24 = arith.constant 0 : index
    %22 = vector.load %arg10[%c0_23, %c0_24] : memref<8x1xf32, #tpu.memory_space<vmem>>, vector<8x1xf32>
    %23 = vector.broadcast %22 : vector<8x1xf32> to vector<8x64xf32>
    %24 = arith.addf %21, %23 : vector<8x64xf32>
    %cst_25 = arith.constant 0.000000e+00 : f32
    %25 = vector.broadcast %cst_25 : f32 to vector<64x64xf32>
    %26 = vector.extract_strided_slice %10 {offsets = [0, 0], sizes = [4, 64], strides = [1, 1]} : vector<8x64xf32> to vector<4x64xf32>
    %27 = vector.extract_strided_slice %15 {offsets = [0, 0], sizes = [4, 64], strides = [1, 1]} : vector<8x64xf32> to vector<4x64xf32>
    %cst_26 = arith.constant dense<0.000000e+00> : vector<64x64xf32>
    %28 = tpu.matmul %26, %27, %cst_26 {dimension_numbers = #tpu.dot_dimension_numbers<[0], [0], [1], [1], [0, 1, 1, 1], [], []>} : vector<4x64xf32>, vector<4x64xf32>, vector<64x64xf32> -> vector<64x64xf32>
    %cst_27 = arith.constant dense<0xFF800000> : vector<64xf32>
    %29 = vector.multi_reduction <maximumf>, %28, %cst_27 [1] : vector<64x64xf32> to vector<64xf32>
    %30 = vector.shape_cast %29 : vector<64xf32> to vector<64x1xf32>
    %31 = vector.broadcast %30 : vector<64x1xf32> to vector<64x64xf32>
    %32 = arith.subf %28, %31 : vector<64x64xf32>
    %33 = math.exp %32 : vector<64x64xf32>
    %cst_28 = arith.constant dense<0.000000e+00> : vector<64xf32>
    %34 = vector.multi_reduction <add>, %33, %cst_28 [1] : vector<64x64xf32> to vector<64xf32>
    %35 = vector.shape_cast %34 : vector<64xf32> to vector<64x1xf32>
    %36 = tpu.reciprocal %35 {approx = true} : vector<64x1xf32> -> vector<64x1xf32>
    %37 = vector.broadcast %36 : vector<64x1xf32> to vector<64x64xf32>
    %38 = arith.mulf %33, %37 : vector<64x64xf32>
    %39 = arith.addf %25, %38 : vector<64x64xf32>
    %40 = vector.extract_strided_slice %20 {offsets = [0, 0], sizes = [8, 64], strides = [1, 1]} : vector<16x64xf32> to vector<8x64xf32>
    %cst_29 = arith.constant dense<0.000000e+00> : vector<8x64xf32>
    %41 = tpu.matmul %40, %38, %cst_29 {dimension_numbers = #tpu.dot_dimension_numbers<[1], [1], [0], [0], [0, 0, 1, 0], [], []>} : vector<8x64xf32>, vector<64x64xf32>, vector<8x64xf32> -> vector<8x64xf32>
    %42 = arith.addf %24, %41 : vector<8x64xf32>
    %43 = vector.extract_strided_slice %10 {offsets = [4, 0], sizes = [4, 64], strides = [1, 1]} : vector<8x64xf32> to vector<4x64xf32>
    %44 = vector.extract_strided_slice %15 {offsets = [4, 0], sizes = [4, 64], strides = [1, 1]} : vector<8x64xf32> to vector<4x64xf32>
    %cst_30 = arith.constant dense<0.000000e+00> : vector<64x64xf32>
    %45 = tpu.matmul %43, %44, %cst_30 {dimension_numbers = #tpu.dot_dimension_numbers<[0], [0], [1], [1], [0, 1, 1, 1], [], []>} : vector<4x64xf32>, vector<4x64xf32>, vector<64x64xf32> -> vector<64x64xf32>
    %cst_31 = arith.constant dense<0xFF800000> : vector<64xf32>
    %46 = vector.multi_reduction <maximumf>, %45, %cst_31 [1] : vector<64x64xf32> to vector<64xf32>
    %47 = vector.shape_cast %46 : vector<64xf32> to vector<64x1xf32>
    %48 = vector.broadcast %47 : vector<64x1xf32> to vector<64x64xf32>
    %49 = arith.subf %45, %48 : vector<64x64xf32>
    %50 = math.exp %49 : vector<64x64xf32>
    %cst_32 = arith.constant dense<0.000000e+00> : vector<64xf32>
    %51 = vector.multi_reduction <add>, %50, %cst_32 [1] : vector<64x64xf32> to vector<64xf32>
    %52 = vector.shape_cast %51 : vector<64xf32> to vector<64x1xf32>
    %53 = tpu.reciprocal %52 {approx = true} : vector<64x1xf32> -> vector<64x1xf32>
    %54 = vector.broadcast %53 : vector<64x1xf32> to vector<64x64xf32>
    %55 = arith.mulf %50, %54 : vector<64x64xf32>
    %56 = arith.addf %39, %55 : vector<64x64xf32>
    %57 = vector.extract_strided_slice %20 {offsets = [8, 0], sizes = [8, 64], strides = [1, 1]} : vector<16x64xf32> to vector<8x64xf32>
    %cst_33 = arith.constant dense<0.000000e+00> : vector<8x64xf32>
    %58 = tpu.matmul %57, %55, %cst_33 {dimension_numbers = #tpu.dot_dimension_numbers<[1], [1], [0], [0], [0, 0, 1, 0], [], []>} : vector<8x64xf32>, vector<64x64xf32>, vector<8x64xf32> -> vector<8x64xf32>
    %59 = arith.addf %42, %58 : vector<8x64xf32>
    %c0_34 = arith.constant 0 : index
    %c0_35 = arith.constant 0 : index
    %c0_36 = arith.constant 0 : index
    %60 = vector.load %arg11[%c0_34, %c0_35, %c0_36] : memref<1x8x64xf32, #tpu.memory_space<vmem>>, vector<1x8x64xf32>
    %61 = vector.shape_cast %60 : vector<1x8x64xf32> to vector<8x64xf32>
    %62 = vector.shape_cast %59 : vector<8x64xf32> to vector<1x8x64xf32>
    tpu.vector_store %arg11[%c0_34, %c0_35, %c0_36], %62 {strides = array<i32>} : memref<1x8x64xf32, #tpu.memory_space<vmem>>, vector<1x8x64xf32>,
    %cst_37 = arith.constant 5.000000e-01 : f32
    %63 = vector.broadcast %cst_37 : f32 to vector<64x64xf32>
    %64 = arith.mulf %56, %63 : vector<64x64xf32>
    %c0_38 = arith.constant 0 : index
    %c0_39 = arith.constant 0 : index
    %c0_40 = arith.constant 0 : index
    %65 = vector.load %arg12[%c0_38, %c0_39, %c0_40] : memref<1x64x64xf32, #tpu.memory_space<vmem>>, vector<1x64x64xf32>
    %66 = vector.shape_cast %65 : vector<1x64x64xf32> to vector<64x64xf32>
    %67 = vector.shape_cast %64 : vector<64x64xf32> to vector<1x64x64xf32>
    tpu.vector_store %arg12[%c0_38, %c0_39, %c0_40], %67 {strides = array<i32>} : memref<1x64x64xf32, #tpu.memory_space<vmem>>, vector<1x64x64xf32>,
    return
  }
  func.func @transform_0(%arg0: i32) -> (i32, i32, i32) {
    %c0_i32 = arith.constant 0 : i32
    %c0_i32_0 = arith.constant 0 : i32
    %c0_i32_1 = arith.constant 0 : i32
    return %arg0, %c0_i32, %c0_i32_0 : i32, i32, i32
  }
  func.func @transform_1(%arg0: i32) -> (i32, i32, i32) {
    %c0_i32 = arith.constant 0 : i32
    %c0_i32_0 = arith.constant 0 : i32
    %c0_i32_1 = arith.constant 0 : i32
    return %arg0, %c0_i32, %c0_i32_0 : i32, i32, i32
  }
  func.func @transform_2(%arg0: i32) -> (i32, i32, i32) {
    %c0_i32 = arith.constant 0 : i32
    %c0_i32_0 = arith.constant 0 : i32
    %c0_i32_1 = arith.constant 0 : i32
    return %arg0, %c0_i32, %c0_i32_0 : i32, i32, i32
  }
  func.func @transform_3(%arg0: i32) -> (i32, i32) {
    %c0_i32 = arith.constant 0 : i32
    %c0_i32_0 = arith.constant 0 : i32
    %c0_i32_1 = arith.constant 0 : i32
    return %c0_i32, %c0_i32_0 : i32, i32
  }
  func.func @transform_4(%arg0: i32) -> (i32, i32) {
    %c0_i32 = arith.constant 0 : i32
    %c0_i32_0 = arith.constant 0 : i32
    %c0_i32_1 = arith.constant 0 : i32
    return %c0_i32, %c0_i32_0 : i32, i32
  }
  func.func @transform_5(%arg0: i32) -> (i32, i32) {
    %c0_i32 = arith.constant 0 : i32
    %c0_i32_0 = arith.constant 0 : i32
    %c0_i32_1 = arith.constant 0 : i32
    return %c0_i32, %c0_i32_0 : i32, i32
  }
  func.func @transform_6(%arg0: i32) -> (i32, i32) {
    %c0_i32 = arith.constant 0 : i32
    %c0_i32_0 = arith.constant 0 : i32
    %c0_i32_1 = arith.constant 0 : i32
    return %c0_i32, %c0_i32_0 : i32, i32
  }
  func.func @transform_7(%arg0: i32) -> (i32, i32) {
    %c0_i32 = arith.constant 0 : i32
    %c0_i32_0 = arith.constant 0 : i32
    %c0_i32_1 = arith.constant 0 : i32
    return %c0_i32, %c0_i32_0 : i32, i32
  }
  func.func @transform_8(%arg0: i32) -> (i32, i32) {
    %c0_i32 = arith.constant 0 : i32
    %c0_i32_0 = arith.constant 0 : i32
    %c0_i32_1 = arith.constant 0 : i32
    return %c0_i32, %c0_i32_0 : i32, i32
  }
  func.func @transform_9(%arg0: i32) -> (i32, i32) {
    %c0_i32 = arith.constant 0 : i32
    %c0_i32_0 = arith.constant 0 : i32
    %c0_i32_1 = arith.constant 0 : i32
    return %c0_i32, %c0_i32_0 : i32, i32
  }
  func.func @transform_10(%arg0: i32) -> (i32, i32, i32) {
    %c0_i32 = arith.constant 0 : i32
    %c0_i32_0 = arith.constant 0 : i32
    %c0_i32_1 = arith.constant 0 : i32
    return %arg0, %c0_i32, %c0_i32_0 : i32, i32, i32
  }
  func.func @transform_11(%arg0: i32) -> (i32, i32, i32) {
    %c0_i32 = arith.constant 0 : i32
    %c0_i32_0 = arith.constant 0 : i32
    %c0_i32_1 = arith.constant 0 : i32
    return %arg0, %c0_i32, %c0_i32_0 : i32, i32, i32
  }
}

module attributes {stable_mosaic.version = 11 : i64} {
  func.func @mlp_kernel(%arg0: i32, %arg1: memref<20x128xf32, #tpu.memory_space<vmem>>, %arg2: memref<16x20xf32, #tpu.memory_space<vmem>>, %arg3: memref<16x1xf32, #tpu.memory_space<vmem>>, %arg4: memref<8x16xf32, #tpu.memory_space<vmem>>, %arg5: memref<8x1xf32, #tpu.memory_space<vmem>>, %arg6: memref<8x128xf32, #tpu.memory_space<vmem>>) attributes {dimension_semantics = [#tpu.dimension_semantics<arbitrary>], iteration_bounds = array<i64: 1>, scalar_prefetch = 0 : i64, scratch_operands = 0 : i64, tpu.core_type = #tpu.core_type<tc>, window_params = [{pipeline_mode = #tpu.pipeline_mode<synchronous>, transform_indices = @transform_0, window_bounds = array<i64: 20, 128>}, {pipeline_mode = #tpu.pipeline_mode<synchronous>, transform_indices = @transform_1, window_bounds = array<i64: 16, 20>}, {pipeline_mode = #tpu.pipeline_mode<synchronous>, transform_indices = @transform_2, window_bounds = array<i64: 16, 1>}, {pipeline_mode = #tpu.pipeline_mode<synchronous>, transform_indices = @transform_3, window_bounds = array<i64: 8, 16>}, {pipeline_mode = #tpu.pipeline_mode<synchronous>, transform_indices = @transform_4, window_bounds = array<i64: 8, 1>}, {pipeline_mode = #tpu.pipeline_mode<synchronous>, transform_indices = @transform_5, window_bounds = array<i64: 8, 128>}]} {
    %c0 = arith.constant 0 : index
    %c0_0 = arith.constant 0 : index
    %0 = vector.load %arg1[%c0, %c0_0] : memref<20x128xf32, #tpu.memory_space<vmem>>, vector<20x128xf32>
    %c0_1 = arith.constant 0 : index
    %c0_2 = arith.constant 0 : index
    %1 = vector.load %arg2[%c0_1, %c0_2] : memref<16x20xf32, #tpu.memory_space<vmem>>, vector<16x20xf32>
    %cst = arith.constant dense<0.000000e+00> : vector<16x128xf32>
    %2 = tpu.matmul %1, %0, %cst {dimension_numbers = #tpu.dot_dimension_numbers<[1], [0], [0], [1], [0, 0, 1, 1], [], []>} : vector<16x20xf32>, vector<20x128xf32>, vector<16x128xf32> -> vector<16x128xf32>
    %c0_3 = arith.constant 0 : index
    %c0_4 = arith.constant 0 : index
    %3 = vector.load %arg3[%c0_3, %c0_4] : memref<16x1xf32, #tpu.memory_space<vmem>>, vector<16x1xf32>
    %4 = vector.broadcast %3 : vector<16x1xf32> to vector<16x128xf32>
    %5 = arith.addf %2, %4 : vector<16x128xf32>
    %cst_5 = arith.constant 0.000000e+00 : f32
    %6 = vector.broadcast %cst_5 : f32 to vector<16x128xf32>
    %7 = arith.maximumf %5, %6 : vector<16x128xf32>
    %c0_6 = arith.constant 0 : index
    %c0_7 = arith.constant 0 : index
    %8 = vector.load %arg4[%c0_6, %c0_7] : memref<8x16xf32, #tpu.memory_space<vmem>>, vector<8x16xf32>
    %cst_8 = arith.constant dense<0.000000e+00> : vector<8x128xf32>
    %9 = tpu.matmul %8, %7, %cst_8 {dimension_numbers = #tpu.dot_dimension_numbers<[1], [0], [0], [1], [0, 0, 1, 1], [], []>} : vector<8x16xf32>, vector<16x128xf32>, vector<8x128xf32> -> vector<8x128xf32>
    %c0_9 = arith.constant 0 : index
    %c0_10 = arith.constant 0 : index
    %10 = vector.load %arg5[%c0_9, %c0_10] : memref<8x1xf32, #tpu.memory_space<vmem>>, vector<8x1xf32>
    %11 = vector.broadcast %10 : vector<8x1xf32> to vector<8x128xf32>
    %12 = arith.addf %9, %11 : vector<8x128xf32>
    %cst_11 = arith.constant 0.000000e+00 : f32
    %13 = vector.broadcast %cst_11 : f32 to vector<8x128xf32>
    %14 = arith.maximumf %12, %13 : vector<8x128xf32>
    %c0_12 = arith.constant 0 : index
    %c0_13 = arith.constant 0 : index
    %15 = vector.load %arg6[%c0_12, %c0_13] : memref<8x128xf32, #tpu.memory_space<vmem>>, vector<8x128xf32>
    tpu.vector_store %arg6[%c0_12, %c0_13], %14 {strides = array<i32>} : memref<8x128xf32, #tpu.memory_space<vmem>>, vector<8x128xf32>,
    return
  }
  func.func @transform_0(%arg0: i32) -> (i32, i32) {
    %c0_i32 = arith.constant 0 : i32
    %c0_i32_0 = arith.constant 0 : i32
    %c0_i32_1 = arith.constant 0 : i32
    return %c0_i32, %c0_i32_0 : i32, i32
  }
  func.func @transform_1(%arg0: i32) -> (i32, i32) {
    %c0_i32 = arith.constant 0 : i32
    %c0_i32_0 = arith.constant 0 : i32
    %c0_i32_1 = arith.constant 0 : i32
    return %c0_i32, %c0_i32_0 : i32, i32
  }
  func.func @transform_2(%arg0: i32) -> (i32, i32) {
    %c0_i32 = arith.constant 0 : i32
    %c0_i32_0 = arith.constant 0 : i32
    %c0_i32_1 = arith.constant 0 : i32
    return %c0_i32, %c0_i32_0 : i32, i32
  }
  func.func @transform_3(%arg0: i32) -> (i32, i32) {
    %c0_i32 = arith.constant 0 : i32
    %c0_i32_0 = arith.constant 0 : i32
    %c0_i32_1 = arith.constant 0 : i32
    return %c0_i32, %c0_i32_0 : i32, i32
  }
  func.func @transform_4(%arg0: i32) -> (i32, i32) {
    %c0_i32 = arith.constant 0 : i32
    %c0_i32_0 = arith.constant 0 : i32
    %c0_i32_1 = arith.constant 0 : i32
    return %c0_i32, %c0_i32_0 : i32, i32
  }
  func.func @transform_5(%arg0: i32) -> (i32, i32) {
    %c0_i32 = arith.constant 0 : i32
    %c0_i32_0 = arith.constant 0 : i32
    %c0_i32_1 = arith.constant 0 : i32
    return %c0_i32, %c0_i32_0 : i32, i32
  }
}

module attributes {stable_mosaic.version = 11 : i64} {
  func.func @mlp_kernel(%arg0: i32, %arg1: memref<12x128xf32, #tpu.memory_space<vmem>>, %arg2: memref<16x12xf32, #tpu.memory_space<vmem>>, %arg3: memref<16x1xf32, #tpu.memory_space<vmem>>, %arg4: memref<8x16xf32, #tpu.memory_space<vmem>>, %arg5: memref<8x1xf32, #tpu.memory_space<vmem>>, %arg6: memref<8x128xf32, #tpu.memory_space<vmem>>) attributes {dimension_semantics = [#tpu.dimension_semantics<arbitrary>], iteration_bounds = array<i64: 1>, scalar_prefetch = 0 : i64, scratch_operands = 0 : i64, tpu.core_type = #tpu.core_type<tc>, window_params = [{pipeline_mode = #tpu.pipeline_mode<synchronous>, transform_indices = @transform_0, window_bounds = array<i64: 12, 128>}, {pipeline_mode = #tpu.pipeline_mode<synchronous>, transform_indices = @transform_1, window_bounds = array<i64: 16, 12>}, {pipeline_mode = #tpu.pipeline_mode<synchronous>, transform_indices = @transform_2, window_bounds = array<i64: 16, 1>}, {pipeline_mode = #tpu.pipeline_mode<synchronous>, transform_indices = @transform_3, window_bounds = array<i64: 8, 16>}, {pipeline_mode = #tpu.pipeline_mode<synchronous>, transform_indices = @transform_4, window_bounds = array<i64: 8, 1>}, {pipeline_mode = #tpu.pipeline_mode<synchronous>, transform_indices = @transform_5, window_bounds = array<i64: 8, 128>}]} {
    %c0 = arith.constant 0 : index
    %c0_0 = arith.constant 0 : index
    %0 = vector.load %arg1[%c0, %c0_0] : memref<12x128xf32, #tpu.memory_space<vmem>>, vector<12x128xf32>
    %c0_1 = arith.constant 0 : index
    %c0_2 = arith.constant 0 : index
    %1 = vector.load %arg2[%c0_1, %c0_2] : memref<16x12xf32, #tpu.memory_space<vmem>>, vector<16x12xf32>
    %cst = arith.constant dense<0.000000e+00> : vector<16x128xf32>
    %2 = tpu.matmul %1, %0, %cst {dimension_numbers = #tpu.dot_dimension_numbers<[1], [0], [0], [1], [0, 0, 1, 1], [], []>} : vector<16x12xf32>, vector<12x128xf32>, vector<16x128xf32> -> vector<16x128xf32>
    %c0_3 = arith.constant 0 : index
    %c0_4 = arith.constant 0 : index
    %3 = vector.load %arg3[%c0_3, %c0_4] : memref<16x1xf32, #tpu.memory_space<vmem>>, vector<16x1xf32>
    %4 = vector.broadcast %3 : vector<16x1xf32> to vector<16x128xf32>
    %5 = arith.addf %2, %4 : vector<16x128xf32>
    %cst_5 = arith.constant 0.000000e+00 : f32
    %6 = vector.broadcast %cst_5 : f32 to vector<16x128xf32>
    %7 = arith.maximumf %5, %6 : vector<16x128xf32>
    %c0_6 = arith.constant 0 : index
    %c0_7 = arith.constant 0 : index
    %8 = vector.load %arg4[%c0_6, %c0_7] : memref<8x16xf32, #tpu.memory_space<vmem>>, vector<8x16xf32>
    %cst_8 = arith.constant dense<0.000000e+00> : vector<8x128xf32>
    %9 = tpu.matmul %8, %7, %cst_8 {dimension_numbers = #tpu.dot_dimension_numbers<[1], [0], [0], [1], [0, 0, 1, 1], [], []>} : vector<8x16xf32>, vector<16x128xf32>, vector<8x128xf32> -> vector<8x128xf32>
    %c0_9 = arith.constant 0 : index
    %c0_10 = arith.constant 0 : index
    %10 = vector.load %arg5[%c0_9, %c0_10] : memref<8x1xf32, #tpu.memory_space<vmem>>, vector<8x1xf32>
    %11 = vector.broadcast %10 : vector<8x1xf32> to vector<8x128xf32>
    %12 = arith.addf %9, %11 : vector<8x128xf32>
    %cst_11 = arith.constant 0.000000e+00 : f32
    %13 = vector.broadcast %cst_11 : f32 to vector<8x128xf32>
    %14 = arith.maximumf %12, %13 : vector<8x128xf32>
    %c0_12 = arith.constant 0 : index
    %c0_13 = arith.constant 0 : index
    %15 = vector.load %arg6[%c0_12, %c0_13] : memref<8x128xf32, #tpu.memory_space<vmem>>, vector<8x128xf32>
    tpu.vector_store %arg6[%c0_12, %c0_13], %14 {strides = array<i32>} : memref<8x128xf32, #tpu.memory_space<vmem>>, vector<8x128xf32>,
    return
  }
  func.func @transform_0(%arg0: i32) -> (i32, i32) {
    %c0_i32 = arith.constant 0 : i32
    %c0_i32_0 = arith.constant 0 : i32
    %c0_i32_1 = arith.constant 0 : i32
    return %c0_i32, %c0_i32_0 : i32, i32
  }
  func.func @transform_1(%arg0: i32) -> (i32, i32) {
    %c0_i32 = arith.constant 0 : i32
    %c0_i32_0 = arith.constant 0 : i32
    %c0_i32_1 = arith.constant 0 : i32
    return %c0_i32, %c0_i32_0 : i32, i32
  }
  func.func @transform_2(%arg0: i32) -> (i32, i32) {
    %c0_i32 = arith.constant 0 : i32
    %c0_i32_0 = arith.constant 0 : i32
    %c0_i32_1 = arith.constant 0 : i32
    return %c0_i32, %c0_i32_0 : i32, i32
  }
  func.func @transform_3(%arg0: i32) -> (i32, i32) {
    %c0_i32 = arith.constant 0 : i32
    %c0_i32_0 = arith.constant 0 : i32
    %c0_i32_1 = arith.constant 0 : i32
    return %c0_i32, %c0_i32_0 : i32, i32
  }
  func.func @transform_4(%arg0: i32) -> (i32, i32) {
    %c0_i32 = arith.constant 0 : i32
    %c0_i32_0 = arith.constant 0 : i32
    %c0_i32_1 = arith.constant 0 : i32
    return %c0_i32, %c0_i32_0 : i32, i32
  }
  func.func @transform_5(%arg0: i32) -> (i32, i32) {
    %c0_i32 = arith.constant 0 : i32
    %c0_i32_0 = arith.constant 0 : i32
    %c0_i32_1 = arith.constant 0 : i32
    return %c0_i32, %c0_i32_0 : i32, i32
  }
}

module attributes {stable_mosaic.version = 11 : i64} {
  func.func @mha_kernel(%arg0: i32, %arg1: memref<1x8x64xf32, #tpu.memory_space<vmem>>, %arg2: memref<1x8x64xf32, #tpu.memory_space<vmem>>, %arg3: memref<1x8x64xf32, #tpu.memory_space<vmem>>, %arg4: memref<8x8xf32, #tpu.memory_space<vmem>>, %arg5: memref<8x1xf32, #tpu.memory_space<vmem>>, %arg6: memref<8x8xf32, #tpu.memory_space<vmem>>, %arg7: memref<8x1xf32, #tpu.memory_space<vmem>>, %arg8: memref<16x8xf32, #tpu.memory_space<vmem>>, %arg9: memref<16x1xf32, #tpu.memory_space<vmem>>, %arg10: memref<8x1xf32, #tpu.memory_space<vmem>>, %arg11: memref<1x8x64xf32, #tpu.memory_space<vmem>>, %arg12: memref<1x64x64xf32, #tpu.memory_space<vmem>>) attributes {dimension_semantics = [#tpu.dimension_semantics<parallel>], iteration_bounds = array<i64: 2>, scalar_prefetch = 0 : i64, scratch_operands = 0 : i64, tpu.core_type = #tpu.core_type<tc>, window_params = [{transform_indices = @transform_0, window_bounds = array<i64: 1, 8, 64>}, {transform_indices = @transform_1, window_bounds = array<i64: 1, 8, 64>}, {transform_indices = @transform_2, window_bounds = array<i64: 1, 8, 64>}, {pipeline_mode = #tpu.pipeline_mode<synchronous>, transform_indices = @transform_3, window_bounds = array<i64: 8, 8>}, {pipeline_mode = #tpu.pipeline_mode<synchronous>, transform_indices = @transform_4, window_bounds = array<i64: 8, 1>}, {pipeline_mode = #tpu.pipeline_mode<synchronous>, transform_indices = @transform_5, window_bounds = array<i64: 8, 8>}, {pipeline_mode = #tpu.pipeline_mode<synchronous>, transform_indices = @transform_6, window_bounds = array<i64: 8, 1>}, {pipeline_mode = #tpu.pipeline_mode<synchronous>, transform_indices = @transform_7, window_bounds = array<i64: 16, 8>}, {pipeline_mode = #tpu.pipeline_mode<synchronous>, transform_indices = @transform_8, window_bounds = array<i64: 16, 1>}, {pipeline_mode = #tpu.pipeline_mode<synchronous>, transform_indices = @transform_9, window_bounds = array<i64: 8, 1>}, {transform_indices = @transform_10, window_bounds = array<i64: 1, 8, 64>}, {transform_indices = @transform_11, window_bounds = array<i64: 1, 64, 64>}]} {
    %c0 = arith.constant 0 : index
    %c0_0 = arith.constant 0 : index
    %c0_1 = arith.constant 0 : index
    %0 = vector.load %arg1[%c0, %c0_0, %c0_1] : memref<1x8x64xf32, #tpu.memory_space<vmem>>, vector<1x8x64xf32>
    %1 = vector.shape_cast %0 : vector<1x8x64xf32> to vector<8x64xf32>
    %c0_2 = arith.constant 0 : index
    %c0_3 = arith.constant 0 : index
    %c0_4 = arith.constant 0 : index
    %2 = vector.load %arg2[%c0_2, %c0_3, %c0_4] : memref<1x8x64xf32, #tpu.memory_space<vmem>>, vector<1x8x64xf32>
    %3 = vector.shape_cast %2 : vector<1x8x64xf32> to vector<8x64xf32>
    %c0_5 = arith.constant 0 : index
    %c0_6 = arith.constant 0 : index
    %c0_7 = arith.constant 0 : index
    %4 = vector.load %arg3[%c0_5, %c0_6, %c0_7] : memref<1x8x64xf32, #tpu.memory_space<vmem>>, vector<1x8x64xf32>
    %5 = vector.shape_cast %4 : vector<1x8x64xf32> to vector<8x64xf32>
    %c0_8 = arith.constant 0 : index
    %c0_9 = arith.constant 0 : index
    %6 = vector.load %arg4[%c0_8, %c0_9] : memref<8x8xf32, #tpu.memory_space<vmem>>, vector<8x8xf32>
    %cst = arith.constant dense<0.000000e+00> : vector<8x64xf32>
    %7 = tpu.matmul %6, %1, %cst {dimension_numbers = #tpu.dot_dimension_numbers<[1], [0], [0], [1], [0, 0, 1, 1], [], []>} : vector<8x8xf32>, vector<8x64xf32>, vector<8x64xf32> -> vector<8x64xf32>
    %c0_10 = arith.constant 0 : index
    %c0_11 = arith.constant 0 : index
    %8 = vector.load %arg5[%c0_10, %c0_11] : memref<8x1xf32, #tpu.memory_space<vmem>>, vector<8x1xf32>
    %9 = vector.broadcast %8 : vector<8x1xf32> to vector<8x64xf32>
    %10 = arith.addf %7, %9 : vector<8x64xf32>
    %c0_12 = arith.constant 0 : index
    %c0_13 = arith.constant 0 : index
    %11 = vector.load %arg6[%c0_12, %c0_13] : memref<8x8xf32, #tpu.memory_space<vmem>>, vector<8x8xf32>
    %cst_14 = arith.constant dense<0.000000e+00> : vector<8x64xf32>
    %12 = tpu.matmul %11, %3, %cst_14 {dimension_numbers = #tpu.dot_dimension_numbers<[1], [0], [0], [1], [0, 0, 1, 1], [], []>} : vector<8x8xf32>, vector<8x64xf32>, vector<8x64xf32> -> vector<8x64xf32>
    %c0_15 = arith.constant 0 : index
    %c0_16 = arith.constant 0 : index
    %13 = vector.load %arg7[%c0_15, %c0_16] : memref<8x1xf32, #tpu.memory_space<vmem>>, vector<8x1xf32>
    %14 = vector.broadcast %13 : vector<8x1xf32> to vector<8x64xf32>
    %15 = arith.addf %12, %14 : vector<8x64xf32>
    %c0_17 = arith.constant 0 : index
    %c0_18 = arith.constant 0 : index
    %16 = vector.load %arg8[%c0_17, %c0_18] : memref<16x8xf32, #tpu.memory_space<vmem>>, vector<16x8xf32>
    %cst_19 = arith.constant dense<0.000000e+00> : vector<16x64xf32>
    %17 = tpu.matmul %16, %5, %cst_19 {dimension_numbers = #tpu.dot_dimension_numbers<[1], [0], [0], [1], [0, 0, 1, 1], [], []>} : vector<16x8xf32>, vector<8x64xf32>, vector<16x64xf32> -> vector<16x64xf32>
    %c0_20 = arith.constant 0 : index
    %c0_21 = arith.constant 0 : index
    %18 = vector.load %arg9[%c0_20, %c0_21] : memref<16x1xf32, #tpu.memory_space<vmem>>, vector<16x1xf32>
    %19 = vector.broadcast %18 : vector<16x1xf32> to vector<16x64xf32>
    %20 = arith.addf %17, %19 : vector<16x64xf32>
    %cst_22 = arith.constant 0.000000e+00 : f32
    %21 = vector.broadcast %cst_22 : f32 to vector<8x64xf32>
    %c0_23 = arith.constant 0 : index
    %c0_24 = arith.constant 0 : index
    %22 = vector.load %arg10[%c0_23, %c0_24] : memref<8x1xf32, #tpu.memory_space<vmem>>, vector<8x1xf32>
    %23 = vector.broadcast %22 : vector<8x1xf32> to vector<8x64xf32>
    %24 = arith.addf %21, %23 : vector<8x64xf32>
    %cst_25 = arith.constant 0.000000e+00 : f32
    %25 = vector.broadcast %cst_25 : f32 to vector<64x64xf32>
    %26 = vector.extract_strided_slice %10 {offsets = [0, 0], sizes = [4, 64], strides = [1, 1]} : vector<8x64xf32> to vector<4x64xf32>
    %27 = vector.extract_strided_slice %15 {offsets = [0, 0], sizes = [4, 64], strides = [1, 1]} : vector<8x64xf32> to vector<4x64xf32>
    %cst_26 = arith.constant dense<0.000000e+00> : vector<64x64xf32>
    %28 = tpu.matmul %26, %27, %cst_26 {dimension_numbers = #tpu.dot_dimension_numbers<[0], [0], [1], [1], [0, 1, 1, 1], [], []>} : vector<4x64xf32>, vector<4x64xf32>, vector<64x64xf32> -> vector<64x64xf32>
    %cst_27 = arith.constant dense<0xFF800000> : vector<64xf32>
    %29 = vector.multi_reduction <maximumf>, %28, %cst_27 [1] : vector<64x64xf32> to vector<64xf32>
    %30 = vector.shape_cast %29 : vector<64xf32> to vector<64x1xf32>
    %31 = vector.broadcast %30 : vector<64x1xf32> to vector<64x64xf32>
    %32 = arith.subf %28, %31 : vector<64x64xf32>
    %33 = math.exp %32 : vector<64x64xf32>
    %cst_28 = arith.constant dense<0.000000e+00> : vector<64xf32>
    %34 = vector.multi_reduction <add>, %33, %cst_28 [1] : vector<64x64xf32> to vector<64xf32>
    %35 = vector.shape_cast %34 : vector<64xf32> to vector<64x1xf32>
    %36 = tpu.reciprocal %35 {approx = true} : vector<64x1xf32> -> vector<64x1xf32>
    %37 = vector.broadcast %36 : vector<64x1xf32> to vector<64x64xf32>
    %38 = arith.mulf %33, %37 : vector<64x64xf32>
    %39 = arith.addf %25, %38 : vector<64x64xf32>
    %40 = vector.extract_strided_slice %20 {offsets = [0, 0], sizes = [8, 64], strides = [1, 1]} : vector<16x64xf32> to vector<8x64xf32>
    %cst_29 = arith.constant dense<0.000000e+00> : vector<8x64xf32>
    %41 = tpu.matmul %40, %38, %cst_29 {dimension_numbers = #tpu.dot_dimension_numbers<[1], [1], [0], [0], [0, 0, 1, 0], [], []>} : vector<8x64xf32>, vector<64x64xf32>, vector<8x64xf32> -> vector<8x64xf32>
    %42 = arith.addf %24, %41 : vector<8x64xf32>
    %43 = vector.extract_strided_slice %10 {offsets = [4, 0], sizes = [4, 64], strides = [1, 1]} : vector<8x64xf32> to vector<4x64xf32>
    %44 = vector.extract_strided_slice %15 {offsets = [4, 0], sizes = [4, 64], strides = [1, 1]} : vector<8x64xf32> to vector<4x64xf32>
    %cst_30 = arith.constant dense<0.000000e+00> : vector<64x64xf32>
    %45 = tpu.matmul %43, %44, %cst_30 {dimension_numbers = #tpu.dot_dimension_numbers<[0], [0], [1], [1], [0, 1, 1, 1], [], []>} : vector<4x64xf32>, vector<4x64xf32>, vector<64x64xf32> -> vector<64x64xf32>
    %cst_31 = arith.constant dense<0xFF800000> : vector<64xf32>
    %46 = vector.multi_reduction <maximumf>, %45, %cst_31 [1] : vector<64x64xf32> to vector<64xf32>
    %47 = vector.shape_cast %46 : vector<64xf32> to vector<64x1xf32>
    %48 = vector.broadcast %47 : vector<64x1xf32> to vector<64x64xf32>
    %49 = arith.subf %45, %48 : vector<64x64xf32>
    %50 = math.exp %49 : vector<64x64xf32>
    %cst_32 = arith.constant dense<0.000000e+00> : vector<64xf32>
    %51 = vector.multi_reduction <add>, %50, %cst_32 [1] : vector<64x64xf32> to vector<64xf32>
    %52 = vector.shape_cast %51 : vector<64xf32> to vector<64x1xf32>
    %53 = tpu.reciprocal %52 {approx = true} : vector<64x1xf32> -> vector<64x1xf32>
    %54 = vector.broadcast %53 : vector<64x1xf32> to vector<64x64xf32>
    %55 = arith.mulf %50, %54 : vector<64x64xf32>
    %56 = arith.addf %39, %55 : vector<64x64xf32>
    %57 = vector.extract_strided_slice %20 {offsets = [8, 0], sizes = [8, 64], strides = [1, 1]} : vector<16x64xf32> to vector<8x64xf32>
    %cst_33 = arith.constant dense<0.000000e+00> : vector<8x64xf32>
    %58 = tpu.matmul %57, %55, %cst_33 {dimension_numbers = #tpu.dot_dimension_numbers<[1], [1], [0], [0], [0, 0, 1, 0], [], []>} : vector<8x64xf32>, vector<64x64xf32>, vector<8x64xf32> -> vector<8x64xf32>
    %59 = arith.addf %42, %58 : vector<8x64xf32>
    %c0_34 = arith.constant 0 : index
    %c0_35 = arith.constant 0 : index
    %c0_36 = arith.constant 0 : index
    %60 = vector.load %arg11[%c0_34, %c0_35, %c0_36] : memref<1x8x64xf32, #tpu.memory_space<vmem>>, vector<1x8x64xf32>
    %61 = vector.shape_cast %60 : vector<1x8x64xf32> to vector<8x64xf32>
    %62 = vector.shape_cast %59 : vector<8x64xf32> to vector<1x8x64xf32>
    tpu.vector_store %arg11[%c0_34, %c0_35, %c0_36], %62 {strides = array<i32>} : memref<1x8x64xf32, #tpu.memory_space<vmem>>, vector<1x8x64xf32>,
    %cst_37 = arith.constant 5.000000e-01 : f32
    %63 = vector.broadcast %cst_37 : f32 to vector<64x64xf32>
    %64 = arith.mulf %56, %63 : vector<64x64xf32>
    %c0_38 = arith.constant 0 : index
    %c0_39 = arith.constant 0 : index
    %c0_40 = arith.constant 0 : index
    %65 = vector.load %arg12[%c0_38, %c0_39, %c0_40] : memref<1x64x64xf32, #tpu.memory_space<vmem>>, vector<1x64x64xf32>
    %66 = vector.shape_cast %65 : vector<1x64x64xf32> to vector<64x64xf32>
    %67 = vector.shape_cast %64 : vector<64x64xf32> to vector<1x64x64xf32>
    tpu.vector_store %arg12[%c0_38, %c0_39, %c0_40], %67 {strides = array<i32>} : memref<1x64x64xf32, #tpu.memory_space<vmem>>, vector<1x64x64xf32>,
    return
  }
  func.func @transform_0(%arg0: i32) -> (i32, i32, i32) {
    %c0_i32 = arith.constant 0 : i32
    %c0_i32_0 = arith.constant 0 : i32
    %c0_i32_1 = arith.constant 0 : i32
    return %arg0, %c0_i32, %c0_i32_0 : i32, i32, i32
  }
  func.func @transform_1(%arg0: i32) -> (i32, i32, i32) {
    %c0_i32 = arith.constant 0 : i32
    %c0_i32_0 = arith.constant 0 : i32
    %c0_i32_1 = arith.constant 0 : i32
    return %arg0, %c0_i32, %c0_i32_0 : i32, i32, i32
  }
  func.func @transform_2(%arg0: i32) -> (i32, i32, i32) {
    %c0_i32 = arith.constant 0 : i32
    %c0_i32_0 = arith.constant 0 : i32
    %c0_i32_1 = arith.constant 0 : i32
    return %arg0, %c0_i32, %c0_i32_0 : i32, i32, i32
  }
  func.func @transform_3(%arg0: i32) -> (i32, i32) {
    %c0_i32 = arith.constant 0 : i32
    %c0_i32_0 = arith.constant 0 : i32
    %c0_i32_1 = arith.constant 0 : i32
    return %c0_i32, %c0_i32_0 : i32, i32
  }
  func.func @transform_4(%arg0: i32) -> (i32, i32) {
    %c0_i32 = arith.constant 0 : i32
    %c0_i32_0 = arith.constant 0 : i32
    %c0_i32_1 = arith.constant 0 : i32
    return %c0_i32, %c0_i32_0 : i32, i32
  }
  func.func @transform_5(%arg0: i32) -> (i32, i32) {
    %c0_i32 = arith.constant 0 : i32
    %c0_i32_0 = arith.constant 0 : i32
    %c0_i32_1 = arith.constant 0 : i32
    return %c0_i32, %c0_i32_0 : i32, i32
  }
  func.func @transform_6(%arg0: i32) -> (i32, i32) {
    %c0_i32 = arith.constant 0 : i32
    %c0_i32_0 = arith.constant 0 : i32
    %c0_i32_1 = arith.constant 0 : i32
    return %c0_i32, %c0_i32_0 : i32, i32
  }
  func.func @transform_7(%arg0: i32) -> (i32, i32) {
    %c0_i32 = arith.constant 0 : i32
    %c0_i32_0 = arith.constant 0 : i32
    %c0_i32_1 = arith.constant 0 : i32
    return %c0_i32, %c0_i32_0 : i32, i32
  }
  func.func @transform_8(%arg0: i32) -> (i32, i32) {
    %c0_i32 = arith.constant 0 : i32
    %c0_i32_0 = arith.constant 0 : i32
    %c0_i32_1 = arith.constant 0 : i32
    return %c0_i32, %c0_i32_0 : i32, i32
  }
  func.func @transform_9(%arg0: i32) -> (i32, i32) {
    %c0_i32 = arith.constant 0 : i32
    %c0_i32_0 = arith.constant 0 : i32
    %c0_i32_1 = arith.constant 0 : i32
    return %c0_i32, %c0_i32_0 : i32, i32
  }
  func.func @transform_10(%arg0: i32) -> (i32, i32, i32) {
    %c0_i32 = arith.constant 0 : i32
    %c0_i32_0 = arith.constant 0 : i32
    %c0_i32_1 = arith.constant 0 : i32
    return %arg0, %c0_i32, %c0_i32_0 : i32, i32, i32
  }
  func.func @transform_11(%arg0: i32) -> (i32, i32, i32) {
    %c0_i32 = arith.constant 0 : i32
    %c0_i32_0 = arith.constant 0 : i32
    %c0_i32_1 = arith.constant 0 : i32
    return %arg0, %c0_i32, %c0_i32_0 : i32, i32, i32
  }
}

module attributes {stable_mosaic.version = 11 : i64} {
  func.func @conv3x3_kernel(%arg0: i32, %arg1: memref<1x2x18x18xf32, #tpu.memory_space<vmem>>, %arg2: memref<36xf32, #tpu.memory_space<smem>>, %arg3: memref<2xf32, #tpu.memory_space<smem>>, %arg4: memref<1x2x16x16xf32, #tpu.memory_space<vmem>>) attributes {dimension_semantics = [#tpu.dimension_semantics<parallel>], iteration_bounds = array<i64: 2>, scalar_prefetch = 0 : i64, scratch_operands = 0 : i64, tpu.core_type = #tpu.core_type<tc>, window_params = [{transform_indices = @transform_0, window_bounds = array<i64: 1, 2, 18, 18>}, {transform_indices = @transform_1, window_bounds = array<i64: 36>}, {transform_indices = @transform_2, window_bounds = array<i64: 2>}, {transform_indices = @transform_3, window_bounds = array<i64: 1, 2, 16, 16>}]} {
    %c0 = arith.constant 0 : index
    %0 = memref.load %arg3[%c0] : memref<2xf32, #tpu.memory_space<smem>>
    %1 = vector.broadcast %0 : f32 to vector<18x18xf32>
    %c1 = arith.constant 1 : index
    %2 = memref.load %arg3[%c1] : memref<2xf32, #tpu.memory_space<smem>>
    %3 = vector.broadcast %2 : f32 to vector<18x18xf32>
    %c0_0 = arith.constant 0 : index
    %c0_1 = arith.constant 0 : index
    %c0_2 = arith.constant 0 : index
    %c0_3 = arith.constant 0 : index
    %4 = vector.load %arg1[%c0_0, %c0_1, %c0_2, %c0_3] : memref<1x2x18x18xf32, #tpu.memory_space<vmem>>, vector<1x1x18x18xf32>
    %5 = vector.shape_cast %4 : vector<1x1x18x18xf32> to vector<18x18xf32>
    %c0_4 = arith.constant 0 : index
    %6 = memref.load %arg2[%c0_4] : memref<36xf32, #tpu.memory_space<smem>>
    %7 = vector.broadcast %6 : f32 to vector<18x18xf32>
    %8 = arith.mulf %7, %5 : vector<18x18xf32>
    %9 = arith.addf %1, %8 : vector<18x18xf32>
    %c18 = arith.constant 18 : index
    %10 = memref.load %arg2[%c18] : memref<36xf32, #tpu.memory_space<smem>>
    %11 = vector.broadcast %10 : f32 to vector<18x18xf32>
    %12 = arith.mulf %11, %5 : vector<18x18xf32>
    %13 = arith.addf %3, %12 : vector<18x18xf32>
    %c17_i32 = arith.constant 17 : i32
    %14 = tpu.dynamic_rotate %5 by %c17_i32 dim 1 : vector<18x18xf32>, i32 -> vector<18x18xf32>
    %c1_5 = arith.constant 1 : index
    %15 = memref.load %arg2[%c1_5] : memref<36xf32, #tpu.memory_space<smem>>
    %16 = vector.broadcast %15 : f32 to vector<18x18xf32>
    %17 = arith.mulf %16, %14 : vector<18x18xf32>
    %18 = arith.addf %9, %17 : vector<18x18xf32>
    %c19 = arith.constant 19 : index
    %19 = memref.load %arg2[%c19] : memref<36xf32, #tpu.memory_space<smem>>
    %20 = vector.broadcast %19 : f32 to vector<18x18xf32>
    %21 = arith.mulf %20, %14 : vector<18x18xf32>
    %22 = arith.addf %13, %21 : vector<18x18xf32>
    %c16_i32 = arith.constant 16 : i32
    %23 = tpu.dynamic_rotate %5 by %c16_i32 dim 1 : vector<18x18xf32>, i32 -> vector<18x18xf32>
    %c2 = arith.constant 2 : index
    %24 = memref.load %arg2[%c2] : memref<36xf32, #tpu.memory_space<smem>>
    %25 = vector.broadcast %24 : f32 to vector<18x18xf32>
    %26 = arith.mulf %25, %23 : vector<18x18xf32>
    %27 = arith.addf %18, %26 : vector<18x18xf32>
    %c20 = arith.constant 20 : index
    %28 = memref.load %arg2[%c20] : memref<36xf32, #tpu.memory_space<smem>>
    %29 = vector.broadcast %28 : f32 to vector<18x18xf32>
    %30 = arith.mulf %29, %23 : vector<18x18xf32>
    %31 = arith.addf %22, %30 : vector<18x18xf32>
    %c17_i32_6 = arith.constant 17 : i32
    %32 = tpu.dynamic_rotate %5 by %c17_i32_6 dim 0 : vector<18x18xf32>, i32 -> vector<18x18xf32>
    %c3 = arith.constant 3 : index
    %33 = memref.load %arg2[%c3] : memref<36xf32, #tpu.memory_space<smem>>
    %34 = vector.broadcast %33 : f32 to vector<18x18xf32>
    %35 = arith.mulf %34, %32 : vector<18x18xf32>
    %36 = arith.addf %27, %35 : vector<18x18xf32>
    %c21 = arith.constant 21 : index
    %37 = memref.load %arg2[%c21] : memref<36xf32, #tpu.memory_space<smem>>
    %38 = vector.broadcast %37 : f32 to vector<18x18xf32>
    %39 = arith.mulf %38, %32 : vector<18x18xf32>
    %40 = arith.addf %31, %39 : vector<18x18xf32>
    %c17_i32_7 = arith.constant 17 : i32
    %41 = tpu.dynamic_rotate %32 by %c17_i32_7 dim 1 : vector<18x18xf32>, i32 -> vector<18x18xf32>
    %c4 = arith.constant 4 : index
    %42 = memref.load %arg2[%c4] : memref<36xf32, #tpu.memory_space<smem>>
    %43 = vector.broadcast %42 : f32 to vector<18x18xf32>
    %44 = arith.mulf %43, %41 : vector<18x18xf32>
    %45 = arith.addf %36, %44 : vector<18x18xf32>
    %c22 = arith.constant 22 : index
    %46 = memref.load %arg2[%c22] : memref<36xf32, #tpu.memory_space<smem>>
    %47 = vector.broadcast %46 : f32 to vector<18x18xf32>
    %48 = arith.mulf %47, %41 : vector<18x18xf32>
    %49 = arith.addf %40, %48 : vector<18x18xf32>
    %c16_i32_8 = arith.constant 16 : i32
    %50 = tpu.dynamic_rotate %32 by %c16_i32_8 dim 1 : vector<18x18xf32>, i32 -> vector<18x18xf32>
    %c5 = arith.constant 5 : index
    %51 = memref.load %arg2[%c5] : memref<36xf32, #tpu.memory_space<smem>>
    %52 = vector.broadcast %51 : f32 to vector<18x18xf32>
    %53 = arith.mulf %52, %50 : vector<18x18xf32>
    %54 = arith.addf %45, %53 : vector<18x18xf32>
    %c23 = arith.constant 23 : index
    %55 = memref.load %arg2[%c23] : memref<36xf32, #tpu.memory_space<smem>>
    %56 = vector.broadcast %55 : f32 to vector<18x18xf32>
    %57 = arith.mulf %56, %50 : vector<18x18xf32>
    %58 = arith.addf %49, %57 : vector<18x18xf32>
    %c16_i32_9 = arith.constant 16 : i32
    %59 = tpu.dynamic_rotate %5 by %c16_i32_9 dim 0 : vector<18x18xf32>, i32 -> vector<18x18xf32>
    %c6 = arith.constant 6 : index
    %60 = memref.load %arg2[%c6] : memref<36xf32, #tpu.memory_space<smem>>
    %61 = vector.broadcast %60 : f32 to vector<18x18xf32>
    %62 = arith.mulf %61, %59 : vector<18x18xf32>
    %63 = arith.addf %54, %62 : vector<18x18xf32>
    %c24 = arith.constant 24 : index
    %64 = memref.load %arg2[%c24] : memref<36xf32, #tpu.memory_space<smem>>
    %65 = vector.broadcast %64 : f32 to vector<18x18xf32>
    %66 = arith.mulf %65, %59 : vector<18x18xf32>
    %67 = arith.addf %58, %66 : vector<18x18xf32>
    %c17_i32_10 = arith.constant 17 : i32
    %68 = tpu.dynamic_rotate %59 by %c17_i32_10 dim 1 : vector<18x18xf32>, i32 -> vector<18x18xf32>
    %c7 = arith.constant 7 : index
    %69 = memref.load %arg2[%c7] : memref<36xf32, #tpu.memory_space<smem>>
    %70 = vector.broadcast %69 : f32 to vector<18x18xf32>
    %71 = arith.mulf %70, %68 : vector<18x18xf32>
    %72 = arith.addf %63, %71 : vector<18x18xf32>
    %c25 = arith.constant 25 : index
    %73 = memref.load %arg2[%c25] : memref<36xf32, #tpu.memory_space<smem>>
    %74 = vector.broadcast %73 : f32 to vector<18x18xf32>
    %75 = arith.mulf %74, %68 : vector<18x18xf32>
    %76 = arith.addf %67, %75 : vector<18x18xf32>
    %c16_i32_11 = arith.constant 16 : i32
    %77 = tpu.dynamic_rotate %59 by %c16_i32_11 dim 1 : vector<18x18xf32>, i32 -> vector<18x18xf32>
    %c8 = arith.constant 8 : index
    %78 = memref.load %arg2[%c8] : memref<36xf32, #tpu.memory_space<smem>>
    %79 = vector.broadcast %78 : f32 to vector<18x18xf32>
    %80 = arith.mulf %79, %77 : vector<18x18xf32>
    %81 = arith.addf %72, %80 : vector<18x18xf32>
    %c26 = arith.constant 26 : index
    %82 = memref.load %arg2[%c26] : memref<36xf32, #tpu.memory_space<smem>>
    %83 = vector.broadcast %82 : f32 to vector<18x18xf32>
    %84 = arith.mulf %83, %77 : vector<18x18xf32>
    %85 = arith.addf %76, %84 : vector<18x18xf32>
    %c0_12 = arith.constant 0 : index
    %c1_13 = arith.constant 1 : index
    %c0_14 = arith.constant 0 : index
    %c0_15 = arith.constant 0 : index
    %86 = vector.load %arg1[%c0_12, %c1_13, %c0_14, %c0_15] : memref<1x2x18x18xf32, #tpu.memory_space<vmem>>, vector<1x1x18x18xf32>
    %87 = vector.shape_cast %86 : vector<1x1x18x18xf32> to vector<18x18xf32>
    %c9 = arith.constant 9 : index
    %88 = memref.load %arg2[%c9] : memref<36xf32, #tpu.memory_space<smem>>
    %89 = vector.broadcast %88 : f32 to vector<18x18xf32>
    %90 = arith.mulf %89, %87 : vector<18x18xf32>
    %91 = arith.addf %81, %90 : vector<18x18xf32>
    %c27 = arith.constant 27 : index
    %92 = memref.load %arg2[%c27] : memref<36xf32, #tpu.memory_space<smem>>
    %93 = vector.broadcast %92 : f32 to vector<18x18xf32>
    %94 = arith.mulf %93, %87 : vector<18x18xf32>
    %95 = arith.addf %85, %94 : vector<18x18xf32>
    %c17_i32_16 = arith.constant 17 : i32
    %96 = tpu.dynamic_rotate %87 by %c17_i32_16 dim 1 : vector<18x18xf32>, i32 -> vector<18x18xf32>
    %c10 = arith.constant 10 : index
    %97 = memref.load %arg2[%c10] : memref<36xf32, #tpu.memory_space<smem>>
    %98 = vector.broadcast %97 : f32 to vector<18x18xf32>
    %99 = arith.mulf %98, %96 : vector<18x18xf32>
    %100 = arith.addf %91, %99 : vector<18x18xf32>
    %c28 = arith.constant 28 : index
    %101 = memref.load %arg2[%c28] : memref<36xf32, #tpu.memory_space<smem>>
    %102 = vector.broadcast %101 : f32 to vector<18x18xf32>
    %103 = arith.mulf %102, %96 : vector<18x18xf32>
    %104 = arith.addf %95, %103 : vector<18x18xf32>
    %c16_i32_17 = arith.constant 16 : i32
    %105 = tpu.dynamic_rotate %87 by %c16_i32_17 dim 1 : vector<18x18xf32>, i32 -> vector<18x18xf32>
    %c11 = arith.constant 11 : index
    %106 = memref.load %arg2[%c11] : memref<36xf32, #tpu.memory_space<smem>>
    %107 = vector.broadcast %106 : f32 to vector<18x18xf32>
    %108 = arith.mulf %107, %105 : vector<18x18xf32>
    %109 = arith.addf %100, %108 : vector<18x18xf32>
    %c29 = arith.constant 29 : index
    %110 = memref.load %arg2[%c29] : memref<36xf32, #tpu.memory_space<smem>>
    %111 = vector.broadcast %110 : f32 to vector<18x18xf32>
    %112 = arith.mulf %111, %105 : vector<18x18xf32>
    %113 = arith.addf %104, %112 : vector<18x18xf32>
    %c17_i32_18 = arith.constant 17 : i32
    %114 = tpu.dynamic_rotate %87 by %c17_i32_18 dim 0 : vector<18x18xf32>, i32 -> vector<18x18xf32>
    %c12 = arith.constant 12 : index
    %115 = memref.load %arg2[%c12] : memref<36xf32, #tpu.memory_space<smem>>
    %116 = vector.broadcast %115 : f32 to vector<18x18xf32>
    %117 = arith.mulf %116, %114 : vector<18x18xf32>
    %118 = arith.addf %109, %117 : vector<18x18xf32>
    %c30 = arith.constant 30 : index
    %119 = memref.load %arg2[%c30] : memref<36xf32, #tpu.memory_space<smem>>
    %120 = vector.broadcast %119 : f32 to vector<18x18xf32>
    %121 = arith.mulf %120, %114 : vector<18x18xf32>
    %122 = arith.addf %113, %121 : vector<18x18xf32>
    %c17_i32_19 = arith.constant 17 : i32
    %123 = tpu.dynamic_rotate %114 by %c17_i32_19 dim 1 : vector<18x18xf32>, i32 -> vector<18x18xf32>
    %c13 = arith.constant 13 : index
    %124 = memref.load %arg2[%c13] : memref<36xf32, #tpu.memory_space<smem>>
    %125 = vector.broadcast %124 : f32 to vector<18x18xf32>
    %126 = arith.mulf %125, %123 : vector<18x18xf32>
    %127 = arith.addf %118, %126 : vector<18x18xf32>
    %c31 = arith.constant 31 : index
    %128 = memref.load %arg2[%c31] : memref<36xf32, #tpu.memory_space<smem>>
    %129 = vector.broadcast %128 : f32 to vector<18x18xf32>
    %130 = arith.mulf %129, %123 : vector<18x18xf32>
    %131 = arith.addf %122, %130 : vector<18x18xf32>
    %c16_i32_20 = arith.constant 16 : i32
    %132 = tpu.dynamic_rotate %114 by %c16_i32_20 dim 1 : vector<18x18xf32>, i32 -> vector<18x18xf32>
    %c14 = arith.constant 14 : index
    %133 = memref.load %arg2[%c14] : memref<36xf32, #tpu.memory_space<smem>>
    %134 = vector.broadcast %133 : f32 to vector<18x18xf32>
    %135 = arith.mulf %134, %132 : vector<18x18xf32>
    %136 = arith.addf %127, %135 : vector<18x18xf32>
    %c32 = arith.constant 32 : index
    %137 = memref.load %arg2[%c32] : memref<36xf32, #tpu.memory_space<smem>>
    %138 = vector.broadcast %137 : f32 to vector<18x18xf32>
    %139 = arith.mulf %138, %132 : vector<18x18xf32>
    %140 = arith.addf %131, %139 : vector<18x18xf32>
    %c16_i32_21 = arith.constant 16 : i32
    %141 = tpu.dynamic_rotate %87 by %c16_i32_21 dim 0 : vector<18x18xf32>, i32 -> vector<18x18xf32>
    %c15 = arith.constant 15 : index
    %142 = memref.load %arg2[%c15] : memref<36xf32, #tpu.memory_space<smem>>
    %143 = vector.broadcast %142 : f32 to vector<18x18xf32>
    %144 = arith.mulf %143, %141 : vector<18x18xf32>
    %145 = arith.addf %136, %144 : vector<18x18xf32>
    %c33 = arith.constant 33 : index
    %146 = memref.load %arg2[%c33] : memref<36xf32, #tpu.memory_space<smem>>
    %147 = vector.broadcast %146 : f32 to vector<18x18xf32>
    %148 = arith.mulf %147, %141 : vector<18x18xf32>
    %149 = arith.addf %140, %148 : vector<18x18xf32>
    %c17_i32_22 = arith.constant 17 : i32
    %150 = tpu.dynamic_rotate %141 by %c17_i32_22 dim 1 : vector<18x18xf32>, i32 -> vector<18x18xf32>
    %c16 = arith.constant 16 : index
    %151 = memref.load %arg2[%c16] : memref<36xf32, #tpu.memory_space<smem>>
    %152 = vector.broadcast %151 : f32 to vector<18x18xf32>
    %153 = arith.mulf %152, %150 : vector<18x18xf32>
    %154 = arith.addf %145, %153 : vector<18x18xf32>
    %c34 = arith.constant 34 : index
    %155 = memref.load %arg2[%c34] : memref<36xf32, #tpu.memory_space<smem>>
    %156 = vector.broadcast %155 : f32 to vector<18x18xf32>
    %157 = arith.mulf %156, %150 : vector<18x18xf32>
    %158 = arith.addf %149, %157 : vector<18x18xf32>
    %c16_i32_23 = arith.constant 16 : i32
    %159 = tpu.dynamic_rotate %141 by %c16_i32_23 dim 1 : vector<18x18xf32>, i32 -> vector<18x18xf32>
    %c17 = arith.constant 17 : index
    %160 = memref.load %arg2[%c17] : memref<36xf32, #tpu.memory_space<smem>>
    %161 = vector.broadcast %160 : f32 to vector<18x18xf32>
    %162 = arith.mulf %161, %159 : vector<18x18xf32>
    %163 = arith.addf %154, %162 : vector<18x18xf32>
    %c35 = arith.constant 35 : index
    %164 = memref.load %arg2[%c35] : memref<36xf32, #tpu.memory_space<smem>>
    %165 = vector.broadcast %164 : f32 to vector<18x18xf32>
    %166 = arith.mulf %165, %159 : vector<18x18xf32>
    %167 = arith.addf %158, %166 : vector<18x18xf32>
    %168 = vector.extract_strided_slice %163 {offsets = [0, 0], sizes = [16, 16], strides = [1, 1]} : vector<18x18xf32> to vector<16x16xf32>
    %c0_24 = arith.constant 0 : index
    %c0_25 = arith.constant 0 : index
    %c0_26 = arith.constant 0 : index
    %c0_27 = arith.constant 0 : index
    %169 = vector.load %arg4[%c0_24, %c0_25, %c0_26, %c0_27] : memref<1x2x16x16xf32, #tpu.memory_space<vmem>>, vector<1x1x16x16xf32>
    %170 = vector.shape_cast %169 : vector<1x1x16x16xf32> to vector<16x16xf32>
    %171 = vector.shape_cast %168 : vector<16x16xf32> to vector<1x1x16x16xf32>
    tpu.vector_store %arg4[%c0_24, %c0_25, %c0_26, %c0_27], %171 {strides = array<i32>} : memref<1x2x16x16xf32, #tpu.memory_space<vmem>>, vector<1x1x16x16xf32>,
    %172 = vector.extract_strided_slice %167 {offsets = [0, 0], sizes = [16, 16], strides = [1, 1]} : vector<18x18xf32> to vector<16x16xf32>
    %c0_28 = arith.constant 0 : index
    %c1_29 = arith.constant 1 : index
    %c0_30 = arith.constant 0 : index
    %c0_31 = arith.constant 0 : index
    %173 = vector.load %arg4[%c0_28, %c1_29, %c0_30, %c0_31] : memref<1x2x16x16xf32, #tpu.memory_space<vmem>>, vector<1x1x16x16xf32>
    %174 = vector.shape_cast %173 : vector<1x1x16x16xf32> to vector<16x16xf32>
    %175 = vector.shape_cast %172 : vector<16x16xf32> to vector<1x1x16x16xf32>
    tpu.vector_store %arg4[%c0_28, %c1_29, %c0_30, %c0_31], %175 {strides = array<i32>} : memref<1x2x16x16xf32, #tpu.memory_space<vmem>>, vector<1x1x16x16xf32>,
    return
  }
  func.func @transform_0(%arg0: i32) -> (i32, i32, i32, i32) {
    %c0_i32 = arith.constant 0 : i32
    %c0_i32_0 = arith.constant 0 : i32
    %c0_i32_1 = arith.constant 0 : i32
    %c0_i32_2 = arith.constant 0 : i32
    return %arg0, %c0_i32, %c0_i32_0, %c0_i32_1 : i32, i32, i32, i32
  }
  func.func @transform_1(%arg0: i32) -> i32 {
    %c0_i32 = arith.constant 0 : i32
    %c0_i32_0 = arith.constant 0 : i32
    return %c0_i32 : i32
  }
  func.func @transform_2(%arg0: i32) -> i32 {
    %c0_i32 = arith.constant 0 : i32
    %c0_i32_0 = arith.constant 0 : i32
    return %c0_i32 : i32
  }
  func.func @transform_3(%arg0: i32) -> (i32, i32, i32, i32) {
    %c0_i32 = arith.constant 0 : i32
    %c0_i32_0 = arith.constant 0 : i32
    %c0_i32_1 = arith.constant 0 : i32
    %c0_i32_2 = arith.constant 0 : i32
    return %arg0, %c0_i32, %c0_i32_0, %c0_i32_1 : i32, i32, i32, i32
  }
}

module attributes {stable_mosaic.version = 11 : i64} {
  func.func @conv3x3_kernel(%arg0: i32, %arg1: memref<1x2x34x34xf32, #tpu.memory_space<vmem>>, %arg2: memref<36xf32, #tpu.memory_space<smem>>, %arg3: memref<2xf32, #tpu.memory_space<smem>>, %arg4: memref<1x2x32x32xf32, #tpu.memory_space<vmem>>) attributes {dimension_semantics = [#tpu.dimension_semantics<parallel>], iteration_bounds = array<i64: 2>, scalar_prefetch = 0 : i64, scratch_operands = 0 : i64, tpu.core_type = #tpu.core_type<tc>, window_params = [{transform_indices = @transform_0, window_bounds = array<i64: 1, 2, 34, 34>}, {transform_indices = @transform_1, window_bounds = array<i64: 36>}, {transform_indices = @transform_2, window_bounds = array<i64: 2>}, {transform_indices = @transform_3, window_bounds = array<i64: 1, 2, 32, 32>}]} {
    %c0 = arith.constant 0 : index
    %0 = memref.load %arg3[%c0] : memref<2xf32, #tpu.memory_space<smem>>
    %1 = vector.broadcast %0 : f32 to vector<34x34xf32>
    %c1 = arith.constant 1 : index
    %2 = memref.load %arg3[%c1] : memref<2xf32, #tpu.memory_space<smem>>
    %3 = vector.broadcast %2 : f32 to vector<34x34xf32>
    %c0_0 = arith.constant 0 : index
    %c0_1 = arith.constant 0 : index
    %c0_2 = arith.constant 0 : index
    %c0_3 = arith.constant 0 : index
    %4 = vector.load %arg1[%c0_0, %c0_1, %c0_2, %c0_3] : memref<1x2x34x34xf32, #tpu.memory_space<vmem>>, vector<1x1x34x34xf32>
    %5 = vector.shape_cast %4 : vector<1x1x34x34xf32> to vector<34x34xf32>
    %c0_4 = arith.constant 0 : index
    %6 = memref.load %arg2[%c0_4] : memref<36xf32, #tpu.memory_space<smem>>
    %7 = vector.broadcast %6 : f32 to vector<34x34xf32>
    %8 = arith.mulf %7, %5 : vector<34x34xf32>
    %9 = arith.addf %1, %8 : vector<34x34xf32>
    %c18 = arith.constant 18 : index
    %10 = memref.load %arg2[%c18] : memref<36xf32, #tpu.memory_space<smem>>
    %11 = vector.broadcast %10 : f32 to vector<34x34xf32>
    %12 = arith.mulf %11, %5 : vector<34x34xf32>
    %13 = arith.addf %3, %12 : vector<34x34xf32>
    %c33_i32 = arith.constant 33 : i32
    %14 = tpu.dynamic_rotate %5 by %c33_i32 dim 1 : vector<34x34xf32>, i32 -> vector<34x34xf32>
    %c1_5 = arith.constant 1 : index
    %15 = memref.load %arg2[%c1_5] : memref<36xf32, #tpu.memory_space<smem>>
    %16 = vector.broadcast %15 : f32 to vector<34x34xf32>
    %17 = arith.mulf %16, %14 : vector<34x34xf32>
    %18 = arith.addf %9, %17 : vector<34x34xf32>
    %c19 = arith.constant 19 : index
    %19 = memref.load %arg2[%c19] : memref<36xf32, #tpu.memory_space<smem>>
    %20 = vector.broadcast %19 : f32 to vector<34x34xf32>
    %21 = arith.mulf %20, %14 : vector<34x34xf32>
    %22 = arith.addf %13, %21 : vector<34x34xf32>
    %c32_i32 = arith.constant 32 : i32
    %23 = tpu.dynamic_rotate %5 by %c32_i32 dim 1 : vector<34x34xf32>, i32 -> vector<34x34xf32>
    %c2 = arith.constant 2 : index
    %24 = memref.load %arg2[%c2] : memref<36xf32, #tpu.memory_space<smem>>
    %25 = vector.broadcast %24 : f32 to vector<34x34xf32>
    %26 = arith.mulf %25, %23 : vector<34x34xf32>
    %27 = arith.addf %18, %26 : vector<34x34xf32>
    %c20 = arith.constant 20 : index
    %28 = memref.load %arg2[%c20] : memref<36xf32, #tpu.memory_space<smem>>
    %29 = vector.broadcast %28 : f32 to vector<34x34xf32>
    %30 = arith.mulf %29, %23 : vector<34x34xf32>
    %31 = arith.addf %22, %30 : vector<34x34xf32>
    %c33_i32_6 = arith.constant 33 : i32
    %32 = tpu.dynamic_rotate %5 by %c33_i32_6 dim 0 : vector<34x34xf32>, i32 -> vector<34x34xf32>
    %c3 = arith.constant 3 : index
    %33 = memref.load %arg2[%c3] : memref<36xf32, #tpu.memory_space<smem>>
    %34 = vector.broadcast %33 : f32 to vector<34x34xf32>
    %35 = arith.mulf %34, %32 : vector<34x34xf32>
    %36 = arith.addf %27, %35 : vector<34x34xf32>
    %c21 = arith.constant 21 : index
    %37 = memref.load %arg2[%c21] : memref<36xf32, #tpu.memory_space<smem>>
    %38 = vector.broadcast %37 : f32 to vector<34x34xf32>
    %39 = arith.mulf %38, %32 : vector<34x34xf32>
    %40 = arith.addf %31, %39 : vector<34x34xf32>
    %c33_i32_7 = arith.constant 33 : i32
    %41 = tpu.dynamic_rotate %32 by %c33_i32_7 dim 1 : vector<34x34xf32>, i32 -> vector<34x34xf32>
    %c4 = arith.constant 4 : index
    %42 = memref.load %arg2[%c4] : memref<36xf32, #tpu.memory_space<smem>>
    %43 = vector.broadcast %42 : f32 to vector<34x34xf32>
    %44 = arith.mulf %43, %41 : vector<34x34xf32>
    %45 = arith.addf %36, %44 : vector<34x34xf32>
    %c22 = arith.constant 22 : index
    %46 = memref.load %arg2[%c22] : memref<36xf32, #tpu.memory_space<smem>>
    %47 = vector.broadcast %46 : f32 to vector<34x34xf32>
    %48 = arith.mulf %47, %41 : vector<34x34xf32>
    %49 = arith.addf %40, %48 : vector<34x34xf32>
    %c32_i32_8 = arith.constant 32 : i32
    %50 = tpu.dynamic_rotate %32 by %c32_i32_8 dim 1 : vector<34x34xf32>, i32 -> vector<34x34xf32>
    %c5 = arith.constant 5 : index
    %51 = memref.load %arg2[%c5] : memref<36xf32, #tpu.memory_space<smem>>
    %52 = vector.broadcast %51 : f32 to vector<34x34xf32>
    %53 = arith.mulf %52, %50 : vector<34x34xf32>
    %54 = arith.addf %45, %53 : vector<34x34xf32>
    %c23 = arith.constant 23 : index
    %55 = memref.load %arg2[%c23] : memref<36xf32, #tpu.memory_space<smem>>
    %56 = vector.broadcast %55 : f32 to vector<34x34xf32>
    %57 = arith.mulf %56, %50 : vector<34x34xf32>
    %58 = arith.addf %49, %57 : vector<34x34xf32>
    %c32_i32_9 = arith.constant 32 : i32
    %59 = tpu.dynamic_rotate %5 by %c32_i32_9 dim 0 : vector<34x34xf32>, i32 -> vector<34x34xf32>
    %c6 = arith.constant 6 : index
    %60 = memref.load %arg2[%c6] : memref<36xf32, #tpu.memory_space<smem>>
    %61 = vector.broadcast %60 : f32 to vector<34x34xf32>
    %62 = arith.mulf %61, %59 : vector<34x34xf32>
    %63 = arith.addf %54, %62 : vector<34x34xf32>
    %c24 = arith.constant 24 : index
    %64 = memref.load %arg2[%c24] : memref<36xf32, #tpu.memory_space<smem>>
    %65 = vector.broadcast %64 : f32 to vector<34x34xf32>
    %66 = arith.mulf %65, %59 : vector<34x34xf32>
    %67 = arith.addf %58, %66 : vector<34x34xf32>
    %c33_i32_10 = arith.constant 33 : i32
    %68 = tpu.dynamic_rotate %59 by %c33_i32_10 dim 1 : vector<34x34xf32>, i32 -> vector<34x34xf32>
    %c7 = arith.constant 7 : index
    %69 = memref.load %arg2[%c7] : memref<36xf32, #tpu.memory_space<smem>>
    %70 = vector.broadcast %69 : f32 to vector<34x34xf32>
    %71 = arith.mulf %70, %68 : vector<34x34xf32>
    %72 = arith.addf %63, %71 : vector<34x34xf32>
    %c25 = arith.constant 25 : index
    %73 = memref.load %arg2[%c25] : memref<36xf32, #tpu.memory_space<smem>>
    %74 = vector.broadcast %73 : f32 to vector<34x34xf32>
    %75 = arith.mulf %74, %68 : vector<34x34xf32>
    %76 = arith.addf %67, %75 : vector<34x34xf32>
    %c32_i32_11 = arith.constant 32 : i32
    %77 = tpu.dynamic_rotate %59 by %c32_i32_11 dim 1 : vector<34x34xf32>, i32 -> vector<34x34xf32>
    %c8 = arith.constant 8 : index
    %78 = memref.load %arg2[%c8] : memref<36xf32, #tpu.memory_space<smem>>
    %79 = vector.broadcast %78 : f32 to vector<34x34xf32>
    %80 = arith.mulf %79, %77 : vector<34x34xf32>
    %81 = arith.addf %72, %80 : vector<34x34xf32>
    %c26 = arith.constant 26 : index
    %82 = memref.load %arg2[%c26] : memref<36xf32, #tpu.memory_space<smem>>
    %83 = vector.broadcast %82 : f32 to vector<34x34xf32>
    %84 = arith.mulf %83, %77 : vector<34x34xf32>
    %85 = arith.addf %76, %84 : vector<34x34xf32>
    %c0_12 = arith.constant 0 : index
    %c1_13 = arith.constant 1 : index
    %c0_14 = arith.constant 0 : index
    %c0_15 = arith.constant 0 : index
    %86 = vector.load %arg1[%c0_12, %c1_13, %c0_14, %c0_15] : memref<1x2x34x34xf32, #tpu.memory_space<vmem>>, vector<1x1x34x34xf32>
    %87 = vector.shape_cast %86 : vector<1x1x34x34xf32> to vector<34x34xf32>
    %c9 = arith.constant 9 : index
    %88 = memref.load %arg2[%c9] : memref<36xf32, #tpu.memory_space<smem>>
    %89 = vector.broadcast %88 : f32 to vector<34x34xf32>
    %90 = arith.mulf %89, %87 : vector<34x34xf32>
    %91 = arith.addf %81, %90 : vector<34x34xf32>
    %c27 = arith.constant 27 : index
    %92 = memref.load %arg2[%c27] : memref<36xf32, #tpu.memory_space<smem>>
    %93 = vector.broadcast %92 : f32 to vector<34x34xf32>
    %94 = arith.mulf %93, %87 : vector<34x34xf32>
    %95 = arith.addf %85, %94 : vector<34x34xf32>
    %c33_i32_16 = arith.constant 33 : i32
    %96 = tpu.dynamic_rotate %87 by %c33_i32_16 dim 1 : vector<34x34xf32>, i32 -> vector<34x34xf32>
    %c10 = arith.constant 10 : index
    %97 = memref.load %arg2[%c10] : memref<36xf32, #tpu.memory_space<smem>>
    %98 = vector.broadcast %97 : f32 to vector<34x34xf32>
    %99 = arith.mulf %98, %96 : vector<34x34xf32>
    %100 = arith.addf %91, %99 : vector<34x34xf32>
    %c28 = arith.constant 28 : index
    %101 = memref.load %arg2[%c28] : memref<36xf32, #tpu.memory_space<smem>>
    %102 = vector.broadcast %101 : f32 to vector<34x34xf32>
    %103 = arith.mulf %102, %96 : vector<34x34xf32>
    %104 = arith.addf %95, %103 : vector<34x34xf32>
    %c32_i32_17 = arith.constant 32 : i32
    %105 = tpu.dynamic_rotate %87 by %c32_i32_17 dim 1 : vector<34x34xf32>, i32 -> vector<34x34xf32>
    %c11 = arith.constant 11 : index
    %106 = memref.load %arg2[%c11] : memref<36xf32, #tpu.memory_space<smem>>
    %107 = vector.broadcast %106 : f32 to vector<34x34xf32>
    %108 = arith.mulf %107, %105 : vector<34x34xf32>
    %109 = arith.addf %100, %108 : vector<34x34xf32>
    %c29 = arith.constant 29 : index
    %110 = memref.load %arg2[%c29] : memref<36xf32, #tpu.memory_space<smem>>
    %111 = vector.broadcast %110 : f32 to vector<34x34xf32>
    %112 = arith.mulf %111, %105 : vector<34x34xf32>
    %113 = arith.addf %104, %112 : vector<34x34xf32>
    %c33_i32_18 = arith.constant 33 : i32
    %114 = tpu.dynamic_rotate %87 by %c33_i32_18 dim 0 : vector<34x34xf32>, i32 -> vector<34x34xf32>
    %c12 = arith.constant 12 : index
    %115 = memref.load %arg2[%c12] : memref<36xf32, #tpu.memory_space<smem>>
    %116 = vector.broadcast %115 : f32 to vector<34x34xf32>
    %117 = arith.mulf %116, %114 : vector<34x34xf32>
    %118 = arith.addf %109, %117 : vector<34x34xf32>
    %c30 = arith.constant 30 : index
    %119 = memref.load %arg2[%c30] : memref<36xf32, #tpu.memory_space<smem>>
    %120 = vector.broadcast %119 : f32 to vector<34x34xf32>
    %121 = arith.mulf %120, %114 : vector<34x34xf32>
    %122 = arith.addf %113, %121 : vector<34x34xf32>
    %c33_i32_19 = arith.constant 33 : i32
    %123 = tpu.dynamic_rotate %114 by %c33_i32_19 dim 1 : vector<34x34xf32>, i32 -> vector<34x34xf32>
    %c13 = arith.constant 13 : index
    %124 = memref.load %arg2[%c13] : memref<36xf32, #tpu.memory_space<smem>>
    %125 = vector.broadcast %124 : f32 to vector<34x34xf32>
    %126 = arith.mulf %125, %123 : vector<34x34xf32>
    %127 = arith.addf %118, %126 : vector<34x34xf32>
    %c31 = arith.constant 31 : index
    %128 = memref.load %arg2[%c31] : memref<36xf32, #tpu.memory_space<smem>>
    %129 = vector.broadcast %128 : f32 to vector<34x34xf32>
    %130 = arith.mulf %129, %123 : vector<34x34xf32>
    %131 = arith.addf %122, %130 : vector<34x34xf32>
    %c32_i32_20 = arith.constant 32 : i32
    %132 = tpu.dynamic_rotate %114 by %c32_i32_20 dim 1 : vector<34x34xf32>, i32 -> vector<34x34xf32>
    %c14 = arith.constant 14 : index
    %133 = memref.load %arg2[%c14] : memref<36xf32, #tpu.memory_space<smem>>
    %134 = vector.broadcast %133 : f32 to vector<34x34xf32>
    %135 = arith.mulf %134, %132 : vector<34x34xf32>
    %136 = arith.addf %127, %135 : vector<34x34xf32>
    %c32 = arith.constant 32 : index
    %137 = memref.load %arg2[%c32] : memref<36xf32, #tpu.memory_space<smem>>
    %138 = vector.broadcast %137 : f32 to vector<34x34xf32>
    %139 = arith.mulf %138, %132 : vector<34x34xf32>
    %140 = arith.addf %131, %139 : vector<34x34xf32>
    %c32_i32_21 = arith.constant 32 : i32
    %141 = tpu.dynamic_rotate %87 by %c32_i32_21 dim 0 : vector<34x34xf32>, i32 -> vector<34x34xf32>
    %c15 = arith.constant 15 : index
    %142 = memref.load %arg2[%c15] : memref<36xf32, #tpu.memory_space<smem>>
    %143 = vector.broadcast %142 : f32 to vector<34x34xf32>
    %144 = arith.mulf %143, %141 : vector<34x34xf32>
    %145 = arith.addf %136, %144 : vector<34x34xf32>
    %c33 = arith.constant 33 : index
    %146 = memref.load %arg2[%c33] : memref<36xf32, #tpu.memory_space<smem>>
    %147 = vector.broadcast %146 : f32 to vector<34x34xf32>
    %148 = arith.mulf %147, %141 : vector<34x34xf32>
    %149 = arith.addf %140, %148 : vector<34x34xf32>
    %c33_i32_22 = arith.constant 33 : i32
    %150 = tpu.dynamic_rotate %141 by %c33_i32_22 dim 1 : vector<34x34xf32>, i32 -> vector<34x34xf32>
    %c16 = arith.constant 16 : index
    %151 = memref.load %arg2[%c16] : memref<36xf32, #tpu.memory_space<smem>>
    %152 = vector.broadcast %151 : f32 to vector<34x34xf32>
    %153 = arith.mulf %152, %150 : vector<34x34xf32>
    %154 = arith.addf %145, %153 : vector<34x34xf32>
    %c34 = arith.constant 34 : index
    %155 = memref.load %arg2[%c34] : memref<36xf32, #tpu.memory_space<smem>>
    %156 = vector.broadcast %155 : f32 to vector<34x34xf32>
    %157 = arith.mulf %156, %150 : vector<34x34xf32>
    %158 = arith.addf %149, %157 : vector<34x34xf32>
    %c32_i32_23 = arith.constant 32 : i32
    %159 = tpu.dynamic_rotate %141 by %c32_i32_23 dim 1 : vector<34x34xf32>, i32 -> vector<34x34xf32>
    %c17 = arith.constant 17 : index
    %160 = memref.load %arg2[%c17] : memref<36xf32, #tpu.memory_space<smem>>
    %161 = vector.broadcast %160 : f32 to vector<34x34xf32>
    %162 = arith.mulf %161, %159 : vector<34x34xf32>
    %163 = arith.addf %154, %162 : vector<34x34xf32>
    %c35 = arith.constant 35 : index
    %164 = memref.load %arg2[%c35] : memref<36xf32, #tpu.memory_space<smem>>
    %165 = vector.broadcast %164 : f32 to vector<34x34xf32>
    %166 = arith.mulf %165, %159 : vector<34x34xf32>
    %167 = arith.addf %158, %166 : vector<34x34xf32>
    %168 = vector.extract_strided_slice %163 {offsets = [0, 0], sizes = [32, 32], strides = [1, 1]} : vector<34x34xf32> to vector<32x32xf32>
    %c0_24 = arith.constant 0 : index
    %c0_25 = arith.constant 0 : index
    %c0_26 = arith.constant 0 : index
    %c0_27 = arith.constant 0 : index
    %169 = vector.load %arg4[%c0_24, %c0_25, %c0_26, %c0_27] : memref<1x2x32x32xf32, #tpu.memory_space<vmem>>, vector<1x1x32x32xf32>
    %170 = vector.shape_cast %169 : vector<1x1x32x32xf32> to vector<32x32xf32>
    %171 = vector.shape_cast %168 : vector<32x32xf32> to vector<1x1x32x32xf32>
    tpu.vector_store %arg4[%c0_24, %c0_25, %c0_26, %c0_27], %171 {strides = array<i32>} : memref<1x2x32x32xf32, #tpu.memory_space<vmem>>, vector<1x1x32x32xf32>,
    %172 = vector.extract_strided_slice %167 {offsets = [0, 0], sizes = [32, 32], strides = [1, 1]} : vector<34x34xf32> to vector<32x32xf32>
    %c0_28 = arith.constant 0 : index
    %c1_29 = arith.constant 1 : index
    %c0_30 = arith.constant 0 : index
    %c0_31 = arith.constant 0 : index
    %173 = vector.load %arg4[%c0_28, %c1_29, %c0_30, %c0_31] : memref<1x2x32x32xf32, #tpu.memory_space<vmem>>, vector<1x1x32x32xf32>
    %174 = vector.shape_cast %173 : vector<1x1x32x32xf32> to vector<32x32xf32>
    %175 = vector.shape_cast %172 : vector<32x32xf32> to vector<1x1x32x32xf32>
    tpu.vector_store %arg4[%c0_28, %c1_29, %c0_30, %c0_31], %175 {strides = array<i32>} : memref<1x2x32x32xf32, #tpu.memory_space<vmem>>, vector<1x1x32x32xf32>,
    return
  }
  func.func @transform_0(%arg0: i32) -> (i32, i32, i32, i32) {
    %c0_i32 = arith.constant 0 : i32
    %c0_i32_0 = arith.constant 0 : i32
    %c0_i32_1 = arith.constant 0 : i32
    %c0_i32_2 = arith.constant 0 : i32
    return %arg0, %c0_i32, %c0_i32_0, %c0_i32_1 : i32, i32, i32, i32
  }
  func.func @transform_1(%arg0: i32) -> i32 {
    %c0_i32 = arith.constant 0 : i32
    %c0_i32_0 = arith.constant 0 : i32
    return %c0_i32 : i32
  }
  func.func @transform_2(%arg0: i32) -> i32 {
    %c0_i32 = arith.constant 0 : i32
    %c0_i32_0 = arith.constant 0 : i32
    return %c0_i32 : i32
  }
  func.func @transform_3(%arg0: i32) -> (i32, i32, i32, i32) {
    %c0_i32 = arith.constant 0 : i32
    %c0_i32_0 = arith.constant 0 : i32
    %c0_i32_1 = arith.constant 0 : i32
    %c0_i32_2 = arith.constant 0 : i32
    return %arg0, %c0_i32, %c0_i32_0, %c0_i32_1 : i32, i32, i32, i32
  }
}

module attributes {stable_mosaic.version = 11 : i64} {
  func.func @conv3x3_kernel(%arg0: i32, %arg1: memref<1x2x66x66xf32, #tpu.memory_space<vmem>>, %arg2: memref<36xf32, #tpu.memory_space<smem>>, %arg3: memref<2xf32, #tpu.memory_space<smem>>, %arg4: memref<1x2x64x64xf32, #tpu.memory_space<vmem>>) attributes {dimension_semantics = [#tpu.dimension_semantics<parallel>], iteration_bounds = array<i64: 2>, scalar_prefetch = 0 : i64, scratch_operands = 0 : i64, tpu.core_type = #tpu.core_type<tc>, window_params = [{transform_indices = @transform_0, window_bounds = array<i64: 1, 2, 66, 66>}, {transform_indices = @transform_1, window_bounds = array<i64: 36>}, {transform_indices = @transform_2, window_bounds = array<i64: 2>}, {transform_indices = @transform_3, window_bounds = array<i64: 1, 2, 64, 64>}]} {
    %c0 = arith.constant 0 : index
    %0 = memref.load %arg3[%c0] : memref<2xf32, #tpu.memory_space<smem>>
    %1 = vector.broadcast %0 : f32 to vector<66x66xf32>
    %c1 = arith.constant 1 : index
    %2 = memref.load %arg3[%c1] : memref<2xf32, #tpu.memory_space<smem>>
    %3 = vector.broadcast %2 : f32 to vector<66x66xf32>
    %c0_0 = arith.constant 0 : index
    %c0_1 = arith.constant 0 : index
    %c0_2 = arith.constant 0 : index
    %c0_3 = arith.constant 0 : index
    %4 = vector.load %arg1[%c0_0, %c0_1, %c0_2, %c0_3] : memref<1x2x66x66xf32, #tpu.memory_space<vmem>>, vector<1x1x66x66xf32>
    %5 = vector.shape_cast %4 : vector<1x1x66x66xf32> to vector<66x66xf32>
    %c0_4 = arith.constant 0 : index
    %6 = memref.load %arg2[%c0_4] : memref<36xf32, #tpu.memory_space<smem>>
    %7 = vector.broadcast %6 : f32 to vector<66x66xf32>
    %8 = arith.mulf %7, %5 : vector<66x66xf32>
    %9 = arith.addf %1, %8 : vector<66x66xf32>
    %c18 = arith.constant 18 : index
    %10 = memref.load %arg2[%c18] : memref<36xf32, #tpu.memory_space<smem>>
    %11 = vector.broadcast %10 : f32 to vector<66x66xf32>
    %12 = arith.mulf %11, %5 : vector<66x66xf32>
    %13 = arith.addf %3, %12 : vector<66x66xf32>
    %c65_i32 = arith.constant 65 : i32
    %14 = tpu.dynamic_rotate %5 by %c65_i32 dim 1 : vector<66x66xf32>, i32 -> vector<66x66xf32>
    %c1_5 = arith.constant 1 : index
    %15 = memref.load %arg2[%c1_5] : memref<36xf32, #tpu.memory_space<smem>>
    %16 = vector.broadcast %15 : f32 to vector<66x66xf32>
    %17 = arith.mulf %16, %14 : vector<66x66xf32>
    %18 = arith.addf %9, %17 : vector<66x66xf32>
    %c19 = arith.constant 19 : index
    %19 = memref.load %arg2[%c19] : memref<36xf32, #tpu.memory_space<smem>>
    %20 = vector.broadcast %19 : f32 to vector<66x66xf32>
    %21 = arith.mulf %20, %14 : vector<66x66xf32>
    %22 = arith.addf %13, %21 : vector<66x66xf32>
    %c64_i32 = arith.constant 64 : i32
    %23 = tpu.dynamic_rotate %5 by %c64_i32 dim 1 : vector<66x66xf32>, i32 -> vector<66x66xf32>
    %c2 = arith.constant 2 : index
    %24 = memref.load %arg2[%c2] : memref<36xf32, #tpu.memory_space<smem>>
    %25 = vector.broadcast %24 : f32 to vector<66x66xf32>
    %26 = arith.mulf %25, %23 : vector<66x66xf32>
    %27 = arith.addf %18, %26 : vector<66x66xf32>
    %c20 = arith.constant 20 : index
    %28 = memref.load %arg2[%c20] : memref<36xf32, #tpu.memory_space<smem>>
    %29 = vector.broadcast %28 : f32 to vector<66x66xf32>
    %30 = arith.mulf %29, %23 : vector<66x66xf32>
    %31 = arith.addf %22, %30 : vector<66x66xf32>
    %c65_i32_6 = arith.constant 65 : i32
    %32 = tpu.dynamic_rotate %5 by %c65_i32_6 dim 0 : vector<66x66xf32>, i32 -> vector<66x66xf32>
    %c3 = arith.constant 3 : index
    %33 = memref.load %arg2[%c3] : memref<36xf32, #tpu.memory_space<smem>>
    %34 = vector.broadcast %33 : f32 to vector<66x66xf32>
    %35 = arith.mulf %34, %32 : vector<66x66xf32>
    %36 = arith.addf %27, %35 : vector<66x66xf32>
    %c21 = arith.constant 21 : index
    %37 = memref.load %arg2[%c21] : memref<36xf32, #tpu.memory_space<smem>>
    %38 = vector.broadcast %37 : f32 to vector<66x66xf32>
    %39 = arith.mulf %38, %32 : vector<66x66xf32>
    %40 = arith.addf %31, %39 : vector<66x66xf32>
    %c65_i32_7 = arith.constant 65 : i32
    %41 = tpu.dynamic_rotate %32 by %c65_i32_7 dim 1 : vector<66x66xf32>, i32 -> vector<66x66xf32>
    %c4 = arith.constant 4 : index
    %42 = memref.load %arg2[%c4] : memref<36xf32, #tpu.memory_space<smem>>
    %43 = vector.broadcast %42 : f32 to vector<66x66xf32>
    %44 = arith.mulf %43, %41 : vector<66x66xf32>
    %45 = arith.addf %36, %44 : vector<66x66xf32>
    %c22 = arith.constant 22 : index
    %46 = memref.load %arg2[%c22] : memref<36xf32, #tpu.memory_space<smem>>
    %47 = vector.broadcast %46 : f32 to vector<66x66xf32>
    %48 = arith.mulf %47, %41 : vector<66x66xf32>
    %49 = arith.addf %40, %48 : vector<66x66xf32>
    %c64_i32_8 = arith.constant 64 : i32
    %50 = tpu.dynamic_rotate %32 by %c64_i32_8 dim 1 : vector<66x66xf32>, i32 -> vector<66x66xf32>
    %c5 = arith.constant 5 : index
    %51 = memref.load %arg2[%c5] : memref<36xf32, #tpu.memory_space<smem>>
    %52 = vector.broadcast %51 : f32 to vector<66x66xf32>
    %53 = arith.mulf %52, %50 : vector<66x66xf32>
    %54 = arith.addf %45, %53 : vector<66x66xf32>
    %c23 = arith.constant 23 : index
    %55 = memref.load %arg2[%c23] : memref<36xf32, #tpu.memory_space<smem>>
    %56 = vector.broadcast %55 : f32 to vector<66x66xf32>
    %57 = arith.mulf %56, %50 : vector<66x66xf32>
    %58 = arith.addf %49, %57 : vector<66x66xf32>
    %c64_i32_9 = arith.constant 64 : i32
    %59 = tpu.dynamic_rotate %5 by %c64_i32_9 dim 0 : vector<66x66xf32>, i32 -> vector<66x66xf32>
    %c6 = arith.constant 6 : index
    %60 = memref.load %arg2[%c6] : memref<36xf32, #tpu.memory_space<smem>>
    %61 = vector.broadcast %60 : f32 to vector<66x66xf32>
    %62 = arith.mulf %61, %59 : vector<66x66xf32>
    %63 = arith.addf %54, %62 : vector<66x66xf32>
    %c24 = arith.constant 24 : index
    %64 = memref.load %arg2[%c24] : memref<36xf32, #tpu.memory_space<smem>>
    %65 = vector.broadcast %64 : f32 to vector<66x66xf32>
    %66 = arith.mulf %65, %59 : vector<66x66xf32>
    %67 = arith.addf %58, %66 : vector<66x66xf32>
    %c65_i32_10 = arith.constant 65 : i32
    %68 = tpu.dynamic_rotate %59 by %c65_i32_10 dim 1 : vector<66x66xf32>, i32 -> vector<66x66xf32>
    %c7 = arith.constant 7 : index
    %69 = memref.load %arg2[%c7] : memref<36xf32, #tpu.memory_space<smem>>
    %70 = vector.broadcast %69 : f32 to vector<66x66xf32>
    %71 = arith.mulf %70, %68 : vector<66x66xf32>
    %72 = arith.addf %63, %71 : vector<66x66xf32>
    %c25 = arith.constant 25 : index
    %73 = memref.load %arg2[%c25] : memref<36xf32, #tpu.memory_space<smem>>
    %74 = vector.broadcast %73 : f32 to vector<66x66xf32>
    %75 = arith.mulf %74, %68 : vector<66x66xf32>
    %76 = arith.addf %67, %75 : vector<66x66xf32>
    %c64_i32_11 = arith.constant 64 : i32
    %77 = tpu.dynamic_rotate %59 by %c64_i32_11 dim 1 : vector<66x66xf32>, i32 -> vector<66x66xf32>
    %c8 = arith.constant 8 : index
    %78 = memref.load %arg2[%c8] : memref<36xf32, #tpu.memory_space<smem>>
    %79 = vector.broadcast %78 : f32 to vector<66x66xf32>
    %80 = arith.mulf %79, %77 : vector<66x66xf32>
    %81 = arith.addf %72, %80 : vector<66x66xf32>
    %c26 = arith.constant 26 : index
    %82 = memref.load %arg2[%c26] : memref<36xf32, #tpu.memory_space<smem>>
    %83 = vector.broadcast %82 : f32 to vector<66x66xf32>
    %84 = arith.mulf %83, %77 : vector<66x66xf32>
    %85 = arith.addf %76, %84 : vector<66x66xf32>
    %c0_12 = arith.constant 0 : index
    %c1_13 = arith.constant 1 : index
    %c0_14 = arith.constant 0 : index
    %c0_15 = arith.constant 0 : index
    %86 = vector.load %arg1[%c0_12, %c1_13, %c0_14, %c0_15] : memref<1x2x66x66xf32, #tpu.memory_space<vmem>>, vector<1x1x66x66xf32>
    %87 = vector.shape_cast %86 : vector<1x1x66x66xf32> to vector<66x66xf32>
    %c9 = arith.constant 9 : index
    %88 = memref.load %arg2[%c9] : memref<36xf32, #tpu.memory_space<smem>>
    %89 = vector.broadcast %88 : f32 to vector<66x66xf32>
    %90 = arith.mulf %89, %87 : vector<66x66xf32>
    %91 = arith.addf %81, %90 : vector<66x66xf32>
    %c27 = arith.constant 27 : index
    %92 = memref.load %arg2[%c27] : memref<36xf32, #tpu.memory_space<smem>>
    %93 = vector.broadcast %92 : f32 to vector<66x66xf32>
    %94 = arith.mulf %93, %87 : vector<66x66xf32>
    %95 = arith.addf %85, %94 : vector<66x66xf32>
    %c65_i32_16 = arith.constant 65 : i32
    %96 = tpu.dynamic_rotate %87 by %c65_i32_16 dim 1 : vector<66x66xf32>, i32 -> vector<66x66xf32>
    %c10 = arith.constant 10 : index
    %97 = memref.load %arg2[%c10] : memref<36xf32, #tpu.memory_space<smem>>
    %98 = vector.broadcast %97 : f32 to vector<66x66xf32>
    %99 = arith.mulf %98, %96 : vector<66x66xf32>
    %100 = arith.addf %91, %99 : vector<66x66xf32>
    %c28 = arith.constant 28 : index
    %101 = memref.load %arg2[%c28] : memref<36xf32, #tpu.memory_space<smem>>
    %102 = vector.broadcast %101 : f32 to vector<66x66xf32>
    %103 = arith.mulf %102, %96 : vector<66x66xf32>
    %104 = arith.addf %95, %103 : vector<66x66xf32>
    %c64_i32_17 = arith.constant 64 : i32
    %105 = tpu.dynamic_rotate %87 by %c64_i32_17 dim 1 : vector<66x66xf32>, i32 -> vector<66x66xf32>
    %c11 = arith.constant 11 : index
    %106 = memref.load %arg2[%c11] : memref<36xf32, #tpu.memory_space<smem>>
    %107 = vector.broadcast %106 : f32 to vector<66x66xf32>
    %108 = arith.mulf %107, %105 : vector<66x66xf32>
    %109 = arith.addf %100, %108 : vector<66x66xf32>
    %c29 = arith.constant 29 : index
    %110 = memref.load %arg2[%c29] : memref<36xf32, #tpu.memory_space<smem>>
    %111 = vector.broadcast %110 : f32 to vector<66x66xf32>
    %112 = arith.mulf %111, %105 : vector<66x66xf32>
    %113 = arith.addf %104, %112 : vector<66x66xf32>
    %c65_i32_18 = arith.constant 65 : i32
    %114 = tpu.dynamic_rotate %87 by %c65_i32_18 dim 0 : vector<66x66xf32>, i32 -> vector<66x66xf32>
    %c12 = arith.constant 12 : index
    %115 = memref.load %arg2[%c12] : memref<36xf32, #tpu.memory_space<smem>>
    %116 = vector.broadcast %115 : f32 to vector<66x66xf32>
    %117 = arith.mulf %116, %114 : vector<66x66xf32>
    %118 = arith.addf %109, %117 : vector<66x66xf32>
    %c30 = arith.constant 30 : index
    %119 = memref.load %arg2[%c30] : memref<36xf32, #tpu.memory_space<smem>>
    %120 = vector.broadcast %119 : f32 to vector<66x66xf32>
    %121 = arith.mulf %120, %114 : vector<66x66xf32>
    %122 = arith.addf %113, %121 : vector<66x66xf32>
    %c65_i32_19 = arith.constant 65 : i32
    %123 = tpu.dynamic_rotate %114 by %c65_i32_19 dim 1 : vector<66x66xf32>, i32 -> vector<66x66xf32>
    %c13 = arith.constant 13 : index
    %124 = memref.load %arg2[%c13] : memref<36xf32, #tpu.memory_space<smem>>
    %125 = vector.broadcast %124 : f32 to vector<66x66xf32>
    %126 = arith.mulf %125, %123 : vector<66x66xf32>
    %127 = arith.addf %118, %126 : vector<66x66xf32>
    %c31 = arith.constant 31 : index
    %128 = memref.load %arg2[%c31] : memref<36xf32, #tpu.memory_space<smem>>
    %129 = vector.broadcast %128 : f32 to vector<66x66xf32>
    %130 = arith.mulf %129, %123 : vector<66x66xf32>
    %131 = arith.addf %122, %130 : vector<66x66xf32>
    %c64_i32_20 = arith.constant 64 : i32
    %132 = tpu.dynamic_rotate %114 by %c64_i32_20 dim 1 : vector<66x66xf32>, i32 -> vector<66x66xf32>
    %c14 = arith.constant 14 : index
    %133 = memref.load %arg2[%c14] : memref<36xf32, #tpu.memory_space<smem>>
    %134 = vector.broadcast %133 : f32 to vector<66x66xf32>
    %135 = arith.mulf %134, %132 : vector<66x66xf32>
    %136 = arith.addf %127, %135 : vector<66x66xf32>
    %c32 = arith.constant 32 : index
    %137 = memref.load %arg2[%c32] : memref<36xf32, #tpu.memory_space<smem>>
    %138 = vector.broadcast %137 : f32 to vector<66x66xf32>
    %139 = arith.mulf %138, %132 : vector<66x66xf32>
    %140 = arith.addf %131, %139 : vector<66x66xf32>
    %c64_i32_21 = arith.constant 64 : i32
    %141 = tpu.dynamic_rotate %87 by %c64_i32_21 dim 0 : vector<66x66xf32>, i32 -> vector<66x66xf32>
    %c15 = arith.constant 15 : index
    %142 = memref.load %arg2[%c15] : memref<36xf32, #tpu.memory_space<smem>>
    %143 = vector.broadcast %142 : f32 to vector<66x66xf32>
    %144 = arith.mulf %143, %141 : vector<66x66xf32>
    %145 = arith.addf %136, %144 : vector<66x66xf32>
    %c33 = arith.constant 33 : index
    %146 = memref.load %arg2[%c33] : memref<36xf32, #tpu.memory_space<smem>>
    %147 = vector.broadcast %146 : f32 to vector<66x66xf32>
    %148 = arith.mulf %147, %141 : vector<66x66xf32>
    %149 = arith.addf %140, %148 : vector<66x66xf32>
    %c65_i32_22 = arith.constant 65 : i32
    %150 = tpu.dynamic_rotate %141 by %c65_i32_22 dim 1 : vector<66x66xf32>, i32 -> vector<66x66xf32>
    %c16 = arith.constant 16 : index
    %151 = memref.load %arg2[%c16] : memref<36xf32, #tpu.memory_space<smem>>
    %152 = vector.broadcast %151 : f32 to vector<66x66xf32>
    %153 = arith.mulf %152, %150 : vector<66x66xf32>
    %154 = arith.addf %145, %153 : vector<66x66xf32>
    %c34 = arith.constant 34 : index
    %155 = memref.load %arg2[%c34] : memref<36xf32, #tpu.memory_space<smem>>
    %156 = vector.broadcast %155 : f32 to vector<66x66xf32>
    %157 = arith.mulf %156, %150 : vector<66x66xf32>
    %158 = arith.addf %149, %157 : vector<66x66xf32>
    %c64_i32_23 = arith.constant 64 : i32
    %159 = tpu.dynamic_rotate %141 by %c64_i32_23 dim 1 : vector<66x66xf32>, i32 -> vector<66x66xf32>
    %c17 = arith.constant 17 : index
    %160 = memref.load %arg2[%c17] : memref<36xf32, #tpu.memory_space<smem>>
    %161 = vector.broadcast %160 : f32 to vector<66x66xf32>
    %162 = arith.mulf %161, %159 : vector<66x66xf32>
    %163 = arith.addf %154, %162 : vector<66x66xf32>
    %c35 = arith.constant 35 : index
    %164 = memref.load %arg2[%c35] : memref<36xf32, #tpu.memory_space<smem>>
    %165 = vector.broadcast %164 : f32 to vector<66x66xf32>
    %166 = arith.mulf %165, %159 : vector<66x66xf32>
    %167 = arith.addf %158, %166 : vector<66x66xf32>
    %168 = vector.extract_strided_slice %163 {offsets = [0, 0], sizes = [64, 64], strides = [1, 1]} : vector<66x66xf32> to vector<64x64xf32>
    %c0_24 = arith.constant 0 : index
    %c0_25 = arith.constant 0 : index
    %c0_26 = arith.constant 0 : index
    %c0_27 = arith.constant 0 : index
    %169 = vector.load %arg4[%c0_24, %c0_25, %c0_26, %c0_27] : memref<1x2x64x64xf32, #tpu.memory_space<vmem>>, vector<1x1x64x64xf32>
    %170 = vector.shape_cast %169 : vector<1x1x64x64xf32> to vector<64x64xf32>
    %171 = vector.shape_cast %168 : vector<64x64xf32> to vector<1x1x64x64xf32>
    tpu.vector_store %arg4[%c0_24, %c0_25, %c0_26, %c0_27], %171 {strides = array<i32>} : memref<1x2x64x64xf32, #tpu.memory_space<vmem>>, vector<1x1x64x64xf32>,
    %172 = vector.extract_strided_slice %167 {offsets = [0, 0], sizes = [64, 64], strides = [1, 1]} : vector<66x66xf32> to vector<64x64xf32>
    %c0_28 = arith.constant 0 : index
    %c1_29 = arith.constant 1 : index
    %c0_30 = arith.constant 0 : index
    %c0_31 = arith.constant 0 : index
    %173 = vector.load %arg4[%c0_28, %c1_29, %c0_30, %c0_31] : memref<1x2x64x64xf32, #tpu.memory_space<vmem>>, vector<1x1x64x64xf32>
    %174 = vector.shape_cast %173 : vector<1x1x64x64xf32> to vector<64x64xf32>
    %175 = vector.shape_cast %172 : vector<64x64xf32> to vector<1x1x64x64xf32>
    tpu.vector_store %arg4[%c0_28, %c1_29, %c0_30, %c0_31], %175 {strides = array<i32>} : memref<1x2x64x64xf32, #tpu.memory_space<vmem>>, vector<1x1x64x64xf32>,
    return
  }
  func.func @transform_0(%arg0: i32) -> (i32, i32, i32, i32) {
    %c0_i32 = arith.constant 0 : i32
    %c0_i32_0 = arith.constant 0 : i32
    %c0_i32_1 = arith.constant 0 : i32
    %c0_i32_2 = arith.constant 0 : i32
    return %arg0, %c0_i32, %c0_i32_0, %c0_i32_1 : i32, i32, i32, i32
  }
  func.func @transform_1(%arg0: i32) -> i32 {
    %c0_i32 = arith.constant 0 : i32
    %c0_i32_0 = arith.constant 0 : i32
    return %c0_i32 : i32
  }
  func.func @transform_2(%arg0: i32) -> i32 {
    %c0_i32 = arith.constant 0 : i32
    %c0_i32_0 = arith.constant 0 : i32
    return %c0_i32 : i32
  }
  func.func @transform_3(%arg0: i32) -> (i32, i32, i32, i32) {
    %c0_i32 = arith.constant 0 : i32
    %c0_i32_0 = arith.constant 0 : i32
    %c0_i32_1 = arith.constant 0 : i32
    %c0_i32_2 = arith.constant 0 : i32
    return %arg0, %c0_i32, %c0_i32_0, %c0_i32_1 : i32, i32, i32, i32
  }
}

module attributes {stable_mosaic.version = 11 : i64} {
  func.func @combine_kernel(%arg0: i32, %arg1: memref<8x128xf32, #tpu.memory_space<vmem>>, %arg2: memref<8x128xf32, #tpu.memory_space<vmem>>, %arg3: memref<8x128xf32, #tpu.memory_space<vmem>>, %arg4: memref<8x128xf32, #tpu.memory_space<vmem>>) attributes {dimension_semantics = [#tpu.dimension_semantics<arbitrary>], iteration_bounds = array<i64: 1>, scalar_prefetch = 0 : i64, scratch_operands = 0 : i64, tpu.core_type = #tpu.core_type<tc>, window_params = [{pipeline_mode = #tpu.pipeline_mode<synchronous>, transform_indices = @transform_0, window_bounds = array<i64: 8, 128>}, {pipeline_mode = #tpu.pipeline_mode<synchronous>, transform_indices = @transform_1, window_bounds = array<i64: 8, 128>}, {pipeline_mode = #tpu.pipeline_mode<synchronous>, transform_indices = @transform_2, window_bounds = array<i64: 8, 128>}, {pipeline_mode = #tpu.pipeline_mode<synchronous>, transform_indices = @transform_3, window_bounds = array<i64: 8, 128>}]} {
    %c0 = arith.constant 0 : index
    %c0_0 = arith.constant 0 : index
    %0 = vector.load %arg1[%c0, %c0_0] : memref<8x128xf32, #tpu.memory_space<vmem>>, vector<8x128xf32>
    %cst = arith.constant 4.000000e-01 : f32
    %1 = vector.broadcast %cst : f32 to vector<8x128xf32>
    %2 = arith.mulf %1, %0 : vector<8x128xf32>
    %c0_1 = arith.constant 0 : index
    %c0_2 = arith.constant 0 : index
    %3 = vector.load %arg2[%c0_1, %c0_2] : memref<8x128xf32, #tpu.memory_space<vmem>>, vector<8x128xf32>
    %cst_3 = arith.constant 2.000000e-01 : f32
    %4 = vector.broadcast %cst_3 : f32 to vector<8x128xf32>
    %5 = arith.mulf %4, %3 : vector<8x128xf32>
    %6 = arith.addf %2, %5 : vector<8x128xf32>
    %c0_4 = arith.constant 0 : index
    %c0_5 = arith.constant 0 : index
    %7 = vector.load %arg3[%c0_4, %c0_5] : memref<8x128xf32, #tpu.memory_space<vmem>>, vector<8x128xf32>
    %cst_6 = arith.constant 4.000000e-01 : f32
    %8 = vector.broadcast %cst_6 : f32 to vector<8x128xf32>
    %9 = arith.mulf %8, %7 : vector<8x128xf32>
    %10 = arith.addf %6, %9 : vector<8x128xf32>
    %c0_7 = arith.constant 0 : index
    %c0_8 = arith.constant 0 : index
    %11 = vector.load %arg4[%c0_7, %c0_8] : memref<8x128xf32, #tpu.memory_space<vmem>>, vector<8x128xf32>
    tpu.vector_store %arg4[%c0_7, %c0_8], %10 {strides = array<i32>} : memref<8x128xf32, #tpu.memory_space<vmem>>, vector<8x128xf32>,
    return
  }
  func.func @transform_0(%arg0: i32) -> (i32, i32) {
    %c0_i32 = arith.constant 0 : i32
    %c0_i32_0 = arith.constant 0 : i32
    %c0_i32_1 = arith.constant 0 : i32
    return %c0_i32, %c0_i32_0 : i32, i32
  }
  func.func @transform_1(%arg0: i32) -> (i32, i32) {
    %c0_i32 = arith.constant 0 : i32
    %c0_i32_0 = arith.constant 0 : i32
    %c0_i32_1 = arith.constant 0 : i32
    return %c0_i32, %c0_i32_0 : i32, i32
  }
  func.func @transform_2(%arg0: i32) -> (i32, i32) {
    %c0_i32 = arith.constant 0 : i32
    %c0_i32_0 = arith.constant 0 : i32
    %c0_i32_1 = arith.constant 0 : i32
    return %c0_i32, %c0_i32_0 : i32, i32
  }
  func.func @transform_3(%arg0: i32) -> (i32, i32) {
    %c0_i32 = arith.constant 0 : i32
    %c0_i32_0 = arith.constant 0 : i32
    %c0_i32_1 = arith.constant 0 : i32
    return %c0_i32, %c0_i32_0 : i32, i32
  }
}

</mosaic_0001>

<llo_original>
// kernel: feature_predictor_forward.10
$region0: #{feature_predictor_forward.10}
  #allocation0 [shape = 'u32[]', space=smem, size = 0x4, offset = 0x4, fixed_abs, tag = 'smem constant byte address 0x4 - core index']
  #allocation1 [shape = 'u32[144,128]{1,0:T(1,128)}', space=vmem, size = 0x12000, scoped, tag = 'internal scratch']
  %s0 = inlined_call_operand.vmem [shape: f32[8,128], index: 0, kind: input, shape index: {}]
  %s1 = inlined_call_operand.vmem [shape: f32[16,8], index: 1, kind: input, shape index: {}]
  %s2 = inlined_call_operand.vmem [shape: f32[16,1], index: 2, kind: input, shape index: {}]
  %s3 = inlined_call_operand.hbm [shape: f32[8,16], index: 3, kind: input, shape index: {}]
  %s4 = inlined_call_operand.vmem [shape: f32[8,1], index: 4, kind: input, shape index: {}]
  %s5 = inlined_call_operand.vmem [shape: f32[8,128], index: 5, kind: output, shape index: {}]
  %s6 = sld [smem:[#allocation0]]
  $region34: #{feature_predictor_forward.10} parent=0
    _
  %s8 = ssub.s32 1, %s6
  %s9 = scalar_select 0, %s8, %s6
  $region1: #{feature_predictor_forward.10} parent=0
    #allocation2 [shape = 'u8[4096]{0}', space=vmem, size = 0x1000, scoped, tag = 'input window, operand 3, single buffered']
    #allocation3 [shape = 's32[1]{0}', space=sflag, size = 0x4, scoped, tag = 'scoped memory for feature_predictor_forward.10']
    %10 = vsyncpa [#allocation3], 0
    // Predicated region
    $region2: #{feature_predictor_forward.10} parent=1 // pred_check
      _
    $region3: #{feature_predictor_forward.10} parent=1 // pred_check_branch
      %12 = sbr.rel (0) target = $region5
    $region4: #{feature_predictor_forward.10} parent=1 // pred_region
      _
    $region5: #{feature_predictor_forward.10} parent=1 // pred_fallthru
      _
    // Predicated region
    $region6: #{feature_predictor_forward.10} parent=1 // pred_check
      _
    $region7: #{feature_predictor_forward.10} parent=1 // pred_check_branch
      %14 = sbr.rel (0) target = $region9
    $region8: #{feature_predictor_forward.10} parent=1 // pred_region
      _
    $region9: #{feature_predictor_forward.10} parent=1 // pred_fallthru
      _
    // Predicated region
    $region10: #{feature_predictor_forward.10} parent=1 // pred_check
      _
    $region11: #{feature_predictor_forward.10} parent=1 // pred_check_branch
      %16 = sbr.rel (0) target = $region13
    $region12: #{feature_predictor_forward.10} parent=1 // pred_region
      _
    $region13: #{feature_predictor_forward.10} parent=1 // pred_fallthru
      _
    // Predicated region
    $region14: #{feature_predictor_forward.10} parent=1 // pred_check
      _
    $region15: #{feature_predictor_forward.10} parent=1 // pred_check_branch
      %18 = sbr.rel (0) target = $region17
    $region16: #{feature_predictor_forward.10} parent=1 // pred_region
      %s20 = ssub.s32 128, 128
      %21 = vsyncadd [#allocation3], %s20
      %s23 = sshll.u32 [#allocation2], 4
      %s24 = int_to_ptr.vmem [resolvable:$true] %s23
      %26 = dma.hbm_to_vmem [thread:$0]  %s3, 128, %s24, [#allocation3]
    $region17: #{feature_predictor_forward.10} parent=1 // pred_fallthru
      _
    // Predicated region
    $region18: #{feature_predictor_forward.10} parent=1 // pred_check
      _
    $region19: #{feature_predictor_forward.10} parent=1 // pred_check_branch
      %28 = sbr.rel (0) target = $region21
    $region20: #{feature_predictor_forward.10} parent=1 // pred_region
      _
    $region21: #{feature_predictor_forward.10} parent=1 // pred_fallthru
      _
    // Predicated region
    $region22: #{feature_predictor_forward.10} parent=1 // pred_check
      _
    $region23: #{feature_predictor_forward.10} parent=1 // pred_check_branch
      %30 = sbr.rel (0) target = $region25
    $region24: #{feature_predictor_forward.10} parent=1 // pred_region
      %31 = dma.done [#allocation3], 128
    $region25: #{feature_predictor_forward.10} parent=1 // pred_fallthru
      _
    %v32 = vld [vmem:[%s0] sm:$0xff]
    %v33 = vld [vmem:[%s1] sm:$0xff]
    %v34 = vld [vmem:[%s1 + $0x8] sm:$0xff]
    %v35 = vld [vmem:[%s2] sm:$0xff]
    %v36 = vld [vmem:[%s2 + $0x8] sm:$0xff]
    %38 = vset.pattern.permute.xlu0 0
    %39 = vperm.xlu0 %38, %v35
    %v40 = vpop.permute.xlu0 %39
    %43 = vset.pattern.permute.xlu0 0
    %44 = vperm.xlu0 %43, %v36
    %v45 = vpop.permute.xlu0 %44
    %vm47 = vcmask 64512
    %v49 = vsel %vm47, %v33, 0
    %v52 = vsel %vm47, %v34, 0
    %54 = vmatprep.subr.mxu0 0.0
    %55 = vmatpush1.msra.mxu0 %v32
    %56 = vmatprep.subr.mxu0 0.0
    %57 = vmatpush1.msra.mxu0 0.0
    %58 = vmatprep.subr.mxu0 0.0
    %59 = vmatpush1.msra.mxu0 0.0
    %60 = vmatprep.subr.mxu0 0.0
    %61 = vmatpush1.msra.mxu0 0.0
    %62 = vmatprep.subr.mxu0 0.0
    %63 = vmatpush1.msra.mxu0 0.0
    %64 = vmatprep.subr.mxu0 0.0
    %65 = vmatpush1.msra.mxu0 0.0
    %66 = vmatprep.subr.mxu0 0.0
    %67 = vmatpush1.msra.mxu0 0.0
    %68 = vmatprep.subr.mxu0 0.0
    %69 = vmatpush1.msra.mxu0 0.0
    %70 = vmatprep.subr.mxu0 0.0
    %71 = vmatpush1.msra.mxu0 0.0
    %72 = vmatprep.subr.mxu0 0.0
    %73 = vmatpush1.msra.mxu0 0.0
    %74 = vmatprep.subr.mxu0 0.0
    %75 = vmatpush1.msra.mxu0 0.0
    %76 = vmatprep.subr.mxu0 0.0
    %77 = vmatpush1.msra.mxu0 0.0
    %78 = vmatprep.subr.mxu0 0.0
    %79 = vmatpush1.msra.mxu0 0.0
    %80 = vmatprep.subr.mxu0 0.0
    %81 = vmatpush1.msra.mxu0 0.0
    %82 = vmatprep.subr.mxu0 0.0
    %83 = vmatpush1.msra.mxu0 0.0
    %84 = vmatprep.subr.mxu0 0.0
    %85 = vmatpush1.msra.mxu0 0.0
    %86 = vmatprep.subr.mxu0 0.0
    %87 = vmatpush1.msra.mxu0 0.0
    %88 = vmatprep.subr.mxu0 0.0
    %89 = vmatpush1.msra.mxu0 0.0
    %90 = vmatprep.subr.mxu0 0.0
    %91 = vmatpush1.msra.mxu0 0.0
    %92 = vmatprep.subr.mxu0 0.0
    %93 = vmatpush1.msra.mxu0 0.0
    %94 = vmatprep.subr.mxu0 0.0
    %95 = vmatpush1.msra.mxu0 0.0
    %96 = vmatprep.subr.mxu0 0.0
    %97 = vmatpush1.msra.mxu0 0.0
    %98 = vmatprep.subr.mxu0 0.0
    %99 = vmatpush1.msra.mxu0 0.0
    %100 = vmatprep.subr.mxu0 0.0
    %101 = vmatpush1.msra.mxu0 0.0
    %102 = vmatprep.subr.mxu0 0.0
    %103 = vmatpush1.msra.mxu0 0.0
    %104 = vmatprep.subr.mxu0 0.0
    %105 = vmatpush1.msra.mxu0 0.0
    %106 = vmatprep.subr.mxu0 0.0
    %107 = vmatpush1.msra.mxu0 0.0
    %108 = vmatprep.subr.mxu0 0.0
    %109 = vmatpush1.msra.mxu0 0.0
    %110 = vmatprep.subr.mxu0 0.0
    %111 = vmatpush1.msra.mxu0 0.0
    %112 = vmatprep.subr.mxu0 0.0
    %113 = vmatpush1.msra.mxu0 0.0
    %114 = vmatprep.subr.mxu0 0.0
    %115 = vmatpush1.msra.mxu0 0.0
    %116 = vmatprep.subr.mxu0 0.0
    %117 = vmatpush1.msra.mxu0 0.0
    %118 = vmatprep.mubr.f32.mxu0 0.0
    %119 = vmatmul.mubr.f32.gmra.mrb[0].mxu0 %v49
    %v120 = vpop.f32.mrb[0].mxu0
    %v121 = vadd.f32 %v40, %v120
    %v122 = vpop.f32.mrb[0].mxu0
    %123 = vmatprep.mubr.f32.mxu0 0.0
    %124 = vmatmul.mubr.f32.gmra.mrb[0].mxu0 %v52
    %v125 = vpop.f32.mrb[0].mxu0
    %v126 = vadd.f32 %v45, %v125
    %v127 = vpop.f32.mrb[0].mxu0
    %128 = vdwg.mxu0
    %v129 = vmax.f32 %v121, 0.0
    %v130 = vmax.f32 %v126, 0.0
    %v131 = vld [vmem:[#allocation2] sm:$0xff]
    %v132 = vld [vmem:[%s4] sm:$0xff]
    %134 = vset.pattern.permute.xlu0 0
    %135 = vperm.xlu0 %134, %v132
    %v136 = vpop.permute.xlu0 %135
    %vm138 = vcmask 130048
    %v140 = vsel %vm138, %v131, 0
    %142 = vmatprep.subr.mxu0 0.0
    %143 = vmatpush1.msra.mxu0 %v129
    %144 = vmatprep.subr.mxu0 0.0
    %145 = vmatpush1.msra.mxu0 %v130
    %146 = vmatprep.subr.mxu0 0.0
    %147 = vmatpush1.msra.mxu0 0.0
    %148 = vmatprep.subr.mxu0 0.0
    %149 = vmatpush1.msra.mxu0 0.0
    %150 = vmatprep.subr.mxu0 0.0
    %151 = vmatpush1.msra.mxu0 0.0
    %152 = vmatprep.subr.mxu0 0.0
    %153 = vmatpush1.msra.mxu0 0.0
    %154 = vmatprep.subr.mxu0 0.0
    %155 = vmatpush1.msra.mxu0 0.0
    %156 = vmatprep.subr.mxu0 0.0
    %157 = vmatpush1.msra.mxu0 0.0
    %158 = vmatprep.subr.mxu0 0.0
    %159 = vmatpush1.msra.mxu0 0.0
    %160 = vmatprep.subr.mxu0 0.0
    %161 = vmatpush1.msra.mxu0 0.0
    %162 = vmatprep.subr.mxu0 0.0
    %163 = vmatpush1.msra.mxu0 0.0
    %164 = vmatprep.subr.mxu0 0.0
    %165 = vmatpush1.msra.mxu0 0.0
    %166 = vmatprep.subr.mxu0 0.0
    %167 = vmatpush1.msra.mxu0 0.0
    %168 = vmatprep.subr.mxu0 0.0
    %169 = vmatpush1.msra.mxu0 0.0
    %170 = vmatprep.subr.mxu0 0.0
    %171 = vmatpush1.msra.mxu0 0.0
    %172 = vmatprep.subr.mxu0 0.0
    %173 = vmatpush1.msra.mxu0 0.0
    %174 = vmatprep.subr.mxu0 0.0
    %175 = vmatpush1.msra.mxu0 0.0
    %176 = vmatprep.subr.mxu0 0.0
    %177 = vmatpush1.msra.mxu0 0.0
    %178 = vmatprep.subr.mxu0 0.0
    %179 = vmatpush1.msra.mxu0 0.0
    %180 = vmatprep.subr.mxu0 0.0
    %181 = vmatpush1.msra.mxu0 0.0
    %182 = vmatprep.subr.mxu0 0.0
    %183 = vmatpush1.msra.mxu0 0.0
    %184 = vmatprep.subr.mxu0 0.0
    %185 = vmatpush1.msra.mxu0 0.0
    %186 = vmatprep.subr.mxu0 0.0
    %187 = vmatpush1.msra.mxu0 0.0
    %188 = vmatprep.subr.mxu0 0.0
    %189 = vmatpush1.msra.mxu0 0.0
    %190 = vmatprep.subr.mxu0 0.0
    %191 = vmatpush1.msra.mxu0 0.0
    %192 = vmatprep.subr.mxu0 0.0
    %193 = vmatpush1.msra.mxu0 0.0
    %194 = vmatprep.subr.mxu0 0.0
    %195 = vmatpush1.msra.mxu0 0.0
    %196 = vmatprep.subr.mxu0 0.0
    %197 = vmatpush1.msra.mxu0 0.0
    %198 = vmatprep.subr.mxu0 0.0
    %199 = vmatpush1.msra.mxu0 0.0
    %200 = vmatprep.subr.mxu0 0.0
    %201 = vmatpush1.msra.mxu0 0.0
    %202 = vmatprep.subr.mxu0 0.0
    %203 = vmatpush1.msra.mxu0 0.0
    %204 = vmatprep.subr.mxu0 0.0
    %205 = vmatpush1.msra.mxu0 0.0
    %206 = vmatprep.mubr.f32.mxu0 0.0
    %207 = vmatmul.mubr.f32.gmra.mrb[0].mxu0 %v140
    %v208 = vpop.f32.mrb[0].mxu0
    %v209 = vadd.f32 %v136, %v208
    %v210 = vpop.f32.mrb[0].mxu0
    %211 = vdwg.mxu0
    %v212 = vmax.f32 %v209, 0.0
    %213 = vst [vmem:[%s5] sm:$0xff] %v212
    // Predicated region
    $region26: #{feature_predictor_forward.10} parent=1 // pred_check
      _
    $region27: #{feature_predictor_forward.10} parent=1 // pred_check_branch
      %215 = sbr.rel (0) target = $region29
    $region28: #{feature_predictor_forward.10} parent=1 // pred_region
      _
    $region29: #{feature_predictor_forward.10} parent=1 // pred_fallthru
      _
    // Predicated region
    $region30: #{feature_predictor_forward.10} parent=1 // pred_check
      _
    $region31: #{feature_predictor_forward.10} parent=1 // pred_check_branch
      %217 = sbr.rel (0) target = $region33
    $region32: #{feature_predictor_forward.10} parent=1 // pred_region
      _
    $region33: #{feature_predictor_forward.10} parent=1 // pred_fallthru
      _
    %218 = vsyncpa [#allocation3], 1

// kernel: feature_predictor_forward.12
$region0: #{feature_predictor_forward.12}
  #allocation0 [shape = 'u32[]', space=smem, size = 0x4, offset = 0x4, fixed_abs, tag = 'smem constant byte address 0x4 - core index']
  #allocation1 [shape = 'u32[144,128]{1,0:T(1,128)}', space=vmem, size = 0x12000, scoped, tag = 'internal scratch']
  %s0 = inlined_call_operand.vmem [shape: f32[20,128], index: 0, kind: input, shape index: {}]
  %s1 = inlined_call_operand.hbm [shape: f32[16,20], index: 1, kind: input, shape index: {}]
  %s2 = inlined_call_operand.vmem [shape: f32[16,1], index: 2, kind: input, shape index: {}]
  %s3 = inlined_call_operand.hbm [shape: f32[8,16], index: 3, kind: input, shape index: {}]
  %s4 = inlined_call_operand.vmem [shape: f32[8,1], index: 4, kind: input, shape index: {}]
  %s5 = inlined_call_operand.vmem [shape: f32[8,128], index: 5, kind: output, shape index: {}]
  %s6 = sld [smem:[#allocation0]]
  $region38: #{feature_predictor_forward.12} parent=0
    _
  %s8 = ssub.s32 1, %s6
  %s9 = scalar_select 0, %s8, %s6
  $region1: #{feature_predictor_forward.12} parent=0
    #allocation2 [shape = 'u8[8192]{0}', space=vmem, size = 0x2000, scoped, tag = 'input window, operand 1, single buffered']
    #allocation3 [shape = 's32[1]{0}', space=sflag, size = 0x4, scoped, tag = 'scoped memory for feature_predictor_forward.12']
    #allocation4 [shape = 'u8[4096]{0}', space=vmem, size = 0x1000, scoped, tag = 'input window, operand 3, single buffered']
    #allocation5 [shape = 's32[1]{0}', space=sflag, size = 0x4, scoped, tag = 'scoped memory for feature_predictor_forward.12']
    %10 = vsyncpa [#allocation3], 0
    %11 = vsyncpa [#allocation5], 0
    // Predicated region
    $region2: #{feature_predictor_forward.12} parent=1 // pred_check
      _
    $region3: #{feature_predictor_forward.12} parent=1 // pred_check_branch
      %13 = sbr.rel (0) target = $region5
    $region4: #{feature_predictor_forward.12} parent=1 // pred_region
      _
    $region5: #{feature_predictor_forward.12} parent=1 // pred_fallthru
      _
    // Predicated region
    $region6: #{feature_predictor_forward.12} parent=1 // pred_check
      _
    $region7: #{feature_predictor_forward.12} parent=1 // pred_check_branch
      %15 = sbr.rel (0) target = $region9
    $region8: #{feature_predictor_forward.12} parent=1 // pred_region
      %s17 = ssub.s32 256, 256
      %18 = vsyncadd [#allocation3], %s17
      %s19 = sshll.u32 [#allocation2], 4
      %s20 = int_to_ptr.vmem [resolvable:$true] %s19
      %25 = dma.hbm_to_vmem [thread:$0]  %s1, 256, %s20, [#allocation3], 128, 128, 8
    $region9: #{feature_predictor_forward.12} parent=1 // pred_fallthru
      _
    // Predicated region
    $region10: #{feature_predictor_forward.12} parent=1 // pred_check
      _
    $region11: #{feature_predictor_forward.12} parent=1 // pred_check_branch
      %27 = sbr.rel (0) target = $region13
    $region12: #{feature_predictor_forward.12} parent=1 // pred_region
      _
    $region13: #{feature_predictor_forward.12} parent=1 // pred_fallthru
      _
    // Predicated region
    $region14: #{feature_predictor_forward.12} parent=1 // pred_check
      _
    $region15: #{feature_predictor_forward.12} parent=1 // pred_check_branch
      %29 = sbr.rel (0) target = $region17
    $region16: #{feature_predictor_forward.12} parent=1 // pred_region
      %s31 = ssub.s32 128, 128
      %32 = vsyncadd [#allocation5], %s31
      %s34 = sshll.u32 [#allocation4], 4
      %s35 = int_to_ptr.vmem [resolvable:$true] %s34
      %37 = dma.hbm_to_vmem [thread:$0]  %s3, 128, %s35, [#allocation5]
    $region17: #{feature_predictor_forward.12} parent=1 // pred_fallthru
      _
    // Predicated region
    $region18: #{feature_predictor_forward.12} parent=1 // pred_check
      _
    $region19: #{feature_predictor_forward.12} parent=1 // pred_check_branch
      %39 = sbr.rel (0) target = $region21
    $region20: #{feature_predictor_forward.12} parent=1 // pred_region
      _
    $region21: #{feature_predictor_forward.12} parent=1 // pred_fallthru
      _
    // Predicated region
    $region22: #{feature_predictor_forward.12} parent=1 // pred_check
      _
    $region23: #{feature_predictor_forward.12} parent=1 // pred_check_branch
      %41 = sbr.rel (0) target = $region25
    $region24: #{feature_predictor_forward.12} parent=1 // pred_region
      %42 = dma.done [#allocation3], 256
    $region25: #{feature_predictor_forward.12} parent=1 // pred_fallthru
      _
    // Predicated region
    $region26: #{feature_predictor_forward.12} parent=1 // pred_check
      _
    $region27: #{feature_predictor_forward.12} parent=1 // pred_check_branch
      %44 = sbr.rel (0) target = $region29
    $region28: #{feature_predictor_forward.12} parent=1 // pred_region
      %45 = dma.done [#allocation5], 128
    $region29: #{feature_predictor_forward.12} parent=1 // pred_fallthru
      _
    %v46 = vld [vmem:[%s0] sm:$0xff]
    %v47 = vld [vmem:[%s0 + $0x8] sm:$0xff]
    %v48 = vld [vmem:[%s0 + $0x10] sm:$0xf]
    %v49 = vld [vmem:[#allocation2] sm:$0xff]
    %v50 = vld [vmem:[#allocation2 + $0x8] sm:$0xff]
    %v51 = vld [vmem:[%s2] sm:$0xff]
    %v52 = vld [vmem:[%s2 + $0x8] sm:$0xff]
    %54 = vset.pattern.permute.xlu0 0
    %55 = vperm.xlu0 %54, %v51
    %v56 = vpop.permute.xlu0 %55
    %59 = vset.pattern.permute.xlu0 0
    %60 = vperm.xlu0 %59, %v52
    %v61 = vpop.permute.xlu0 %60
    %vm63 = vcmask 162816
    %v65 = vsel %vm63, %v49, 0
    %v68 = vsel %vm63, %v50, 0
    %vm70 = vcmask 1043456
    %v72 = vsel %vm70, %v48, 0
    %74 = vmatprep.subr.mxu0 0.0
    %75 = vmatpush1.msra.mxu0 %v46
    %76 = vmatprep.subr.mxu0 0.0
    %77 = vmatpush1.msra.mxu0 %v47
    %78 = vmatprep.subr.mxu0 0.0
    %79 = vmatpush1.msra.mxu0 %v72
    %80 = vmatprep.subr.mxu0 0.0
    %81 = vmatpush1.msra.mxu0 0.0
    %82 = vmatprep.subr.mxu0 0.0
    %83 = vmatpush1.msra.mxu0 0.0
    %84 = vmatprep.subr.mxu0 0.0
    %85 = vmatpush1.msra.mxu0 0.0
    %86 = vmatprep.subr.mxu0 0.0
    %87 = vmatpush1.msra.mxu0 0.0
    %88 = vmatprep.subr.mxu0 0.0
    %89 = vmatpush1.msra.mxu0 0.0
    %90 = vmatprep.subr.mxu0 0.0
    %91 = vmatpush1.msra.mxu0 0.0
    %92 = vmatprep.subr.mxu0 0.0
    %93 = vmatpush1.msra.mxu0 0.0
    %94 = vmatprep.subr.mxu0 0.0
    %95 = vmatpush1.msra.mxu0 0.0
    %96 = vmatprep.subr.mxu0 0.0
    %97 = vmatpush1.msra.mxu0 0.0
    %98 = vmatprep.subr.mxu0 0.0
    %99 = vmatpush1.msra.mxu0 0.0
    %100 = vmatprep.subr.mxu0 0.0
    %101 = vmatpush1.msra.mxu0 0.0
    %102 = vmatprep.subr.mxu0 0.0
    %103 = vmatpush1.msra.mxu0 0.0
    %104 = vmatprep.subr.mxu0 0.0
    %105 = vmatpush1.msra.mxu0 0.0
    %106 = vmatprep.subr.mxu0 0.0
    %107 = vmatpush1.msra.mxu0 0.0
    %108 = vmatprep.subr.mxu0 0.0
    %109 = vmatpush1.msra.mxu0 0.0
    %110 = vmatprep.subr.mxu0 0.0
    %111 = vmatpush1.msra.mxu0 0.0
    %112 = vmatprep.subr.mxu0 0.0
    %113 = vmatpush1.msra.mxu0 0.0
    %114 = vmatprep.subr.mxu0 0.0
    %115 = vmatpush1.msra.mxu0 0.0
    %116 = vmatprep.subr.mxu0 0.0
    %117 = vmatpush1.msra.mxu0 0.0
    %118 = vmatprep.subr.mxu0 0.0
    %119 = vmatpush1.msra.mxu0 0.0
    %120 = vmatprep.subr.mxu0 0.0
    %121 = vmatpush1.msra.mxu0 0.0
    %122 = vmatprep.subr.mxu0 0.0
    %123 = vmatpush1.msra.mxu0 0.0
    %124 = vmatprep.subr.mxu0 0.0
    %125 = vmatpush1.msra.mxu0 0.0
    %126 = vmatprep.subr.mxu0 0.0
    %127 = vmatpush1.msra.mxu0 0.0
    %128 = vmatprep.subr.mxu0 0.0
    %129 = vmatpush1.msra.mxu0 0.0
    %130 = vmatprep.subr.mxu0 0.0
    %131 = vmatpush1.msra.mxu0 0.0
    %132 = vmatprep.subr.mxu0 0.0
    %133 = vmatpush1.msra.mxu0 0.0
    %134 = vmatprep.subr.mxu0 0.0
    %135 = vmatpush1.msra.mxu0 0.0
    %136 = vmatprep.subr.mxu0 0.0
    %137 = vmatpush1.msra.mxu0 0.0
    %138 = vmatprep.mubr.f32.mxu0 0.0
    %139 = vmatmul.mubr.f32.gmra.mrb[0].mxu0 %v65
    %v140 = vpop.f32.mrb[0].mxu0
    %v141 = vadd.f32 %v56, %v140
    %v142 = vpop.f32.mrb[0].mxu0
    %143 = vmatprep.mubr.f32.mxu0 0.0
    %144 = vmatmul.mubr.f32.gmra.mrb[0].mxu0 %v68
    %v145 = vpop.f32.mrb[0].mxu0
    %v146 = vadd.f32 %v61, %v145
    %v147 = vpop.f32.mrb[0].mxu0
    %148 = vdwg.mxu0
    %v149 = vmax.f32 %v141, 0.0
    %v150 = vmax.f32 %v146, 0.0
    %v151 = vld [vmem:[#allocation4] sm:$0xff]
    %v152 = vld [vmem:[%s4] sm:$0xff]
    %154 = vset.pattern.permute.xlu0 0
    %155 = vperm.xlu0 %154, %v152
    %v156 = vpop.permute.xlu0 %155
    %vm158 = vcmask 130048
    %v160 = vsel %vm158, %v151, 0
    %162 = vmatprep.subr.mxu0 0.0
    %163 = vmatpush1.msra.mxu0 %v149
    %164 = vmatprep.subr.mxu0 0.0
    %165 = vmatpush1.msra.mxu0 %v150
    %166 = vmatprep.subr.mxu0 0.0
    %167 = vmatpush1.msra.mxu0 0.0
    %168 = vmatprep.subr.mxu0 0.0
    %169 = vmatpush1.msra.mxu0 0.0
    %170 = vmatprep.subr.mxu0 0.0
    %171 = vmatpush1.msra.mxu0 0.0
    %172 = vmatprep.subr.mxu0 0.0
    %173 = vmatpush1.msra.mxu0 0.0
    %174 = vmatprep.subr.mxu0 0.0
    %175 = vmatpush1.msra.mxu0 0.0
    %176 = vmatprep.subr.mxu0 0.0
    %177 = vmatpush1.msra.mxu0 0.0
    %178 = vmatprep.subr.mxu0 0.0
    %179 = vmatpush1.msra.mxu0 0.0
    %180 = vmatprep.subr.mxu0 0.0
    %181 = vmatpush1.msra.mxu0 0.0
    %182 = vmatprep.subr.mxu0 0.0
    %183 = vmatpush1.msra.mxu0 0.0
    %184 = vmatprep.subr.mxu0 0.0
    %185 = vmatpush1.msra.mxu0 0.0
    %186 = vmatprep.subr.mxu0 0.0
    %187 = vmatpush1.msra.mxu0 0.0
    %188 = vmatprep.subr.mxu0 0.0
    %189 = vmatpush1.msra.mxu0 0.0
    %190 = vmatprep.subr.mxu0 0.0
    %191 = vmatpush1.msra.mxu0 0.0
    %192 = vmatprep.subr.mxu0 0.0
    %193 = vmatpush1.msra.mxu0 0.0
    %194 = vmatprep.subr.mxu0 0.0
    %195 = vmatpush1.msra.mxu0 0.0
    %196 = vmatprep.subr.mxu0 0.0
    %197 = vmatpush1.msra.mxu0 0.0
    %198 = vmatprep.subr.mxu0 0.0
    %199 = vmatpush1.msra.mxu0 0.0
    %200 = vmatprep.subr.mxu0 0.0
    %201 = vmatpush1.msra.mxu0 0.0
    %202 = vmatprep.subr.mxu0 0.0
    %203 = vmatpush1.msra.mxu0 0.0
    %204 = vmatprep.subr.mxu0 0.0
    %205 = vmatpush1.msra.mxu0 0.0
    %206 = vmatprep.subr.mxu0 0.0
    %207 = vmatpush1.msra.mxu0 0.0
    %208 = vmatprep.subr.mxu0 0.0
    %209 = vmatpush1.msra.mxu0 0.0
    %210 = vmatprep.subr.mxu0 0.0
    %211 = vmatpush1.msra.mxu0 0.0
    %212 = vmatprep.subr.mxu0 0.0
    %213 = vmatpush1.msra.mxu0 0.0
    %214 = vmatprep.subr.mxu0 0.0
    %215 = vmatpush1.msra.mxu0 0.0
    %216 = vmatprep.subr.mxu0 0.0
    %217 = vmatpush1.msra.mxu0 0.0
    %218 = vmatprep.subr.mxu0 0.0
    %219 = vmatpush1.msra.mxu0 0.0
    %220 = vmatprep.subr.mxu0 0.0
    %221 = vmatpush1.msra.mxu0 0.0
    %222 = vmatprep.subr.mxu0 0.0
    %223 = vmatpush1.msra.mxu0 0.0
    %224 = vmatprep.subr.mxu0 0.0
    %225 = vmatpush1.msra.mxu0 0.0
    %226 = vmatprep.mubr.f32.mxu0 0.0
    %227 = vmatmul.mubr.f32.gmra.mrb[0].mxu0 %v160
    %v228 = vpop.f32.mrb[0].mxu0
    %v229 = vadd.f32 %v156, %v228
    %v230 = vpop.f32.mrb[0].mxu0
    %231 = vdwg.mxu0
    %v232 = vmax.f32 %v229, 0.0
    %233 = vst [vmem:[%s5] sm:$0xff] %v232
    // Predicated region
    $region30: #{feature_predictor_forward.12} parent=1 // pred_check
      _
    $region31: #{feature_predictor_forward.12} parent=1 // pred_check_branch
      %235 = sbr.rel (0) target = $region33
    $region32: #{feature_predictor_forward.12} parent=1 // pred_region
      _
    $region33: #{feature_predictor_forward.12} parent=1 // pred_fallthru
      _
    // Predicated region
    $region34: #{feature_predictor_forward.12} parent=1 // pred_check
      _
    $region35: #{feature_predictor_forward.12} parent=1 // pred_check_branch
      %237 = sbr.rel (0) target = $region37
    $region36: #{feature_predictor_forward.12} parent=1 // pred_region
      _
    $region37: #{feature_predictor_forward.12} parent=1 // pred_fallthru
      _
    %238 = vsyncpa [#allocation3], 1
    %239 = vsyncpa [#allocation5], 1

// kernel: feature_predictor_forward.11
$region0: #{feature_predictor_forward.11}
  #allocation0 [shape = 'u32[]', space=smem, size = 0x4, offset = 0x4, fixed_abs, tag = 'smem constant byte address 0x4 - core index']
  #allocation1 [shape = 'u32[144,128]{1,0:T(1,128)}', space=vmem, size = 0x12000, scoped, tag = 'internal scratch']
  %s0 = inlined_call_operand.vmem [shape: f32[2,8,64], index: 0, kind: input, shape index: {}, may-alias: {0,1,2}]
  %s1 = inlined_call_operand.vmem [shape: f32[2,8,64], index: 1, kind: input, shape index: {}, may-alias: {0,1,2}]
  %s2 = inlined_call_operand.vmem [shape: f32[2,8,64], index: 2, kind: input, shape index: {}, may-alias: {0,1,2}]
  %s3 = inlined_call_operand.vmem [shape: f32[8,8], index: 3, kind: input, shape index: {}]
  %s4 = inlined_call_operand.vmem [shape: f32[8,1], index: 4, kind: input, shape index: {}]
  %s5 = inlined_call_operand.vmem [shape: f32[8,8], index: 5, kind: input, shape index: {}]
  %s6 = inlined_call_operand.vmem [shape: f32[8,1], index: 6, kind: input, shape index: {}]
  %s7 = inlined_call_operand.vmem [shape: f32[16,8], index: 7, kind: input, shape index: {}]
  %s8 = inlined_call_operand.vmem [shape: f32[16,1], index: 8, kind: input, shape index: {}]
  %s9 = inlined_call_operand.vmem [shape: f32[8,1], index: 9, kind: input, shape index: {}]
  %s10 = inlined_call_operand.vmem [shape: f32[2,8,64], index: 10, kind: output, shape index: {0}]
  %s11 = inlined_call_operand.vmem [shape: f32[2,64,64], index: 11, kind: output, shape index: {1}]
  %12 = xla_tuple %s10, %s11
  %s13 = sld [smem:[#allocation0]]
  $region81: #{feature_predictor_forward.11} parent=0
    _
  %s15 = ssub.s32 1, %s13
  %s16 = scalar_select 0, %s15, %s13
  loop: start=0, step=1, limit=4
  $region2: #{feature_predictor_forward.11} parent=0 // loop_pre_header
    _
  $region3: #{feature_predictor_forward.11} parent=0 // loop_header
    %s18 = sphi 0, %s22
    %p19 = scmp.ge.s32.totalorder %s18, 4
    %s28 = sphi 0, %s30
    %s31 = sphi 0, %s28
    %s32 = sphi 0, %s31
    %s48 = sphi 0, %s32
    %s54 = sphi 0, %s56
    %s57 = sphi 0, %s54
    %s58 = sphi 0, %s57
    %s74 = sphi 0, %s58
    %s80 = sphi 0, %s82
    %s83 = sphi 0, %s80
    %s84 = sphi 0, %s83
    %s100 = sphi 0, %s84
    %s104 = sphi 0, %s104
    %s106 = sphi 0, %s104
    %s107 = sphi 0, %s106
    %s121 = sphi 0, %s107
    %s125 = sphi 0, %s125
    %s127 = sphi 0, %s125
    %s128 = sphi 0, %s127
    %s142 = sphi 0, %s128
    %s146 = sphi 0, %s146
    %s148 = sphi 0, %s146
    %s149 = sphi 0, %s148
    %s163 = sphi 0, %s149
    %s167 = sphi 0, %s167
    %s169 = sphi 0, %s167
    %s170 = sphi 0, %s169
    %s184 = sphi 0, %s170
    %s188 = sphi 0, %s188
    %s190 = sphi 0, %s188
    %s191 = sphi 0, %s190
    %s205 = sphi 0, %s191
    %s209 = sphi 0, %s209
    %s211 = sphi 0, %s209
    %s212 = sphi 0, %s211
    %s226 = sphi 0, %s212
    %s230 = sphi 0, %s230
    %s232 = sphi 0, %s230
    %s233 = sphi 0, %s232
    %s247 = sphi 0, %s233
    %s253 = sphi 0, %s255
    %s256 = sphi 0, %s253
    %s257 = sphi 0, %s256
    %s273 = sphi 0, %s257
    %s279 = sphi 0, %s281
    %s282 = sphi 0, %s279
    %s283 = sphi 0, %s282
    %s299 = sphi 0, %s283
  $region4: #{feature_predictor_forward.11} parent=0 // loop_header_branch
    %21 = sbr.rel (%p19) target = $region8
  $region5: #{feature_predictor_forward.11} parent=0 // loop_body
    %s23 = ssub.s32 %s18, 1
    %s24 = ssub.s32 %s18, 2
    %s25 = sadd.s32 %s18, 1
    %s26 = ssub.s32 %s18, %s25
    %p27 = scmp.eq.s32.totalorder %s26, 0
    %s29 = sadd.s32 %s28, 1
    %s30 = scalar_select %p27, %s28, %s29
    %p33 = pneg %p27
    %p34 = scmp.eq.s32.totalorder %s18, 1
    %p35 = por %p33, %p34
    %p36 = scmp.ne.s32.totalorder %s28, %s31
    %p37 = scmp.eq.s32.totalorder %s18, 0
    %p38 = por %p36, %p37
    %p39 = scmp.ne.s32.totalorder %s28, %s31
    %p40 = scmp.eq.s32.totalorder %s23, 1
    %p41 = por %p39, %p40
    %p42 = scmp.ne.s32.totalorder %s31, %s32
    %p43 = scmp.eq.s32.totalorder %s23, 0
    %p44 = por %p42, %p43
    %p45 = scmp.ne.s32.totalorder %s31, %s32
    %p46 = scmp.eq.s32.totalorder %s24, 1
    %p47 = por %p45, %p46
    %p49 = scmp.ne.s32.totalorder %s32, %s48
    %p50 = scmp.eq.s32.totalorder %s24, 0
    %p51 = por %p49, %p50
    %s52 = ssub.s32 %s18, %s25
    %p53 = scmp.eq.s32.totalorder %s52, 0
    %s55 = sadd.s32 %s54, 1
    %s56 = scalar_select %p53, %s54, %s55
    %p59 = pneg %p53
    %p60 = scmp.eq.s32.totalorder %s18, 1
    %p61 = por %p59, %p60
    %p62 = scmp.ne.s32.totalorder %s54, %s57
    %p63 = scmp.eq.s32.totalorder %s18, 0
    %p64 = por %p62, %p63
    %p65 = scmp.ne.s32.totalorder %s54, %s57
    %p66 = scmp.eq.s32.totalorder %s23, 1
    %p67 = por %p65, %p66
    %p68 = scmp.ne.s32.totalorder %s57, %s58
    %p69 = scmp.eq.s32.totalorder %s23, 0
    %p70 = por %p68, %p69
    %p71 = scmp.ne.s32.totalorder %s57, %s58
    %p72 = scmp.eq.s32.totalorder %s24, 1
    %p73 = por %p71, %p72
    %p75 = scmp.ne.s32.totalorder %s58, %s74
    %p76 = scmp.eq.s32.totalorder %s24, 0
    %p77 = por %p75, %p76
    %s78 = ssub.s32 %s18, %s25
    %p79 = scmp.eq.s32.totalorder %s78, 0
    %s81 = sadd.s32 %s80, 1
    %s82 = scalar_select %p79, %s80, %s81
    %p85 = pneg %p79
    %p86 = scmp.eq.s32.totalorder %s18, 1
    %p87 = por %p85, %p86
    %p88 = scmp.ne.s32.totalorder %s80, %s83
    %p89 = scmp.eq.s32.totalorder %s18, 0
    %p90 = por %p88, %p89
    %p91 = scmp.ne.s32.totalorder %s80, %s83
    %p92 = scmp.eq.s32.totalorder %s23, 1
    %p93 = por %p91, %p92
    %p94 = scmp.ne.s32.totalorder %s83, %s84
    %p95 = scmp.eq.s32.totalorder %s23, 0
    %p96 = por %p94, %p95
    %p97 = scmp.ne.s32.totalorder %s83, %s84
    %p98 = scmp.eq.s32.totalorder %s24, 1
    %p99 = por %p97, %p98
    %p101 = scmp.ne.s32.totalorder %s84, %s100
    %p102 = scmp.eq.s32.totalorder %s24, 0
    %p103 = por %p101, %p102
    %s105 = sadd.s32 %s104, 1
    %p108 = scmp.eq.s32.totalorder %s18, 1
    %p109 = scmp.ne.s32.totalorder %s104, %s106
    %p110 = scmp.eq.s32.totalorder %s18, 0
    %p111 = por %p109, %p110
    %p112 = scmp.ne.s32.totalorder %s104, %s106
    %p113 = scmp.eq.s32.totalorder %s23, 1
    %p114 = por %p112, %p113
    %p115 = scmp.ne.s32.totalorder %s106, %s107
    %p116 = scmp.eq.s32.totalorder %s23, 0
    %p117 = por %p115, %p116
    %p118 = scmp.ne.s32.totalorder %s106, %s107
    %p119 = scmp.eq.s32.totalorder %s24, 1
    %p120 = por %p118, %p119
    %p122 = scmp.ne.s32.totalorder %s107, %s121
    %p123 = scmp.eq.s32.totalorder %s24, 0
    %p124 = por %p122, %p123
    %s126 = sadd.s32 %s125, 1
    %p129 = scmp.eq.s32.totalorder %s18, 1
    %p130 = scmp.ne.s32.totalorder %s125, %s127
    %p131 = scmp.eq.s32.totalorder %s18, 0
    %p132 = por %p130, %p131
    %p133 = scmp.ne.s32.totalorder %s125, %s127
    %p134 = scmp.eq.s32.totalorder %s23, 1
    %p135 = por %p133, %p134
    %p136 = scmp.ne.s32.totalorder %s127, %s128
    %p137 = scmp.eq.s32.totalorder %s23, 0
    %p138 = por %p136, %p137
    %p139 = scmp.ne.s32.totalorder %s127, %s128
    %p140 = scmp.eq.s32.totalorder %s24, 1
    %p141 = por %p139, %p140
    %p143 = scmp.ne.s32.totalorder %s128, %s142
    %p144 = scmp.eq.s32.totalorder %s24, 0
    %p145 = por %p143, %p144
    %s147 = sadd.s32 %s146, 1
    %p150 = scmp.eq.s32.totalorder %s18, 1
    %p151 = scmp.ne.s32.totalorder %s146, %s148
    %p152 = scmp.eq.s32.totalorder %s18, 0
    %p153 = por %p151, %p152
    %p154 = scmp.ne.s32.totalorder %s146, %s148
    %p155 = scmp.eq.s32.totalorder %s23, 1
    %p156 = por %p154, %p155
    %p157 = scmp.ne.s32.totalorder %s148, %s149
    %p158 = scmp.eq.s32.totalorder %s23, 0
    %p159 = por %p157, %p158
    %p160 = scmp.ne.s32.totalorder %s148, %s149
    %p161 = scmp.eq.s32.totalorder %s24, 1
    %p162 = por %p160, %p161
    %p164 = scmp.ne.s32.totalorder %s149, %s163
    %p165 = scmp.eq.s32.totalorder %s24, 0
    %p166 = por %p164, %p165
    %s168 = sadd.s32 %s167, 1
    %p171 = scmp.eq.s32.totalorder %s18, 1
    %p172 = scmp.ne.s32.totalorder %s167, %s169
    %p173 = scmp.eq.s32.totalorder %s18, 0
    %p174 = por %p172, %p173
    %p175 = scmp.ne.s32.totalorder %s167, %s169
    %p176 = scmp.eq.s32.totalorder %s23, 1
    %p177 = por %p175, %p176
    %p178 = scmp.ne.s32.totalorder %s169, %s170
    %p179 = scmp.eq.s32.totalorder %s23, 0
    %p180 = por %p178, %p179
    %p181 = scmp.ne.s32.totalorder %s169, %s170
    %p182 = scmp.eq.s32.totalorder %s24, 1
    %p183 = por %p181, %p182
    %p185 = scmp.ne.s32.totalorder %s170, %s184
    %p186 = scmp.eq.s32.totalorder %s24, 0
    %p187 = por %p185, %p186
    %s189 = sadd.s32 %s188, 1
    %p192 = scmp.eq.s32.totalorder %s18, 1
    %p193 = scmp.ne.s32.totalorder %s188, %s190
    %p194 = scmp.eq.s32.totalorder %s18, 0
    %p195 = por %p193, %p194
    %p196 = scmp.ne.s32.totalorder %s188, %s190
    %p197 = scmp.eq.s32.totalorder %s23, 1
    %p198 = por %p196, %p197
    %p199 = scmp.ne.s32.totalorder %s190, %s191
    %p200 = scmp.eq.s32.totalorder %s23, 0
    %p201 = por %p199, %p200
    %p202 = scmp.ne.s32.totalorder %s190, %s191
    %p203 = scmp.eq.s32.totalorder %s24, 1
    %p204 = por %p202, %p203
    %p206 = scmp.ne.s32.totalorder %s191, %s205
    %p207 = scmp.eq.s32.totalorder %s24, 0
    %p208 = por %p206, %p207
    %s210 = sadd.s32 %s209, 1
    %p213 = scmp.eq.s32.totalorder %s18, 1
    %p214 = scmp.ne.s32.totalorder %s209, %s211
    %p215 = scmp.eq.s32.totalorder %s18, 0
    %p216 = por %p214, %p215
    %p217 = scmp.ne.s32.totalorder %s209, %s211
    %p218 = scmp.eq.s32.totalorder %s23, 1
    %p219 = por %p217, %p218
    %p220 = scmp.ne.s32.totalorder %s211, %s212
    %p221 = scmp.eq.s32.totalorder %s23, 0
    %p222 = por %p220, %p221
    %p223 = scmp.ne.s32.totalorder %s211, %s212
    %p224 = scmp.eq.s32.totalorder %s24, 1
    %p225 = por %p223, %p224
    %p227 = scmp.ne.s32.totalorder %s212, %s226
    %p228 = scmp.eq.s32.totalorder %s24, 0
    %p229 = por %p227, %p228
    %s231 = sadd.s32 %s230, 1
    %p234 = scmp.eq.s32.totalorder %s18, 1
    %p235 = scmp.ne.s32.totalorder %s230, %s232
    %p236 = scmp.eq.s32.totalorder %s18, 0
    %p237 = por %p235, %p236
    %p238 = scmp.ne.s32.totalorder %s230, %s232
    %p239 = scmp.eq.s32.totalorder %s23, 1
    %p240 = por %p238, %p239
    %p241 = scmp.ne.s32.totalorder %s232, %s233
    %p242 = scmp.eq.s32.totalorder %s23, 0
    %p243 = por %p241, %p242
    %p244 = scmp.ne.s32.totalorder %s232, %s233
    %p245 = scmp.eq.s32.totalorder %s24, 1
    %p246 = por %p244, %p245
    %p248 = scmp.ne.s32.totalorder %s233, %s247
    %p249 = scmp.eq.s32.totalorder %s24, 0
    %p250 = por %p248, %p249
    %s251 = ssub.s32 %s18, %s25
    %p252 = scmp.eq.s32.totalorder %s251, 0
    %s254 = sadd.s32 %s253, 1
    %s255 = scalar_select %p252, %s253, %s254
    %p258 = pneg %p252
    %p259 = scmp.eq.s32.totalorder %s18, 1
    %p260 = por %p258, %p259
    %p261 = scmp.ne.s32.totalorder %s253, %s256
    %p262 = scmp.eq.s32.totalorder %s18, 0
    %p263 = por %p261, %p262
    %p264 = scmp.ne.s32.totalorder %s253, %s256
    %p265 = scmp.eq.s32.totalorder %s23, 1
    %p266 = por %p264, %p265
    %p267 = scmp.ne.s32.totalorder %s256, %s257
    %p268 = scmp.eq.s32.totalorder %s23, 0
    %p269 = por %p267, %p268
    %p270 = scmp.ne.s32.totalorder %s256, %s257
    %p271 = scmp.eq.s32.totalorder %s24, 1
    %p272 = por %p270, %p271
    %p274 = scmp.ne.s32.totalorder %s257, %s273
    %p275 = scmp.eq.s32.totalorder %s24, 0
    %p276 = por %p274, %p275
    %s277 = ssub.s32 %s18, %s25
    %p278 = scmp.eq.s32.totalorder %s277, 0
    %s280 = sadd.s32 %s279, 1
    %s281 = scalar_select %p278, %s279, %s280
    %p284 = pneg %p278
    %p285 = scmp.eq.s32.totalorder %s18, 1
    %p286 = por %p284, %p285
    %p287 = scmp.ne.s32.totalorder %s279, %s282
    %p288 = scmp.eq.s32.totalorder %s18, 0
    %p289 = por %p287, %p288
    %p290 = scmp.ne.s32.totalorder %s279, %s282
    %p291 = scmp.eq.s32.totalorder %s23, 1
    %p292 = por %p290, %p291
    %p293 = scmp.ne.s32.totalorder %s282, %s283
    %p294 = scmp.eq.s32.totalorder %s23, 0
    %p295 = por %p293, %p294
    %p296 = scmp.ne.s32.totalorder %s282, %s283
    %p297 = scmp.eq.s32.totalorder %s24, 1
    %p298 = por %p296, %p297
    %p300 = scmp.ne.s32.totalorder %s283, %s299
    %p301 = scmp.eq.s32.totalorder %s24, 0
    %p302 = por %p300, %p301
    %p303 = scmp.le.s32.totalorder 1, %s18
    %p304 = scmp.lt.s32.totalorder %s18, 3
    %p305 = pnand %p303, %p304
    %p306 = pneg %p305
    // Predicated region
    $region9: #{feature_predictor_forward.11} parent=5 // pred_check
      _
    $region10: #{feature_predictor_forward.11} parent=5 // pred_check_branch
      %308 = sbr.rel (%p305) target = $region12
    $region11: #{feature_predictor_forward.11} parent=5 // pred_region
      %s309 = ssub.s32 %s18, 1
      // Predicated region
      $region13: #{feature_predictor_forward.11} parent=11 // pred_check
        %p310 = pneg %p117
      $region14: #{feature_predictor_forward.11} parent=11 // pred_check_branch
        %312 = sbr.rel (%p310) target = $region16
      $region15: #{feature_predictor_forward.11} parent=11 // pred_region
        _
      $region16: #{feature_predictor_forward.11} parent=11 // pred_fallthru
        _
      // Predicated region
      $region17: #{feature_predictor_forward.11} parent=11 // pred_check
        %p313 = pneg %p138
      $region18: #{feature_predictor_forward.11} parent=11 // pred_check_branch
        %315 = sbr.rel (%p313) target = $region20
      $region19: #{feature_predictor_forward.11} parent=11 // pred_region
        _
      $region20: #{feature_predictor_forward.11} parent=11 // pred_fallthru
        _
      // Predicated region
      $region21: #{feature_predictor_forward.11} parent=11 // pred_check
        %p316 = pneg %p159
      $region22: #{feature_predictor_forward.11} parent=11 // pred_check_branch
        %318 = sbr.rel (%p316) target = $region24
      $region23: #{feature_predictor_forward.11} parent=11 // pred_region
        _
      $region24: #{feature_predictor_forward.11} parent=11 // pred_fallthru
        _
      // Predicated region
      $region25: #{feature_predictor_forward.11} parent=11 // pred_check
        %p319 = pneg %p180
      $region26: #{feature_predictor_forward.11} parent=11 // pred_check_branch
        %321 = sbr.rel (%p319) target = $region28
      $region27: #{feature_predictor_forward.11} parent=11 // pred_region
        _
      $region28: #{feature_predictor_forward.11} parent=11 // pred_fallthru
        _
      // Predicated region
      $region29: #{feature_predictor_forward.11} parent=11 // pred_check
        %p322 = pneg %p201
      $region30: #{feature_predictor_forward.11} parent=11 // pred_check_branch
        %324 = sbr.rel (%p322) target = $region32
      $region31: #{feature_predictor_forward.11} parent=11 // pred_region
        _
      $region32: #{feature_predictor_forward.11} parent=11 // pred_fallthru
        _
      // Predicated region
      $region33: #{feature_predictor_forward.11} parent=11 // pred_check
        %p325 = pneg %p222
      $region34: #{feature_predictor_forward.11} parent=11 // pred_check_branch
        %327 = sbr.rel (%p325) target = $region36
      $region35: #{feature_predictor_forward.11} parent=11 // pred_region
        _
      $region36: #{feature_predictor_forward.11} parent=11 // pred_fallthru
        _
      // Predicated region
      $region37: #{feature_predictor_forward.11} parent=11 // pred_check
        %p328 = pneg %p243
      $region38: #{feature_predictor_forward.11} parent=11 // pred_check_branch
        %330 = sbr.rel (%p328) target = $region40
      $region39: #{feature_predictor_forward.11} parent=11 // pred_region
        _
      $region40: #{feature_predictor_forward.11} parent=11 // pred_fallthru
        _
    $region12: #{feature_predictor_forward.11} parent=5 // pred_fallthru
      _
    %p331 = scmp.lt.s32.totalorder %s18, 2
    // Predicated region
    $region41: #{feature_predictor_forward.11} parent=5 // pred_check
      %p332 = pneg %p331
    $region42: #{feature_predictor_forward.11} parent=5 // pred_check_branch
      %334 = sbr.rel (%p332) target = $region44
    $region43: #{feature_predictor_forward.11} parent=5 // pred_region
      // Predicated region
      $region45: #{feature_predictor_forward.11} parent=43 // pred_check
        %p335 = pneg %p38
      $region46: #{feature_predictor_forward.11} parent=43 // pred_check_branch
        %337 = sbr.rel (%p335) target = $region48
      $region47: #{feature_predictor_forward.11} parent=43 // pred_region
        %p338 = scmp.lt.s32.totalorder %s18, 1
        %s339 = scalar_select %p338, %s18, 1
        %s340 = smul.addr %s339, 8
        %s341 = scalar_lea.vmem %s0, %s340
      $region48: #{feature_predictor_forward.11} parent=43 // pred_fallthru
        _
      // Predicated region
      $region49: #{feature_predictor_forward.11} parent=43 // pred_check
        %p342 = pneg %p64
      $region50: #{feature_predictor_forward.11} parent=43 // pred_check_branch
        %344 = sbr.rel (%p342) target = $region52
      $region51: #{feature_predictor_forward.11} parent=43 // pred_region
        %p345 = scmp.lt.s32.totalorder %s18, 1
        %s346 = scalar_select %p345, %s18, 1
        %s347 = smul.addr %s346, 8
        %s348 = scalar_lea.vmem %s1, %s347
      $region52: #{feature_predictor_forward.11} parent=43 // pred_fallthru
        _
      // Predicated region
      $region53: #{feature_predictor_forward.11} parent=43 // pred_check
        %p349 = pneg %p90
      $region54: #{feature_predictor_forward.11} parent=43 // pred_check_branch
        %351 = sbr.rel (%p349) target = $region56
      $region55: #{feature_predictor_forward.11} parent=43 // pred_region
        %p352 = scmp.lt.s32.totalorder %s18, 1
        %s353 = scalar_select %p352, %s18, 1
        %s354 = smul.addr %s353, 8
        %s355 = scalar_lea.vmem %s2, %s354
      $region56: #{feature_predictor_forward.11} parent=43 // pred_fallthru
        _
    $region44: #{feature_predictor_forward.11} parent=5 // pred_fallthru
      _
    %p356 = scmp.le.s32.totalorder 1, %s18
    %p357 = scmp.lt.s32.totalorder %s18, 3
    %p358 = pnand %p356, %p357
    %p359 = pneg %p358
    // Predicated region
    $region57: #{feature_predictor_forward.11} parent=5 // pred_check
      _
    $region58: #{feature_predictor_forward.11} parent=5 // pred_check_branch
      %361 = sbr.rel (%p358) target = $region60
    $region59: #{feature_predictor_forward.11} parent=5 // pred_region
      %s362 = ssub.s32 %s18, 1
      %p363 = scmp.lt.s32.totalorder %s23, 1
      %s364 = scalar_select %p363, %s23, 1
      %s365 = smul.addr %s364, 8
      %s366 = scalar_lea.vmem %s0, %s365
      %p367 = pneg %p44
      %p368 = pneg %p41
      %p369 = scmp.lt.s32.totalorder %s23, 1
      %s370 = scalar_select %p369, %s23, 1
      %s371 = smul.addr %s370, 8
      %s372 = scalar_lea.vmem %s1, %s371
      %p373 = pneg %p70
      %p374 = pneg %p67
      %p375 = scmp.lt.s32.totalorder %s23, 1
      %s376 = scalar_select %p375, %s23, 1
      %s377 = smul.addr %s376, 8
      %s378 = scalar_lea.vmem %s2, %s377
      %p379 = pneg %p96
      %p380 = pneg %p93
      %p381 = pneg %p117
      %p382 = pneg %p114
      %p383 = pneg %p138
      %p384 = pneg %p135
      %p385 = pneg %p159
      %p386 = pneg %p156
      %p387 = pneg %p180
      %p388 = pneg %p177
      %p389 = pneg %p201
      %p390 = pneg %p198
      %p391 = pneg %p222
      %p392 = pneg %p219
      %p393 = pneg %p243
      %p394 = pneg %p240
      %p395 = pneg %p269
      %p396 = pneg %p266
      %p397 = scmp.lt.s32.totalorder %s23, 1
      %s398 = scalar_select %p397, %s23, 1
      %s399 = smul.addr %s398, 8
      %s400 = scalar_lea.vmem %s10, %s399
      %p401 = pneg %p295
      %p402 = pneg %p292
      %p403 = scmp.lt.s32.totalorder %s23, 1
      %s404 = scalar_select %p403, %s23, 1
      %s405 = smul.addr %s404, 8
      %s406 = smul.addr %s405, 8
      %s407 = scalar_lea.vmem %s11, %s406
      %p408 = scmp.lt.s32.totalorder %s23, 1
      %s409 = scalar_select %p408, %s23, 1
      %s410 = smul.addr %s409, 8
      %s411 = scalar_lea.vmem %s0, %s410
      %p412 = scmp.lt.s32.totalorder %s23, 1
      %s413 = scalar_select %p412, %s23, 1
      %s414 = smul.addr %s413, 8
      %s415 = scalar_lea.vmem %s1, %s414
      %p416 = scmp.lt.s32.totalorder %s23, 1
      %s417 = scalar_select %p416, %s23, 1
      %s418 = smul.addr %s417, 8
      %s419 = scalar_lea.vmem %s2, %s418
      %p420 = scmp.lt.s32.totalorder %s23, 1
      %s421 = scalar_select %p420, %s23, 1
      %s422 = smul.addr %s421, 8
      %s423 = scalar_lea.vmem %s10, %s422
      %p424 = scmp.lt.s32.totalorder %s23, 1
      %s425 = scalar_select %p424, %s23, 1
      %s426 = smul.addr %s425, 8
      %s427 = smul.addr %s426, 8
      %s428 = scalar_lea.vmem %s11, %s427
      %v429 = vld [vmem:[%s411] sm:$0xff]
      %v430 = vld [vmem:[%s415] sm:$0xff]
      %v431 = vld [vmem:[%s419] sm:$0xff]
      %v432 = vld [vmem:[%s3] sm:$0xff]
      %v433 = vld [vmem:[%s4] sm:$0xff]
      %435 = vset.pattern.permute.xlu0 0
      %436 = vperm.xlu0 %435, %v433
      %v437 = vpop.permute.xlu0 %436
      %vm439 = vcmask 64512
      %v441 = vsel %vm439, %v432, 0
      %443 = vmatprep.subr.mxu0 0.0
      %444 = vmatpush1.msra.mxu0 %v429
      %445 = vmatprep.subr.mxu0 0.0
      %446 = vmatpush1.msra.mxu0 0.0
      %447 = vmatprep.subr.mxu0 0.0
      %448 = vmatpush1.msra.mxu0 0.0
      %449 = vmatprep.subr.mxu0 0.0
      %450 = vmatpush1.msra.mxu0 0.0
      %451 = vmatprep.subr.mxu0 0.0
      %452 = vmatpush1.msra.mxu0 0.0
      %453 = vmatprep.subr.mxu0 0.0
      %454 = vmatpush1.msra.mxu0 0.0
      %455 = vmatprep.subr.mxu0 0.0
      %456 = vmatpush1.msra.mxu0 0.0
      %457 = vmatprep.subr.mxu0 0.0
      %458 = vmatpush1.msra.mxu0 0.0
      %459 = vmatprep.subr.mxu0 0.0
      %460 = vmatpush1.msra.mxu0 0.0
      %461 = vmatprep.subr.mxu0 0.0
      %462 = vmatpush1.msra.mxu0 0.0
      %463 = vmatprep.subr.mxu0 0.0
      %464 = vmatpush1.msra.mxu0 0.0
      %465 = vmatprep.subr.mxu0 0.0
      %466 = vmatpush1.msra.mxu0 0.0
      %467 = vmatprep.subr.mxu0 0.0
      %468 = vmatpush1.msra.mxu0 0.0
      %469 = vmatprep.subr.mxu0 0.0
      %470 = vmatpush1.msra.mxu0 0.0
      %471 = vmatprep.subr.mxu0 0.0
      %472 = vmatpush1.msra.mxu0 0.0
      %473 = vmatprep.subr.mxu0 0.0
      %474 = vmatpush1.msra.mxu0 0.0
      %475 = vmatprep.subr.mxu0 0.0
      %476 = vmatpush1.msra.mxu0 0.0
      %477 = vmatprep.subr.mxu0 0.0
      %478 = vmatpush1.msra.mxu0 0.0
      %479 = vmatprep.subr.mxu0 0.0
      %480 = vmatpush1.msra.mxu0 0.0
      %481 = vmatprep.subr.mxu0 0.0
      %482 = vmatpush1.msra.mxu0 0.0
      %483 = vmatprep.subr.mxu0 0.0
      %484 = vmatpush1.msra.mxu0 0.0
      %485 = vmatprep.subr.mxu0 0.0
      %486 = vmatpush1.msra.mxu0 0.0
      %487 = vmatprep.subr.mxu0 0.0
      %488 = vmatpush1.msra.mxu0 0.0
      %489 = vmatprep.subr.mxu0 0.0
      %490 = vmatpush1.msra.mxu0 0.0
      %491 = vmatprep.subr.mxu0 0.0
      %492 = vmatpush1.msra.mxu0 0.0
      %493 = vmatprep.subr.mxu0 0.0
      %494 = vmatpush1.msra.mxu0 0.0
      %495 = vmatprep.subr.mxu0 0.0
      %496 = vmatpush1.msra.mxu0 0.0
      %497 = vmatprep.subr.mxu0 0.0
      %498 = vmatpush1.msra.mxu0 0.0
      %499 = vmatprep.subr.mxu0 0.0
      %500 = vmatpush1.msra.mxu0 0.0
      %501 = vmatprep.subr.mxu0 0.0
      %502 = vmatpush1.msra.mxu0 0.0
      %503 = vmatprep.subr.mxu0 0.0
      %504 = vmatpush1.msra.mxu0 0.0
      %505 = vmatprep.subr.mxu0 0.0
      %506 = vmatpush1.msra.mxu0 0.0
      %507 = vmatprep.mubr.f32.mxu0 0.0
      %508 = vmatmul.mubr.f32.gmra.mrb[0].mxu0 %v441
      %v509 = vpop.f32.mrb[0].mxu0
      %v510 = vadd.f32 %v437, %v509
      %v511 = vpop.f32.mrb[0].mxu0
      %512 = vdwg.mxu0
      %v513 = vld [vmem:[%s5] sm:$0xff]
      %v514 = vld [vmem:[%s6] sm:$0xff]
      %516 = vset.pattern.permute.xlu0 0
      %517 = vperm.xlu0 %516, %v514
      %v518 = vpop.permute.xlu0 %517
      %v521 = vsel %vm439, %v513, 0
      %523 = vmatprep.subr.mxu0 0.0
      %524 = vmatpush1.msra.mxu0 %v430
      %525 = vmatprep.subr.mxu0 0.0
      %526 = vmatpush1.msra.mxu0 0.0
      %527 = vmatprep.subr.mxu0 0.0
      %528 = vmatpush1.msra.mxu0 0.0
      %529 = vmatprep.subr.mxu0 0.0
      %530 = vmatpush1.msra.mxu0 0.0
      %531 = vmatprep.subr.mxu0 0.0
      %532 = vmatpush1.msra.mxu0 0.0
      %533 = vmatprep.subr.mxu0 0.0
      %534 = vmatpush1.msra.mxu0 0.0
      %535 = vmatprep.subr.mxu0 0.0
      %536 = vmatpush1.msra.mxu0 0.0
      %537 = vmatprep.subr.mxu0 0.0
      %538 = vmatpush1.msra.mxu0 0.0
      %539 = vmatprep.subr.mxu0 0.0
      %540 = vmatpush1.msra.mxu0 0.0
      %541 = vmatprep.subr.mxu0 0.0
      %542 = vmatpush1.msra.mxu0 0.0
      %543 = vmatprep.subr.mxu0 0.0
      %544 = vmatpush1.msra.mxu0 0.0
      %545 = vmatprep.subr.mxu0 0.0
      %546 = vmatpush1.msra.mxu0 0.0
      %547 = vmatprep.subr.mxu0 0.0
      %548 = vmatpush1.msra.mxu0 0.0
      %549 = vmatprep.subr.mxu0 0.0
      %550 = vmatpush1.msra.mxu0 0.0
      %551 = vmatprep.subr.mxu0 0.0
      %552 = vmatpush1.msra.mxu0 0.0
      %553 = vmatprep.subr.mxu0 0.0
      %554 = vmatpush1.msra.mxu0 0.0
      %555 = vmatprep.subr.mxu0 0.0
      %556 = vmatpush1.msra.mxu0 0.0
      %557 = vmatprep.subr.mxu0 0.0
      %558 = vmatpush1.msra.mxu0 0.0
      %559 = vmatprep.subr.mxu0 0.0
      %560 = vmatpush1.msra.mxu0 0.0
      %561 = vmatprep.subr.mxu0 0.0
      %562 = vmatpush1.msra.mxu0 0.0
      %563 = vmatprep.subr.mxu0 0.0
      %564 = vmatpush1.msra.mxu0 0.0
      %565 = vmatprep.subr.mxu0 0.0
      %566 = vmatpush1.msra.mxu0 0.0
      %567 = vmatprep.subr.mxu0 0.0
      %568 = vmatpush1.msra.mxu0 0.0
      %569 = vmatprep.subr.mxu0 0.0
      %570 = vmatpush1.msra.mxu0 0.0
      %571 = vmatprep.subr.mxu0 0.0
      %572 = vmatpush1.msra.mxu0 0.0
      %573 = vmatprep.subr.mxu0 0.0
      %574 = vmatpush1.msra.mxu0 0.0
      %575 = vmatprep.subr.mxu0 0.0
      %576 = vmatpush1.msra.mxu0 0.0
      %577 = vmatprep.subr.mxu0 0.0
      %578 = vmatpush1.msra.mxu0 0.0
      %579 = vmatprep.subr.mxu0 0.0
      %580 = vmatpush1.msra.mxu0 0.0
      %581 = vmatprep.subr.mxu0 0.0
      %582 = vmatpush1.msra.mxu0 0.0
      %583 = vmatprep.subr.mxu0 0.0
      %584 = vmatpush1.msra.mxu0 0.0
      %585 = vmatprep.subr.mxu0 0.0
      %586 = vmatpush1.msra.mxu0 0.0
      %587 = vmatprep.mubr.f32.mxu0 0.0
      %588 = vmatmul.mubr.f32.gmra.mrb[0].mxu0 %v521
      %v589 = vpop.f32.mrb[0].mxu0
      %v590 = vadd.f32 %v518, %v589
      %v591 = vpop.f32.mrb[0].mxu0
      %592 = vdwg.mxu0
      %v593 = vld [vmem:[%s7] sm:$0xff]
      %v594 = vld [vmem:[%s7 + $0x8] sm:$0xff]
      %v595 = vld [vmem:[%s8] sm:$0xff]
      %v596 = vld [vmem:[%s8 + $0x8] sm:$0xff]
      %598 = vset.pattern.permute.xlu0 0
      %599 = vperm.xlu0 %598, %v595
      %v600 = vpop.permute.xlu0 %599
      %603 = vset.pattern.permute.xlu0 0
      %604 = vperm.xlu0 %603, %v596
      %v605 = vpop.permute.xlu0 %604
      %v608 = vsel %vm439, %v593, 0
      %v611 = vsel %vm439, %v594, 0
      %613 = vmatprep.subr.mxu0 0.0
      %614 = vmatpush1.msra.mxu0 %v431
      %615 = vmatprep.subr.mxu0 0.0
      %616 = vmatpush1.msra.mxu0 0.0
      %617 = vmatprep.subr.mxu0 0.0
      %618 = vmatpush1.msra.mxu0 0.0
      %619 = vmatprep.subr.mxu0 0.0
      %620 = vmatpush1.msra.mxu0 0.0
      %621 = vmatprep.subr.mxu0 0.0
      %622 = vmatpush1.msra.mxu0 0.0
      %623 = vmatprep.subr.mxu0 0.0
      %624 = vmatpush1.msra.mxu0 0.0
      %625 = vmatprep.subr.mxu0 0.0
      %626 = vmatpush1.msra.mxu0 0.0
      %627 = vmatprep.subr.mxu0 0.0
      %628 = vmatpush1.msra.mxu0 0.0
      %629 = vmatprep.subr.mxu0 0.0
      %630 = vmatpush1.msra.mxu0 0.0
      %631 = vmatprep.subr.mxu0 0.0
      %632 = vmatpush1.msra.mxu0 0.0
      %633 = vmatprep.subr.mxu0 0.0
      %634 = vmatpush1.msra.mxu0 0.0
      %635 = vmatprep.subr.mxu0 0.0
      %636 = vmatpush1.msra.mxu0 0.0
      %637 = vmatprep.subr.mxu0 0.0
      %638 = vmatpush1.msra.mxu0 0.0
      %639 = vmatprep.subr.mxu0 0.0
      %640 = vmatpush1.msra.mxu0 0.0
      %641 = vmatprep.subr.mxu0 0.0
      %642 = vmatpush1.msra.mxu0 0.0
      %643 = vmatprep.subr.mxu0 0.0
      %644 = vmatpush1.msra.mxu0 0.0
      %645 = vmatprep.subr.mxu0 0.0
      %646 = vmatpush1.msra.mxu0 0.0
      %647 = vmatprep.subr.mxu0 0.0
      %648 = vmatpush1.msra.mxu0 0.0
      %649 = vmatprep.subr.mxu0 0.0
      %650 = vmatpush1.msra.mxu0 0.0
      %651 = vmatprep.subr.mxu0 0.0
      %652 = vmatpush1.msra.mxu0 0.0
      %653 = vmatprep.subr.mxu0 0.0
      %654 = vmatpush1.msra.mxu0 0.0
      %655 = vmatprep.subr.mxu0 0.0
      %656 = vmatpush1.msra.mxu0 0.0
      %657 = vmatprep.subr.mxu0 0.0
      %658 = vmatpush1.msra.mxu0 0.0
      %659 = vmatprep.subr.mxu0 0.0
      %660 = vmatpush1.msra.mxu0 0.0
      %661 = vmatprep.subr.mxu0 0.0
      %662 = vmatpush1.msra.mxu0 0.0
      %663 = vmatprep.subr.mxu0 0.0
      %664 = vmatpush1.msra.mxu0 0.0
      %665 = vmatprep.subr.mxu0 0.0
      %666 = vmatpush1.msra.mxu0 0.0
      %667 = vmatprep.subr.mxu0 0.0
      %668 = vmatpush1.msra.mxu0 0.0
      %669 = vmatprep.subr.mxu0 0.0
      %670 = vmatpush1.msra.mxu0 0.0
      %671 = vmatprep.subr.mxu0 0.0
      %672 = vmatpush1.msra.mxu0 0.0
      %673 = vmatprep.subr.mxu0 0.0
      %674 = vmatpush1.msra.mxu0 0.0
      %675 = vmatprep.subr.mxu0 0.0
      %676 = vmatpush1.msra.mxu0 0.0
      %677 = vmatprep.mubr.f32.mxu0 0.0
      %678 = vmatmul.mubr.f32.gmra.mrb[0].mxu0 %v608
      %v679 = vpop.f32.mrb[0].mxu0
      %v680 = vadd.f32 %v600, %v679
      %v681 = vpop.f32.mrb[0].mxu0
      %682 = vmatprep.mubr.f32.mxu0 0.0
      %683 = vmatmul.mubr.f32.gmra.mrb[0].mxu0 %v611
      %v684 = vpop.f32.mrb[0].mxu0
      %v685 = vadd.f32 %v605, %v684
      %v686 = vpop.f32.mrb[0].mxu0
      %687 = vdwg.mxu0
      %v688 = vld [vmem:[%s9] sm:$0xff]
      %690 = vset.pattern.permute.xlu0 0
      %691 = vperm.xlu0 %690, %v688
      %v692 = vpop.permute.xlu0 %691
      %v694 = vadd.f32 %v692, 0.0
      %695 = vxpose.xlu0.b32.start [1/16] %v510, 128
      %696 = vxpose.xlu0.b32.cont [2/16] 0.0, 128
      %697 = vxpose.xlu0.b32.cont [3/16] 0.0, 128
      %698 = vxpose.xlu0.b32.cont [4/16] 0.0, 128
      %699 = vxpose.xlu0.b32.cont [5/16] 0.0, 128
      %700 = vxpose.xlu0.b32.cont [6/16] 0.0, 128
      %701 = vxpose.xlu0.b32.cont [7/16] 0.0, 128
      %702 = vxpose.xlu0.b32.cont [8/16] 0.0, 128
      %703 = vxpose.xlu0.b32.cont [9/16] 0.0, 128
      %704 = vxpose.xlu0.b32.cont [10/16] 0.0, 128
      %705 = vxpose.xlu0.b32.cont [11/16] 0.0, 128
      %706 = vxpose.xlu0.b32.cont [12/16] 0.0, 128
      %707 = vxpose.xlu0.b32.cont [13/16] 0.0, 128
      %708 = vxpose.xlu0.b32.cont [14/16] 0.0, 128
      %709 = vxpose.xlu0.b32.cont [15/16] 0.0, 128
      %710 = vxpose.xlu0.b32.end [16/16] 0.0, 128
      %v711 = vpop.trf.xlu0
      %v712 = vpop.trf.xlu0
      %v713 = vpop.trf.xlu0
      %v714 = vpop.trf.xlu0
      %v715 = vpop.trf.xlu0
      %v716 = vpop.trf.xlu0
      %v717 = vpop.trf.xlu0
      %v718 = vpop.trf.xlu0
      %v719 = vpop.trf.xlu0
      %v720 = vpop.trf.xlu0
      %v721 = vpop.trf.xlu0
      %v722 = vpop.trf.xlu0
      %v723 = vpop.trf.xlu0
      %v724 = vpop.trf.xlu0
      %v725 = vpop.trf.xlu0
      %v726 = vpop.trf.xlu0
      %vm727 = vcmask 31744
      %v729 = vsel %vm727, %v711, 0
      %v732 = vsel %vm727, %v712, 0
      %v735 = vsel %vm727, %v713, 0
      %v738 = vsel %vm727, %v714, 0
      %v741 = vsel %vm727, %v715, 0
      %v744 = vsel %vm727, %v716, 0
      %v747 = vsel %vm727, %v717, 0
      %v750 = vsel %vm727, %v718, 0
      %vm752 = vcmask 1043456
      %v754 = vsel %vm752, %v590, 0
      %756 = vmatprep.subr.mxu0 0.0
      %757 = vmatpush1.msra.mxu0 %v754
      %758 = vmatprep.subr.mxu0 0.0
      %759 = vmatpush1.msra.mxu0 0.0
      %760 = vmatprep.subr.mxu0 0.0
      %761 = vmatpush1.msra.mxu0 0.0
      %762 = vmatprep.subr.mxu0 0.0
      %763 = vmatpush1.msra.mxu0 0.0
      %764 = vmatprep.subr.mxu0 0.0
      %765 = vmatpush1.msra.mxu0 0.0
      %766 = vmatprep.subr.mxu0 0.0
      %767 = vmatpush1.msra.mxu0 0.0
      %768 = vmatprep.subr.mxu0 0.0
      %769 = vmatpush1.msra.mxu0 0.0
      %770 = vmatprep.subr.mxu0 0.0
      %771 = vmatpush1.msra.mxu0 0.0
      %772 = vmatprep.subr.mxu0 0.0
      %773 = vmatpush1.msra.mxu0 0.0
      %774 = vmatprep.subr.mxu0 0.0
      %775 = vmatpush1.msra.mxu0 0.0
      %776 = vmatprep.subr.mxu0 0.0
      %777 = vmatpush1.msra.mxu0 0.0
      %778 = vmatprep.subr.mxu0 0.0
      %779 = vmatpush1.msra.mxu0 0.0
      %780 = vmatprep.subr.mxu0 0.0
      %781 = vmatpush1.msra.mxu0 0.0
      %782 = vmatprep.subr.mxu0 0.0
      %783 = vmatpush1.msra.mxu0 0.0
      %784 = vmatprep.subr.mxu0 0.0
      %785 = vmatpush1.msra.mxu0 0.0
      %786 = vmatprep.subr.mxu0 0.0
      %787 = vmatpush1.msra.mxu0 0.0
      %788 = vmatprep.subr.mxu0 0.0
      %789 = vmatpush1.msra.mxu0 0.0
      %790 = vmatprep.subr.mxu0 0.0
      %791 = vmatpush1.msra.mxu0 0.0
      %792 = vmatprep.subr.mxu0 0.0
      %793 = vmatpush1.msra.mxu0 0.0
      %794 = vmatprep.subr.mxu0 0.0
      %795 = vmatpush1.msra.mxu0 0.0
      %796 = vmatprep.subr.mxu0 0.0
      %797 = vmatpush1.msra.mxu0 0.0
      %798 = vmatprep.subr.mxu0 0.0
      %799 = vmatpush1.msra.mxu0 0.0
      %800 = vmatprep.subr.mxu0 0.0
      %801 = vmatpush1.msra.mxu0 0.0
      %802 = vmatprep.subr.mxu0 0.0
      %803 = vmatpush1.msra.mxu0 0.0
      %804 = vmatprep.subr.mxu0 0.0
      %805 = vmatpush1.msra.mxu0 0.0
      %806 = vmatprep.subr.mxu0 0.0
      %807 = vmatpush1.msra.mxu0 0.0
      %808 = vmatprep.subr.mxu0 0.0
      %809 = vmatpush1.msra.mxu0 0.0
      %810 = vmatprep.subr.mxu0 0.0
      %811 = vmatpush1.msra.mxu0 0.0
      %812 = vmatprep.subr.mxu0 0.0
      %813 = vmatpush1.msra.mxu0 0.0
      %814 = vmatprep.subr.mxu0 0.0
      %815 = vmatpush1.msra.mxu0 0.0
      %816 = vmatprep.subr.mxu0 0.0
      %817 = vmatpush1.msra.mxu0 0.0
      %818 = vmatprep.subr.mxu0 0.0
      %819 = vmatpush1.msra.mxu0 0.0
      %820 = vmatprep.mubr.f32.mxu0 0.0
      %821 = vmatmul.mubr.f32.gmra.mrb[0].mxu0 %v729
      %v822 = vpop.f32.mrb[0].mxu0
      %v823 = vadd.f32 0.0, %v822
      %v824 = vpop.f32.mrb[0].mxu0
      %825 = vmatprep.mubr.f32.mxu0 0.0
      %826 = vmatmul.mubr.f32.gmra.mrb[0].mxu0 %v732
      %v827 = vpop.f32.mrb[0].mxu0
      %v828 = vadd.f32 0.0, %v827
      %v829 = vpop.f32.mrb[0].mxu0
      %830 = vmatprep.mubr.f32.mxu0 0.0
      %831 = vmatmul.mubr.f32.gmra.mrb[0].mxu0 %v735
      %v832 = vpop.f32.mrb[0].mxu0
      %v833 = vadd.f32 0.0, %v832
      %v834 = vpop.f32.mrb[0].mxu0
      %835 = vmatprep.mubr.f32.mxu0 0.0
      %836 = vmatmul.mubr.f32.gmra.mrb[0].mxu0 %v738
      %v837 = vpop.f32.mrb[0].mxu0
      %v838 = vadd.f32 0.0, %v837
      %v839 = vpop.f32.mrb[0].mxu0
      %840 = vmatprep.mubr.f32.mxu0 0.0
      %841 = vmatmul.mubr.f32.gmra.mrb[0].mxu0 %v741
      %v842 = vpop.f32.mrb[0].mxu0
      %v843 = vadd.f32 0.0, %v842
      %v844 = vpop.f32.mrb[0].mxu0
      %845 = vmatprep.mubr.f32.mxu0 0.0
      %846 = vmatmul.mubr.f32.gmra.mrb[0].mxu0 %v744
      %v847 = vpop.f32.mrb[0].mxu0
      %v848 = vadd.f32 0.0, %v847
      %v849 = vpop.f32.mrb[0].mxu0
      %850 = vmatprep.mubr.f32.mxu0 0.0
      %851 = vmatmul.mubr.f32.gmra.mrb[0].mxu0 %v747
      %v852 = vpop.f32.mrb[0].mxu0
      %v853 = vadd.f32 0.0, %v852
      %v854 = vpop.f32.mrb[0].mxu0
      %855 = vmatprep.mubr.f32.mxu0 0.0
      %856 = vmatmul.mubr.f32.gmra.mrb[0].mxu0 %v750
      %v857 = vpop.f32.mrb[0].mxu0
      %v858 = vadd.f32 0.0, %v857
      %v859 = vpop.f32.mrb[0].mxu0
      %860 = vdwg.mxu0
      %vm861 = vcmask 523264
      %v862 = vsel %vm861, %v823, -inf
      %863 = vmax.xlane.f32.xlu0 %v862
      %v864 = vpop.xlane.xlu0 %863
      %v865 = vsel %vm861, %v828, -inf
      %866 = vmax.xlane.f32.xlu0 %v865
      %v867 = vpop.xlane.xlu0 %866
      %v868 = vsel %vm861, %v833, -inf
      %869 = vmax.xlane.f32.xlu0 %v868
      %v870 = vpop.xlane.xlu0 %869
      %v871 = vsel %vm861, %v838, -inf
      %872 = vmax.xlane.f32.xlu0 %v871
      %v873 = vpop.xlane.xlu0 %872
      %v874 = vsel %vm861, %v843, -inf
      %875 = vmax.xlane.f32.xlu0 %v874
      %v876 = vpop.xlane.xlu0 %875
      %v877 = vsel %vm861, %v848, -inf
      %878 = vmax.xlane.f32.xlu0 %v877
      %v879 = vpop.xlane.xlu0 %878
      %v880 = vsel %vm861, %v853, -inf
      %881 = vmax.xlane.f32.xlu0 %v880
      %v882 = vpop.xlane.xlu0 %881
      %v883 = vsel %vm861, %v858, -inf
      %884 = vmax.xlane.f32.xlu0 %v883
      %v885 = vpop.xlane.xlu0 %884
      %v886 = vsub.f32 %v823, %v864
      %v887 = vsub.f32 %v828, %v867
      %v888 = vsub.f32 %v833, %v870
      %v889 = vsub.f32 %v838, %v873
      %v890 = vsub.f32 %v843, %v876
      %v891 = vsub.f32 %v848, %v879
      %v892 = vsub.f32 %v853, %v882
      %v893 = vsub.f32 %v858, %v885
      %v894 = vmul.f32 %v886, 1.442695
      %v895 = vpow.pop %v894
      %v896 = vmul.f32 %v887, 1.442695
      %v897 = vpow.pop %v896
      %v898 = vmul.f32 %v888, 1.442695
      %v899 = vpow.pop %v898
      %v900 = vmul.f32 %v889, 1.442695
      %v901 = vpow.pop %v900
      %v902 = vmul.f32 %v890, 1.442695
      %v903 = vpow.pop %v902
      %v904 = vmul.f32 %v891, 1.442695
      %v905 = vpow.pop %v904
      %v906 = vmul.f32 %v892, 1.442695
      %v907 = vpow.pop %v906
      %v908 = vmul.f32 %v893, 1.442695
      %v909 = vpow.pop %v908
      %v910 = vsel %vm861, %v895, 0.0
      %911 = vadd.xlane.f32.xlu0 %v910
      %v912 = vpop.xlane.xlu0 %911
      %v913 = vsel %vm861, %v897, 0.0
      %914 = vadd.xlane.f32.xlu0 %v913
      %v915 = vpop.xlane.xlu0 %914
      %v916 = vsel %vm861, %v899, 0.0
      %917 = vadd.xlane.f32.xlu0 %v916
      %v918 = vpop.xlane.xlu0 %917
      %v919 = vsel %vm861, %v901, 0.0
      %920 = vadd.xlane.f32.xlu0 %v919
      %v921 = vpop.xlane.xlu0 %920
      %v922 = vsel %vm861, %v903, 0.0
      %923 = vadd.xlane.f32.xlu0 %v922
      %v924 = vpop.xlane.xlu0 %923
      %v925 = vsel %vm861, %v905, 0.0
      %926 = vadd.xlane.f32.xlu0 %v925
      %v927 = vpop.xlane.xlu0 %926
      %v928 = vsel %vm861, %v907, 0.0
      %929 = vadd.xlane.f32.xlu0 %v928
      %v930 = vpop.xlane.xlu0 %929
      %v931 = vsel %vm861, %v909, 0.0
      %932 = vadd.xlane.f32.xlu0 %v931
      %v933 = vpop.xlane.xlu0 %932
      %v934 = vrcp.pop %v912
      %v935 = vrcp.pop %v915
      %v936 = vrcp.pop %v918
      %v937 = vrcp.pop %v921
      %v938 = vrcp.pop %v924
      %v939 = vrcp.pop %v927
      %v940 = vrcp.pop %v930
      %v941 = vrcp.pop %v933
      %v942 = vmul.f32 %v895, %v934
      %v943 = vmul.f32 %v897, %v935
      %v944 = vmul.f32 %v899, %v936
      %v945 = vmul.f32 %v901, %v937
      %v946 = vmul.f32 %v903, %v938
      %v947 = vmul.f32 %v905, %v939
      %v948 = vmul.f32 %v907, %v940
      %v949 = vmul.f32 %v909, %v941
      %v950 = vadd.f32 %v942, 0.0
      %v951 = vadd.f32 %v943, 0.0
      %v952 = vadd.f32 %v944, 0.0
      %v953 = vadd.f32 %v945, 0.0
      %v954 = vadd.f32 %v946, 0.0
      %v955 = vadd.f32 %v947, 0.0
      %v956 = vadd.f32 %v948, 0.0
      %v957 = vadd.f32 %v949, 0.0
      %v959 = vsel %vm861, %v680, 0
      %v962 = vsel %vm861, %v942, 0
      %v965 = vsel %vm861, %v943, 0
      %v968 = vsel %vm861, %v944, 0
      %v971 = vsel %vm861, %v945, 0
      %v974 = vsel %vm861, %v946, 0
      %v977 = vsel %vm861, %v947, 0
      %v980 = vsel %vm861, %v948, 0
      %v983 = vsel %vm861, %v949, 0
      %985 = vmatprep.subr.mxu0 0.0
      %986 = vmatpush1.xpose.msra.mxu0 %v962
      %987 = vmatprep.subr.mxu0 0.0
      %988 = vmatpush1.xpose.msra.mxu0 %v965
      %989 = vmatprep.subr.mxu0 0.0
      %990 = vmatpush1.xpose.msra.mxu0 %v968
      %991 = vmatprep.subr.mxu0 0.0
      %992 = vmatpush1.xpose.msra.mxu0 %v971
      %993 = vmatprep.subr.mxu0 0.0
      %994 = vmatpush1.xpose.msra.mxu0 %v974
      %995 = vmatprep.subr.mxu0 0.0
      %996 = vmatpush1.xpose.msra.mxu0 %v977
      %997 = vmatprep.subr.mxu0 0.0
      %998 = vmatpush1.xpose.msra.mxu0 %v980
      %999 = vmatprep.subr.mxu0 0.0
      %1000 = vmatpush1.xpose.msra.mxu0 %v983
      %1001 = vmatprep.subr.mxu0 0.0
      %1002 = vmatpush1.xpose.msra.mxu0 0.0
      %1003 = vmatprep.subr.mxu0 0.0
      %1004 = vmatpush1.xpose.msra.mxu0 0.0
      %1005 = vmatprep.subr.mxu0 0.0
      %1006 = vmatpush1.xpose.msra.mxu0 0.0
      %1007 = vmatprep.subr.mxu0 0.0
      %1008 = vmatpush1.xpose.msra.mxu0 0.0
      %1009 = vmatprep.subr.mxu0 0.0
      %1010 = vmatpush1.xpose.msra.mxu0 0.0
      %1011 = vmatprep.subr.mxu0 0.0
      %1012 = vmatpush1.xpose.msra.mxu0 0.0
      %1013 = vmatprep.subr.mxu0 0.0
      %1014 = vmatpush1.xpose.msra.mxu0 0.0
      %1015 = vmatprep.subr.mxu0 0.0
      %1016 = vmatpush1.xpose.msra.mxu0 0.0
      %1017 = vmatprep.subr.mxu0 0.0
      %1018 = vmatpush1.xpose.msra.mxu0 0.0
      %1019 = vmatprep.subr.mxu0 0.0
      %1020 = vmatpush1.xpose.msra.mxu0 0.0
      %1021 = vmatprep.subr.mxu0 0.0
      %1022 = vmatpush1.xpose.msra.mxu0 0.0
      %1023 = vmatprep.subr.mxu0 0.0
      %1024 = vmatpush1.xpose.msra.mxu0 0.0
      %1025 = vmatprep.subr.mxu0 0.0
      %1026 = vmatpush1.xpose.msra.mxu0 0.0
      %1027 = vmatprep.subr.mxu0 0.0
      %1028 = vmatpush1.xpose.msra.mxu0 0.0
      %1029 = vmatprep.subr.mxu0 0.0
      %1030 = vmatpush1.xpose.msra.mxu0 0.0
      %1031 = vmatprep.subr.mxu0 0.0
      %1032 = vmatpush1.xpose.msra.mxu0 0.0
      %1033 = vmatprep.subr.mxu0 0.0
      %1034 = vmatpush1.xpose.msra.mxu0 0.0
      %1035 = vmatprep.subr.mxu0 0.0
      %1036 = vmatpush1.xpose.msra.mxu0 0.0
      %1037 = vmatprep.subr.mxu0 0.0
      %1038 = vmatpush1.xpose.msra.mxu0 0.0
      %1039 = vmatprep.subr.mxu0 0.0
      %1040 = vmatpush1.xpose.msra.mxu0 0.0
      %1041 = vmatprep.subr.mxu0 0.0
      %1042 = vmatpush1.xpose.msra.mxu0 0.0
      %1043 = vmatprep.subr.mxu0 0.0
      %1044 = vmatpush1.xpose.msra.mxu0 0.0
      %1045 = vmatprep.subr.mxu0 0.0
      %1046 = vmatpush1.xpose.msra.mxu0 0.0
      %1047 = vmatprep.subr.mxu0 0.0
      %1048 = vmatpush1.xpose.msra.mxu0 0.0
      %1049 = vmatprep.mubr.f32.mxu0 0.0
      %1050 = vmatmul.mubr.f32.gmra.mrb[0].mxu0 %v959
      %v1051 = vpop.f32.mrb[0].mxu0
      %v1052 = vadd.f32 0.0, %v1051
      %v1053 = vpop.f32.mrb[0].mxu0
      %1054 = vdwg.mxu0
      %v1055 = vadd.f32 %v694, %v1052
      %v1057 = vrot.slane %v510, 4
      %1059 = vxpose.xlu0.b32.start [1/16] %v1057, 128
      %1060 = vxpose.xlu0.b32.cont [2/16] 0.0, 128
      %1061 = vxpose.xlu0.b32.cont [3/16] 0.0, 128
      %1062 = vxpose.xlu0.b32.cont [4/16] 0.0, 128
      %1063 = vxpose.xlu0.b32.cont [5/16] 0.0, 128
      %1064 = vxpose.xlu0.b32.cont [6/16] 0.0, 128
      %1065 = vxpose.xlu0.b32.cont [7/16] 0.0, 128
      %1066 = vxpose.xlu0.b32.cont [8/16] 0.0, 128
      %1067 = vxpose.xlu0.b32.cont [9/16] 0.0, 128
      %1068 = vxpose.xlu0.b32.cont [10/16] 0.0, 128
      %1069 = vxpose.xlu0.b32.cont [11/16] 0.0, 128
      %1070 = vxpose.xlu0.b32.cont [12/16] 0.0, 128
      %1071 = vxpose.xlu0.b32.cont [13/16] 0.0, 128
      %1072 = vxpose.xlu0.b32.cont [14/16] 0.0, 128
      %1073 = vxpose.xlu0.b32.cont [15/16] 0.0, 128
      %1074 = vxpose.xlu0.b32.end [16/16] 0.0, 128
      %v1075 = vpop.trf.xlu0
      %v1076 = vpop.trf.xlu0
      %v1077 = vpop.trf.xlu0
      %v1078 = vpop.trf.xlu0
      %v1079 = vpop.trf.xlu0
      %v1080 = vpop.trf.xlu0
      %v1081 = vpop.trf.xlu0
      %v1082 = vpop.trf.xlu0
      %v1083 = vpop.trf.xlu0
      %v1084 = vpop.trf.xlu0
      %v1085 = vpop.trf.xlu0
      %v1086 = vpop.trf.xlu0
      %v1087 = vpop.trf.xlu0
      %v1088 = vpop.trf.xlu0
      %v1089 = vpop.trf.xlu0
      %v1090 = vpop.trf.xlu0
      %v1091 = vrot.slane %v590, 4
      %v1093 = vsel %vm727, %v1075, 0
      %v1096 = vsel %vm727, %v1076, 0
      %v1099 = vsel %vm727, %v1077, 0
      %v1102 = vsel %vm727, %v1078, 0
      %v1105 = vsel %vm727, %v1079, 0
      %v1108 = vsel %vm727, %v1080, 0
      %v1111 = vsel %vm727, %v1081, 0
      %v1114 = vsel %vm727, %v1082, 0
      %v1116 = vsel %vm752, %v1091, 0
      %1118 = vmatprep.subr.mxu0 0.0
      %1119 = vmatpush1.msra.mxu0 %v1116
      %1120 = vmatprep.subr.mxu0 0.0
      %1121 = vmatpush1.msra.mxu0 0.0
      %1122 = vmatprep.subr.mxu0 0.0
      %1123 = vmatpush1.msra.mxu0 0.0
      %1124 = vmatprep.subr.mxu0 0.0
      %1125 = vmatpush1.msra.mxu0 0.0
      %1126 = vmatprep.subr.mxu0 0.0
      %1127 = vmatpush1.msra.mxu0 0.0
      %1128 = vmatprep.subr.mxu0 0.0
      %1129 = vmatpush1.msra.mxu0 0.0
      %1130 = vmatprep.subr.mxu0 0.0
      %1131 = vmatpush1.msra.mxu0 0.0
      %1132 = vmatprep.subr.mxu0 0.0
      %1133 = vmatpush1.msra.mxu0 0.0
      %1134 = vmatprep.subr.mxu0 0.0
      %1135 = vmatpush1.msra.mxu0 0.0
      %1136 = vmatprep.subr.mxu0 0.0
      %1137 = vmatpush1.msra.mxu0 0.0
      %1138 = vmatprep.subr.mxu0 0.0
      %1139 = vmatpush1.msra.mxu0 0.0
      %1140 = vmatprep.subr.mxu0 0.0
      %1141 = vmatpush1.msra.mxu0 0.0
      %1142 = vmatprep.subr.mxu0 0.0
      %1143 = vmatpush1.msra.mxu0 0.0
      %1144 = vmatprep.subr.mxu0 0.0
      %1145 = vmatpush1.msra.mxu0 0.0
      %1146 = vmatprep.subr.mxu0 0.0
      %1147 = vmatpush1.msra.mxu0 0.0
      %1148 = vmatprep.subr.mxu0 0.0
      %1149 = vmatpush1.msra.mxu0 0.0
      %1150 = vmatprep.subr.mxu0 0.0
      %1151 = vmatpush1.msra.mxu0 0.0
      %1152 = vmatprep.subr.mxu0 0.0
      %1153 = vmatpush1.msra.mxu0 0.0
      %1154 = vmatprep.subr.mxu0 0.0
      %1155 = vmatpush1.msra.mxu0 0.0
      %1156 = vmatprep.subr.mxu0 0.0
      %1157 = vmatpush1.msra.mxu0 0.0
      %1158 = vmatprep.subr.mxu0 0.0
      %1159 = vmatpush1.msra.mxu0 0.0
      %1160 = vmatprep.subr.mxu0 0.0
      %1161 = vmatpush1.msra.mxu0 0.0
      %1162 = vmatprep.subr.mxu0 0.0
      %1163 = vmatpush1.msra.mxu0 0.0
      %1164 = vmatprep.subr.mxu0 0.0
      %1165 = vmatpush1.msra.mxu0 0.0
      %1166 = vmatprep.subr.mxu0 0.0
      %1167 = vmatpush1.msra.mxu0 0.0
      %1168 = vmatprep.subr.mxu0 0.0
      %1169 = vmatpush1.msra.mxu0 0.0
      %1170 = vmatprep.subr.mxu0 0.0
      %1171 = vmatpush1.msra.mxu0 0.0
      %1172 = vmatprep.subr.mxu0 0.0
      %1173 = vmatpush1.msra.mxu0 0.0
      %1174 = vmatprep.subr.mxu0 0.0
      %1175 = vmatpush1.msra.mxu0 0.0
      %1176 = vmatprep.subr.mxu0 0.0
      %1177 = vmatpush1.msra.mxu0 0.0
      %1178 = vmatprep.subr.mxu0 0.0
      %1179 = vmatpush1.msra.mxu0 0.0
      %1180 = vmatprep.subr.mxu0 0.0
      %1181 = vmatpush1.msra.mxu0 0.0
      %1182 = vmatprep.mubr.f32.mxu0 0.0
      %1183 = vmatmul.mubr.f32.gmra.mrb[0].mxu0 %v1093
      %v1184 = vpop.f32.mrb[0].mxu0
      %v1185 = vadd.f32 0.0, %v1184
      %v1186 = vpop.f32.mrb[0].mxu0
      %1187 = vmatprep.mubr.f32.mxu0 0.0
      %1188 = vmatmul.mubr.f32.gmra.mrb[0].mxu0 %v1096
      %v1189 = vpop.f32.mrb[0].mxu0
      %v1190 = vadd.f32 0.0, %v1189
      %v1191 = vpop.f32.mrb[0].mxu0
      %1192 = vmatprep.mubr.f32.mxu0 0.0
      %1193 = vmatmul.mubr.f32.gmra.mrb[0].mxu0 %v1099
      %v1194 = vpop.f32.mrb[0].mxu0
      %v1195 = vadd.f32 0.0, %v1194
      %v1196 = vpop.f32.mrb[0].mxu0
      %1197 = vmatprep.mubr.f32.mxu0 0.0
      %1198 = vmatmul.mubr.f32.gmra.mrb[0].mxu0 %v1102
      %v1199 = vpop.f32.mrb[0].mxu0
      %v1200 = vadd.f32 0.0, %v1199
      %v1201 = vpop.f32.mrb[0].mxu0
      %1202 = vmatprep.mubr.f32.mxu0 0.0
      %1203 = vmatmul.mubr.f32.gmra.mrb[0].mxu0 %v1105
      %v1204 = vpop.f32.mrb[0].mxu0
      %v1205 = vadd.f32 0.0, %v1204
      %v1206 = vpop.f32.mrb[0].mxu0
      %1207 = vmatprep.mubr.f32.mxu0 0.0
      %1208 = vmatmul.mubr.f32.gmra.mrb[0].mxu0 %v1108
      %v1209 = vpop.f32.mrb[0].mxu0
      %v1210 = vadd.f32 0.0, %v1209
      %v1211 = vpop.f32.mrb[0].mxu0
      %1212 = vmatprep.mubr.f32.mxu0 0.0
      %1213 = vmatmul.mubr.f32.gmra.mrb[0].mxu0 %v1111
      %v1214 = vpop.f32.mrb[0].mxu0
      %v1215 = vadd.f32 0.0, %v1214
      %v1216 = vpop.f32.mrb[0].mxu0
      %1217 = vmatprep.mubr.f32.mxu0 0.0
      %1218 = vmatmul.mubr.f32.gmra.mrb[0].mxu0 %v1114
      %v1219 = vpop.f32.mrb[0].mxu0
      %v1220 = vadd.f32 0.0, %v1219
      %v1221 = vpop.f32.mrb[0].mxu0
      %1222 = vdwg.mxu0
      %v1223 = vsel %vm861, %v1185, -inf
      %1224 = vmax.xlane.f32.xlu0 %v1223
      %v1225 = vpop.xlane.xlu0 %1224
      %v1226 = vsel %vm861, %v1190, -inf
      %1227 = vmax.xlane.f32.xlu0 %v1226
      %v1228 = vpop.xlane.xlu0 %1227
      %v1229 = vsel %vm861, %v1195, -inf
      %1230 = vmax.xlane.f32.xlu0 %v1229
      %v1231 = vpop.xlane.xlu0 %1230
      %v1232 = vsel %vm861, %v1200, -inf
      %1233 = vmax.xlane.f32.xlu0 %v1232
      %v1234 = vpop.xlane.xlu0 %1233
      %v1235 = vsel %vm861, %v1205, -inf
      %1236 = vmax.xlane.f32.xlu0 %v1235
      %v1237 = vpop.xlane.xlu0 %1236
      %v1238 = vsel %vm861, %v1210, -inf
      %1239 = vmax.xlane.f32.xlu0 %v1238
      %v1240 = vpop.xlane.xlu0 %1239
      %v1241 = vsel %vm861, %v1215, -inf
      %1242 = vmax.xlane.f32.xlu0 %v1241
      %v1243 = vpop.xlane.xlu0 %1242
      %v1244 = vsel %vm861, %v1220, -inf
      %1245 = vmax.xlane.f32.xlu0 %v1244
      %v1246 = vpop.xlane.xlu0 %1245
      %v1247 = vsub.f32 %v1185, %v1225
      %v1248 = vsub.f32 %v1190, %v1228
      %v1249 = vsub.f32 %v1195, %v1231
      %v1250 = vsub.f32 %v1200, %v1234
      %v1251 = vsub.f32 %v1205, %v1237
      %v1252 = vsub.f32 %v1210, %v1240
      %v1253 = vsub.f32 %v1215, %v1243
      %v1254 = vsub.f32 %v1220, %v1246
      %v1255 = vmul.f32 %v1247, 1.442695
      %v1256 = vpow.pop %v1255
      %v1257 = vmul.f32 %v1248, 1.442695
      %v1258 = vpow.pop %v1257
      %v1259 = vmul.f32 %v1249, 1.442695
      %v1260 = vpow.pop %v1259
      %v1261 = vmul.f32 %v1250, 1.442695
      %v1262 = vpow.pop %v1261
      %v1263 = vmul.f32 %v1251, 1.442695
      %v1264 = vpow.pop %v1263
      %v1265 = vmul.f32 %v1252, 1.442695
      %v1266 = vpow.pop %v1265
      %v1267 = vmul.f32 %v1253, 1.442695
      %v1268 = vpow.pop %v1267
      %v1269 = vmul.f32 %v1254, 1.442695
      %v1270 = vpow.pop %v1269
      %v1271 = vsel %vm861, %v1256, 0.0
      %1272 = vadd.xlane.f32.xlu0 %v1271
      %v1273 = vpop.xlane.xlu0 %1272
      %v1274 = vsel %vm861, %v1258, 0.0
      %1275 = vadd.xlane.f32.xlu0 %v1274
      %v1276 = vpop.xlane.xlu0 %1275
      %v1277 = vsel %vm861, %v1260, 0.0
      %1278 = vadd.xlane.f32.xlu0 %v1277
      %v1279 = vpop.xlane.xlu0 %1278
      %v1280 = vsel %vm861, %v1262, 0.0
      %1281 = vadd.xlane.f32.xlu0 %v1280
      %v1282 = vpop.xlane.xlu0 %1281
      %v1283 = vsel %vm861, %v1264, 0.0
      %1284 = vadd.xlane.f32.xlu0 %v1283
      %v1285 = vpop.xlane.xlu0 %1284
      %v1286 = vsel %vm861, %v1266, 0.0
      %1287 = vadd.xlane.f32.xlu0 %v1286
      %v1288 = vpop.xlane.xlu0 %1287
      %v1289 = vsel %vm861, %v1268, 0.0
      %1290 = vadd.xlane.f32.xlu0 %v1289
      %v1291 = vpop.xlane.xlu0 %1290
      %v1292 = vsel %vm861, %v1270, 0.0
      %1293 = vadd.xlane.f32.xlu0 %v1292
      %v1294 = vpop.xlane.xlu0 %1293
      %v1295 = vrcp.pop %v1273
      %v1296 = vrcp.pop %v1276
      %v1297 = vrcp.pop %v1279
      %v1298 = vrcp.pop %v1282
      %v1299 = vrcp.pop %v1285
      %v1300 = vrcp.pop %v1288
      %v1301 = vrcp.pop %v1291
      %v1302 = vrcp.pop %v1294
      %v1303 = vmul.f32 %v1256, %v1295
      %v1304 = vmul.f32 %v1258, %v1296
      %v1305 = vmul.f32 %v1260, %v1297
      %v1306 = vmul.f32 %v1262, %v1298
      %v1307 = vmul.f32 %v1264, %v1299
      %v1308 = vmul.f32 %v1266, %v1300
      %v1309 = vmul.f32 %v1268, %v1301
      %v1310 = vmul.f32 %v1270, %v1302
      %v1311 = vadd.f32 %v950, %v1303
      %v1312 = vadd.f32 %v951, %v1304
      %v1313 = vadd.f32 %v952, %v1305
      %v1314 = vadd.f32 %v953, %v1306
      %v1315 = vadd.f32 %v954, %v1307
      %v1316 = vadd.f32 %v955, %v1308
      %v1317 = vadd.f32 %v956, %v1309
      %v1318 = vadd.f32 %v957, %v1310
      %v1320 = vsel %vm861, %v685, 0
      %v1323 = vsel %vm861, %v1303, 0
      %v1326 = vsel %vm861, %v1304, 0
      %v1329 = vsel %vm861, %v1305, 0
      %v1332 = vsel %vm861, %v1306, 0
      %v1335 = vsel %vm861, %v1307, 0
      %v1338 = vsel %vm861, %v1308, 0
      %v1341 = vsel %vm861, %v1309, 0
      %v1344 = vsel %vm861, %v1310, 0
      %1346 = vmatprep.subr.mxu0 0.0
      %1347 = vmatpush1.xpose.msra.mxu0 %v1323
      %1348 = vmatprep.subr.mxu0 0.0
      %1349 = vmatpush1.xpose.msra.mxu0 %v1326
      %1350 = vmatprep.subr.mxu0 0.0
      %1351 = vmatpush1.xpose.msra.mxu0 %v1329
      %1352 = vmatprep.subr.mxu0 0.0
      %1353 = vmatpush1.xpose.msra.mxu0 %v1332
      %1354 = vmatprep.subr.mxu0 0.0
      %1355 = vmatpush1.xpose.msra.mxu0 %v1335
      %1356 = vmatprep.subr.mxu0 0.0
      %1357 = vmatpush1.xpose.msra.mxu0 %v1338
      %1358 = vmatprep.subr.mxu0 0.0
      %1359 = vmatpush1.xpose.msra.mxu0 %v1341
      %1360 = vmatprep.subr.mxu0 0.0
      %1361 = vmatpush1.xpose.msra.mxu0 %v1344
      %1362 = vmatprep.subr.mxu0 0.0
      %1363 = vmatpush1.xpose.msra.mxu0 0.0
      %1364 = vmatprep.subr.mxu0 0.0
      %1365 = vmatpush1.xpose.msra.mxu0 0.0
      %1366 = vmatprep.subr.mxu0 0.0
      %1367 = vmatpush1.xpose.msra.mxu0 0.0
      %1368 = vmatprep.subr.mxu0 0.0
      %1369 = vmatpush1.xpose.msra.mxu0 0.0
      %1370 = vmatprep.subr.mxu0 0.0
      %1371 = vmatpush1.xpose.msra.mxu0 0.0
      %1372 = vmatprep.subr.mxu0 0.0
      %1373 = vmatpush1.xpose.msra.mxu0 0.0
      %1374 = vmatprep.subr.mxu0 0.0
      %1375 = vmatpush1.xpose.msra.mxu0 0.0
      %1376 = vmatprep.subr.mxu0 0.0
      %1377 = vmatpush1.xpose.msra.mxu0 0.0
      %1378 = vmatprep.subr.mxu0 0.0
      %1379 = vmatpush1.xpose.msra.mxu0 0.0
      %1380 = vmatprep.subr.mxu0 0.0
      %1381 = vmatpush1.xpose.msra.mxu0 0.0
      %1382 = vmatprep.subr.mxu0 0.0
      %1383 = vmatpush1.xpose.msra.mxu0 0.0
      %1384 = vmatprep.subr.mxu0 0.0
      %1385 = vmatpush1.xpose.msra.mxu0 0.0
      %1386 = vmatprep.subr.mxu0 0.0
      %1387 = vmatpush1.xpose.msra.mxu0 0.0
      %1388 = vmatprep.subr.mxu0 0.0
      %1389 = vmatpush1.xpose.msra.mxu0 0.0
      %1390 = vmatprep.subr.mxu0 0.0
      %1391 = vmatpush1.xpose.msra.mxu0 0.0
      %1392 = vmatprep.subr.mxu0 0.0
      %1393 = vmatpush1.xpose.msra.mxu0 0.0
      %1394 = vmatprep.subr.mxu0 0.0
      %1395 = vmatpush1.xpose.msra.mxu0 0.0
      %1396 = vmatprep.subr.mxu0 0.0
      %1397 = vmatpush1.xpose.msra.mxu0 0.0
      %1398 = vmatprep.subr.mxu0 0.0
      %1399 = vmatpush1.xpose.msra.mxu0 0.0
      %1400 = vmatprep.subr.mxu0 0.0
      %1401 = vmatpush1.xpose.msra.mxu0 0.0
      %1402 = vmatprep.subr.mxu0 0.0
      %1403 = vmatpush1.xpose.msra.mxu0 0.0
      %1404 = vmatprep.subr.mxu0 0.0
      %1405 = vmatpush1.xpose.msra.mxu0 0.0
      %1406 = vmatprep.subr.mxu0 0.0
      %1407 = vmatpush1.xpose.msra.mxu0 0.0
      %1408 = vmatprep.subr.mxu0 0.0
      %1409 = vmatpush1.xpose.msra.mxu0 0.0
      %1410 = vmatprep.mubr.f32.mxu0 0.0
      %1411 = vmatmul.mubr.f32.gmra.mrb[0].mxu0 %v1320
      %v1412 = vpop.f32.mrb[0].mxu0
      %v1413 = vadd.f32 0.0, %v1412
      %v1414 = vpop.f32.mrb[0].mxu0
      %1415 = vdwg.mxu0
      %v1416 = vadd.f32 %v1055, %v1413
      %1417 = vst.msk [vmem:[%s423] sm:$0xff] %vm861, %v1416
      %v1418 = vmul.f32 %v1311, 0.5
      %v1419 = vmul.f32 %v1312, 0.5
      %v1420 = vmul.f32 %v1313, 0.5
      %v1421 = vmul.f32 %v1314, 0.5
      %v1422 = vmul.f32 %v1315, 0.5
      %v1423 = vmul.f32 %v1316, 0.5
      %v1424 = vmul.f32 %v1317, 0.5
      %v1425 = vmul.f32 %v1318, 0.5
      %1426 = vst.msk [vmem:[%s428] sm:$0xff] %vm861, %v1418
      %1427 = vst.msk [vmem:[%s428 + $0x8] sm:$0xff] %vm861, %v1419
      %1428 = vst.msk [vmem:[%s428 + $0x10] sm:$0xff] %vm861, %v1420
      %1429 = vst.msk [vmem:[%s428 + $0x18] sm:$0xff] %vm861, %v1421
      %1430 = vst.msk [vmem:[%s428 + $0x20] sm:$0xff] %vm861, %v1422
      %1431 = vst.msk [vmem:[%s428 + $0x28] sm:$0xff] %vm861, %v1423
      %1432 = vst.msk [vmem:[%s428 + $0x30] sm:$0xff] %vm861, %v1424
      %1433 = vst.msk [vmem:[%s428 + $0x38] sm:$0xff] %vm861, %v1425
      %p1434 = scmp.lt.s32.totalorder %s23, 1
      %s1435 = scalar_select %p1434, %s23, 1
      %s1436 = smul.addr %s1435, 8
      %s1437 = scalar_lea.vmem %s10, %s1436
      %p1438 = scmp.lt.s32.totalorder %s23, 1
      %s1439 = scalar_select %p1438, %s23, 1
      %s1440 = smul.addr %s1439, 8
      %s1441 = smul.addr %s1440, 8
      %s1442 = scalar_lea.vmem %s11, %s1441
      // Predicated region
      $region61: #{feature_predictor_forward.11} parent=59 // pred_check
        %p1443 = pneg %p266
      $region62: #{feature_predictor_forward.11} parent=59 // pred_check_branch
        %1445 = sbr.rel (%p1443) target = $region64
      $region63: #{feature_predictor_forward.11} parent=59 // pred_region
        _
      $region64: #{feature_predictor_forward.11} parent=59 // pred_fallthru
        _
      // Predicated region
      $region65: #{feature_predictor_forward.11} parent=59 // pred_check
        %p1446 = pneg %p292
      $region66: #{feature_predictor_forward.11} parent=59 // pred_check_branch
        %1448 = sbr.rel (%p1446) target = $region68
      $region67: #{feature_predictor_forward.11} parent=59 // pred_region
        _
      $region68: #{feature_predictor_forward.11} parent=59 // pred_fallthru
        _
    $region60: #{feature_predictor_forward.11} parent=5 // pred_fallthru
      _
    %p1449 = scmp.le.s32.totalorder 2, %s18
    // Predicated region
    $region69: #{feature_predictor_forward.11} parent=5 // pred_check
      %p1450 = pneg %p1449
    $region70: #{feature_predictor_forward.11} parent=5 // pred_check_branch
      %1452 = sbr.rel (%p1450) target = $region72
    $region71: #{feature_predictor_forward.11} parent=5 // pred_region
      %s1453 = ssub.s32 %s18, 2
      // Predicated region
      $region73: #{feature_predictor_forward.11} parent=71 // pred_check
        %p1454 = pneg %p272
      $region74: #{feature_predictor_forward.11} parent=71 // pred_check_branch
        %1456 = sbr.rel (%p1454) target = $region76
      $region75: #{feature_predictor_forward.11} parent=71 // pred_region
        %p1457 = scmp.lt.s32.totalorder %s24, 1
        %s1458 = scalar_select %p1457, %s24, 1
        %s1459 = smul.addr %s1458, 8
        %s1460 = scalar_lea.vmem %s10, %s1459
      $region76: #{feature_predictor_forward.11} parent=71 // pred_fallthru
        _
      // Predicated region
      $region77: #{feature_predictor_forward.11} parent=71 // pred_check
        %p1461 = pneg %p298
      $region78: #{feature_predictor_forward.11} parent=71 // pred_check_branch
        %1463 = sbr.rel (%p1461) target = $region80
      $region79: #{feature_predictor_forward.11} parent=71 // pred_region
        %p1464 = scmp.lt.s32.totalorder %s24, 1
        %s1465 = scalar_select %p1464, %s24, 1
        %s1466 = smul.addr %s1465, 8
        %s1467 = smul.addr %s1466, 8
        %s1468 = scalar_lea.vmem %s11, %s1467
      $region80: #{feature_predictor_forward.11} parent=71 // pred_fallthru
        _
    $region72: #{feature_predictor_forward.11} parent=5 // pred_fallthru
      _
  $region6: #{feature_predictor_forward.11} parent=0 // loop_footer
    %s22 = sadd.s32 1, %s18
  $region7: #{feature_predictor_forward.11} parent=0 // loop_footer_branch
    %17 = sbr.rel target = $region3
  $region8: #{feature_predictor_forward.11} parent=0 // loop_exit
    _

// kernel: feature_predictor_forward.14
$region0: #{feature_predictor_forward.14}
  #allocation0 [shape = 'u32[]', space=smem, size = 0x4, offset = 0x4, fixed_abs, tag = 'smem constant byte address 0x4 - core index']
  #allocation1 [shape = 'u32[144,128]{1,0:T(1,128)}', space=vmem, size = 0x12000, scoped, tag = 'internal scratch']
  %s0 = inlined_call_operand.vmem [shape: f32[12,128], index: 0, kind: input, shape index: {}]
  %s1 = inlined_call_operand.hbm [shape: f32[16,12], index: 1, kind: input, shape index: {}]
  %s2 = inlined_call_operand.vmem [shape: f32[16,1], index: 2, kind: input, shape index: {}]
  %s3 = inlined_call_operand.hbm [shape: f32[8,16], index: 3, kind: input, shape index: {}]
  %s4 = inlined_call_operand.vmem [shape: f32[8,1], index: 4, kind: input, shape index: {}]
  %s5 = inlined_call_operand.vmem [shape: f32[8,128], index: 5, kind: output, shape index: {}]
  %s6 = sld [smem:[#allocation0]]
  $region38: #{feature_predictor_forward.14} parent=0
    _
  %s8 = ssub.s32 1, %s6
  %s9 = scalar_select 0, %s8, %s6
  $region1: #{feature_predictor_forward.14} parent=0
    #allocation2 [shape = 'u8[8192]{0}', space=vmem, size = 0x2000, scoped, tag = 'input window, operand 1, single buffered']
    #allocation3 [shape = 's32[1]{0}', space=sflag, size = 0x4, scoped, tag = 'scoped memory for feature_predictor_forward.14']
    #allocation4 [shape = 'u8[4096]{0}', space=vmem, size = 0x1000, scoped, tag = 'input window, operand 3, single buffered']
    #allocation5 [shape = 's32[1]{0}', space=sflag, size = 0x4, scoped, tag = 'scoped memory for feature_predictor_forward.14']
    %10 = vsyncpa [#allocation3], 0
    %11 = vsyncpa [#allocation5], 0
    // Predicated region
    $region2: #{feature_predictor_forward.14} parent=1 // pred_check
      _
    $region3: #{feature_predictor_forward.14} parent=1 // pred_check_branch
      %13 = sbr.rel (0) target = $region5
    $region4: #{feature_predictor_forward.14} parent=1 // pred_region
      _
    $region5: #{feature_predictor_forward.14} parent=1 // pred_fallthru
      _
    // Predicated region
    $region6: #{feature_predictor_forward.14} parent=1 // pred_check
      _
    $region7: #{feature_predictor_forward.14} parent=1 // pred_check_branch
      %15 = sbr.rel (0) target = $region9
    $region8: #{feature_predictor_forward.14} parent=1 // pred_region
      %s17 = ssub.s32 256, 256
      %18 = vsyncadd [#allocation3], %s17
      %s19 = sshll.u32 [#allocation2], 4
      %s20 = int_to_ptr.vmem [resolvable:$true] %s19
      %25 = dma.hbm_to_vmem [thread:$0]  %s1, 256, %s20, [#allocation3], 128, 128, 8
    $region9: #{feature_predictor_forward.14} parent=1 // pred_fallthru
      _
    // Predicated region
    $region10: #{feature_predictor_forward.14} parent=1 // pred_check
      _
    $region11: #{feature_predictor_forward.14} parent=1 // pred_check_branch
      %27 = sbr.rel (0) target = $region13
    $region12: #{feature_predictor_forward.14} parent=1 // pred_region
      _
    $region13: #{feature_predictor_forward.14} parent=1 // pred_fallthru
      _
    // Predicated region
    $region14: #{feature_predictor_forward.14} parent=1 // pred_check
      _
    $region15: #{feature_predictor_forward.14} parent=1 // pred_check_branch
      %29 = sbr.rel (0) target = $region17
    $region16: #{feature_predictor_forward.14} parent=1 // pred_region
      %s31 = ssub.s32 128, 128
      %32 = vsyncadd [#allocation5], %s31
      %s34 = sshll.u32 [#allocation4], 4
      %s35 = int_to_ptr.vmem [resolvable:$true] %s34
      %37 = dma.hbm_to_vmem [thread:$0]  %s3, 128, %s35, [#allocation5]
    $region17: #{feature_predictor_forward.14} parent=1 // pred_fallthru
      _
    // Predicated region
    $region18: #{feature_predictor_forward.14} parent=1 // pred_check
      _
    $region19: #{feature_predictor_forward.14} parent=1 // pred_check_branch
      %39 = sbr.rel (0) target = $region21
    $region20: #{feature_predictor_forward.14} parent=1 // pred_region
      _
    $region21: #{feature_predictor_forward.14} parent=1 // pred_fallthru
      _
    // Predicated region
    $region22: #{feature_predictor_forward.14} parent=1 // pred_check
      _
    $region23: #{feature_predictor_forward.14} parent=1 // pred_check_branch
      %41 = sbr.rel (0) target = $region25
    $region24: #{feature_predictor_forward.14} parent=1 // pred_region
      %42 = dma.done [#allocation3], 256
    $region25: #{feature_predictor_forward.14} parent=1 // pred_fallthru
      _
    // Predicated region
    $region26: #{feature_predictor_forward.14} parent=1 // pred_check
      _
    $region27: #{feature_predictor_forward.14} parent=1 // pred_check_branch
      %44 = sbr.rel (0) target = $region29
    $region28: #{feature_predictor_forward.14} parent=1 // pred_region
      %45 = dma.done [#allocation5], 128
    $region29: #{feature_predictor_forward.14} parent=1 // pred_fallthru
      _
    %v46 = vld [vmem:[%s0] sm:$0xff]
    %v47 = vld [vmem:[%s0 + $0x8] sm:$0xf]
    %v48 = vld [vmem:[#allocation2] sm:$0xff]
    %v49 = vld [vmem:[#allocation2 + $0x8] sm:$0xff]
    %v50 = vld [vmem:[%s2] sm:$0xff]
    %v51 = vld [vmem:[%s2 + $0x8] sm:$0xff]
    %53 = vset.pattern.permute.xlu0 0
    %54 = vperm.xlu0 %53, %v50
    %v55 = vpop.permute.xlu0 %54
    %58 = vset.pattern.permute.xlu0 0
    %59 = vperm.xlu0 %58, %v51
    %v60 = vpop.permute.xlu0 %59
    %vm62 = vcmask 97280
    %v64 = vsel %vm62, %v48, 0
    %v67 = vsel %vm62, %v49, 0
    %vm69 = vcmask 1043456
    %v71 = vsel %vm69, %v47, 0
    %73 = vmatprep.subr.mxu0 0.0
    %74 = vmatpush1.msra.mxu0 %v46
    %75 = vmatprep.subr.mxu0 0.0
    %76 = vmatpush1.msra.mxu0 %v71
    %77 = vmatprep.subr.mxu0 0.0
    %78 = vmatpush1.msra.mxu0 0.0
    %79 = vmatprep.subr.mxu0 0.0
    %80 = vmatpush1.msra.mxu0 0.0
    %81 = vmatprep.subr.mxu0 0.0
    %82 = vmatpush1.msra.mxu0 0.0
    %83 = vmatprep.subr.mxu0 0.0
    %84 = vmatpush1.msra.mxu0 0.0
    %85 = vmatprep.subr.mxu0 0.0
    %86 = vmatpush1.msra.mxu0 0.0
    %87 = vmatprep.subr.mxu0 0.0
    %88 = vmatpush1.msra.mxu0 0.0
    %89 = vmatprep.subr.mxu0 0.0
    %90 = vmatpush1.msra.mxu0 0.0
    %91 = vmatprep.subr.mxu0 0.0
    %92 = vmatpush1.msra.mxu0 0.0
    %93 = vmatprep.subr.mxu0 0.0
    %94 = vmatpush1.msra.mxu0 0.0
    %95 = vmatprep.subr.mxu0 0.0
    %96 = vmatpush1.msra.mxu0 0.0
    %97 = vmatprep.subr.mxu0 0.0
    %98 = vmatpush1.msra.mxu0 0.0
    %99 = vmatprep.subr.mxu0 0.0
    %100 = vmatpush1.msra.mxu0 0.0
    %101 = vmatprep.subr.mxu0 0.0
    %102 = vmatpush1.msra.mxu0 0.0
    %103 = vmatprep.subr.mxu0 0.0
    %104 = vmatpush1.msra.mxu0 0.0
    %105 = vmatprep.subr.mxu0 0.0
    %106 = vmatpush1.msra.mxu0 0.0
    %107 = vmatprep.subr.mxu0 0.0
    %108 = vmatpush1.msra.mxu0 0.0
    %109 = vmatprep.subr.mxu0 0.0
    %110 = vmatpush1.msra.mxu0 0.0
    %111 = vmatprep.subr.mxu0 0.0
    %112 = vmatpush1.msra.mxu0 0.0
    %113 = vmatprep.subr.mxu0 0.0
    %114 = vmatpush1.msra.mxu0 0.0
    %115 = vmatprep.subr.mxu0 0.0
    %116 = vmatpush1.msra.mxu0 0.0
    %117 = vmatprep.subr.mxu0 0.0
    %118 = vmatpush1.msra.mxu0 0.0
    %119 = vmatprep.subr.mxu0 0.0
    %120 = vmatpush1.msra.mxu0 0.0
    %121 = vmatprep.subr.mxu0 0.0
    %122 = vmatpush1.msra.mxu0 0.0
    %123 = vmatprep.subr.mxu0 0.0
    %124 = vmatpush1.msra.mxu0 0.0
    %125 = vmatprep.subr.mxu0 0.0
    %126 = vmatpush1.msra.mxu0 0.0
    %127 = vmatprep.subr.mxu0 0.0
    %128 = vmatpush1.msra.mxu0 0.0
    %129 = vmatprep.subr.mxu0 0.0
    %130 = vmatpush1.msra.mxu0 0.0
    %131 = vmatprep.subr.mxu0 0.0
    %132 = vmatpush1.msra.mxu0 0.0
    %133 = vmatprep.subr.mxu0 0.0
    %134 = vmatpush1.msra.mxu0 0.0
    %135 = vmatprep.subr.mxu0 0.0
    %136 = vmatpush1.msra.mxu0 0.0
    %137 = vmatprep.mubr.f32.mxu0 0.0
    %138 = vmatmul.mubr.f32.gmra.mrb[0].mxu0 %v64
    %v139 = vpop.f32.mrb[0].mxu0
    %v140 = vadd.f32 %v55, %v139
    %v141 = vpop.f32.mrb[0].mxu0
    %142 = vmatprep.mubr.f32.mxu0 0.0
    %143 = vmatmul.mubr.f32.gmra.mrb[0].mxu0 %v67
    %v144 = vpop.f32.mrb[0].mxu0
    %v145 = vadd.f32 %v60, %v144
    %v146 = vpop.f32.mrb[0].mxu0
    %147 = vdwg.mxu0
    %v148 = vmax.f32 %v140, 0.0
    %v149 = vmax.f32 %v145, 0.0
    %v150 = vld [vmem:[#allocation4] sm:$0xff]
    %v151 = vld [vmem:[%s4] sm:$0xff]
    %153 = vset.pattern.permute.xlu0 0
    %154 = vperm.xlu0 %153, %v151
    %v155 = vpop.permute.xlu0 %154
    %vm157 = vcmask 130048
    %v159 = vsel %vm157, %v150, 0
    %161 = vmatprep.subr.mxu0 0.0
    %162 = vmatpush1.msra.mxu0 %v148
    %163 = vmatprep.subr.mxu0 0.0
    %164 = vmatpush1.msra.mxu0 %v149
    %165 = vmatprep.subr.mxu0 0.0
    %166 = vmatpush1.msra.mxu0 0.0
    %167 = vmatprep.subr.mxu0 0.0
    %168 = vmatpush1.msra.mxu0 0.0
    %169 = vmatprep.subr.mxu0 0.0
    %170 = vmatpush1.msra.mxu0 0.0
    %171 = vmatprep.subr.mxu0 0.0
    %172 = vmatpush1.msra.mxu0 0.0
    %173 = vmatprep.subr.mxu0 0.0
    %174 = vmatpush1.msra.mxu0 0.0
    %175 = vmatprep.subr.mxu0 0.0
    %176 = vmatpush1.msra.mxu0 0.0
    %177 = vmatprep.subr.mxu0 0.0
    %178 = vmatpush1.msra.mxu0 0.0
    %179 = vmatprep.subr.mxu0 0.0
    %180 = vmatpush1.msra.mxu0 0.0
    %181 = vmatprep.subr.mxu0 0.0
    %182 = vmatpush1.msra.mxu0 0.0
    %183 = vmatprep.subr.mxu0 0.0
    %184 = vmatpush1.msra.mxu0 0.0
    %185 = vmatprep.subr.mxu0 0.0
    %186 = vmatpush1.msra.mxu0 0.0
    %187 = vmatprep.subr.mxu0 0.0
    %188 = vmatpush1.msra.mxu0 0.0
    %189 = vmatprep.subr.mxu0 0.0
    %190 = vmatpush1.msra.mxu0 0.0
    %191 = vmatprep.subr.mxu0 0.0
    %192 = vmatpush1.msra.mxu0 0.0
    %193 = vmatprep.subr.mxu0 0.0
    %194 = vmatpush1.msra.mxu0 0.0
    %195 = vmatprep.subr.mxu0 0.0
    %196 = vmatpush1.msra.mxu0 0.0
    %197 = vmatprep.subr.mxu0 0.0
    %198 = vmatpush1.msra.mxu0 0.0
    %199 = vmatprep.subr.mxu0 0.0
    %200 = vmatpush1.msra.mxu0 0.0
    %201 = vmatprep.subr.mxu0 0.0
    %202 = vmatpush1.msra.mxu0 0.0
    %203 = vmatprep.subr.mxu0 0.0
    %204 = vmatpush1.msra.mxu0 0.0
    %205 = vmatprep.subr.mxu0 0.0
    %206 = vmatpush1.msra.mxu0 0.0
    %207 = vmatprep.subr.mxu0 0.0
    %208 = vmatpush1.msra.mxu0 0.0
    %209 = vmatprep.subr.mxu0 0.0
    %210 = vmatpush1.msra.mxu0 0.0
    %211 = vmatprep.subr.mxu0 0.0
    %212 = vmatpush1.msra.mxu0 0.0
    %213 = vmatprep.subr.mxu0 0.0
    %214 = vmatpush1.msra.mxu0 0.0
    %215 = vmatprep.subr.mxu0 0.0
    %216 = vmatpush1.msra.mxu0 0.0
    %217 = vmatprep.subr.mxu0 0.0
    %218 = vmatpush1.msra.mxu0 0.0
    %219 = vmatprep.subr.mxu0 0.0
    %220 = vmatpush1.msra.mxu0 0.0
    %221 = vmatprep.subr.mxu0 0.0
    %222 = vmatpush1.msra.mxu0 0.0
    %223 = vmatprep.subr.mxu0 0.0
    %224 = vmatpush1.msra.mxu0 0.0
    %225 = vmatprep.mubr.f32.mxu0 0.0
    %226 = vmatmul.mubr.f32.gmra.mrb[0].mxu0 %v159
    %v227 = vpop.f32.mrb[0].mxu0
    %v228 = vadd.f32 %v155, %v227
    %v229 = vpop.f32.mrb[0].mxu0
    %230 = vdwg.mxu0
    %v231 = vmax.f32 %v228, 0.0
    %232 = vst [vmem:[%s5] sm:$0xff] %v231
    // Predicated region
    $region30: #{feature_predictor_forward.14} parent=1 // pred_check
      _
    $region31: #{feature_predictor_forward.14} parent=1 // pred_check_branch
      %234 = sbr.rel (0) target = $region33
    $region32: #{feature_predictor_forward.14} parent=1 // pred_region
      _
    $region33: #{feature_predictor_forward.14} parent=1 // pred_fallthru
      _
    // Predicated region
    $region34: #{feature_predictor_forward.14} parent=1 // pred_check
      _
    $region35: #{feature_predictor_forward.14} parent=1 // pred_check_branch
      %236 = sbr.rel (0) target = $region37
    $region36: #{feature_predictor_forward.14} parent=1 // pred_region
      _
    $region37: #{feature_predictor_forward.14} parent=1 // pred_fallthru
      _
    %237 = vsyncpa [#allocation3], 1
    %238 = vsyncpa [#allocation5], 1

// kernel: feature_predictor_forward.13
$region0: #{feature_predictor_forward.13}
  #allocation0 [shape = 'u32[]', space=smem, size = 0x4, offset = 0x4, fixed_abs, tag = 'smem constant byte address 0x4 - core index']
  #allocation1 [shape = 'u32[144,128]{1,0:T(1,128)}', space=vmem, size = 0x12000, scoped, tag = 'internal scratch']
  %s0 = inlined_call_operand.vmem [shape: f32[2,8,64], index: 0, kind: input, shape index: {}, may-alias: {0,1}]
  %s1 = inlined_call_operand.vmem [shape: f32[2,8,64], index: 1, kind: input, shape index: {}, may-alias: {0,1}]
  %s2 = inlined_call_operand.vmem [shape: f32[2,8,64], index: 2, kind: input, shape index: {}]
  %s3 = inlined_call_operand.vmem [shape: f32[8,8], index: 3, kind: input, shape index: {}]
  %s4 = inlined_call_operand.vmem [shape: f32[8,1], index: 4, kind: input, shape index: {}]
  %s5 = inlined_call_operand.vmem [shape: f32[8,8], index: 5, kind: input, shape index: {}]
  %s6 = inlined_call_operand.vmem [shape: f32[8,1], index: 6, kind: input, shape index: {}]
  %s7 = inlined_call_operand.vmem [shape: f32[16,8], index: 7, kind: input, shape index: {}]
  %s8 = inlined_call_operand.vmem [shape: f32[16,1], index: 8, kind: input, shape index: {}]
  %s9 = inlined_call_operand.vmem [shape: f32[8,1], index: 9, kind: input, shape index: {}]
  %s10 = inlined_call_operand.hbm [shape: f32[2,8,64], index: 10, kind: output, shape index: {0}]
  %s11 = inlined_call_operand.vmem [shape: f32[2,64,64], index: 11, kind: output, shape index: {1}]
  %12 = xla_tuple %s10, %s11
  %s13 = sld [smem:[#allocation0]]
  $region81: #{feature_predictor_forward.13} parent=0
    _
  %s15 = ssub.s32 1, %s13
  %s16 = scalar_select 0, %s15, %s13
  $region1: #{feature_predictor_forward.13} parent=0
    #allocation2 [shape = 'u8[8192]{0}', space=vmem, size = 0x2000, scoped, tag = 'output window, operand 0']
    #allocation3 [shape = 's32[2]{0}', space=sflag, size = 0x8, scoped, tag = 'scoped memory for feature_predictor_forward.13']
    %17 = vsyncpa [#allocation3], 0
    %s18 = scalar_lea.sflag [#allocation3], 1
    %19 = vsyncpa %s18, 0
    loop: start=0, step=1, limit=4
    $region2: #{feature_predictor_forward.13} parent=1 // loop_pre_header
      _
    $region3: #{feature_predictor_forward.13} parent=1 // loop_header
      %s21 = sphi 0, %s25
      %p22 = scmp.ge.s32.totalorder %s21, 4
      %s31 = sphi 0, %s33
      %s34 = sphi 0, %s31
      %s35 = sphi 0, %s34
      %s51 = sphi 0, %s35
      %s57 = sphi 0, %s59
      %s60 = sphi 0, %s57
      %s61 = sphi 0, %s60
      %s77 = sphi 0, %s61
      %s83 = sphi 0, %s85
      %s86 = sphi 0, %s83
      %s87 = sphi 0, %s86
      %s103 = sphi 0, %s87
      %s107 = sphi 0, %s107
      %s109 = sphi 0, %s107
      %s110 = sphi 0, %s109
      %s124 = sphi 0, %s110
      %s128 = sphi 0, %s128
      %s130 = sphi 0, %s128
      %s131 = sphi 0, %s130
      %s145 = sphi 0, %s131
      %s149 = sphi 0, %s149
      %s151 = sphi 0, %s149
      %s152 = sphi 0, %s151
      %s166 = sphi 0, %s152
      %s170 = sphi 0, %s170
      %s172 = sphi 0, %s170
      %s173 = sphi 0, %s172
      %s187 = sphi 0, %s173
      %s191 = sphi 0, %s191
      %s193 = sphi 0, %s191
      %s194 = sphi 0, %s193
      %s208 = sphi 0, %s194
      %s212 = sphi 0, %s212
      %s214 = sphi 0, %s212
      %s215 = sphi 0, %s214
      %s229 = sphi 0, %s215
      %s233 = sphi 0, %s233
      %s235 = sphi 0, %s233
      %s236 = sphi 0, %s235
      %s250 = sphi 0, %s236
      %s256 = sphi 0, %s258
      %s259 = sphi 0, %s256
      %s260 = sphi 0, %s259
      %s276 = sphi 0, %s260
      %s282 = sphi 0, %s284
      %s285 = sphi 0, %s282
      %s286 = sphi 0, %s285
      %s302 = sphi 0, %s286
    $region4: #{feature_predictor_forward.13} parent=1 // loop_header_branch
      %24 = sbr.rel (%p22) target = $region8
    $region5: #{feature_predictor_forward.13} parent=1 // loop_body
      %s26 = ssub.s32 %s21, 1
      %s27 = ssub.s32 %s21, 2
      %s28 = sadd.s32 %s21, 1
      %s29 = ssub.s32 %s21, %s28
      %p30 = scmp.eq.s32.totalorder %s29, 0
      %s32 = sadd.s32 %s31, 1
      %s33 = scalar_select %p30, %s31, %s32
      %p36 = pneg %p30
      %p37 = scmp.eq.s32.totalorder %s21, 1
      %p38 = por %p36, %p37
      %p39 = scmp.ne.s32.totalorder %s31, %s34
      %p40 = scmp.eq.s32.totalorder %s21, 0
      %p41 = por %p39, %p40
      %p42 = scmp.ne.s32.totalorder %s31, %s34
      %p43 = scmp.eq.s32.totalorder %s26, 1
      %p44 = por %p42, %p43
      %p45 = scmp.ne.s32.totalorder %s34, %s35
      %p46 = scmp.eq.s32.totalorder %s26, 0
      %p47 = por %p45, %p46
      %p48 = scmp.ne.s32.totalorder %s34, %s35
      %p49 = scmp.eq.s32.totalorder %s27, 1
      %p50 = por %p48, %p49
      %p52 = scmp.ne.s32.totalorder %s35, %s51
      %p53 = scmp.eq.s32.totalorder %s27, 0
      %p54 = por %p52, %p53
      %s55 = ssub.s32 %s21, %s28
      %p56 = scmp.eq.s32.totalorder %s55, 0
      %s58 = sadd.s32 %s57, 1
      %s59 = scalar_select %p56, %s57, %s58
      %p62 = pneg %p56
      %p63 = scmp.eq.s32.totalorder %s21, 1
      %p64 = por %p62, %p63
      %p65 = scmp.ne.s32.totalorder %s57, %s60
      %p66 = scmp.eq.s32.totalorder %s21, 0
      %p67 = por %p65, %p66
      %p68 = scmp.ne.s32.totalorder %s57, %s60
      %p69 = scmp.eq.s32.totalorder %s26, 1
      %p70 = por %p68, %p69
      %p71 = scmp.ne.s32.totalorder %s60, %s61
      %p72 = scmp.eq.s32.totalorder %s26, 0
      %p73 = por %p71, %p72
      %p74 = scmp.ne.s32.totalorder %s60, %s61
      %p75 = scmp.eq.s32.totalorder %s27, 1
      %p76 = por %p74, %p75
      %p78 = scmp.ne.s32.totalorder %s61, %s77
      %p79 = scmp.eq.s32.totalorder %s27, 0
      %p80 = por %p78, %p79
      %s81 = ssub.s32 %s21, %s28
      %p82 = scmp.eq.s32.totalorder %s81, 0
      %s84 = sadd.s32 %s83, 1
      %s85 = scalar_select %p82, %s83, %s84
      %p88 = pneg %p82
      %p89 = scmp.eq.s32.totalorder %s21, 1
      %p90 = por %p88, %p89
      %p91 = scmp.ne.s32.totalorder %s83, %s86
      %p92 = scmp.eq.s32.totalorder %s21, 0
      %p93 = por %p91, %p92
      %p94 = scmp.ne.s32.totalorder %s83, %s86
      %p95 = scmp.eq.s32.totalorder %s26, 1
      %p96 = por %p94, %p95
      %p97 = scmp.ne.s32.totalorder %s86, %s87
      %p98 = scmp.eq.s32.totalorder %s26, 0
      %p99 = por %p97, %p98
      %p100 = scmp.ne.s32.totalorder %s86, %s87
      %p101 = scmp.eq.s32.totalorder %s27, 1
      %p102 = por %p100, %p101
      %p104 = scmp.ne.s32.totalorder %s87, %s103
      %p105 = scmp.eq.s32.totalorder %s27, 0
      %p106 = por %p104, %p105
      %s108 = sadd.s32 %s107, 1
      %p111 = scmp.eq.s32.totalorder %s21, 1
      %p112 = scmp.ne.s32.totalorder %s107, %s109
      %p113 = scmp.eq.s32.totalorder %s21, 0
      %p114 = por %p112, %p113
      %p115 = scmp.ne.s32.totalorder %s107, %s109
      %p116 = scmp.eq.s32.totalorder %s26, 1
      %p117 = por %p115, %p116
      %p118 = scmp.ne.s32.totalorder %s109, %s110
      %p119 = scmp.eq.s32.totalorder %s26, 0
      %p120 = por %p118, %p119
      %p121 = scmp.ne.s32.totalorder %s109, %s110
      %p122 = scmp.eq.s32.totalorder %s27, 1
      %p123 = por %p121, %p122
      %p125 = scmp.ne.s32.totalorder %s110, %s124
      %p126 = scmp.eq.s32.totalorder %s27, 0
      %p127 = por %p125, %p126
      %s129 = sadd.s32 %s128, 1
      %p132 = scmp.eq.s32.totalorder %s21, 1
      %p133 = scmp.ne.s32.totalorder %s128, %s130
      %p134 = scmp.eq.s32.totalorder %s21, 0
      %p135 = por %p133, %p134
      %p136 = scmp.ne.s32.totalorder %s128, %s130
      %p137 = scmp.eq.s32.totalorder %s26, 1
      %p138 = por %p136, %p137
      %p139 = scmp.ne.s32.totalorder %s130, %s131
      %p140 = scmp.eq.s32.totalorder %s26, 0
      %p141 = por %p139, %p140
      %p142 = scmp.ne.s32.totalorder %s130, %s131
      %p143 = scmp.eq.s32.totalorder %s27, 1
      %p144 = por %p142, %p143
      %p146 = scmp.ne.s32.totalorder %s131, %s145
      %p147 = scmp.eq.s32.totalorder %s27, 0
      %p148 = por %p146, %p147
      %s150 = sadd.s32 %s149, 1
      %p153 = scmp.eq.s32.totalorder %s21, 1
      %p154 = scmp.ne.s32.totalorder %s149, %s151
      %p155 = scmp.eq.s32.totalorder %s21, 0
      %p156 = por %p154, %p155
      %p157 = scmp.ne.s32.totalorder %s149, %s151
      %p158 = scmp.eq.s32.totalorder %s26, 1
      %p159 = por %p157, %p158
      %p160 = scmp.ne.s32.totalorder %s151, %s152
      %p161 = scmp.eq.s32.totalorder %s26, 0
      %p162 = por %p160, %p161
      %p163 = scmp.ne.s32.totalorder %s151, %s152
      %p164 = scmp.eq.s32.totalorder %s27, 1
      %p165 = por %p163, %p164
      %p167 = scmp.ne.s32.totalorder %s152, %s166
      %p168 = scmp.eq.s32.totalorder %s27, 0
      %p169 = por %p167, %p168
      %s171 = sadd.s32 %s170, 1
      %p174 = scmp.eq.s32.totalorder %s21, 1
      %p175 = scmp.ne.s32.totalorder %s170, %s172
      %p176 = scmp.eq.s32.totalorder %s21, 0
      %p177 = por %p175, %p176
      %p178 = scmp.ne.s32.totalorder %s170, %s172
      %p179 = scmp.eq.s32.totalorder %s26, 1
      %p180 = por %p178, %p179
      %p181 = scmp.ne.s32.totalorder %s172, %s173
      %p182 = scmp.eq.s32.totalorder %s26, 0
      %p183 = por %p181, %p182
      %p184 = scmp.ne.s32.totalorder %s172, %s173
      %p185 = scmp.eq.s32.totalorder %s27, 1
      %p186 = por %p184, %p185
      %p188 = scmp.ne.s32.totalorder %s173, %s187
      %p189 = scmp.eq.s32.totalorder %s27, 0
      %p190 = por %p188, %p189
      %s192 = sadd.s32 %s191, 1
      %p195 = scmp.eq.s32.totalorder %s21, 1
      %p196 = scmp.ne.s32.totalorder %s191, %s193
      %p197 = scmp.eq.s32.totalorder %s21, 0
      %p198 = por %p196, %p197
      %p199 = scmp.ne.s32.totalorder %s191, %s193
      %p200 = scmp.eq.s32.totalorder %s26, 1
      %p201 = por %p199, %p200
      %p202 = scmp.ne.s32.totalorder %s193, %s194
      %p203 = scmp.eq.s32.totalorder %s26, 0
      %p204 = por %p202, %p203
      %p205 = scmp.ne.s32.totalorder %s193, %s194
      %p206 = scmp.eq.s32.totalorder %s27, 1
      %p207 = por %p205, %p206
      %p209 = scmp.ne.s32.totalorder %s194, %s208
      %p210 = scmp.eq.s32.totalorder %s27, 0
      %p211 = por %p209, %p210
      %s213 = sadd.s32 %s212, 1
      %p216 = scmp.eq.s32.totalorder %s21, 1
      %p217 = scmp.ne.s32.totalorder %s212, %s214
      %p218 = scmp.eq.s32.totalorder %s21, 0
      %p219 = por %p217, %p218
      %p220 = scmp.ne.s32.totalorder %s212, %s214
      %p221 = scmp.eq.s32.totalorder %s26, 1
      %p222 = por %p220, %p221
      %p223 = scmp.ne.s32.totalorder %s214, %s215
      %p224 = scmp.eq.s32.totalorder %s26, 0
      %p225 = por %p223, %p224
      %p226 = scmp.ne.s32.totalorder %s214, %s215
      %p227 = scmp.eq.s32.totalorder %s27, 1
      %p228 = por %p226, %p227
      %p230 = scmp.ne.s32.totalorder %s215, %s229
      %p231 = scmp.eq.s32.totalorder %s27, 0
      %p232 = por %p230, %p231
      %s234 = sadd.s32 %s233, 1
      %p237 = scmp.eq.s32.totalorder %s21, 1
      %p238 = scmp.ne.s32.totalorder %s233, %s235
      %p239 = scmp.eq.s32.totalorder %s21, 0
      %p240 = por %p238, %p239
      %p241 = scmp.ne.s32.totalorder %s233, %s235
      %p242 = scmp.eq.s32.totalorder %s26, 1
      %p243 = por %p241, %p242
      %p244 = scmp.ne.s32.totalorder %s235, %s236
      %p245 = scmp.eq.s32.totalorder %s26, 0
      %p246 = por %p244, %p245
      %p247 = scmp.ne.s32.totalorder %s235, %s236
      %p248 = scmp.eq.s32.totalorder %s27, 1
      %p249 = por %p247, %p248
      %p251 = scmp.ne.s32.totalorder %s236, %s250
      %p252 = scmp.eq.s32.totalorder %s27, 0
      %p253 = por %p251, %p252
      %s254 = ssub.s32 %s21, %s28
      %p255 = scmp.eq.s32.totalorder %s254, 0
      %s257 = sadd.s32 %s256, 1
      %s258 = scalar_select %p255, %s256, %s257
      %p261 = pneg %p255
      %p262 = scmp.eq.s32.totalorder %s21, 1
      %p263 = por %p261, %p262
      %p264 = scmp.ne.s32.totalorder %s256, %s259
      %p265 = scmp.eq.s32.totalorder %s21, 0
      %p266 = por %p264, %p265
      %p267 = scmp.ne.s32.totalorder %s256, %s259
      %p268 = scmp.eq.s32.totalorder %s26, 1
      %p269 = por %p267, %p268
      %p270 = scmp.ne.s32.totalorder %s259, %s260
      %p271 = scmp.eq.s32.totalorder %s26, 0
      %p272 = por %p270, %p271
      %p273 = scmp.ne.s32.totalorder %s259, %s260
      %p274 = scmp.eq.s32.totalorder %s27, 1
      %p275 = por %p273, %p274
      %p277 = scmp.ne.s32.totalorder %s260, %s276
      %p278 = scmp.eq.s32.totalorder %s27, 0
      %p279 = por %p277, %p278
      %s280 = ssub.s32 %s21, %s28
      %p281 = scmp.eq.s32.totalorder %s280, 0
      %s283 = sadd.s32 %s282, 1
      %s284 = scalar_select %p281, %s282, %s283
      %p287 = pneg %p281
      %p288 = scmp.eq.s32.totalorder %s21, 1
      %p289 = por %p287, %p288
      %p290 = scmp.ne.s32.totalorder %s282, %s285
      %p291 = scmp.eq.s32.totalorder %s21, 0
      %p292 = por %p290, %p291
      %p293 = scmp.ne.s32.totalorder %s282, %s285
      %p294 = scmp.eq.s32.totalorder %s26, 1
      %p295 = por %p293, %p294
      %p296 = scmp.ne.s32.totalorder %s285, %s286
      %p297 = scmp.eq.s32.totalorder %s26, 0
      %p298 = por %p296, %p297
      %p299 = scmp.ne.s32.totalorder %s285, %s286
      %p300 = scmp.eq.s32.totalorder %s27, 1
      %p301 = por %p299, %p300
      %p303 = scmp.ne.s32.totalorder %s286, %s302
      %p304 = scmp.eq.s32.totalorder %s27, 0
      %p305 = por %p303, %p304
      %p306 = scmp.le.s32.totalorder 1, %s21
      %p307 = scmp.lt.s32.totalorder %s21, 3
      %p308 = pnand %p306, %p307
      %p309 = pneg %p308
      // Predicated region
      $region9: #{feature_predictor_forward.13} parent=5 // pred_check
        _
      $region10: #{feature_predictor_forward.13} parent=5 // pred_check_branch
        %311 = sbr.rel (%p308) target = $region12
      $region11: #{feature_predictor_forward.13} parent=5 // pred_region
        %s312 = ssub.s32 %s21, 1
        // Predicated region
        $region13: #{feature_predictor_forward.13} parent=11 // pred_check
          %p313 = pneg %p120
        $region14: #{feature_predictor_forward.13} parent=11 // pred_check_branch
          %315 = sbr.rel (%p313) target = $region16
        $region15: #{feature_predictor_forward.13} parent=11 // pred_region
          _
        $region16: #{feature_predictor_forward.13} parent=11 // pred_fallthru
          _
        // Predicated region
        $region17: #{feature_predictor_forward.13} parent=11 // pred_check
          %p316 = pneg %p141
        $region18: #{feature_predictor_forward.13} parent=11 // pred_check_branch
          %318 = sbr.rel (%p316) target = $region20
        $region19: #{feature_predictor_forward.13} parent=11 // pred_region
          _
        $region20: #{feature_predictor_forward.13} parent=11 // pred_fallthru
          _
        // Predicated region
        $region21: #{feature_predictor_forward.13} parent=11 // pred_check
          %p319 = pneg %p162
        $region22: #{feature_predictor_forward.13} parent=11 // pred_check_branch
          %321 = sbr.rel (%p319) target = $region24
        $region23: #{feature_predictor_forward.13} parent=11 // pred_region
          _
        $region24: #{feature_predictor_forward.13} parent=11 // pred_fallthru
          _
        // Predicated region
        $region25: #{feature_predictor_forward.13} parent=11 // pred_check
          %p322 = pneg %p183
        $region26: #{feature_predictor_forward.13} parent=11 // pred_check_branch
          %324 = sbr.rel (%p322) target = $region28
        $region27: #{feature_predictor_forward.13} parent=11 // pred_region
          _
        $region28: #{feature_predictor_forward.13} parent=11 // pred_fallthru
          _
        // Predicated region
        $region29: #{feature_predictor_forward.13} parent=11 // pred_check
          %p325 = pneg %p204
        $region30: #{feature_predictor_forward.13} parent=11 // pred_check_branch
          %327 = sbr.rel (%p325) target = $region32
        $region31: #{feature_predictor_forward.13} parent=11 // pred_region
          _
        $region32: #{feature_predictor_forward.13} parent=11 // pred_fallthru
          _
        // Predicated region
        $region33: #{feature_predictor_forward.13} parent=11 // pred_check
          %p328 = pneg %p225
        $region34: #{feature_predictor_forward.13} parent=11 // pred_check_branch
          %330 = sbr.rel (%p328) target = $region36
        $region35: #{feature_predictor_forward.13} parent=11 // pred_region
          _
        $region36: #{feature_predictor_forward.13} parent=11 // pred_fallthru
          _
        // Predicated region
        $region37: #{feature_predictor_forward.13} parent=11 // pred_check
          %p331 = pneg %p246
        $region38: #{feature_predictor_forward.13} parent=11 // pred_check_branch
          %333 = sbr.rel (%p331) target = $region40
        $region39: #{feature_predictor_forward.13} parent=11 // pred_region
          _
        $region40: #{feature_predictor_forward.13} parent=11 // pred_fallthru
          _
      $region12: #{feature_predictor_forward.13} parent=5 // pred_fallthru
        _
      %p334 = scmp.lt.s32.totalorder %s21, 2
      // Predicated region
      $region41: #{feature_predictor_forward.13} parent=5 // pred_check
        %p335 = pneg %p334
      $region42: #{feature_predictor_forward.13} parent=5 // pred_check_branch
        %337 = sbr.rel (%p335) target = $region44
      $region43: #{feature_predictor_forward.13} parent=5 // pred_region
        // Predicated region
        $region45: #{feature_predictor_forward.13} parent=43 // pred_check
          %p338 = pneg %p41
        $region46: #{feature_predictor_forward.13} parent=43 // pred_check_branch
          %340 = sbr.rel (%p338) target = $region48
        $region47: #{feature_predictor_forward.13} parent=43 // pred_region
          %p341 = scmp.lt.s32.totalorder %s21, 1
          %s342 = scalar_select %p341, %s21, 1
          %s343 = smul.addr %s342, 8
          %s344 = scalar_lea.vmem %s0, %s343
        $region48: #{feature_predictor_forward.13} parent=43 // pred_fallthru
          _
        // Predicated region
        $region49: #{feature_predictor_forward.13} parent=43 // pred_check
          %p345 = pneg %p67
        $region50: #{feature_predictor_forward.13} parent=43 // pred_check_branch
          %347 = sbr.rel (%p345) target = $region52
        $region51: #{feature_predictor_forward.13} parent=43 // pred_region
          %p348 = scmp.lt.s32.totalorder %s21, 1
          %s349 = scalar_select %p348, %s21, 1
          %s350 = smul.addr %s349, 8
          %s351 = scalar_lea.vmem %s1, %s350
        $region52: #{feature_predictor_forward.13} parent=43 // pred_fallthru
          _
        // Predicated region
        $region53: #{feature_predictor_forward.13} parent=43 // pred_check
          %p352 = pneg %p93
        $region54: #{feature_predictor_forward.13} parent=43 // pred_check_branch
          %354 = sbr.rel (%p352) target = $region56
        $region55: #{feature_predictor_forward.13} parent=43 // pred_region
          %p355 = scmp.lt.s32.totalorder %s21, 1
          %s356 = scalar_select %p355, %s21, 1
          %s357 = smul.addr %s356, 8
          %s358 = scalar_lea.vmem %s2, %s357
        $region56: #{feature_predictor_forward.13} parent=43 // pred_fallthru
          _
      $region44: #{feature_predictor_forward.13} parent=5 // pred_fallthru
        _
      %p359 = scmp.le.s32.totalorder 1, %s21
      %p360 = scmp.lt.s32.totalorder %s21, 3
      %p361 = pnand %p359, %p360
      %p362 = pneg %p361
      // Predicated region
      $region57: #{feature_predictor_forward.13} parent=5 // pred_check
        _
      $region58: #{feature_predictor_forward.13} parent=5 // pred_check_branch
        %364 = sbr.rel (%p361) target = $region60
      $region59: #{feature_predictor_forward.13} parent=5 // pred_region
        %s365 = ssub.s32 %s21, 1
        %p366 = scmp.lt.s32.totalorder %s26, 1
        %s367 = scalar_select %p366, %s26, 1
        %s368 = smul.addr %s367, 8
        %s369 = scalar_lea.vmem %s0, %s368
        %p370 = pneg %p47
        %p371 = pneg %p44
        %p372 = scmp.lt.s32.totalorder %s26, 1
        %s373 = scalar_select %p372, %s26, 1
        %s374 = smul.addr %s373, 8
        %s375 = scalar_lea.vmem %s1, %s374
        %p376 = pneg %p73
        %p377 = pneg %p70
        %p378 = scmp.lt.s32.totalorder %s26, 1
        %s379 = scalar_select %p378, %s26, 1
        %s380 = smul.addr %s379, 8
        %s381 = scalar_lea.vmem %s2, %s380
        %p382 = pneg %p99
        %p383 = pneg %p96
        %p384 = pneg %p120
        %p385 = pneg %p117
        %p386 = pneg %p141
        %p387 = pneg %p138
        %p388 = pneg %p162
        %p389 = pneg %p159
        %p390 = pneg %p183
        %p391 = pneg %p180
        %p392 = pneg %p204
        %p393 = pneg %p201
        %p394 = pneg %p225
        %p395 = pneg %p222
        %p396 = pneg %p246
        %p397 = pneg %p243
        %p398 = pneg %p272
        %p399 = pneg %p269
        %s400 = sand.u32 %s259, 1
        %s401 = scalar_lea.sflag [#allocation3], %s400
        %s402 = sand.u32 %s259, 1
        %s403 = smul.addr %s402, 8
        %s404 = scalar_lea.vmem [#allocation2], %s403
        %p405 = pneg %p298
        %p406 = pneg %p295
        %p407 = scmp.lt.s32.totalorder %s26, 1
        %s408 = scalar_select %p407, %s26, 1
        %s409 = smul.addr %s408, 8
        %s410 = smul.addr %s409, 8
        %s411 = scalar_lea.vmem %s11, %s410
        %p412 = scmp.lt.s32.totalorder %s26, 1
        %s413 = scalar_select %p412, %s26, 1
        %s414 = smul.addr %s413, 8
        %s415 = scalar_lea.vmem %s0, %s414
        %p416 = scmp.lt.s32.totalorder %s26, 1
        %s417 = scalar_select %p416, %s26, 1
        %s418 = smul.addr %s417, 8
        %s419 = scalar_lea.vmem %s1, %s418
        %p420 = scmp.lt.s32.totalorder %s26, 1
        %s421 = scalar_select %p420, %s26, 1
        %s422 = smul.addr %s421, 8
        %s423 = scalar_lea.vmem %s2, %s422
        %p424 = scmp.lt.s32.totalorder %s26, 1
        %s425 = scalar_select %p424, %s26, 1
        %s426 = smul.addr %s425, 8
        %s427 = smul.addr %s426, 8
        %s428 = scalar_lea.vmem %s11, %s427
        %v429 = vld [vmem:[%s415] sm:$0xff]
        %v430 = vld [vmem:[%s419] sm:$0xff]
        %v431 = vld [vmem:[%s423] sm:$0xff]
        %v432 = vld [vmem:[%s3] sm:$0xff]
        %v433 = vld [vmem:[%s4] sm:$0xff]
        %435 = vset.pattern.permute.xlu0 0
        %436 = vperm.xlu0 %435, %v433
        %v437 = vpop.permute.xlu0 %436
        %vm439 = vcmask 64512
        %v441 = vsel %vm439, %v432, 0
        %443 = vmatprep.subr.mxu0 0.0
        %444 = vmatpush1.msra.mxu0 %v429
        %445 = vmatprep.subr.mxu0 0.0
        %446 = vmatpush1.msra.mxu0 0.0
        %447 = vmatprep.subr.mxu0 0.0
        %448 = vmatpush1.msra.mxu0 0.0
        %449 = vmatprep.subr.mxu0 0.0
        %450 = vmatpush1.msra.mxu0 0.0
        %451 = vmatprep.subr.mxu0 0.0
        %452 = vmatpush1.msra.mxu0 0.0
        %453 = vmatprep.subr.mxu0 0.0
        %454 = vmatpush1.msra.mxu0 0.0
        %455 = vmatprep.subr.mxu0 0.0
        %456 = vmatpush1.msra.mxu0 0.0
        %457 = vmatprep.subr.mxu0 0.0
        %458 = vmatpush1.msra.mxu0 0.0
        %459 = vmatprep.subr.mxu0 0.0
        %460 = vmatpush1.msra.mxu0 0.0
        %461 = vmatprep.subr.mxu0 0.0
        %462 = vmatpush1.msra.mxu0 0.0
        %463 = vmatprep.subr.mxu0 0.0
        %464 = vmatpush1.msra.mxu0 0.0
        %465 = vmatprep.subr.mxu0 0.0
        %466 = vmatpush1.msra.mxu0 0.0
        %467 = vmatprep.subr.mxu0 0.0
        %468 = vmatpush1.msra.mxu0 0.0
        %469 = vmatprep.subr.mxu0 0.0
        %470 = vmatpush1.msra.mxu0 0.0
        %471 = vmatprep.subr.mxu0 0.0
        %472 = vmatpush1.msra.mxu0 0.0
        %473 = vmatprep.subr.mxu0 0.0
        %474 = vmatpush1.msra.mxu0 0.0
        %475 = vmatprep.subr.mxu0 0.0
        %476 = vmatpush1.msra.mxu0 0.0
        %477 = vmatprep.subr.mxu0 0.0
        %478 = vmatpush1.msra.mxu0 0.0
        %479 = vmatprep.subr.mxu0 0.0
        %480 = vmatpush1.msra.mxu0 0.0
        %481 = vmatprep.subr.mxu0 0.0
        %482 = vmatpush1.msra.mxu0 0.0
        %483 = vmatprep.subr.mxu0 0.0
        %484 = vmatpush1.msra.mxu0 0.0
        %485 = vmatprep.subr.mxu0 0.0
        %486 = vmatpush1.msra.mxu0 0.0
        %487 = vmatprep.subr.mxu0 0.0
        %488 = vmatpush1.msra.mxu0 0.0
        %489 = vmatprep.subr.mxu0 0.0
        %490 = vmatpush1.msra.mxu0 0.0
        %491 = vmatprep.subr.mxu0 0.0
        %492 = vmatpush1.msra.mxu0 0.0
        %493 = vmatprep.subr.mxu0 0.0
        %494 = vmatpush1.msra.mxu0 0.0
        %495 = vmatprep.subr.mxu0 0.0
        %496 = vmatpush1.msra.mxu0 0.0
        %497 = vmatprep.subr.mxu0 0.0
        %498 = vmatpush1.msra.mxu0 0.0
        %499 = vmatprep.subr.mxu0 0.0
        %500 = vmatpush1.msra.mxu0 0.0
        %501 = vmatprep.subr.mxu0 0.0
        %502 = vmatpush1.msra.mxu0 0.0
        %503 = vmatprep.subr.mxu0 0.0
        %504 = vmatpush1.msra.mxu0 0.0
        %505 = vmatprep.subr.mxu0 0.0
        %506 = vmatpush1.msra.mxu0 0.0
        %507 = vmatprep.mubr.f32.mxu0 0.0
        %508 = vmatmul.mubr.f32.gmra.mrb[0].mxu0 %v441
        %v509 = vpop.f32.mrb[0].mxu0
        %v510 = vadd.f32 %v437, %v509
        %v511 = vpop.f32.mrb[0].mxu0
        %512 = vdwg.mxu0
        %v513 = vld [vmem:[%s5] sm:$0xff]
        %v514 = vld [vmem:[%s6] sm:$0xff]
        %516 = vset.pattern.permute.xlu0 0
        %517 = vperm.xlu0 %516, %v514
        %v518 = vpop.permute.xlu0 %517
        %v521 = vsel %vm439, %v513, 0
        %523 = vmatprep.subr.mxu0 0.0
        %524 = vmatpush1.msra.mxu0 %v430
        %525 = vmatprep.subr.mxu0 0.0
        %526 = vmatpush1.msra.mxu0 0.0
        %527 = vmatprep.subr.mxu0 0.0
        %528 = vmatpush1.msra.mxu0 0.0
        %529 = vmatprep.subr.mxu0 0.0
        %530 = vmatpush1.msra.mxu0 0.0
        %531 = vmatprep.subr.mxu0 0.0
        %532 = vmatpush1.msra.mxu0 0.0
        %533 = vmatprep.subr.mxu0 0.0
        %534 = vmatpush1.msra.mxu0 0.0
        %535 = vmatprep.subr.mxu0 0.0
        %536 = vmatpush1.msra.mxu0 0.0
        %537 = vmatprep.subr.mxu0 0.0
        %538 = vmatpush1.msra.mxu0 0.0
        %539 = vmatprep.subr.mxu0 0.0
        %540 = vmatpush1.msra.mxu0 0.0
        %541 = vmatprep.subr.mxu0 0.0
        %542 = vmatpush1.msra.mxu0 0.0
        %543 = vmatprep.subr.mxu0 0.0
        %544 = vmatpush1.msra.mxu0 0.0
        %545 = vmatprep.subr.mxu0 0.0
        %546 = vmatpush1.msra.mxu0 0.0
        %547 = vmatprep.subr.mxu0 0.0
        %548 = vmatpush1.msra.mxu0 0.0
        %549 = vmatprep.subr.mxu0 0.0
        %550 = vmatpush1.msra.mxu0 0.0
        %551 = vmatprep.subr.mxu0 0.0
        %552 = vmatpush1.msra.mxu0 0.0
        %553 = vmatprep.subr.mxu0 0.0
        %554 = vmatpush1.msra.mxu0 0.0
        %555 = vmatprep.subr.mxu0 0.0
        %556 = vmatpush1.msra.mxu0 0.0
        %557 = vmatprep.subr.mxu0 0.0
        %558 = vmatpush1.msra.mxu0 0.0
        %559 = vmatprep.subr.mxu0 0.0
        %560 = vmatpush1.msra.mxu0 0.0
        %561 = vmatprep.subr.mxu0 0.0
        %562 = vmatpush1.msra.mxu0 0.0
        %563 = vmatprep.subr.mxu0 0.0
        %564 = vmatpush1.msra.mxu0 0.0
        %565 = vmatprep.subr.mxu0 0.0
        %566 = vmatpush1.msra.mxu0 0.0
        %567 = vmatprep.subr.mxu0 0.0
        %568 = vmatpush1.msra.mxu0 0.0
        %569 = vmatprep.subr.mxu0 0.0
        %570 = vmatpush1.msra.mxu0 0.0
        %571 = vmatprep.subr.mxu0 0.0
        %572 = vmatpush1.msra.mxu0 0.0
        %573 = vmatprep.subr.mxu0 0.0
        %574 = vmatpush1.msra.mxu0 0.0
        %575 = vmatprep.subr.mxu0 0.0
        %576 = vmatpush1.msra.mxu0 0.0
        %577 = vmatprep.subr.mxu0 0.0
        %578 = vmatpush1.msra.mxu0 0.0
        %579 = vmatprep.subr.mxu0 0.0
        %580 = vmatpush1.msra.mxu0 0.0
        %581 = vmatprep.subr.mxu0 0.0
        %582 = vmatpush1.msra.mxu0 0.0
        %583 = vmatprep.subr.mxu0 0.0
        %584 = vmatpush1.msra.mxu0 0.0
        %585 = vmatprep.subr.mxu0 0.0
        %586 = vmatpush1.msra.mxu0 0.0
        %587 = vmatprep.mubr.f32.mxu0 0.0
        %588 = vmatmul.mubr.f32.gmra.mrb[0].mxu0 %v521
        %v589 = vpop.f32.mrb[0].mxu0
        %v590 = vadd.f32 %v518, %v589
        %v591 = vpop.f32.mrb[0].mxu0
        %592 = vdwg.mxu0
        %v593 = vld [vmem:[%s7] sm:$0xff]
        %v594 = vld [vmem:[%s7 + $0x8] sm:$0xff]
        %v595 = vld [vmem:[%s8] sm:$0xff]
        %v596 = vld [vmem:[%s8 + $0x8] sm:$0xff]
        %598 = vset.pattern.permute.xlu0 0
        %599 = vperm.xlu0 %598, %v595
        %v600 = vpop.permute.xlu0 %599
        %603 = vset.pattern.permute.xlu0 0
        %604 = vperm.xlu0 %603, %v596
        %v605 = vpop.permute.xlu0 %604
        %v608 = vsel %vm439, %v593, 0
        %v611 = vsel %vm439, %v594, 0
        %613 = vmatprep.subr.mxu0 0.0
        %614 = vmatpush1.msra.mxu0 %v431
        %615 = vmatprep.subr.mxu0 0.0
        %616 = vmatpush1.msra.mxu0 0.0
        %617 = vmatprep.subr.mxu0 0.0
        %618 = vmatpush1.msra.mxu0 0.0
        %619 = vmatprep.subr.mxu0 0.0
        %620 = vmatpush1.msra.mxu0 0.0
        %621 = vmatprep.subr.mxu0 0.0
        %622 = vmatpush1.msra.mxu0 0.0
        %623 = vmatprep.subr.mxu0 0.0
        %624 = vmatpush1.msra.mxu0 0.0
        %625 = vmatprep.subr.mxu0 0.0
        %626 = vmatpush1.msra.mxu0 0.0
        %627 = vmatprep.subr.mxu0 0.0
        %628 = vmatpush1.msra.mxu0 0.0
        %629 = vmatprep.subr.mxu0 0.0
        %630 = vmatpush1.msra.mxu0 0.0
        %631 = vmatprep.subr.mxu0 0.0
        %632 = vmatpush1.msra.mxu0 0.0
        %633 = vmatprep.subr.mxu0 0.0
        %634 = vmatpush1.msra.mxu0 0.0
        %635 = vmatprep.subr.mxu0 0.0
        %636 = vmatpush1.msra.mxu0 0.0
        %637 = vmatprep.subr.mxu0 0.0
        %638 = vmatpush1.msra.mxu0 0.0
        %639 = vmatprep.subr.mxu0 0.0
        %640 = vmatpush1.msra.mxu0 0.0
        %641 = vmatprep.subr.mxu0 0.0
        %642 = vmatpush1.msra.mxu0 0.0
        %643 = vmatprep.subr.mxu0 0.0
        %644 = vmatpush1.msra.mxu0 0.0
        %645 = vmatprep.subr.mxu0 0.0
        %646 = vmatpush1.msra.mxu0 0.0
        %647 = vmatprep.subr.mxu0 0.0
        %648 = vmatpush1.msra.mxu0 0.0
        %649 = vmatprep.subr.mxu0 0.0
        %650 = vmatpush1.msra.mxu0 0.0
        %651 = vmatprep.subr.mxu0 0.0
        %652 = vmatpush1.msra.mxu0 0.0
        %653 = vmatprep.subr.mxu0 0.0
        %654 = vmatpush1.msra.mxu0 0.0
        %655 = vmatprep.subr.mxu0 0.0
        %656 = vmatpush1.msra.mxu0 0.0
        %657 = vmatprep.subr.mxu0 0.0
        %658 = vmatpush1.msra.mxu0 0.0
        %659 = vmatprep.subr.mxu0 0.0
        %660 = vmatpush1.msra.mxu0 0.0
        %661 = vmatprep.subr.mxu0 0.0
        %662 = vmatpush1.msra.mxu0 0.0
        %663 = vmatprep.subr.mxu0 0.0
        %664 = vmatpush1.msra.mxu0 0.0
        %665 = vmatprep.subr.mxu0 0.0
        %666 = vmatpush1.msra.mxu0 0.0
        %667 = vmatprep.subr.mxu0 0.0
        %668 = vmatpush1.msra.mxu0 0.0
        %669 = vmatprep.subr.mxu0 0.0
        %670 = vmatpush1.msra.mxu0 0.0
        %671 = vmatprep.subr.mxu0 0.0
        %672 = vmatpush1.msra.mxu0 0.0
        %673 = vmatprep.subr.mxu0 0.0
        %674 = vmatpush1.msra.mxu0 0.0
        %675 = vmatprep.subr.mxu0 0.0
        %676 = vmatpush1.msra.mxu0 0.0
        %677 = vmatprep.mubr.f32.mxu0 0.0
        %678 = vmatmul.mubr.f32.gmra.mrb[0].mxu0 %v608
        %v679 = vpop.f32.mrb[0].mxu0
        %v680 = vadd.f32 %v600, %v679
        %v681 = vpop.f32.mrb[0].mxu0
        %682 = vmatprep.mubr.f32.mxu0 0.0
        %683 = vmatmul.mubr.f32.gmra.mrb[0].mxu0 %v611
        %v684 = vpop.f32.mrb[0].mxu0
        %v685 = vadd.f32 %v605, %v684
        %v686 = vpop.f32.mrb[0].mxu0
        %687 = vdwg.mxu0
        %v688 = vld [vmem:[%s9] sm:$0xff]
        %690 = vset.pattern.permute.xlu0 0
        %691 = vperm.xlu0 %690, %v688
        %v692 = vpop.permute.xlu0 %691
        %v694 = vadd.f32 %v692, 0.0
        %695 = vxpose.xlu0.b32.start [1/16] %v510, 128
        %696 = vxpose.xlu0.b32.cont [2/16] 0.0, 128
        %697 = vxpose.xlu0.b32.cont [3/16] 0.0, 128
        %698 = vxpose.xlu0.b32.cont [4/16] 0.0, 128
        %699 = vxpose.xlu0.b32.cont [5/16] 0.0, 128
        %700 = vxpose.xlu0.b32.cont [6/16] 0.0, 128
        %701 = vxpose.xlu0.b32.cont [7/16] 0.0, 128
        %702 = vxpose.xlu0.b32.cont [8/16] 0.0, 128
        %703 = vxpose.xlu0.b32.cont [9/16] 0.0, 128
        %704 = vxpose.xlu0.b32.cont [10/16] 0.0, 128
        %705 = vxpose.xlu0.b32.cont [11/16] 0.0, 128
        %706 = vxpose.xlu0.b32.cont [12/16] 0.0, 128
        %707 = vxpose.xlu0.b32.cont [13/16] 0.0, 128
        %708 = vxpose.xlu0.b32.cont [14/16] 0.0, 128
        %709 = vxpose.xlu0.b32.cont [15/16] 0.0, 128
        %710 = vxpose.xlu0.b32.end [16/16] 0.0, 128
        %v711 = vpop.trf.xlu0
        %v712 = vpop.trf.xlu0
        %v713 = vpop.trf.xlu0
        %v714 = vpop.trf.xlu0
        %v715 = vpop.trf.xlu0
        %v716 = vpop.trf.xlu0
        %v717 = vpop.trf.xlu0
        %v718 = vpop.trf.xlu0
        %v719 = vpop.trf.xlu0
        %v720 = vpop.trf.xlu0
        %v721 = vpop.trf.xlu0
        %v722 = vpop.trf.xlu0
        %v723 = vpop.trf.xlu0
        %v724 = vpop.trf.xlu0
        %v725 = vpop.trf.xlu0
        %v726 = vpop.trf.xlu0
        %vm727 = vcmask 31744
        %v729 = vsel %vm727, %v711, 0
        %v732 = vsel %vm727, %v712, 0
        %v735 = vsel %vm727, %v713, 0
        %v738 = vsel %vm727, %v714, 0
        %v741 = vsel %vm727, %v715, 0
        %v744 = vsel %vm727, %v716, 0
        %v747 = vsel %vm727, %v717, 0
        %v750 = vsel %vm727, %v718, 0
        %vm752 = vcmask 1043456
        %v754 = vsel %vm752, %v590, 0
        %756 = vmatprep.subr.mxu0 0.0
        %757 = vmatpush1.msra.mxu0 %v754
        %758 = vmatprep.subr.mxu0 0.0
        %759 = vmatpush1.msra.mxu0 0.0
        %760 = vmatprep.subr.mxu0 0.0
        %761 = vmatpush1.msra.mxu0 0.0
        %762 = vmatprep.subr.mxu0 0.0
        %763 = vmatpush1.msra.mxu0 0.0
        %764 = vmatprep.subr.mxu0 0.0
        %765 = vmatpush1.msra.mxu0 0.0
        %766 = vmatprep.subr.mxu0 0.0
        %767 = vmatpush1.msra.mxu0 0.0
        %768 = vmatprep.subr.mxu0 0.0
        %769 = vmatpush1.msra.mxu0 0.0
        %770 = vmatprep.subr.mxu0 0.0
        %771 = vmatpush1.msra.mxu0 0.0
        %772 = vmatprep.subr.mxu0 0.0
        %773 = vmatpush1.msra.mxu0 0.0
        %774 = vmatprep.subr.mxu0 0.0
        %775 = vmatpush1.msra.mxu0 0.0
        %776 = vmatprep.subr.mxu0 0.0
        %777 = vmatpush1.msra.mxu0 0.0
        %778 = vmatprep.subr.mxu0 0.0
        %779 = vmatpush1.msra.mxu0 0.0
        %780 = vmatprep.subr.mxu0 0.0
        %781 = vmatpush1.msra.mxu0 0.0
        %782 = vmatprep.subr.mxu0 0.0
        %783 = vmatpush1.msra.mxu0 0.0
        %784 = vmatprep.subr.mxu0 0.0
        %785 = vmatpush1.msra.mxu0 0.0
        %786 = vmatprep.subr.mxu0 0.0
        %787 = vmatpush1.msra.mxu0 0.0
        %788 = vmatprep.subr.mxu0 0.0
        %789 = vmatpush1.msra.mxu0 0.0
        %790 = vmatprep.subr.mxu0 0.0
        %791 = vmatpush1.msra.mxu0 0.0
        %792 = vmatprep.subr.mxu0 0.0
        %793 = vmatpush1.msra.mxu0 0.0
        %794 = vmatprep.subr.mxu0 0.0
        %795 = vmatpush1.msra.mxu0 0.0
        %796 = vmatprep.subr.mxu0 0.0
        %797 = vmatpush1.msra.mxu0 0.0
        %798 = vmatprep.subr.mxu0 0.0
        %799 = vmatpush1.msra.mxu0 0.0
        %800 = vmatprep.subr.mxu0 0.0
        %801 = vmatpush1.msra.mxu0 0.0
        %802 = vmatprep.subr.mxu0 0.0
        %803 = vmatpush1.msra.mxu0 0.0
        %804 = vmatprep.subr.mxu0 0.0
        %805 = vmatpush1.msra.mxu0 0.0
        %806 = vmatprep.subr.mxu0 0.0
        %807 = vmatpush1.msra.mxu0 0.0
        %808 = vmatprep.subr.mxu0 0.0
        %809 = vmatpush1.msra.mxu0 0.0
        %810 = vmatprep.subr.mxu0 0.0
        %811 = vmatpush1.msra.mxu0 0.0
        %812 = vmatprep.subr.mxu0 0.0
        %813 = vmatpush1.msra.mxu0 0.0
        %814 = vmatprep.subr.mxu0 0.0
        %815 = vmatpush1.msra.mxu0 0.0
        %816 = vmatprep.subr.mxu0 0.0
        %817 = vmatpush1.msra.mxu0 0.0
        %818 = vmatprep.subr.mxu0 0.0
        %819 = vmatpush1.msra.mxu0 0.0
        %820 = vmatprep.mubr.f32.mxu0 0.0
        %821 = vmatmul.mubr.f32.gmra.mrb[0].mxu0 %v729
        %v822 = vpop.f32.mrb[0].mxu0
        %v823 = vadd.f32 0.0, %v822
        %v824 = vpop.f32.mrb[0].mxu0
        %825 = vmatprep.mubr.f32.mxu0 0.0
        %826 = vmatmul.mubr.f32.gmra.mrb[0].mxu0 %v732
        %v827 = vpop.f32.mrb[0].mxu0
        %v828 = vadd.f32 0.0, %v827
        %v829 = vpop.f32.mrb[0].mxu0
        %830 = vmatprep.mubr.f32.mxu0 0.0
        %831 = vmatmul.mubr.f32.gmra.mrb[0].mxu0 %v735
        %v832 = vpop.f32.mrb[0].mxu0
        %v833 = vadd.f32 0.0, %v832
        %v834 = vpop.f32.mrb[0].mxu0
        %835 = vmatprep.mubr.f32.mxu0 0.0
        %836 = vmatmul.mubr.f32.gmra.mrb[0].mxu0 %v738
        %v837 = vpop.f32.mrb[0].mxu0
        %v838 = vadd.f32 0.0, %v837
        %v839 = vpop.f32.mrb[0].mxu0
        %840 = vmatprep.mubr.f32.mxu0 0.0
        %841 = vmatmul.mubr.f32.gmra.mrb[0].mxu0 %v741
        %v842 = vpop.f32.mrb[0].mxu0
        %v843 = vadd.f32 0.0, %v842
        %v844 = vpop.f32.mrb[0].mxu0
        %845 = vmatprep.mubr.f32.mxu0 0.0
        %846 = vmatmul.mubr.f32.gmra.mrb[0].mxu0 %v744
        %v847 = vpop.f32.mrb[0].mxu0
        %v848 = vadd.f32 0.0, %v847
        %v849 = vpop.f32.mrb[0].mxu0
        %850 = vmatprep.mubr.f32.mxu0 0.0
        %851 = vmatmul.mubr.f32.gmra.mrb[0].mxu0 %v747
        %v852 = vpop.f32.mrb[0].mxu0
        %v853 = vadd.f32 0.0, %v852
        %v854 = vpop.f32.mrb[0].mxu0
        %855 = vmatprep.mubr.f32.mxu0 0.0
        %856 = vmatmul.mubr.f32.gmra.mrb[0].mxu0 %v750
        %v857 = vpop.f32.mrb[0].mxu0
        %v858 = vadd.f32 0.0, %v857
        %v859 = vpop.f32.mrb[0].mxu0
        %860 = vdwg.mxu0
        %vm861 = vcmask 523264
        %v862 = vsel %vm861, %v823, -inf
        %863 = vmax.xlane.f32.xlu0 %v862
        %v864 = vpop.xlane.xlu0 %863
        %v865 = vsel %vm861, %v828, -inf
        %866 = vmax.xlane.f32.xlu0 %v865
        %v867 = vpop.xlane.xlu0 %866
        %v868 = vsel %vm861, %v833, -inf
        %869 = vmax.xlane.f32.xlu0 %v868
        %v870 = vpop.xlane.xlu0 %869
        %v871 = vsel %vm861, %v838, -inf
        %872 = vmax.xlane.f32.xlu0 %v871
        %v873 = vpop.xlane.xlu0 %872
        %v874 = vsel %vm861, %v843, -inf
        %875 = vmax.xlane.f32.xlu0 %v874
        %v876 = vpop.xlane.xlu0 %875
        %v877 = vsel %vm861, %v848, -inf
        %878 = vmax.xlane.f32.xlu0 %v877
        %v879 = vpop.xlane.xlu0 %878
        %v880 = vsel %vm861, %v853, -inf
        %881 = vmax.xlane.f32.xlu0 %v880
        %v882 = vpop.xlane.xlu0 %881
        %v883 = vsel %vm861, %v858, -inf
        %884 = vmax.xlane.f32.xlu0 %v883
        %v885 = vpop.xlane.xlu0 %884
        %v886 = vsub.f32 %v823, %v864
        %v887 = vsub.f32 %v828, %v867
        %v888 = vsub.f32 %v833, %v870
        %v889 = vsub.f32 %v838, %v873
        %v890 = vsub.f32 %v843, %v876
        %v891 = vsub.f32 %v848, %v879
        %v892 = vsub.f32 %v853, %v882
        %v893 = vsub.f32 %v858, %v885
        %v894 = vmul.f32 %v886, 1.442695
        %v895 = vpow.pop %v894
        %v896 = vmul.f32 %v887, 1.442695
        %v897 = vpow.pop %v896
        %v898 = vmul.f32 %v888, 1.442695
        %v899 = vpow.pop %v898
        %v900 = vmul.f32 %v889, 1.442695
        %v901 = vpow.pop %v900
        %v902 = vmul.f32 %v890, 1.442695
        %v903 = vpow.pop %v902
        %v904 = vmul.f32 %v891, 1.442695
        %v905 = vpow.pop %v904
        %v906 = vmul.f32 %v892, 1.442695
        %v907 = vpow.pop %v906
        %v908 = vmul.f32 %v893, 1.442695
        %v909 = vpow.pop %v908
        %v910 = vsel %vm861, %v895, 0.0
        %911 = vadd.xlane.f32.xlu0 %v910
        %v912 = vpop.xlane.xlu0 %911
        %v913 = vsel %vm861, %v897, 0.0
        %914 = vadd.xlane.f32.xlu0 %v913
        %v915 = vpop.xlane.xlu0 %914
        %v916 = vsel %vm861, %v899, 0.0
        %917 = vadd.xlane.f32.xlu0 %v916
        %v918 = vpop.xlane.xlu0 %917
        %v919 = vsel %vm861, %v901, 0.0
        %920 = vadd.xlane.f32.xlu0 %v919
        %v921 = vpop.xlane.xlu0 %920
        %v922 = vsel %vm861, %v903, 0.0
        %923 = vadd.xlane.f32.xlu0 %v922
        %v924 = vpop.xlane.xlu0 %923
        %v925 = vsel %vm861, %v905, 0.0
        %926 = vadd.xlane.f32.xlu0 %v925
        %v927 = vpop.xlane.xlu0 %926
        %v928 = vsel %vm861, %v907, 0.0
        %929 = vadd.xlane.f32.xlu0 %v928
        %v930 = vpop.xlane.xlu0 %929
        %v931 = vsel %vm861, %v909, 0.0
        %932 = vadd.xlane.f32.xlu0 %v931
        %v933 = vpop.xlane.xlu0 %932
        %v934 = vrcp.pop %v912
        %v935 = vrcp.pop %v915
        %v936 = vrcp.pop %v918
        %v937 = vrcp.pop %v921
        %v938 = vrcp.pop %v924
        %v939 = vrcp.pop %v927
        %v940 = vrcp.pop %v930
        %v941 = vrcp.pop %v933
        %v942 = vmul.f32 %v895, %v934
        %v943 = vmul.f32 %v897, %v935
        %v944 = vmul.f32 %v899, %v936
        %v945 = vmul.f32 %v901, %v937
        %v946 = vmul.f32 %v903, %v938
        %v947 = vmul.f32 %v905, %v939
        %v948 = vmul.f32 %v907, %v940
        %v949 = vmul.f32 %v909, %v941
        %v950 = vadd.f32 %v942, 0.0
        %v951 = vadd.f32 %v943, 0.0
        %v952 = vadd.f32 %v944, 0.0
        %v953 = vadd.f32 %v945, 0.0
        %v954 = vadd.f32 %v946, 0.0
        %v955 = vadd.f32 %v947, 0.0
        %v956 = vadd.f32 %v948, 0.0
        %v957 = vadd.f32 %v949, 0.0
        %v959 = vsel %vm861, %v680, 0
        %v962 = vsel %vm861, %v942, 0
        %v965 = vsel %vm861, %v943, 0
        %v968 = vsel %vm861, %v944, 0
        %v971 = vsel %vm861, %v945, 0
        %v974 = vsel %vm861, %v946, 0
        %v977 = vsel %vm861, %v947, 0
        %v980 = vsel %vm861, %v948, 0
        %v983 = vsel %vm861, %v949, 0
        %985 = vmatprep.subr.mxu0 0.0
        %986 = vmatpush1.xpose.msra.mxu0 %v962
        %987 = vmatprep.subr.mxu0 0.0
        %988 = vmatpush1.xpose.msra.mxu0 %v965
        %989 = vmatprep.subr.mxu0 0.0
        %990 = vmatpush1.xpose.msra.mxu0 %v968
        %991 = vmatprep.subr.mxu0 0.0
        %992 = vmatpush1.xpose.msra.mxu0 %v971
        %993 = vmatprep.subr.mxu0 0.0
        %994 = vmatpush1.xpose.msra.mxu0 %v974
        %995 = vmatprep.subr.mxu0 0.0
        %996 = vmatpush1.xpose.msra.mxu0 %v977
        %997 = vmatprep.subr.mxu0 0.0
        %998 = vmatpush1.xpose.msra.mxu0 %v980
        %999 = vmatprep.subr.mxu0 0.0
        %1000 = vmatpush1.xpose.msra.mxu0 %v983
        %1001 = vmatprep.subr.mxu0 0.0
        %1002 = vmatpush1.xpose.msra.mxu0 0.0
        %1003 = vmatprep.subr.mxu0 0.0
        %1004 = vmatpush1.xpose.msra.mxu0 0.0
        %1005 = vmatprep.subr.mxu0 0.0
        %1006 = vmatpush1.xpose.msra.mxu0 0.0
        %1007 = vmatprep.subr.mxu0 0.0
        %1008 = vmatpush1.xpose.msra.mxu0 0.0
        %1009 = vmatprep.subr.mxu0 0.0
        %1010 = vmatpush1.xpose.msra.mxu0 0.0
        %1011 = vmatprep.subr.mxu0 0.0
        %1012 = vmatpush1.xpose.msra.mxu0 0.0
        %1013 = vmatprep.subr.mxu0 0.0
        %1014 = vmatpush1.xpose.msra.mxu0 0.0
        %1015 = vmatprep.subr.mxu0 0.0
        %1016 = vmatpush1.xpose.msra.mxu0 0.0
        %1017 = vmatprep.subr.mxu0 0.0
        %1018 = vmatpush1.xpose.msra.mxu0 0.0
        %1019 = vmatprep.subr.mxu0 0.0
        %1020 = vmatpush1.xpose.msra.mxu0 0.0
        %1021 = vmatprep.subr.mxu0 0.0
        %1022 = vmatpush1.xpose.msra.mxu0 0.0
        %1023 = vmatprep.subr.mxu0 0.0
        %1024 = vmatpush1.xpose.msra.mxu0 0.0
        %1025 = vmatprep.subr.mxu0 0.0
        %1026 = vmatpush1.xpose.msra.mxu0 0.0
        %1027 = vmatprep.subr.mxu0 0.0
        %1028 = vmatpush1.xpose.msra.mxu0 0.0
        %1029 = vmatprep.subr.mxu0 0.0
        %1030 = vmatpush1.xpose.msra.mxu0 0.0
        %1031 = vmatprep.subr.mxu0 0.0
        %1032 = vmatpush1.xpose.msra.mxu0 0.0
        %1033 = vmatprep.subr.mxu0 0.0
        %1034 = vmatpush1.xpose.msra.mxu0 0.0
        %1035 = vmatprep.subr.mxu0 0.0
        %1036 = vmatpush1.xpose.msra.mxu0 0.0
        %1037 = vmatprep.subr.mxu0 0.0
        %1038 = vmatpush1.xpose.msra.mxu0 0.0
        %1039 = vmatprep.subr.mxu0 0.0
        %1040 = vmatpush1.xpose.msra.mxu0 0.0
        %1041 = vmatprep.subr.mxu0 0.0
        %1042 = vmatpush1.xpose.msra.mxu0 0.0
        %1043 = vmatprep.subr.mxu0 0.0
        %1044 = vmatpush1.xpose.msra.mxu0 0.0
        %1045 = vmatprep.subr.mxu0 0.0
        %1046 = vmatpush1.xpose.msra.mxu0 0.0
        %1047 = vmatprep.subr.mxu0 0.0
        %1048 = vmatpush1.xpose.msra.mxu0 0.0
        %1049 = vmatprep.mubr.f32.mxu0 0.0
        %1050 = vmatmul.mubr.f32.gmra.mrb[0].mxu0 %v959
        %v1051 = vpop.f32.mrb[0].mxu0
        %v1052 = vadd.f32 0.0, %v1051
        %v1053 = vpop.f32.mrb[0].mxu0
        %1054 = vdwg.mxu0
        %v1055 = vadd.f32 %v694, %v1052
        %v1057 = vrot.slane %v510, 4
        %1059 = vxpose.xlu0.b32.start [1/16] %v1057, 128
        %1060 = vxpose.xlu0.b32.cont [2/16] 0.0, 128
        %1061 = vxpose.xlu0.b32.cont [3/16] 0.0, 128
        %1062 = vxpose.xlu0.b32.cont [4/16] 0.0, 128
        %1063 = vxpose.xlu0.b32.cont [5/16] 0.0, 128
        %1064 = vxpose.xlu0.b32.cont [6/16] 0.0, 128
        %1065 = vxpose.xlu0.b32.cont [7/16] 0.0, 128
        %1066 = vxpose.xlu0.b32.cont [8/16] 0.0, 128
        %1067 = vxpose.xlu0.b32.cont [9/16] 0.0, 128
        %1068 = vxpose.xlu0.b32.cont [10/16] 0.0, 128
        %1069 = vxpose.xlu0.b32.cont [11/16] 0.0, 128
        %1070 = vxpose.xlu0.b32.cont [12/16] 0.0, 128
        %1071 = vxpose.xlu0.b32.cont [13/16] 0.0, 128
        %1072 = vxpose.xlu0.b32.cont [14/16] 0.0, 128
        %1073 = vxpose.xlu0.b32.cont [15/16] 0.0, 128
        %1074 = vxpose.xlu0.b32.end [16/16] 0.0, 128
        %v1075 = vpop.trf.xlu0
        %v1076 = vpop.trf.xlu0
        %v1077 = vpop.trf.xlu0
        %v1078 = vpop.trf.xlu0
        %v1079 = vpop.trf.xlu0
        %v1080 = vpop.trf.xlu0
        %v1081 = vpop.trf.xlu0
        %v1082 = vpop.trf.xlu0
        %v1083 = vpop.trf.xlu0
        %v1084 = vpop.trf.xlu0
        %v1085 = vpop.trf.xlu0
        %v1086 = vpop.trf.xlu0
        %v1087 = vpop.trf.xlu0
        %v1088 = vpop.trf.xlu0
        %v1089 = vpop.trf.xlu0
        %v1090 = vpop.trf.xlu0
        %v1091 = vrot.slane %v590, 4
        %v1093 = vsel %vm727, %v1075, 0
        %v1096 = vsel %vm727, %v1076, 0
        %v1099 = vsel %vm727, %v1077, 0
        %v1102 = vsel %vm727, %v1078, 0
        %v1105 = vsel %vm727, %v1079, 0
        %v1108 = vsel %vm727, %v1080, 0
        %v1111 = vsel %vm727, %v1081, 0
        %v1114 = vsel %vm727, %v1082, 0
        %v1116 = vsel %vm752, %v1091, 0
        %1118 = vmatprep.subr.mxu0 0.0
        %1119 = vmatpush1.msra.mxu0 %v1116
        %1120 = vmatprep.subr.mxu0 0.0
        %1121 = vmatpush1.msra.mxu0 0.0
        %1122 = vmatprep.subr.mxu0 0.0
        %1123 = vmatpush1.msra.mxu0 0.0
        %1124 = vmatprep.subr.mxu0 0.0
        %1125 = vmatpush1.msra.mxu0 0.0
        %1126 = vmatprep.subr.mxu0 0.0
        %1127 = vmatpush1.msra.mxu0 0.0
        %1128 = vmatprep.subr.mxu0 0.0
        %1129 = vmatpush1.msra.mxu0 0.0
        %1130 = vmatprep.subr.mxu0 0.0
        %1131 = vmatpush1.msra.mxu0 0.0
        %1132 = vmatprep.subr.mxu0 0.0
        %1133 = vmatpush1.msra.mxu0 0.0
        %1134 = vmatprep.subr.mxu0 0.0
        %1135 = vmatpush1.msra.mxu0 0.0
        %1136 = vmatprep.subr.mxu0 0.0
        %1137 = vmatpush1.msra.mxu0 0.0
        %1138 = vmatprep.subr.mxu0 0.0
        %1139 = vmatpush1.msra.mxu0 0.0
        %1140 = vmatprep.subr.mxu0 0.0
        %1141 = vmatpush1.msra.mxu0 0.0
        %1142 = vmatprep.subr.mxu0 0.0
        %1143 = vmatpush1.msra.mxu0 0.0
        %1144 = vmatprep.subr.mxu0 0.0
        %1145 = vmatpush1.msra.mxu0 0.0
        %1146 = vmatprep.subr.mxu0 0.0
        %1147 = vmatpush1.msra.mxu0 0.0
        %1148 = vmatprep.subr.mxu0 0.0
        %1149 = vmatpush1.msra.mxu0 0.0
        %1150 = vmatprep.subr.mxu0 0.0
        %1151 = vmatpush1.msra.mxu0 0.0
        %1152 = vmatprep.subr.mxu0 0.0
        %1153 = vmatpush1.msra.mxu0 0.0
        %1154 = vmatprep.subr.mxu0 0.0
        %1155 = vmatpush1.msra.mxu0 0.0
        %1156 = vmatprep.subr.mxu0 0.0
        %1157 = vmatpush1.msra.mxu0 0.0
        %1158 = vmatprep.subr.mxu0 0.0
        %1159 = vmatpush1.msra.mxu0 0.0
        %1160 = vmatprep.subr.mxu0 0.0
        %1161 = vmatpush1.msra.mxu0 0.0
        %1162 = vmatprep.subr.mxu0 0.0
        %1163 = vmatpush1.msra.mxu0 0.0
        %1164 = vmatprep.subr.mxu0 0.0
        %1165 = vmatpush1.msra.mxu0 0.0
        %1166 = vmatprep.subr.mxu0 0.0
        %1167 = vmatpush1.msra.mxu0 0.0
        %1168 = vmatprep.subr.mxu0 0.0
        %1169 = vmatpush1.msra.mxu0 0.0
        %1170 = vmatprep.subr.mxu0 0.0
        %1171 = vmatpush1.msra.mxu0 0.0
        %1172 = vmatprep.subr.mxu0 0.0
        %1173 = vmatpush1.msra.mxu0 0.0
        %1174 = vmatprep.subr.mxu0 0.0
        %1175 = vmatpush1.msra.mxu0 0.0
        %1176 = vmatprep.subr.mxu0 0.0
        %1177 = vmatpush1.msra.mxu0 0.0
        %1178 = vmatprep.subr.mxu0 0.0
        %1179 = vmatpush1.msra.mxu0 0.0
        %1180 = vmatprep.subr.mxu0 0.0
        %1181 = vmatpush1.msra.mxu0 0.0
        %1182 = vmatprep.mubr.f32.mxu0 0.0
        %1183 = vmatmul.mubr.f32.gmra.mrb[0].mxu0 %v1093
        %v1184 = vpop.f32.mrb[0].mxu0
        %v1185 = vadd.f32 0.0, %v1184
        %v1186 = vpop.f32.mrb[0].mxu0
        %1187 = vmatprep.mubr.f32.mxu0 0.0
        %1188 = vmatmul.mubr.f32.gmra.mrb[0].mxu0 %v1096
        %v1189 = vpop.f32.mrb[0].mxu0
        %v1190 = vadd.f32 0.0, %v1189
        %v1191 = vpop.f32.mrb[0].mxu0
        %1192 = vmatprep.mubr.f32.mxu0 0.0
        %1193 = vmatmul.mubr.f32.gmra.mrb[0].mxu0 %v1099
        %v1194 = vpop.f32.mrb[0].mxu0
        %v1195 = vadd.f32 0.0, %v1194
        %v1196 = vpop.f32.mrb[0].mxu0
        %1197 = vmatprep.mubr.f32.mxu0 0.0
        %1198 = vmatmul.mubr.f32.gmra.mrb[0].mxu0 %v1102
        %v1199 = vpop.f32.mrb[0].mxu0
        %v1200 = vadd.f32 0.0, %v1199
        %v1201 = vpop.f32.mrb[0].mxu0
        %1202 = vmatprep.mubr.f32.mxu0 0.0
        %1203 = vmatmul.mubr.f32.gmra.mrb[0].mxu0 %v1105
        %v1204 = vpop.f32.mrb[0].mxu0
        %v1205 = vadd.f32 0.0, %v1204
        %v1206 = vpop.f32.mrb[0].mxu0
        %1207 = vmatprep.mubr.f32.mxu0 0.0
        %1208 = vmatmul.mubr.f32.gmra.mrb[0].mxu0 %v1108
        %v1209 = vpop.f32.mrb[0].mxu0
        %v1210 = vadd.f32 0.0, %v1209
        %v1211 = vpop.f32.mrb[0].mxu0
        %1212 = vmatprep.mubr.f32.mxu0 0.0
        %1213 = vmatmul.mubr.f32.gmra.mrb[0].mxu0 %v1111
        %v1214 = vpop.f32.mrb[0].mxu0
        %v1215 = vadd.f32 0.0, %v1214
        %v1216 = vpop.f32.mrb[0].mxu0
        %1217 = vmatprep.mubr.f32.mxu0 0.0
        %1218 = vmatmul.mubr.f32.gmra.mrb[0].mxu0 %v1114
        %v1219 = vpop.f32.mrb[0].mxu0
        %v1220 = vadd.f32 0.0, %v1219
        %v1221 = vpop.f32.mrb[0].mxu0
        %1222 = vdwg.mxu0
        %v1223 = vsel %vm861, %v1185, -inf
        %1224 = vmax.xlane.f32.xlu0 %v1223
        %v1225 = vpop.xlane.xlu0 %1224
        %v1226 = vsel %vm861, %v1190, -inf
        %1227 = vmax.xlane.f32.xlu0 %v1226
        %v1228 = vpop.xlane.xlu0 %1227
        %v1229 = vsel %vm861, %v1195, -inf
        %1230 = vmax.xlane.f32.xlu0 %v1229
        %v1231 = vpop.xlane.xlu0 %1230
        %v1232 = vsel %vm861, %v1200, -inf
        %1233 = vmax.xlane.f32.xlu0 %v1232
        %v1234 = vpop.xlane.xlu0 %1233
        %v1235 = vsel %vm861, %v1205, -inf
        %1236 = vmax.xlane.f32.xlu0 %v1235
        %v1237 = vpop.xlane.xlu0 %1236
        %v1238 = vsel %vm861, %v1210, -inf
        %1239 = vmax.xlane.f32.xlu0 %v1238
        %v1240 = vpop.xlane.xlu0 %1239
        %v1241 = vsel %vm861, %v1215, -inf
        %1242 = vmax.xlane.f32.xlu0 %v1241
        %v1243 = vpop.xlane.xlu0 %1242
        %v1244 = vsel %vm861, %v1220, -inf
        %1245 = vmax.xlane.f32.xlu0 %v1244
        %v1246 = vpop.xlane.xlu0 %1245
        %v1247 = vsub.f32 %v1185, %v1225
        %v1248 = vsub.f32 %v1190, %v1228
        %v1249 = vsub.f32 %v1195, %v1231
        %v1250 = vsub.f32 %v1200, %v1234
        %v1251 = vsub.f32 %v1205, %v1237
        %v1252 = vsub.f32 %v1210, %v1240
        %v1253 = vsub.f32 %v1215, %v1243
        %v1254 = vsub.f32 %v1220, %v1246
        %v1255 = vmul.f32 %v1247, 1.442695
        %v1256 = vpow.pop %v1255
        %v1257 = vmul.f32 %v1248, 1.442695
        %v1258 = vpow.pop %v1257
        %v1259 = vmul.f32 %v1249, 1.442695
        %v1260 = vpow.pop %v1259
        %v1261 = vmul.f32 %v1250, 1.442695
        %v1262 = vpow.pop %v1261
        %v1263 = vmul.f32 %v1251, 1.442695
        %v1264 = vpow.pop %v1263
        %v1265 = vmul.f32 %v1252, 1.442695
        %v1266 = vpow.pop %v1265
        %v1267 = vmul.f32 %v1253, 1.442695
        %v1268 = vpow.pop %v1267
        %v1269 = vmul.f32 %v1254, 1.442695
        %v1270 = vpow.pop %v1269
        %v1271 = vsel %vm861, %v1256, 0.0
        %1272 = vadd.xlane.f32.xlu0 %v1271
        %v1273 = vpop.xlane.xlu0 %1272
        %v1274 = vsel %vm861, %v1258, 0.0
        %1275 = vadd.xlane.f32.xlu0 %v1274
        %v1276 = vpop.xlane.xlu0 %1275
        %v1277 = vsel %vm861, %v1260, 0.0
        %1278 = vadd.xlane.f32.xlu0 %v1277
        %v1279 = vpop.xlane.xlu0 %1278
        %v1280 = vsel %vm861, %v1262, 0.0
        %1281 = vadd.xlane.f32.xlu0 %v1280
        %v1282 = vpop.xlane.xlu0 %1281
        %v1283 = vsel %vm861, %v1264, 0.0
        %1284 = vadd.xlane.f32.xlu0 %v1283
        %v1285 = vpop.xlane.xlu0 %1284
        %v1286 = vsel %vm861, %v1266, 0.0
        %1287 = vadd.xlane.f32.xlu0 %v1286
        %v1288 = vpop.xlane.xlu0 %1287
        %v1289 = vsel %vm861, %v1268, 0.0
        %1290 = vadd.xlane.f32.xlu0 %v1289
        %v1291 = vpop.xlane.xlu0 %1290
        %v1292 = vsel %vm861, %v1270, 0.0
        %1293 = vadd.xlane.f32.xlu0 %v1292
        %v1294 = vpop.xlane.xlu0 %1293
        %v1295 = vrcp.pop %v1273
        %v1296 = vrcp.pop %v1276
        %v1297 = vrcp.pop %v1279
        %v1298 = vrcp.pop %v1282
        %v1299 = vrcp.pop %v1285
        %v1300 = vrcp.pop %v1288
        %v1301 = vrcp.pop %v1291
        %v1302 = vrcp.pop %v1294
        %v1303 = vmul.f32 %v1256, %v1295
        %v1304 = vmul.f32 %v1258, %v1296
        %v1305 = vmul.f32 %v1260, %v1297
        %v1306 = vmul.f32 %v1262, %v1298
        %v1307 = vmul.f32 %v1264, %v1299
        %v1308 = vmul.f32 %v1266, %v1300
        %v1309 = vmul.f32 %v1268, %v1301
        %v1310 = vmul.f32 %v1270, %v1302
        %v1311 = vadd.f32 %v950, %v1303
        %v1312 = vadd.f32 %v951, %v1304
        %v1313 = vadd.f32 %v952, %v1305
        %v1314 = vadd.f32 %v953, %v1306
        %v1315 = vadd.f32 %v954, %v1307
        %v1316 = vadd.f32 %v955, %v1308
        %v1317 = vadd.f32 %v956, %v1309
        %v1318 = vadd.f32 %v957, %v1310
        %v1320 = vsel %vm861, %v685, 0
        %v1323 = vsel %vm861, %v1303, 0
        %v1326 = vsel %vm861, %v1304, 0
        %v1329 = vsel %vm861, %v1305, 0
        %v1332 = vsel %vm861, %v1306, 0
        %v1335 = vsel %vm861, %v1307, 0
        %v1338 = vsel %vm861, %v1308, 0
        %v1341 = vsel %vm861, %v1309, 0
        %v1344 = vsel %vm861, %v1310, 0
        %1346 = vmatprep.subr.mxu0 0.0
        %1347 = vmatpush1.xpose.msra.mxu0 %v1323
        %1348 = vmatprep.subr.mxu0 0.0
        %1349 = vmatpush1.xpose.msra.mxu0 %v1326
        %1350 = vmatprep.subr.mxu0 0.0
        %1351 = vmatpush1.xpose.msra.mxu0 %v1329
        %1352 = vmatprep.subr.mxu0 0.0
        %1353 = vmatpush1.xpose.msra.mxu0 %v1332
        %1354 = vmatprep.subr.mxu0 0.0
        %1355 = vmatpush1.xpose.msra.mxu0 %v1335
        %1356 = vmatprep.subr.mxu0 0.0
        %1357 = vmatpush1.xpose.msra.mxu0 %v1338
        %1358 = vmatprep.subr.mxu0 0.0
        %1359 = vmatpush1.xpose.msra.mxu0 %v1341
        %1360 = vmatprep.subr.mxu0 0.0
        %1361 = vmatpush1.xpose.msra.mxu0 %v1344
        %1362 = vmatprep.subr.mxu0 0.0
        %1363 = vmatpush1.xpose.msra.mxu0 0.0
        %1364 = vmatprep.subr.mxu0 0.0
        %1365 = vmatpush1.xpose.msra.mxu0 0.0
        %1366 = vmatprep.subr.mxu0 0.0
        %1367 = vmatpush1.xpose.msra.mxu0 0.0
        %1368 = vmatprep.subr.mxu0 0.0
        %1369 = vmatpush1.xpose.msra.mxu0 0.0
        %1370 = vmatprep.subr.mxu0 0.0
        %1371 = vmatpush1.xpose.msra.mxu0 0.0
        %1372 = vmatprep.subr.mxu0 0.0
        %1373 = vmatpush1.xpose.msra.mxu0 0.0
        %1374 = vmatprep.subr.mxu0 0.0
        %1375 = vmatpush1.xpose.msra.mxu0 0.0
        %1376 = vmatprep.subr.mxu0 0.0
        %1377 = vmatpush1.xpose.msra.mxu0 0.0
        %1378 = vmatprep.subr.mxu0 0.0
        %1379 = vmatpush1.xpose.msra.mxu0 0.0
        %1380 = vmatprep.subr.mxu0 0.0
        %1381 = vmatpush1.xpose.msra.mxu0 0.0
        %1382 = vmatprep.subr.mxu0 0.0
        %1383 = vmatpush1.xpose.msra.mxu0 0.0
        %1384 = vmatprep.subr.mxu0 0.0
        %1385 = vmatpush1.xpose.msra.mxu0 0.0
        %1386 = vmatprep.subr.mxu0 0.0
        %1387 = vmatpush1.xpose.msra.mxu0 0.0
        %1388 = vmatprep.subr.mxu0 0.0
        %1389 = vmatpush1.xpose.msra.mxu0 0.0
        %1390 = vmatprep.subr.mxu0 0.0
        %1391 = vmatpush1.xpose.msra.mxu0 0.0
        %1392 = vmatprep.subr.mxu0 0.0
        %1393 = vmatpush1.xpose.msra.mxu0 0.0
        %1394 = vmatprep.subr.mxu0 0.0
        %1395 = vmatpush1.xpose.msra.mxu0 0.0
        %1396 = vmatprep.subr.mxu0 0.0
        %1397 = vmatpush1.xpose.msra.mxu0 0.0
        %1398 = vmatprep.subr.mxu0 0.0
        %1399 = vmatpush1.xpose.msra.mxu0 0.0
        %1400 = vmatprep.subr.mxu0 0.0
        %1401 = vmatpush1.xpose.msra.mxu0 0.0
        %1402 = vmatprep.subr.mxu0 0.0
        %1403 = vmatpush1.xpose.msra.mxu0 0.0
        %1404 = vmatprep.subr.mxu0 0.0
        %1405 = vmatpush1.xpose.msra.mxu0 0.0
        %1406 = vmatprep.subr.mxu0 0.0
        %1407 = vmatpush1.xpose.msra.mxu0 0.0
        %1408 = vmatprep.subr.mxu0 0.0
        %1409 = vmatpush1.xpose.msra.mxu0 0.0
        %1410 = vmatprep.mubr.f32.mxu0 0.0
        %1411 = vmatmul.mubr.f32.gmra.mrb[0].mxu0 %v1320
        %v1412 = vpop.f32.mrb[0].mxu0
        %v1413 = vadd.f32 0.0, %v1412
        %v1414 = vpop.f32.mrb[0].mxu0
        %1415 = vdwg.mxu0
        %v1416 = vadd.f32 %v1055, %v1413
        %1417 = vst.msk [vmem:[%s404] sm:$0xff] %vm861, %v1416
        %v1418 = vmul.f32 %v1311, 0.5
        %v1419 = vmul.f32 %v1312, 0.5
        %v1420 = vmul.f32 %v1313, 0.5
        %v1421 = vmul.f32 %v1314, 0.5
        %v1422 = vmul.f32 %v1315, 0.5
        %v1423 = vmul.f32 %v1316, 0.5
        %v1424 = vmul.f32 %v1317, 0.5
        %v1425 = vmul.f32 %v1318, 0.5
        %1426 = vst.msk [vmem:[%s428] sm:$0xff] %vm861, %v1418
        %1427 = vst.msk [vmem:[%s428 + $0x8] sm:$0xff] %vm861, %v1419
        %1428 = vst.msk [vmem:[%s428 + $0x10] sm:$0xff] %vm861, %v1420
        %1429 = vst.msk [vmem:[%s428 + $0x18] sm:$0xff] %vm861, %v1421
        %1430 = vst.msk [vmem:[%s428 + $0x20] sm:$0xff] %vm861, %v1422
        %1431 = vst.msk [vmem:[%s428 + $0x28] sm:$0xff] %vm861, %v1423
        %1432 = vst.msk [vmem:[%s428 + $0x30] sm:$0xff] %vm861, %v1424
        %1433 = vst.msk [vmem:[%s428 + $0x38] sm:$0xff] %vm861, %v1425
        %s1434 = sand.u32 %s259, 1
        %s1435 = scalar_lea.sflag [#allocation3], %s1434
        %s1436 = sand.u32 %s259, 1
        %s1437 = smul.addr %s1436, 8
        %s1438 = scalar_lea.vmem [#allocation2], %s1437
        %p1439 = scmp.lt.s32.totalorder %s26, 1
        %s1440 = scalar_select %p1439, %s26, 1
        %s1441 = smul.addr %s1440, 8
        %s1442 = smul.addr %s1441, 8
        %s1443 = scalar_lea.vmem %s11, %s1442
        // Predicated region
        $region61: #{feature_predictor_forward.13} parent=59 // pred_check
          %p1444 = pneg %p269
        $region62: #{feature_predictor_forward.13} parent=59 // pred_check_branch
          %1446 = sbr.rel (%p1444) target = $region64
        $region63: #{feature_predictor_forward.13} parent=59 // pred_region
          %s1448 = ssub.s32 128, 128
          %1449 = vsyncadd %s1435, %s1448
          %s1450 = smul.addr %s26, 128
          %s1451 = scalar_lea.hbm %s10, %s1450
          %s1453 = sshll.u32 %s1438, 4
          %s1454 = int_to_ptr.vmem [resolvable:$true] %s1453
          %1456 = dma.vmem_to_hbm [thread:$0]  %s1454, 128, %s1451, %s1435
        $region64: #{feature_predictor_forward.13} parent=59 // pred_fallthru
          _
        // Predicated region
        $region65: #{feature_predictor_forward.13} parent=59 // pred_check
          %p1457 = pneg %p295
        $region66: #{feature_predictor_forward.13} parent=59 // pred_check_branch
          %1459 = sbr.rel (%p1457) target = $region68
        $region67: #{feature_predictor_forward.13} parent=59 // pred_region
          _
        $region68: #{feature_predictor_forward.13} parent=59 // pred_fallthru
          _
      $region60: #{feature_predictor_forward.13} parent=5 // pred_fallthru
        _
      %p1460 = scmp.le.s32.totalorder 2, %s21
      // Predicated region
      $region69: #{feature_predictor_forward.13} parent=5 // pred_check
        %p1461 = pneg %p1460
      $region70: #{feature_predictor_forward.13} parent=5 // pred_check_branch
        %1463 = sbr.rel (%p1461) target = $region72
      $region71: #{feature_predictor_forward.13} parent=5 // pred_region
        %s1464 = ssub.s32 %s21, 2
        // Predicated region
        $region73: #{feature_predictor_forward.13} parent=71 // pred_check
          %p1465 = pneg %p275
        $region74: #{feature_predictor_forward.13} parent=71 // pred_check_branch
          %1467 = sbr.rel (%p1465) target = $region76
        $region75: #{feature_predictor_forward.13} parent=71 // pred_region
          %s1468 = sand.u32 %s260, 1
          %s1469 = scalar_lea.sflag [#allocation3], %s1468
          %s1470 = sand.u32 %s260, 1
          %s1471 = smul.addr %s1470, 8
          %s1472 = scalar_lea.vmem [#allocation2], %s1471
          %1473 = dma.done %s1469, 128
        $region76: #{feature_predictor_forward.13} parent=71 // pred_fallthru
          _
        // Predicated region
        $region77: #{feature_predictor_forward.13} parent=71 // pred_check
          %p1474 = pneg %p301
        $region78: #{feature_predictor_forward.13} parent=71 // pred_check_branch
          %1476 = sbr.rel (%p1474) target = $region80
        $region79: #{feature_predictor_forward.13} parent=71 // pred_region
          %p1477 = scmp.lt.s32.totalorder %s27, 1
          %s1478 = scalar_select %p1477, %s27, 1
          %s1479 = smul.addr %s1478, 8
          %s1480 = smul.addr %s1479, 8
          %s1481 = scalar_lea.vmem %s11, %s1480
        $region80: #{feature_predictor_forward.13} parent=71 // pred_fallthru
          _
      $region72: #{feature_predictor_forward.13} parent=5 // pred_fallthru
        _
    $region6: #{feature_predictor_forward.13} parent=1 // loop_footer
      %s25 = sadd.s32 1, %s21
    $region7: #{feature_predictor_forward.13} parent=1 // loop_footer_branch
      %20 = sbr.rel target = $region3
    $region8: #{feature_predictor_forward.13} parent=1 // loop_exit
      _
    %1482 = vsyncpa [#allocation3], 1
    %s1483 = scalar_lea.sflag [#allocation3], 1
    %1484 = vsyncpa %s1483, 1

// kernel: feature_predictor_forward.16
$region0: #{feature_predictor_forward.16}
  #allocation0 [shape = 'u32[]', space=smem, size = 0x4, offset = 0x4, fixed_abs, tag = 'smem constant byte address 0x4 - core index']
  #allocation1 [shape = 'u32[144,128]{1,0:T(1,128)}', space=vmem, size = 0x12000, scoped, tag = 'internal scratch']
  %s0 = inlined_call_operand.vmem [shape: f32[2,2,18,18], index: 0, kind: input, shape index: {}]
  %s1 = inlined_call_operand.vmem [shape: f32[36], index: 1, kind: input, shape index: {}]
  %s2 = inlined_call_operand.vmem [shape: f32[2], index: 2, kind: input, shape index: {}]
  %s3 = inlined_call_operand.vmem [shape: f32[2,2,16,16], index: 3, kind: output, shape index: {}]
  %s4 = sld [smem:[#allocation0]]
  $region53: #{feature_predictor_forward.16} parent=0
    _
  %s6 = ssub.s32 1, %s4
  %s7 = scalar_select 0, %s6, %s4
  $region1: #{feature_predictor_forward.16} parent=0
    #allocation2 [shape = 'u8[512]{0}', space=smem, size = 0x200, scoped, tag = 'input window, operand 1, single buffered']
    #allocation3 [shape = 's32[2]{0}', space=sflag, size = 0x8, scoped, tag = 'scoped memory for feature_predictor_forward.16']
    #allocation4 [shape = 'u8[512]{0}', space=smem, size = 0x200, scoped, tag = 'input window, operand 2, single buffered']
    #allocation5 [shape = 's32[1]{0}', space=sflag, size = 0x4, scoped, tag = 'scoped memory for feature_predictor_forward.16']
    %8 = vsyncpa [#allocation3], 0
    %9 = vsyncpa [#allocation5], 0
    loop: start=0, step=1, limit=4
    $region2: #{feature_predictor_forward.16} parent=1 // loop_pre_header
      _
    $region3: #{feature_predictor_forward.16} parent=1 // loop_header
      %s11 = sphi 0, %s15
      %p12 = scmp.ge.s32.totalorder %s11, 4
      %s21 = sphi 0, %s23
      %s24 = sphi 0, %s21
      %s25 = sphi 0, %s24
      %s41 = sphi 0, %s25
      %s45 = sphi 0, %s45
      %s47 = sphi 0, %s45
      %s48 = sphi 0, %s47
      %s62 = sphi 0, %s48
      %s66 = sphi 0, %s66
      %s68 = sphi 0, %s66
      %s69 = sphi 0, %s68
      %s83 = sphi 0, %s69
      %s89 = sphi 0, %s91
      %s92 = sphi 0, %s89
      %s93 = sphi 0, %s92
      %s109 = sphi 0, %s93
    $region4: #{feature_predictor_forward.16} parent=1 // loop_header_branch
      %14 = sbr.rel (%p12) target = $region8
    $region5: #{feature_predictor_forward.16} parent=1 // loop_body
      %s16 = ssub.s32 %s11, 1
      %s17 = ssub.s32 %s11, 2
      %s18 = sadd.s32 %s11, 1
      %s19 = ssub.s32 %s11, %s18
      %p20 = scmp.eq.s32.totalorder %s19, 0
      %s22 = sadd.s32 %s21, 1
      %s23 = scalar_select %p20, %s21, %s22
      %p26 = pneg %p20
      %p27 = scmp.eq.s32.totalorder %s11, 1
      %p28 = por %p26, %p27
      %p29 = scmp.ne.s32.totalorder %s21, %s24
      %p30 = scmp.eq.s32.totalorder %s11, 0
      %p31 = por %p29, %p30
      %p32 = scmp.ne.s32.totalorder %s21, %s24
      %p33 = scmp.eq.s32.totalorder %s16, 1
      %p34 = por %p32, %p33
      %p35 = scmp.ne.s32.totalorder %s24, %s25
      %p36 = scmp.eq.s32.totalorder %s16, 0
      %p37 = por %p35, %p36
      %p38 = scmp.ne.s32.totalorder %s24, %s25
      %p39 = scmp.eq.s32.totalorder %s17, 1
      %p40 = por %p38, %p39
      %p42 = scmp.ne.s32.totalorder %s25, %s41
      %p43 = scmp.eq.s32.totalorder %s17, 0
      %p44 = por %p42, %p43
      %s46 = sadd.s32 %s45, 1
      %p49 = scmp.eq.s32.totalorder %s11, 1
      %p50 = scmp.ne.s32.totalorder %s45, %s47
      %p51 = scmp.eq.s32.totalorder %s11, 0
      %p52 = por %p50, %p51
      %p53 = scmp.ne.s32.totalorder %s45, %s47
      %p54 = scmp.eq.s32.totalorder %s16, 1
      %p55 = por %p53, %p54
      %p56 = scmp.ne.s32.totalorder %s47, %s48
      %p57 = scmp.eq.s32.totalorder %s16, 0
      %p58 = por %p56, %p57
      %p59 = scmp.ne.s32.totalorder %s47, %s48
      %p60 = scmp.eq.s32.totalorder %s17, 1
      %p61 = por %p59, %p60
      %p63 = scmp.ne.s32.totalorder %s48, %s62
      %p64 = scmp.eq.s32.totalorder %s17, 0
      %p65 = por %p63, %p64
      %s67 = sadd.s32 %s66, 1
      %p70 = scmp.eq.s32.totalorder %s11, 1
      %p71 = scmp.ne.s32.totalorder %s66, %s68
      %p72 = scmp.eq.s32.totalorder %s11, 0
      %p73 = por %p71, %p72
      %p74 = scmp.ne.s32.totalorder %s66, %s68
      %p75 = scmp.eq.s32.totalorder %s16, 1
      %p76 = por %p74, %p75
      %p77 = scmp.ne.s32.totalorder %s68, %s69
      %p78 = scmp.eq.s32.totalorder %s16, 0
      %p79 = por %p77, %p78
      %p80 = scmp.ne.s32.totalorder %s68, %s69
      %p81 = scmp.eq.s32.totalorder %s17, 1
      %p82 = por %p80, %p81
      %p84 = scmp.ne.s32.totalorder %s69, %s83
      %p85 = scmp.eq.s32.totalorder %s17, 0
      %p86 = por %p84, %p85
      %s87 = ssub.s32 %s11, %s18
      %p88 = scmp.eq.s32.totalorder %s87, 0
      %s90 = sadd.s32 %s89, 1
      %s91 = scalar_select %p88, %s89, %s90
      %p94 = pneg %p88
      %p95 = scmp.eq.s32.totalorder %s11, 1
      %p96 = por %p94, %p95
      %p97 = scmp.ne.s32.totalorder %s89, %s92
      %p98 = scmp.eq.s32.totalorder %s11, 0
      %p99 = por %p97, %p98
      %p100 = scmp.ne.s32.totalorder %s89, %s92
      %p101 = scmp.eq.s32.totalorder %s16, 1
      %p102 = por %p100, %p101
      %p103 = scmp.ne.s32.totalorder %s92, %s93
      %p104 = scmp.eq.s32.totalorder %s16, 0
      %p105 = por %p103, %p104
      %p106 = scmp.ne.s32.totalorder %s92, %s93
      %p107 = scmp.eq.s32.totalorder %s17, 1
      %p108 = por %p106, %p107
      %p110 = scmp.ne.s32.totalorder %s93, %s109
      %p111 = scmp.eq.s32.totalorder %s17, 0
      %p112 = por %p110, %p111
      %p113 = scmp.le.s32.totalorder 1, %s11
      %p114 = scmp.lt.s32.totalorder %s11, 3
      %p115 = pnand %p113, %p114
      %p116 = pneg %p115
      // Predicated region
      $region9: #{feature_predictor_forward.16} parent=5 // pred_check
        _
      $region10: #{feature_predictor_forward.16} parent=5 // pred_check_branch
        %118 = sbr.rel (%p115) target = $region12
      $region11: #{feature_predictor_forward.16} parent=5 // pred_region
        %s119 = ssub.s32 %s11, 1
        // Predicated region
        $region13: #{feature_predictor_forward.16} parent=11 // pred_check
          %p120 = pneg %p58
        $region14: #{feature_predictor_forward.16} parent=11 // pred_check_branch
          %122 = sbr.rel (%p120) target = $region16
        $region15: #{feature_predictor_forward.16} parent=11 // pred_region
          %s124 = ssub.s32 16, 16
          %125 = vsyncadd [#allocation3], %s124
          %s127 = sshll.u32 %s1, 4
          %s128 = int_to_ptr.vmem [resolvable:$true] %s127
          %130 = dma.vmem_to_smem %s128, 16, [#allocation2], [#allocation3]
        $region16: #{feature_predictor_forward.16} parent=11 // pred_fallthru
          _
        // Predicated region
        $region17: #{feature_predictor_forward.16} parent=11 // pred_check
          %p131 = pneg %p79
        $region18: #{feature_predictor_forward.16} parent=11 // pred_check_branch
          %133 = sbr.rel (%p131) target = $region20
        $region19: #{feature_predictor_forward.16} parent=11 // pred_region
          %s135 = ssub.s32 16, 16
          %136 = vsyncadd [#allocation5], %s135
          %s138 = sshll.u32 %s2, 4
          %s139 = int_to_ptr.vmem [resolvable:$true] %s138
          %141 = dma.vmem_to_smem %s139, 16, [#allocation4], [#allocation5]
        $region20: #{feature_predictor_forward.16} parent=11 // pred_fallthru
          _
      $region12: #{feature_predictor_forward.16} parent=5 // pred_fallthru
        _
      %p142 = scmp.lt.s32.totalorder %s11, 2
      // Predicated region
      $region21: #{feature_predictor_forward.16} parent=5 // pred_check
        %p143 = pneg %p142
      $region22: #{feature_predictor_forward.16} parent=5 // pred_check_branch
        %145 = sbr.rel (%p143) target = $region24
      $region23: #{feature_predictor_forward.16} parent=5 // pred_region
        // Predicated region
        $region25: #{feature_predictor_forward.16} parent=23 // pred_check
          %p146 = pneg %p31
        $region26: #{feature_predictor_forward.16} parent=23 // pred_check_branch
          %148 = sbr.rel (%p146) target = $region28
        $region27: #{feature_predictor_forward.16} parent=23 // pred_region
          %p149 = scmp.lt.s32.totalorder %s11, 1
          %s150 = scalar_select %p149, %s11, 1
          %s151 = smul.addr %s150, 6
          %s152 = smul.addr %s151, 8
          %s153 = scalar_lea.vmem %s0, %s152
        $region28: #{feature_predictor_forward.16} parent=23 // pred_fallthru
          _
      $region24: #{feature_predictor_forward.16} parent=5 // pred_fallthru
        _
      %p154 = scmp.le.s32.totalorder 1, %s11
      %p155 = scmp.lt.s32.totalorder %s11, 3
      %p156 = pnand %p154, %p155
      %p157 = pneg %p156
      // Predicated region
      $region29: #{feature_predictor_forward.16} parent=5 // pred_check
        _
      $region30: #{feature_predictor_forward.16} parent=5 // pred_check_branch
        %159 = sbr.rel (%p156) target = $region32
      $region31: #{feature_predictor_forward.16} parent=5 // pred_region
        %s160 = ssub.s32 %s11, 1
        // Predicated region
        $region33: #{feature_predictor_forward.16} parent=31 // pred_check
          %p161 = pneg %p58
        $region34: #{feature_predictor_forward.16} parent=31 // pred_check_branch
          %163 = sbr.rel (%p161) target = $region36
        $region35: #{feature_predictor_forward.16} parent=31 // pred_region
          %164 = dma.done [#allocation3], 16
        $region36: #{feature_predictor_forward.16} parent=31 // pred_fallthru
          _
        // Predicated region
        $region37: #{feature_predictor_forward.16} parent=31 // pred_check
          %p165 = pneg %p79
        $region38: #{feature_predictor_forward.16} parent=31 // pred_check_branch
          %167 = sbr.rel (%p165) target = $region40
        $region39: #{feature_predictor_forward.16} parent=31 // pred_region
          %168 = dma.done [#allocation5], 16
        $region40: #{feature_predictor_forward.16} parent=31 // pred_fallthru
          _
        %169 = sfence
        %p170 = scmp.lt.s32.totalorder %s16, 1
        %s171 = scalar_select %p170, %s16, 1
        %s172 = smul.addr %s171, 6
        %s173 = smul.addr %s172, 8
        %s174 = scalar_lea.vmem %s0, %s173
        %p175 = pneg %p37
        %p176 = pneg %p34
        %p177 = pneg %p58
        %p178 = pneg %p55
        %p179 = pneg %p79
        %p180 = pneg %p76
        %p181 = pneg %p105
        %p182 = pneg %p102
        %p183 = scmp.lt.s32.totalorder %s16, 1
        %s184 = scalar_select %p183, %s16, 1
        %s185 = smul.addr %s184, 4
        %s186 = smul.addr %s185, 8
        %s187 = scalar_lea.vmem %s3, %s186
        %p188 = scmp.lt.s32.totalorder %s16, 1
        %s189 = scalar_select %p188, %s16, 1
        %s190 = smul.addr %s189, 6
        %s191 = smul.addr %s190, 8
        %s192 = scalar_lea.vmem %s0, %s191
        %p193 = scmp.lt.s32.totalorder %s16, 1
        %s194 = scalar_select %p193, %s16, 1
        %s195 = smul.addr %s194, 4
        %s196 = smul.addr %s195, 8
        %s197 = scalar_lea.vmem %s3, %s196
        %s198 = sld [smem:[#allocation4]]
        %v199 = vstv %s198
        %s200 = sld [smem:[#allocation4 + $0x1]]
        %v201 = vstv %s200
        %v202 = vld [vmem:[%s192] sm:$0xff]
        %v203 = vld [vmem:[%s192 + $0x8] sm:$0xff]
        %v204 = vld [vmem:[%s192 + $0x10] sm:$0x3]
        %s205 = sld [smem:[#allocation2]]
        %v206 = vstv %s205
        %v207 = vmul.f32 %v206, %v202
        %v208 = vmul.f32 %v206, %v203
        %v209 = vadd.f32 %v199, %v207
        %v210 = vadd.f32 %v199, %v208
        %s211 = sld [smem:[#allocation2 + $0x12]]
        %v212 = vstv %s211
        %v213 = vmul.f32 %v212, %v202
        %v214 = vmul.f32 %v212, %v203
        %v215 = vadd.f32 %v201, %v213
        %v216 = vadd.f32 %v201, %v214
        %vm217 = vcmask 1047696
        %218 = vrot.lane.b32.xlu0 %v202, 18
        %v219 = vpop.permute.xlu0 %218
        %v220 = vsel %vm217, %v219, %v202
        %221 = vrot.lane.b32.xlu0 %v203, 18
        %v222 = vpop.permute.xlu0 %221
        %v223 = vsel %vm217, %v222, %v203
        %224 = vrot.lane.b32.xlu0 %v220, 18
        %v225 = vpop.permute.xlu0 %224
        %226 = vrot.lane.b32.xlu0 %v223, 18
        %v227 = vpop.permute.xlu0 %226
        %v228 = vsel %vm217, %v225, %v202
        %v229 = vsel %vm217, %v227, %v203
        %s230 = sld [smem:[#allocation2 + $0x1]]
        %v231 = vstv %s230
        %v232 = vmul.f32 %v231, %v228
        %v233 = vmul.f32 %v231, %v229
        %236 = vrot.lane.b32.xlu0 %v232, 127
        %v237 = vpop.permute.xlu0 %236
        %238 = vrot.lane.b32.xlu0 %v233, 127
        %v239 = vpop.permute.xlu0 %238
        %v242 = vadd.f32 %v209, %v237
        %v243 = vadd.f32 %v210, %v239
        %s244 = sld [smem:[#allocation2 + $0x13]]
        %v245 = vstv %s244
        %v246 = vmul.f32 %v245, %v228
        %v247 = vmul.f32 %v245, %v229
        %250 = vrot.lane.b32.xlu0 %v246, 127
        %v251 = vpop.permute.xlu0 %250
        %252 = vrot.lane.b32.xlu0 %v247, 127
        %v253 = vpop.permute.xlu0 %252
        %v256 = vadd.f32 %v215, %v251
        %v257 = vadd.f32 %v216, %v253
        %s258 = sld [smem:[#allocation2 + $0x2]]
        %v259 = vstv %s258
        %v260 = vmul.f32 %v259, %v228
        %v261 = vmul.f32 %v259, %v229
        %264 = vrot.lane.b32.xlu0 %v260, 126
        %v265 = vpop.permute.xlu0 %264
        %266 = vrot.lane.b32.xlu0 %v261, 126
        %v267 = vpop.permute.xlu0 %266
        %v270 = vadd.f32 %v242, %v265
        %v271 = vadd.f32 %v243, %v267
        %s272 = sld [smem:[#allocation2 + $0x14]]
        %v273 = vstv %s272
        %v274 = vmul.f32 %v273, %v228
        %v275 = vmul.f32 %v273, %v229
        %278 = vrot.lane.b32.xlu0 %v274, 126
        %v279 = vpop.permute.xlu0 %278
        %280 = vrot.lane.b32.xlu0 %v275, 126
        %v281 = vpop.permute.xlu0 %280
        %v284 = vadd.f32 %v256, %v279
        %v285 = vadd.f32 %v257, %v281
        %vm286 = vcmask 1047554
        %v287 = vrot.slane %v202, 6
        %v288 = vsel %vm286, %v287, %v204
        %s289 = sld [smem:[#allocation2 + $0x3]]
        %v290 = vstv %s289
        %v291 = vmul.f32 %v290, %v202
        %v292 = vmul.f32 %v290, %v203
        %v293 = vmul.f32 %v290, %v288
        %vm297 = vcmask 1046528
        %v298 = vrot.slane %v291, 1
        %v299 = vrot.slane %v292, 1
        %v300 = vsel %vm297, %v298, %v299
        %v301 = vrot.slane %v293, 1
        %v302 = vsel %vm297, %v299, %v301
        %v305 = vadd.f32 %v270, %v300
        %v306 = vadd.f32 %v271, %v302
        %s307 = sld [smem:[#allocation2 + $0x15]]
        %v308 = vstv %s307
        %v309 = vmul.f32 %v308, %v202
        %v310 = vmul.f32 %v308, %v203
        %v311 = vmul.f32 %v308, %v288
        %v315 = vrot.slane %v309, 1
        %v316 = vrot.slane %v310, 1
        %v317 = vsel %vm297, %v315, %v316
        %v318 = vrot.slane %v311, 1
        %v319 = vsel %vm297, %v316, %v318
        %v322 = vadd.f32 %v284, %v317
        %v323 = vadd.f32 %v285, %v319
        %v327 = vrot.slane %v202, 1
        %v328 = vrot.slane %v203, 1
        %v329 = vsel %vm297, %v327, %v328
        %v330 = vrot.slane %v288, 1
        %v331 = vsel %vm297, %v328, %v330
        %334 = vrot.lane.b32.xlu0 %v329, 18
        %v335 = vpop.permute.xlu0 %334
        %v336 = vsel %vm217, %v335, %v329
        %337 = vrot.lane.b32.xlu0 %v331, 18
        %v338 = vpop.permute.xlu0 %337
        %v339 = vsel %vm217, %v338, %v331
        %340 = vrot.lane.b32.xlu0 %v336, 18
        %v341 = vpop.permute.xlu0 %340
        %342 = vrot.lane.b32.xlu0 %v339, 18
        %v343 = vpop.permute.xlu0 %342
        %v344 = vsel %vm217, %v341, %v329
        %v345 = vsel %vm217, %v343, %v331
        %s346 = sld [smem:[#allocation2 + $0x4]]
        %v347 = vstv %s346
        %v348 = vmul.f32 %v347, %v344
        %v349 = vmul.f32 %v347, %v345
        %352 = vrot.lane.b32.xlu0 %v348, 127
        %v353 = vpop.permute.xlu0 %352
        %354 = vrot.lane.b32.xlu0 %v349, 127
        %v355 = vpop.permute.xlu0 %354
        %v358 = vadd.f32 %v305, %v353
        %v359 = vadd.f32 %v306, %v355
        %s360 = sld [smem:[#allocation2 + $0x16]]
        %v361 = vstv %s360
        %v362 = vmul.f32 %v361, %v344
        %v363 = vmul.f32 %v361, %v345
        %366 = vrot.lane.b32.xlu0 %v362, 127
        %v367 = vpop.permute.xlu0 %366
        %368 = vrot.lane.b32.xlu0 %v363, 127
        %v369 = vpop.permute.xlu0 %368
        %v372 = vadd.f32 %v322, %v367
        %v373 = vadd.f32 %v323, %v369
        %s374 = sld [smem:[#allocation2 + $0x5]]
        %v375 = vstv %s374
        %v376 = vmul.f32 %v375, %v344
        %v377 = vmul.f32 %v375, %v345
        %380 = vrot.lane.b32.xlu0 %v376, 126
        %v381 = vpop.permute.xlu0 %380
        %382 = vrot.lane.b32.xlu0 %v377, 126
        %v383 = vpop.permute.xlu0 %382
        %v386 = vadd.f32 %v358, %v381
        %v387 = vadd.f32 %v359, %v383
        %s388 = sld [smem:[#allocation2 + $0x17]]
        %v389 = vstv %s388
        %v390 = vmul.f32 %v389, %v344
        %v391 = vmul.f32 %v389, %v345
        %394 = vrot.lane.b32.xlu0 %v390, 126
        %v395 = vpop.permute.xlu0 %394
        %396 = vrot.lane.b32.xlu0 %v391, 126
        %v397 = vpop.permute.xlu0 %396
        %v400 = vadd.f32 %v372, %v395
        %v401 = vadd.f32 %v373, %v397
        %s402 = sld [smem:[#allocation2 + $0x6]]
        %v403 = vstv %s402
        %v404 = vmul.f32 %v403, %v202
        %v405 = vmul.f32 %v403, %v203
        %v406 = vmul.f32 %v403, %v288
        %vm410 = vcmask 1045504
        %v411 = vrot.slane %v404, 2
        %v412 = vrot.slane %v405, 2
        %v413 = vsel %vm410, %v411, %v412
        %v414 = vrot.slane %v406, 2
        %v415 = vsel %vm410, %v412, %v414
        %v418 = vadd.f32 %v386, %v413
        %v419 = vadd.f32 %v387, %v415
        %s420 = sld [smem:[#allocation2 + $0x18]]
        %v421 = vstv %s420
        %v422 = vmul.f32 %v421, %v202
        %v423 = vmul.f32 %v421, %v203
        %v424 = vmul.f32 %v421, %v288
        %v428 = vrot.slane %v422, 2
        %v429 = vrot.slane %v423, 2
        %v430 = vsel %vm410, %v428, %v429
        %v431 = vrot.slane %v424, 2
        %v432 = vsel %vm410, %v429, %v431
        %v435 = vadd.f32 %v400, %v430
        %v436 = vadd.f32 %v401, %v432
        %v437 = vrot.slane %v202, 2
        %v438 = vrot.slane %v203, 2
        %v439 = vsel %vm410, %v437, %v438
        %v440 = vrot.slane %v288, 2
        %v441 = vsel %vm410, %v438, %v440
        %444 = vrot.lane.b32.xlu0 %v439, 18
        %v445 = vpop.permute.xlu0 %444
        %v446 = vsel %vm217, %v445, %v439
        %447 = vrot.lane.b32.xlu0 %v441, 18
        %v448 = vpop.permute.xlu0 %447
        %v449 = vsel %vm217, %v448, %v441
        %450 = vrot.lane.b32.xlu0 %v446, 18
        %v451 = vpop.permute.xlu0 %450
        %452 = vrot.lane.b32.xlu0 %v449, 18
        %v453 = vpop.permute.xlu0 %452
        %v454 = vsel %vm217, %v451, %v439
        %v455 = vsel %vm217, %v453, %v441
        %s456 = sld [smem:[#allocation2 + $0x7]]
        %v457 = vstv %s456
        %v458 = vmul.f32 %v457, %v454
        %v459 = vmul.f32 %v457, %v455
        %462 = vrot.lane.b32.xlu0 %v458, 127
        %v463 = vpop.permute.xlu0 %462
        %464 = vrot.lane.b32.xlu0 %v459, 127
        %v465 = vpop.permute.xlu0 %464
        %v468 = vadd.f32 %v418, %v463
        %v469 = vadd.f32 %v419, %v465
        %s470 = sld [smem:[#allocation2 + $0x19]]
        %v471 = vstv %s470
        %v472 = vmul.f32 %v471, %v454
        %v473 = vmul.f32 %v471, %v455
        %476 = vrot.lane.b32.xlu0 %v472, 127
        %v477 = vpop.permute.xlu0 %476
        %478 = vrot.lane.b32.xlu0 %v473, 127
        %v479 = vpop.permute.xlu0 %478
        %v482 = vadd.f32 %v435, %v477
        %v483 = vadd.f32 %v436, %v479
        %s484 = sld [smem:[#allocation2 + $0x8]]
        %v485 = vstv %s484
        %v486 = vmul.f32 %v485, %v454
        %v487 = vmul.f32 %v485, %v455
        %490 = vrot.lane.b32.xlu0 %v486, 126
        %v491 = vpop.permute.xlu0 %490
        %492 = vrot.lane.b32.xlu0 %v487, 126
        %v493 = vpop.permute.xlu0 %492
        %v496 = vadd.f32 %v468, %v491
        %v497 = vadd.f32 %v469, %v493
        %s498 = sld [smem:[#allocation2 + $0x1a]]
        %v499 = vstv %s498
        %v500 = vmul.f32 %v499, %v454
        %v501 = vmul.f32 %v499, %v455
        %504 = vrot.lane.b32.xlu0 %v500, 126
        %v505 = vpop.permute.xlu0 %504
        %506 = vrot.lane.b32.xlu0 %v501, 126
        %v507 = vpop.permute.xlu0 %506
        %v510 = vadd.f32 %v482, %v505
        %v511 = vadd.f32 %v483, %v507
        %s512 = scalar_lea.vmem %s192, 24
        %v513 = vld [vmem:[%s512] sm:$0xff]
        %v514 = vld [vmem:[%s512 + $0x8] sm:$0xff]
        %v515 = vld [vmem:[%s512 + $0x10] sm:$0x3]
        %s516 = sld [smem:[#allocation2 + $0x9]]
        %v517 = vstv %s516
        %v518 = vmul.f32 %v517, %v513
        %v519 = vmul.f32 %v517, %v514
        %v520 = vadd.f32 %v496, %v518
        %v521 = vadd.f32 %v497, %v519
        %s522 = sld [smem:[#allocation2 + $0x1b]]
        %v523 = vstv %s522
        %v524 = vmul.f32 %v523, %v513
        %v525 = vmul.f32 %v523, %v514
        %v526 = vadd.f32 %v510, %v524
        %v527 = vadd.f32 %v511, %v525
        %528 = vrot.lane.b32.xlu0 %v513, 18
        %v529 = vpop.permute.xlu0 %528
        %v530 = vsel %vm217, %v529, %v513
        %531 = vrot.lane.b32.xlu0 %v514, 18
        %v532 = vpop.permute.xlu0 %531
        %v533 = vsel %vm217, %v532, %v514
        %534 = vrot.lane.b32.xlu0 %v530, 18
        %v535 = vpop.permute.xlu0 %534
        %536 = vrot.lane.b32.xlu0 %v533, 18
        %v537 = vpop.permute.xlu0 %536
        %v538 = vsel %vm217, %v535, %v513
        %v539 = vsel %vm217, %v537, %v514
        %s540 = sld [smem:[#allocation2 + $0xa]]
        %v541 = vstv %s540
        %v542 = vmul.f32 %v541, %v538
        %v543 = vmul.f32 %v541, %v539
        %546 = vrot.lane.b32.xlu0 %v542, 127
        %v547 = vpop.permute.xlu0 %546
        %548 = vrot.lane.b32.xlu0 %v543, 127
        %v549 = vpop.permute.xlu0 %548
        %v552 = vadd.f32 %v520, %v547
        %v553 = vadd.f32 %v521, %v549
        %s554 = sld [smem:[#allocation2 + $0x1c]]
        %v555 = vstv %s554
        %v556 = vmul.f32 %v555, %v538
        %v557 = vmul.f32 %v555, %v539
        %560 = vrot.lane.b32.xlu0 %v556, 127
        %v561 = vpop.permute.xlu0 %560
        %562 = vrot.lane.b32.xlu0 %v557, 127
        %v563 = vpop.permute.xlu0 %562
        %v566 = vadd.f32 %v526, %v561
        %v567 = vadd.f32 %v527, %v563
        %s568 = sld [smem:[#allocation2 + $0xb]]
        %v569 = vstv %s568
        %v570 = vmul.f32 %v569, %v538
        %v571 = vmul.f32 %v569, %v539
        %574 = vrot.lane.b32.xlu0 %v570, 126
        %v575 = vpop.permute.xlu0 %574
        %576 = vrot.lane.b32.xlu0 %v571, 126
        %v577 = vpop.permute.xlu0 %576
        %v580 = vadd.f32 %v552, %v575
        %v581 = vadd.f32 %v553, %v577
        %s582 = sld [smem:[#allocation2 + $0x1d]]
        %v583 = vstv %s582
        %v584 = vmul.f32 %v583, %v538
        %v585 = vmul.f32 %v583, %v539
        %588 = vrot.lane.b32.xlu0 %v584, 126
        %v589 = vpop.permute.xlu0 %588
        %590 = vrot.lane.b32.xlu0 %v585, 126
        %v591 = vpop.permute.xlu0 %590
        %v594 = vadd.f32 %v566, %v589
        %v595 = vadd.f32 %v567, %v591
        %v596 = vrot.slane %v513, 6
        %v597 = vsel %vm286, %v596, %v515
        %s598 = sld [smem:[#allocation2 + $0xc]]
        %v599 = vstv %s598
        %v600 = vmul.f32 %v599, %v513
        %v601 = vmul.f32 %v599, %v514
        %v602 = vmul.f32 %v599, %v597
        %v606 = vrot.slane %v600, 1
        %v607 = vrot.slane %v601, 1
        %v608 = vsel %vm297, %v606, %v607
        %v609 = vrot.slane %v602, 1
        %v610 = vsel %vm297, %v607, %v609
        %v613 = vadd.f32 %v580, %v608
        %v614 = vadd.f32 %v581, %v610
        %s615 = sld [smem:[#allocation2 + $0x1e]]
        %v616 = vstv %s615
        %v617 = vmul.f32 %v616, %v513
        %v618 = vmul.f32 %v616, %v514
        %v619 = vmul.f32 %v616, %v597
        %v623 = vrot.slane %v617, 1
        %v624 = vrot.slane %v618, 1
        %v625 = vsel %vm297, %v623, %v624
        %v626 = vrot.slane %v619, 1
        %v627 = vsel %vm297, %v624, %v626
        %v630 = vadd.f32 %v594, %v625
        %v631 = vadd.f32 %v595, %v627
        %v635 = vrot.slane %v513, 1
        %v636 = vrot.slane %v514, 1
        %v637 = vsel %vm297, %v635, %v636
        %v638 = vrot.slane %v597, 1
        %v639 = vsel %vm297, %v636, %v638
        %642 = vrot.lane.b32.xlu0 %v637, 18
        %v643 = vpop.permute.xlu0 %642
        %v644 = vsel %vm217, %v643, %v637
        %645 = vrot.lane.b32.xlu0 %v639, 18
        %v646 = vpop.permute.xlu0 %645
        %v647 = vsel %vm217, %v646, %v639
        %648 = vrot.lane.b32.xlu0 %v644, 18
        %v649 = vpop.permute.xlu0 %648
        %650 = vrot.lane.b32.xlu0 %v647, 18
        %v651 = vpop.permute.xlu0 %650
        %v652 = vsel %vm217, %v649, %v637
        %v653 = vsel %vm217, %v651, %v639
        %s654 = sld [smem:[#allocation2 + $0xd]]
        %v655 = vstv %s654
        %v656 = vmul.f32 %v655, %v652
        %v657 = vmul.f32 %v655, %v653
        %660 = vrot.lane.b32.xlu0 %v656, 127
        %v661 = vpop.permute.xlu0 %660
        %662 = vrot.lane.b32.xlu0 %v657, 127
        %v663 = vpop.permute.xlu0 %662
        %v666 = vadd.f32 %v613, %v661
        %v667 = vadd.f32 %v614, %v663
        %s668 = sld [smem:[#allocation2 + $0x1f]]
        %v669 = vstv %s668
        %v670 = vmul.f32 %v669, %v652
        %v671 = vmul.f32 %v669, %v653
        %674 = vrot.lane.b32.xlu0 %v670, 127
        %v675 = vpop.permute.xlu0 %674
        %676 = vrot.lane.b32.xlu0 %v671, 127
        %v677 = vpop.permute.xlu0 %676
        %v680 = vadd.f32 %v630, %v675
        %v681 = vadd.f32 %v631, %v677
        %s682 = sld [smem:[#allocation2 + $0xe]]
        %v683 = vstv %s682
        %v684 = vmul.f32 %v683, %v652
        %v685 = vmul.f32 %v683, %v653
        %688 = vrot.lane.b32.xlu0 %v684, 126
        %v689 = vpop.permute.xlu0 %688
        %690 = vrot.lane.b32.xlu0 %v685, 126
        %v691 = vpop.permute.xlu0 %690
        %v694 = vadd.f32 %v666, %v689
        %v695 = vadd.f32 %v667, %v691
        %s696 = sld [smem:[#allocation2 + $0x20]]
        %v697 = vstv %s696
        %v698 = vmul.f32 %v697, %v652
        %v699 = vmul.f32 %v697, %v653
        %702 = vrot.lane.b32.xlu0 %v698, 126
        %v703 = vpop.permute.xlu0 %702
        %704 = vrot.lane.b32.xlu0 %v699, 126
        %v705 = vpop.permute.xlu0 %704
        %v708 = vadd.f32 %v680, %v703
        %v709 = vadd.f32 %v681, %v705
        %s710 = sld [smem:[#allocation2 + $0xf]]
        %v711 = vstv %s710
        %v712 = vmul.f32 %v711, %v513
        %v713 = vmul.f32 %v711, %v514
        %v714 = vmul.f32 %v711, %v597
        %v718 = vrot.slane %v712, 2
        %v719 = vrot.slane %v713, 2
        %v720 = vsel %vm410, %v718, %v719
        %v721 = vrot.slane %v714, 2
        %v722 = vsel %vm410, %v719, %v721
        %v725 = vadd.f32 %v694, %v720
        %v726 = vadd.f32 %v695, %v722
        %s727 = sld [smem:[#allocation2 + $0x21]]
        %v728 = vstv %s727
        %v729 = vmul.f32 %v728, %v513
        %v730 = vmul.f32 %v728, %v514
        %v731 = vmul.f32 %v728, %v597
        %v735 = vrot.slane %v729, 2
        %v736 = vrot.slane %v730, 2
        %v737 = vsel %vm410, %v735, %v736
        %v738 = vrot.slane %v731, 2
        %v739 = vsel %vm410, %v736, %v738
        %v742 = vadd.f32 %v708, %v737
        %v743 = vadd.f32 %v709, %v739
        %v744 = vrot.slane %v513, 2
        %v745 = vrot.slane %v514, 2
        %v746 = vsel %vm410, %v744, %v745
        %v747 = vrot.slane %v597, 2
        %v748 = vsel %vm410, %v745, %v747
        %751 = vrot.lane.b32.xlu0 %v746, 18
        %v752 = vpop.permute.xlu0 %751
        %v753 = vsel %vm217, %v752, %v746
        %754 = vrot.lane.b32.xlu0 %v748, 18
        %v755 = vpop.permute.xlu0 %754
        %v756 = vsel %vm217, %v755, %v748
        %757 = vrot.lane.b32.xlu0 %v753, 18
        %v758 = vpop.permute.xlu0 %757
        %759 = vrot.lane.b32.xlu0 %v756, 18
        %v760 = vpop.permute.xlu0 %759
        %v761 = vsel %vm217, %v758, %v746
        %v762 = vsel %vm217, %v760, %v748
        %s763 = sld [smem:[#allocation2 + $0x10]]
        %v764 = vstv %s763
        %v765 = vmul.f32 %v764, %v761
        %v766 = vmul.f32 %v764, %v762
        %769 = vrot.lane.b32.xlu0 %v765, 127
        %v770 = vpop.permute.xlu0 %769
        %771 = vrot.lane.b32.xlu0 %v766, 127
        %v772 = vpop.permute.xlu0 %771
        %v775 = vadd.f32 %v725, %v770
        %v776 = vadd.f32 %v726, %v772
        %s777 = sld [smem:[#allocation2 + $0x22]]
        %v778 = vstv %s777
        %v779 = vmul.f32 %v778, %v761
        %v780 = vmul.f32 %v778, %v762
        %783 = vrot.lane.b32.xlu0 %v779, 127
        %v784 = vpop.permute.xlu0 %783
        %785 = vrot.lane.b32.xlu0 %v780, 127
        %v786 = vpop.permute.xlu0 %785
        %v789 = vadd.f32 %v742, %v784
        %v790 = vadd.f32 %v743, %v786
        %s791 = sld [smem:[#allocation2 + $0x11]]
        %v792 = vstv %s791
        %v793 = vmul.f32 %v792, %v761
        %v794 = vmul.f32 %v792, %v762
        %797 = vrot.lane.b32.xlu0 %v793, 126
        %v798 = vpop.permute.xlu0 %797
        %799 = vrot.lane.b32.xlu0 %v794, 126
        %v800 = vpop.permute.xlu0 %799
        %v803 = vadd.f32 %v775, %v798
        %v804 = vadd.f32 %v776, %v800
        %s805 = sld [smem:[#allocation2 + $0x23]]
        %v806 = vstv %s805
        %v807 = vmul.f32 %v806, %v761
        %v808 = vmul.f32 %v806, %v762
        %811 = vrot.lane.b32.xlu0 %v807, 126
        %v812 = vpop.permute.xlu0 %811
        %813 = vrot.lane.b32.xlu0 %v808, 126
        %v814 = vpop.permute.xlu0 %813
        %v817 = vadd.f32 %v789, %v812
        %v818 = vadd.f32 %v790, %v814
        %vm819 = vcmask 130048
        %820 = vst.msk [vmem:[%s197] sm:$0xff] %vm819, %v803
        %821 = vst.msk [vmem:[%s197 + $0x8] sm:$0xff] %vm819, %v804
        %s822 = scalar_lea.vmem %s197, 16
        %823 = vst.msk [vmem:[%s822] sm:$0xff] %vm819, %v817
        %824 = vst.msk [vmem:[%s822 + $0x8] sm:$0xff] %vm819, %v818
        %p825 = scmp.lt.s32.totalorder %s16, 1
        %s826 = scalar_select %p825, %s16, 1
        %s827 = smul.addr %s826, 4
        %s828 = smul.addr %s827, 8
        %s829 = scalar_lea.vmem %s3, %s828
        // Predicated region
        $region41: #{feature_predictor_forward.16} parent=31 // pred_check
          %p830 = pneg %p102
        $region42: #{feature_predictor_forward.16} parent=31 // pred_check_branch
          %832 = sbr.rel (%p830) target = $region44
        $region43: #{feature_predictor_forward.16} parent=31 // pred_region
          _
        $region44: #{feature_predictor_forward.16} parent=31 // pred_fallthru
          _
      $region32: #{feature_predictor_forward.16} parent=5 // pred_fallthru
        _
      %p833 = scmp.le.s32.totalorder 2, %s11
      // Predicated region
      $region45: #{feature_predictor_forward.16} parent=5 // pred_check
        %p834 = pneg %p833
      $region46: #{feature_predictor_forward.16} parent=5 // pred_check_branch
        %836 = sbr.rel (%p834) target = $region48
      $region47: #{feature_predictor_forward.16} parent=5 // pred_region
        %s837 = ssub.s32 %s11, 2
        // Predicated region
        $region49: #{feature_predictor_forward.16} parent=47 // pred_check
          %p838 = pneg %p108
        $region50: #{feature_predictor_forward.16} parent=47 // pred_check_branch
          %840 = sbr.rel (%p838) target = $region52
        $region51: #{feature_predictor_forward.16} parent=47 // pred_region
          %p841 = scmp.lt.s32.totalorder %s17, 1
          %s842 = scalar_select %p841, %s17, 1
          %s843 = smul.addr %s842, 4
          %s844 = smul.addr %s843, 8
          %s845 = scalar_lea.vmem %s3, %s844
        $region52: #{feature_predictor_forward.16} parent=47 // pred_fallthru
          _
      $region48: #{feature_predictor_forward.16} parent=5 // pred_fallthru
        _
    $region6: #{feature_predictor_forward.16} parent=1 // loop_footer
      %s15 = sadd.s32 1, %s11
    $region7: #{feature_predictor_forward.16} parent=1 // loop_footer_branch
      %10 = sbr.rel target = $region3
    $region8: #{feature_predictor_forward.16} parent=1 // loop_exit
      _
    %846 = vsyncpa [#allocation3], 1
    %s847 = scalar_lea.sflag [#allocation3], 1
    %848 = vsyncpa %s847, 1
    %849 = vsyncpa [#allocation5], 1

// kernel: feature_predictor_forward.17
$region0: #{feature_predictor_forward.17}
  #allocation0 [shape = 'u32[]', space=smem, size = 0x4, offset = 0x4, fixed_abs, tag = 'smem constant byte address 0x4 - core index']
  #allocation1 [shape = 'u32[144,128]{1,0:T(1,128)}', space=vmem, size = 0x12000, scoped, tag = 'internal scratch']
  %s0 = inlined_call_operand.vmem [shape: f32[2,2,34,34], index: 0, kind: input, shape index: {}]
  %s1 = inlined_call_operand.vmem [shape: f32[36], index: 1, kind: input, shape index: {}]
  %s2 = inlined_call_operand.vmem [shape: f32[2], index: 2, kind: input, shape index: {}]
  %s3 = inlined_call_operand.vmem [shape: f32[2,2,32,32], index: 3, kind: output, shape index: {}]
  %s4 = sld [smem:[#allocation0]]
  $region53: #{feature_predictor_forward.17} parent=0
    _
  %s6 = ssub.s32 1, %s4
  %s7 = scalar_select 0, %s6, %s4
  $region1: #{feature_predictor_forward.17} parent=0
    #allocation2 [shape = 'u8[512]{0}', space=smem, size = 0x200, scoped, tag = 'input window, operand 1, single buffered']
    #allocation3 [shape = 's32[2]{0}', space=sflag, size = 0x8, scoped, tag = 'scoped memory for feature_predictor_forward.17']
    #allocation4 [shape = 'u8[512]{0}', space=smem, size = 0x200, scoped, tag = 'input window, operand 2, single buffered']
    #allocation5 [shape = 's32[1]{0}', space=sflag, size = 0x4, scoped, tag = 'scoped memory for feature_predictor_forward.17']
    %8 = vsyncpa [#allocation3], 0
    %9 = vsyncpa [#allocation5], 0
    loop: start=0, step=1, limit=4
    $region2: #{feature_predictor_forward.17} parent=1 // loop_pre_header
      _
    $region3: #{feature_predictor_forward.17} parent=1 // loop_header
      %s11 = sphi 0, %s15
      %p12 = scmp.ge.s32.totalorder %s11, 4
      %s21 = sphi 0, %s23
      %s24 = sphi 0, %s21
      %s25 = sphi 0, %s24
      %s41 = sphi 0, %s25
      %s45 = sphi 0, %s45
      %s47 = sphi 0, %s45
      %s48 = sphi 0, %s47
      %s62 = sphi 0, %s48
      %s66 = sphi 0, %s66
      %s68 = sphi 0, %s66
      %s69 = sphi 0, %s68
      %s83 = sphi 0, %s69
      %s89 = sphi 0, %s91
      %s92 = sphi 0, %s89
      %s93 = sphi 0, %s92
      %s109 = sphi 0, %s93
    $region4: #{feature_predictor_forward.17} parent=1 // loop_header_branch
      %14 = sbr.rel (%p12) target = $region8
    $region5: #{feature_predictor_forward.17} parent=1 // loop_body
      %s16 = ssub.s32 %s11, 1
      %s17 = ssub.s32 %s11, 2
      %s18 = sadd.s32 %s11, 1
      %s19 = ssub.s32 %s11, %s18
      %p20 = scmp.eq.s32.totalorder %s19, 0
      %s22 = sadd.s32 %s21, 1
      %s23 = scalar_select %p20, %s21, %s22
      %p26 = pneg %p20
      %p27 = scmp.eq.s32.totalorder %s11, 1
      %p28 = por %p26, %p27
      %p29 = scmp.ne.s32.totalorder %s21, %s24
      %p30 = scmp.eq.s32.totalorder %s11, 0
      %p31 = por %p29, %p30
      %p32 = scmp.ne.s32.totalorder %s21, %s24
      %p33 = scmp.eq.s32.totalorder %s16, 1
      %p34 = por %p32, %p33
      %p35 = scmp.ne.s32.totalorder %s24, %s25
      %p36 = scmp.eq.s32.totalorder %s16, 0
      %p37 = por %p35, %p36
      %p38 = scmp.ne.s32.totalorder %s24, %s25
      %p39 = scmp.eq.s32.totalorder %s17, 1
      %p40 = por %p38, %p39
      %p42 = scmp.ne.s32.totalorder %s25, %s41
      %p43 = scmp.eq.s32.totalorder %s17, 0
      %p44 = por %p42, %p43
      %s46 = sadd.s32 %s45, 1
      %p49 = scmp.eq.s32.totalorder %s11, 1
      %p50 = scmp.ne.s32.totalorder %s45, %s47
      %p51 = scmp.eq.s32.totalorder %s11, 0
      %p52 = por %p50, %p51
      %p53 = scmp.ne.s32.totalorder %s45, %s47
      %p54 = scmp.eq.s32.totalorder %s16, 1
      %p55 = por %p53, %p54
      %p56 = scmp.ne.s32.totalorder %s47, %s48
      %p57 = scmp.eq.s32.totalorder %s16, 0
      %p58 = por %p56, %p57
      %p59 = scmp.ne.s32.totalorder %s47, %s48
      %p60 = scmp.eq.s32.totalorder %s17, 1
      %p61 = por %p59, %p60
      %p63 = scmp.ne.s32.totalorder %s48, %s62
      %p64 = scmp.eq.s32.totalorder %s17, 0
      %p65 = por %p63, %p64
      %s67 = sadd.s32 %s66, 1
      %p70 = scmp.eq.s32.totalorder %s11, 1
      %p71 = scmp.ne.s32.totalorder %s66, %s68
      %p72 = scmp.eq.s32.totalorder %s11, 0
      %p73 = por %p71, %p72
      %p74 = scmp.ne.s32.totalorder %s66, %s68
      %p75 = scmp.eq.s32.totalorder %s16, 1
      %p76 = por %p74, %p75
      %p77 = scmp.ne.s32.totalorder %s68, %s69
      %p78 = scmp.eq.s32.totalorder %s16, 0
      %p79 = por %p77, %p78
      %p80 = scmp.ne.s32.totalorder %s68, %s69
      %p81 = scmp.eq.s32.totalorder %s17, 1
      %p82 = por %p80, %p81
      %p84 = scmp.ne.s32.totalorder %s69, %s83
      %p85 = scmp.eq.s32.totalorder %s17, 0
      %p86 = por %p84, %p85
      %s87 = ssub.s32 %s11, %s18
      %p88 = scmp.eq.s32.totalorder %s87, 0
      %s90 = sadd.s32 %s89, 1
      %s91 = scalar_select %p88, %s89, %s90
      %p94 = pneg %p88
      %p95 = scmp.eq.s32.totalorder %s11, 1
      %p96 = por %p94, %p95
      %p97 = scmp.ne.s32.totalorder %s89, %s92
      %p98 = scmp.eq.s32.totalorder %s11, 0
      %p99 = por %p97, %p98
      %p100 = scmp.ne.s32.totalorder %s89, %s92
      %p101 = scmp.eq.s32.totalorder %s16, 1
      %p102 = por %p100, %p101
      %p103 = scmp.ne.s32.totalorder %s92, %s93
      %p104 = scmp.eq.s32.totalorder %s16, 0
      %p105 = por %p103, %p104
      %p106 = scmp.ne.s32.totalorder %s92, %s93
      %p107 = scmp.eq.s32.totalorder %s17, 1
      %p108 = por %p106, %p107
      %p110 = scmp.ne.s32.totalorder %s93, %s109
      %p111 = scmp.eq.s32.totalorder %s17, 0
      %p112 = por %p110, %p111
      %p113 = scmp.le.s32.totalorder 1, %s11
      %p114 = scmp.lt.s32.totalorder %s11, 3
      %p115 = pnand %p113, %p114
      %p116 = pneg %p115
      // Predicated region
      $region9: #{feature_predictor_forward.17} parent=5 // pred_check
        _
      $region10: #{feature_predictor_forward.17} parent=5 // pred_check_branch
        %118 = sbr.rel (%p115) target = $region12
      $region11: #{feature_predictor_forward.17} parent=5 // pred_region
        %s119 = ssub.s32 %s11, 1
        // Predicated region
        $region13: #{feature_predictor_forward.17} parent=11 // pred_check
          %p120 = pneg %p58
        $region14: #{feature_predictor_forward.17} parent=11 // pred_check_branch
          %122 = sbr.rel (%p120) target = $region16
        $region15: #{feature_predictor_forward.17} parent=11 // pred_region
          %s124 = ssub.s32 16, 16
          %125 = vsyncadd [#allocation3], %s124
          %s127 = sshll.u32 %s1, 4
          %s128 = int_to_ptr.vmem [resolvable:$true] %s127
          %130 = dma.vmem_to_smem %s128, 16, [#allocation2], [#allocation3]
        $region16: #{feature_predictor_forward.17} parent=11 // pred_fallthru
          _
        // Predicated region
        $region17: #{feature_predictor_forward.17} parent=11 // pred_check
          %p131 = pneg %p79
        $region18: #{feature_predictor_forward.17} parent=11 // pred_check_branch
          %133 = sbr.rel (%p131) target = $region20
        $region19: #{feature_predictor_forward.17} parent=11 // pred_region
          %s135 = ssub.s32 16, 16
          %136 = vsyncadd [#allocation5], %s135
          %s138 = sshll.u32 %s2, 4
          %s139 = int_to_ptr.vmem [resolvable:$true] %s138
          %141 = dma.vmem_to_smem %s139, 16, [#allocation4], [#allocation5]
        $region20: #{feature_predictor_forward.17} parent=11 // pred_fallthru
          _
      $region12: #{feature_predictor_forward.17} parent=5 // pred_fallthru
        _
      %p142 = scmp.lt.s32.totalorder %s11, 2
      // Predicated region
      $region21: #{feature_predictor_forward.17} parent=5 // pred_check
        %p143 = pneg %p142
      $region22: #{feature_predictor_forward.17} parent=5 // pred_check_branch
        %145 = sbr.rel (%p143) target = $region24
      $region23: #{feature_predictor_forward.17} parent=5 // pred_region
        // Predicated region
        $region25: #{feature_predictor_forward.17} parent=23 // pred_check
          %p146 = pneg %p31
        $region26: #{feature_predictor_forward.17} parent=23 // pred_check_branch
          %148 = sbr.rel (%p146) target = $region28
        $region27: #{feature_predictor_forward.17} parent=23 // pred_region
          %p149 = scmp.lt.s32.totalorder %s11, 1
          %s150 = scalar_select %p149, %s11, 1
          %s151 = smul.addr %s150, 10
          %s152 = smul.addr %s151, 8
          %s153 = scalar_lea.vmem %s0, %s152
        $region28: #{feature_predictor_forward.17} parent=23 // pred_fallthru
          _
      $region24: #{feature_predictor_forward.17} parent=5 // pred_fallthru
        _
      %p154 = scmp.le.s32.totalorder 1, %s11
      %p155 = scmp.lt.s32.totalorder %s11, 3
      %p156 = pnand %p154, %p155
      %p157 = pneg %p156
      // Predicated region
      $region29: #{feature_predictor_forward.17} parent=5 // pred_check
        _
      $region30: #{feature_predictor_forward.17} parent=5 // pred_check_branch
        %159 = sbr.rel (%p156) target = $region32
      $region31: #{feature_predictor_forward.17} parent=5 // pred_region
        %s160 = ssub.s32 %s11, 1
        // Predicated region
        $region33: #{feature_predictor_forward.17} parent=31 // pred_check
          %p161 = pneg %p58
        $region34: #{feature_predictor_forward.17} parent=31 // pred_check_branch
          %163 = sbr.rel (%p161) target = $region36
        $region35: #{feature_predictor_forward.17} parent=31 // pred_region
          %164 = dma.done [#allocation3], 16
        $region36: #{feature_predictor_forward.17} parent=31 // pred_fallthru
          _
        // Predicated region
        $region37: #{feature_predictor_forward.17} parent=31 // pred_check
          %p165 = pneg %p79
        $region38: #{feature_predictor_forward.17} parent=31 // pred_check_branch
          %167 = sbr.rel (%p165) target = $region40
        $region39: #{feature_predictor_forward.17} parent=31 // pred_region
          %168 = dma.done [#allocation5], 16
        $region40: #{feature_predictor_forward.17} parent=31 // pred_fallthru
          _
        %169 = sfence
        %p170 = scmp.lt.s32.totalorder %s16, 1
        %s171 = scalar_select %p170, %s16, 1
        %s172 = smul.addr %s171, 10
        %s173 = smul.addr %s172, 8
        %s174 = scalar_lea.vmem %s0, %s173
        %p175 = pneg %p37
        %p176 = pneg %p34
        %p177 = pneg %p58
        %p178 = pneg %p55
        %p179 = pneg %p79
        %p180 = pneg %p76
        %p181 = pneg %p105
        %p182 = pneg %p102
        %p183 = scmp.lt.s32.totalorder %s16, 1
        %s184 = scalar_select %p183, %s16, 1
        %s185 = smul.addr %s184, 8
        %s186 = smul.addr %s185, 8
        %s187 = scalar_lea.vmem %s3, %s186
        %p188 = scmp.lt.s32.totalorder %s16, 1
        %s189 = scalar_select %p188, %s16, 1
        %s190 = smul.addr %s189, 10
        %s191 = smul.addr %s190, 8
        %s192 = scalar_lea.vmem %s0, %s191
        %p193 = scmp.lt.s32.totalorder %s16, 1
        %s194 = scalar_select %p193, %s16, 1
        %s195 = smul.addr %s194, 8
        %s196 = smul.addr %s195, 8
        %s197 = scalar_lea.vmem %s3, %s196
        %s198 = sld [smem:[#allocation4]]
        %v199 = vstv %s198
        %s200 = sld [smem:[#allocation4 + $0x1]]
        %v201 = vstv %s200
        %v202 = vld [vmem:[%s192] sm:$0xff]
        %v203 = vld [vmem:[%s192 + $0x8] sm:$0xff]
        %v204 = vld [vmem:[%s192 + $0x10] sm:$0xff]
        %v205 = vld [vmem:[%s192 + $0x18] sm:$0xff]
        %v206 = vld [vmem:[%s192 + $0x20] sm:$0x3]
        %s207 = sld [smem:[#allocation2]]
        %v208 = vstv %s207
        %v209 = vmul.f32 %v208, %v202
        %v210 = vmul.f32 %v208, %v203
        %v211 = vmul.f32 %v208, %v204
        %v212 = vmul.f32 %v208, %v205
        %v213 = vadd.f32 %v199, %v209
        %v214 = vadd.f32 %v199, %v210
        %v215 = vadd.f32 %v199, %v211
        %v216 = vadd.f32 %v199, %v212
        %s217 = sld [smem:[#allocation2 + $0x12]]
        %v218 = vstv %s217
        %v219 = vmul.f32 %v218, %v202
        %v220 = vmul.f32 %v218, %v203
        %v221 = vmul.f32 %v218, %v204
        %v222 = vmul.f32 %v218, %v205
        %v223 = vadd.f32 %v201, %v219
        %v224 = vadd.f32 %v201, %v220
        %v225 = vadd.f32 %v201, %v221
        %v226 = vadd.f32 %v201, %v222
        %vm227 = vcmask 1047824
        %228 = vrot.lane.b32.xlu0 %v202, 34
        %v229 = vpop.permute.xlu0 %228
        %v230 = vsel %vm227, %v229, %v202
        %231 = vrot.lane.b32.xlu0 %v203, 34
        %v232 = vpop.permute.xlu0 %231
        %v233 = vsel %vm227, %v232, %v203
        %234 = vrot.lane.b32.xlu0 %v204, 34
        %v235 = vpop.permute.xlu0 %234
        %v236 = vsel %vm227, %v235, %v204
        %237 = vrot.lane.b32.xlu0 %v205, 34
        %v238 = vpop.permute.xlu0 %237
        %v239 = vsel %vm227, %v238, %v205
        %240 = vrot.lane.b32.xlu0 %v230, 34
        %v241 = vpop.permute.xlu0 %240
        %242 = vrot.lane.b32.xlu0 %v233, 34
        %v243 = vpop.permute.xlu0 %242
        %244 = vrot.lane.b32.xlu0 %v236, 34
        %v245 = vpop.permute.xlu0 %244
        %246 = vrot.lane.b32.xlu0 %v239, 34
        %v247 = vpop.permute.xlu0 %246
        %v248 = vsel %vm227, %v241, %v202
        %v249 = vsel %vm227, %v243, %v203
        %v250 = vsel %vm227, %v245, %v204
        %v251 = vsel %vm227, %v247, %v205
        %s252 = sld [smem:[#allocation2 + $0x1]]
        %v253 = vstv %s252
        %v254 = vmul.f32 %v253, %v248
        %v255 = vmul.f32 %v253, %v249
        %v256 = vmul.f32 %v253, %v250
        %v257 = vmul.f32 %v253, %v251
        %262 = vrot.lane.b32.xlu0 %v254, 127
        %v263 = vpop.permute.xlu0 %262
        %264 = vrot.lane.b32.xlu0 %v255, 127
        %v265 = vpop.permute.xlu0 %264
        %266 = vrot.lane.b32.xlu0 %v256, 127
        %v267 = vpop.permute.xlu0 %266
        %268 = vrot.lane.b32.xlu0 %v257, 127
        %v269 = vpop.permute.xlu0 %268
        %v274 = vadd.f32 %v213, %v263
        %v275 = vadd.f32 %v214, %v265
        %v276 = vadd.f32 %v215, %v267
        %v277 = vadd.f32 %v216, %v269
        %s278 = sld [smem:[#allocation2 + $0x13]]
        %v279 = vstv %s278
        %v280 = vmul.f32 %v279, %v248
        %v281 = vmul.f32 %v279, %v249
        %v282 = vmul.f32 %v279, %v250
        %v283 = vmul.f32 %v279, %v251
        %288 = vrot.lane.b32.xlu0 %v280, 127
        %v289 = vpop.permute.xlu0 %288
        %290 = vrot.lane.b32.xlu0 %v281, 127
        %v291 = vpop.permute.xlu0 %290
        %292 = vrot.lane.b32.xlu0 %v282, 127
        %v293 = vpop.permute.xlu0 %292
        %294 = vrot.lane.b32.xlu0 %v283, 127
        %v295 = vpop.permute.xlu0 %294
        %v300 = vadd.f32 %v223, %v289
        %v301 = vadd.f32 %v224, %v291
        %v302 = vadd.f32 %v225, %v293
        %v303 = vadd.f32 %v226, %v295
        %s304 = sld [smem:[#allocation2 + $0x2]]
        %v305 = vstv %s304
        %v306 = vmul.f32 %v305, %v248
        %v307 = vmul.f32 %v305, %v249
        %v308 = vmul.f32 %v305, %v250
        %v309 = vmul.f32 %v305, %v251
        %314 = vrot.lane.b32.xlu0 %v306, 126
        %v315 = vpop.permute.xlu0 %314
        %316 = vrot.lane.b32.xlu0 %v307, 126
        %v317 = vpop.permute.xlu0 %316
        %318 = vrot.lane.b32.xlu0 %v308, 126
        %v319 = vpop.permute.xlu0 %318
        %320 = vrot.lane.b32.xlu0 %v309, 126
        %v321 = vpop.permute.xlu0 %320
        %v326 = vadd.f32 %v274, %v315
        %v327 = vadd.f32 %v275, %v317
        %v328 = vadd.f32 %v276, %v319
        %v329 = vadd.f32 %v277, %v321
        %s330 = sld [smem:[#allocation2 + $0x14]]
        %v331 = vstv %s330
        %v332 = vmul.f32 %v331, %v248
        %v333 = vmul.f32 %v331, %v249
        %v334 = vmul.f32 %v331, %v250
        %v335 = vmul.f32 %v331, %v251
        %340 = vrot.lane.b32.xlu0 %v332, 126
        %v341 = vpop.permute.xlu0 %340
        %342 = vrot.lane.b32.xlu0 %v333, 126
        %v343 = vpop.permute.xlu0 %342
        %344 = vrot.lane.b32.xlu0 %v334, 126
        %v345 = vpop.permute.xlu0 %344
        %346 = vrot.lane.b32.xlu0 %v335, 126
        %v347 = vpop.permute.xlu0 %346
        %v352 = vadd.f32 %v300, %v341
        %v353 = vadd.f32 %v301, %v343
        %v354 = vadd.f32 %v302, %v345
        %v355 = vadd.f32 %v303, %v347
        %vm356 = vcmask 1047554
        %v357 = vrot.slane %v202, 6
        %v358 = vsel %vm356, %v357, %v206
        %s359 = sld [smem:[#allocation2 + $0x3]]
        %v360 = vstv %s359
        %v361 = vmul.f32 %v360, %v202
        %v362 = vmul.f32 %v360, %v203
        %v363 = vmul.f32 %v360, %v204
        %v364 = vmul.f32 %v360, %v205
        %v365 = vmul.f32 %v360, %v358
        %vm371 = vcmask 1046528
        %v372 = vrot.slane %v361, 1
        %v373 = vrot.slane %v362, 1
        %v374 = vsel %vm371, %v372, %v373
        %v375 = vrot.slane %v363, 1
        %v376 = vsel %vm371, %v373, %v375
        %v377 = vrot.slane %v364, 1
        %v378 = vsel %vm371, %v375, %v377
        %v379 = vrot.slane %v365, 1
        %v380 = vsel %vm371, %v377, %v379
        %v385 = vadd.f32 %v326, %v374
        %v386 = vadd.f32 %v327, %v376
        %v387 = vadd.f32 %v328, %v378
        %v388 = vadd.f32 %v329, %v380
        %s389 = sld [smem:[#allocation2 + $0x15]]
        %v390 = vstv %s389
        %v391 = vmul.f32 %v390, %v202
        %v392 = vmul.f32 %v390, %v203
        %v393 = vmul.f32 %v390, %v204
        %v394 = vmul.f32 %v390, %v205
        %v395 = vmul.f32 %v390, %v358
        %v401 = vrot.slane %v391, 1
        %v402 = vrot.slane %v392, 1
        %v403 = vsel %vm371, %v401, %v402
        %v404 = vrot.slane %v393, 1
        %v405 = vsel %vm371, %v402, %v404
        %v406 = vrot.slane %v394, 1
        %v407 = vsel %vm371, %v404, %v406
        %v408 = vrot.slane %v395, 1
        %v409 = vsel %vm371, %v406, %v408
        %v414 = vadd.f32 %v352, %v403
        %v415 = vadd.f32 %v353, %v405
        %v416 = vadd.f32 %v354, %v407
        %v417 = vadd.f32 %v355, %v409
        %v423 = vrot.slane %v202, 1
        %v424 = vrot.slane %v203, 1
        %v425 = vsel %vm371, %v423, %v424
        %v426 = vrot.slane %v204, 1
        %v427 = vsel %vm371, %v424, %v426
        %v428 = vrot.slane %v205, 1
        %v429 = vsel %vm371, %v426, %v428
        %v430 = vrot.slane %v358, 1
        %v431 = vsel %vm371, %v428, %v430
        %436 = vrot.lane.b32.xlu0 %v425, 34
        %v437 = vpop.permute.xlu0 %436
        %v438 = vsel %vm227, %v437, %v425
        %439 = vrot.lane.b32.xlu0 %v427, 34
        %v440 = vpop.permute.xlu0 %439
        %v441 = vsel %vm227, %v440, %v427
        %442 = vrot.lane.b32.xlu0 %v429, 34
        %v443 = vpop.permute.xlu0 %442
        %v444 = vsel %vm227, %v443, %v429
        %445 = vrot.lane.b32.xlu0 %v431, 34
        %v446 = vpop.permute.xlu0 %445
        %v447 = vsel %vm227, %v446, %v431
        %448 = vrot.lane.b32.xlu0 %v438, 34
        %v449 = vpop.permute.xlu0 %448
        %450 = vrot.lane.b32.xlu0 %v441, 34
        %v451 = vpop.permute.xlu0 %450
        %452 = vrot.lane.b32.xlu0 %v444, 34
        %v453 = vpop.permute.xlu0 %452
        %454 = vrot.lane.b32.xlu0 %v447, 34
        %v455 = vpop.permute.xlu0 %454
        %v456 = vsel %vm227, %v449, %v425
        %v457 = vsel %vm227, %v451, %v427
        %v458 = vsel %vm227, %v453, %v429
        %v459 = vsel %vm227, %v455, %v431
        %s460 = sld [smem:[#allocation2 + $0x4]]
        %v461 = vstv %s460
        %v462 = vmul.f32 %v461, %v456
        %v463 = vmul.f32 %v461, %v457
        %v464 = vmul.f32 %v461, %v458
        %v465 = vmul.f32 %v461, %v459
        %470 = vrot.lane.b32.xlu0 %v462, 127
        %v471 = vpop.permute.xlu0 %470
        %472 = vrot.lane.b32.xlu0 %v463, 127
        %v473 = vpop.permute.xlu0 %472
        %474 = vrot.lane.b32.xlu0 %v464, 127
        %v475 = vpop.permute.xlu0 %474
        %476 = vrot.lane.b32.xlu0 %v465, 127
        %v477 = vpop.permute.xlu0 %476
        %v482 = vadd.f32 %v385, %v471
        %v483 = vadd.f32 %v386, %v473
        %v484 = vadd.f32 %v387, %v475
        %v485 = vadd.f32 %v388, %v477
        %s486 = sld [smem:[#allocation2 + $0x16]]
        %v487 = vstv %s486
        %v488 = vmul.f32 %v487, %v456
        %v489 = vmul.f32 %v487, %v457
        %v490 = vmul.f32 %v487, %v458
        %v491 = vmul.f32 %v487, %v459
        %496 = vrot.lane.b32.xlu0 %v488, 127
        %v497 = vpop.permute.xlu0 %496
        %498 = vrot.lane.b32.xlu0 %v489, 127
        %v499 = vpop.permute.xlu0 %498
        %500 = vrot.lane.b32.xlu0 %v490, 127
        %v501 = vpop.permute.xlu0 %500
        %502 = vrot.lane.b32.xlu0 %v491, 127
        %v503 = vpop.permute.xlu0 %502
        %v508 = vadd.f32 %v414, %v497
        %v509 = vadd.f32 %v415, %v499
        %v510 = vadd.f32 %v416, %v501
        %v511 = vadd.f32 %v417, %v503
        %s512 = sld [smem:[#allocation2 + $0x5]]
        %v513 = vstv %s512
        %v514 = vmul.f32 %v513, %v456
        %v515 = vmul.f32 %v513, %v457
        %v516 = vmul.f32 %v513, %v458
        %v517 = vmul.f32 %v513, %v459
        %522 = vrot.lane.b32.xlu0 %v514, 126
        %v523 = vpop.permute.xlu0 %522
        %524 = vrot.lane.b32.xlu0 %v515, 126
        %v525 = vpop.permute.xlu0 %524
        %526 = vrot.lane.b32.xlu0 %v516, 126
        %v527 = vpop.permute.xlu0 %526
        %528 = vrot.lane.b32.xlu0 %v517, 126
        %v529 = vpop.permute.xlu0 %528
        %v534 = vadd.f32 %v482, %v523
        %v535 = vadd.f32 %v483, %v525
        %v536 = vadd.f32 %v484, %v527
        %v537 = vadd.f32 %v485, %v529
        %s538 = sld [smem:[#allocation2 + $0x17]]
        %v539 = vstv %s538
        %v540 = vmul.f32 %v539, %v456
        %v541 = vmul.f32 %v539, %v457
        %v542 = vmul.f32 %v539, %v458
        %v543 = vmul.f32 %v539, %v459
        %548 = vrot.lane.b32.xlu0 %v540, 126
        %v549 = vpop.permute.xlu0 %548
        %550 = vrot.lane.b32.xlu0 %v541, 126
        %v551 = vpop.permute.xlu0 %550
        %552 = vrot.lane.b32.xlu0 %v542, 126
        %v553 = vpop.permute.xlu0 %552
        %554 = vrot.lane.b32.xlu0 %v543, 126
        %v555 = vpop.permute.xlu0 %554
        %v560 = vadd.f32 %v508, %v549
        %v561 = vadd.f32 %v509, %v551
        %v562 = vadd.f32 %v510, %v553
        %v563 = vadd.f32 %v511, %v555
        %s564 = sld [smem:[#allocation2 + $0x6]]
        %v565 = vstv %s564
        %v566 = vmul.f32 %v565, %v202
        %v567 = vmul.f32 %v565, %v203
        %v568 = vmul.f32 %v565, %v204
        %v569 = vmul.f32 %v565, %v205
        %v570 = vmul.f32 %v565, %v358
        %vm576 = vcmask 1045504
        %v577 = vrot.slane %v566, 2
        %v578 = vrot.slane %v567, 2
        %v579 = vsel %vm576, %v577, %v578
        %v580 = vrot.slane %v568, 2
        %v581 = vsel %vm576, %v578, %v580
        %v582 = vrot.slane %v569, 2
        %v583 = vsel %vm576, %v580, %v582
        %v584 = vrot.slane %v570, 2
        %v585 = vsel %vm576, %v582, %v584
        %v590 = vadd.f32 %v534, %v579
        %v591 = vadd.f32 %v535, %v581
        %v592 = vadd.f32 %v536, %v583
        %v593 = vadd.f32 %v537, %v585
        %s594 = sld [smem:[#allocation2 + $0x18]]
        %v595 = vstv %s594
        %v596 = vmul.f32 %v595, %v202
        %v597 = vmul.f32 %v595, %v203
        %v598 = vmul.f32 %v595, %v204
        %v599 = vmul.f32 %v595, %v205
        %v600 = vmul.f32 %v595, %v358
        %v606 = vrot.slane %v596, 2
        %v607 = vrot.slane %v597, 2
        %v608 = vsel %vm576, %v606, %v607
        %v609 = vrot.slane %v598, 2
        %v610 = vsel %vm576, %v607, %v609
        %v611 = vrot.slane %v599, 2
        %v612 = vsel %vm576, %v609, %v611
        %v613 = vrot.slane %v600, 2
        %v614 = vsel %vm576, %v611, %v613
        %v619 = vadd.f32 %v560, %v608
        %v620 = vadd.f32 %v561, %v610
        %v621 = vadd.f32 %v562, %v612
        %v622 = vadd.f32 %v563, %v614
        %v623 = vrot.slane %v202, 2
        %v624 = vrot.slane %v203, 2
        %v625 = vsel %vm576, %v623, %v624
        %v626 = vrot.slane %v204, 2
        %v627 = vsel %vm576, %v624, %v626
        %v628 = vrot.slane %v205, 2
        %v629 = vsel %vm576, %v626, %v628
        %v630 = vrot.slane %v358, 2
        %v631 = vsel %vm576, %v628, %v630
        %636 = vrot.lane.b32.xlu0 %v625, 34
        %v637 = vpop.permute.xlu0 %636
        %v638 = vsel %vm227, %v637, %v625
        %639 = vrot.lane.b32.xlu0 %v627, 34
        %v640 = vpop.permute.xlu0 %639
        %v641 = vsel %vm227, %v640, %v627
        %642 = vrot.lane.b32.xlu0 %v629, 34
        %v643 = vpop.permute.xlu0 %642
        %v644 = vsel %vm227, %v643, %v629
        %645 = vrot.lane.b32.xlu0 %v631, 34
        %v646 = vpop.permute.xlu0 %645
        %v647 = vsel %vm227, %v646, %v631
        %648 = vrot.lane.b32.xlu0 %v638, 34
        %v649 = vpop.permute.xlu0 %648
        %650 = vrot.lane.b32.xlu0 %v641, 34
        %v651 = vpop.permute.xlu0 %650
        %652 = vrot.lane.b32.xlu0 %v644, 34
        %v653 = vpop.permute.xlu0 %652
        %654 = vrot.lane.b32.xlu0 %v647, 34
        %v655 = vpop.permute.xlu0 %654
        %v656 = vsel %vm227, %v649, %v625
        %v657 = vsel %vm227, %v651, %v627
        %v658 = vsel %vm227, %v653, %v629
        %v659 = vsel %vm227, %v655, %v631
        %s660 = sld [smem:[#allocation2 + $0x7]]
        %v661 = vstv %s660
        %v662 = vmul.f32 %v661, %v656
        %v663 = vmul.f32 %v661, %v657
        %v664 = vmul.f32 %v661, %v658
        %v665 = vmul.f32 %v661, %v659
        %670 = vrot.lane.b32.xlu0 %v662, 127
        %v671 = vpop.permute.xlu0 %670
        %672 = vrot.lane.b32.xlu0 %v663, 127
        %v673 = vpop.permute.xlu0 %672
        %674 = vrot.lane.b32.xlu0 %v664, 127
        %v675 = vpop.permute.xlu0 %674
        %676 = vrot.lane.b32.xlu0 %v665, 127
        %v677 = vpop.permute.xlu0 %676
        %v682 = vadd.f32 %v590, %v671
        %v683 = vadd.f32 %v591, %v673
        %v684 = vadd.f32 %v592, %v675
        %v685 = vadd.f32 %v593, %v677
        %s686 = sld [smem:[#allocation2 + $0x19]]
        %v687 = vstv %s686
        %v688 = vmul.f32 %v687, %v656
        %v689 = vmul.f32 %v687, %v657
        %v690 = vmul.f32 %v687, %v658
        %v691 = vmul.f32 %v687, %v659
        %696 = vrot.lane.b32.xlu0 %v688, 127
        %v697 = vpop.permute.xlu0 %696
        %698 = vrot.lane.b32.xlu0 %v689, 127
        %v699 = vpop.permute.xlu0 %698
        %700 = vrot.lane.b32.xlu0 %v690, 127
        %v701 = vpop.permute.xlu0 %700
        %702 = vrot.lane.b32.xlu0 %v691, 127
        %v703 = vpop.permute.xlu0 %702
        %v708 = vadd.f32 %v619, %v697
        %v709 = vadd.f32 %v620, %v699
        %v710 = vadd.f32 %v621, %v701
        %v711 = vadd.f32 %v622, %v703
        %s712 = sld [smem:[#allocation2 + $0x8]]
        %v713 = vstv %s712
        %v714 = vmul.f32 %v713, %v656
        %v715 = vmul.f32 %v713, %v657
        %v716 = vmul.f32 %v713, %v658
        %v717 = vmul.f32 %v713, %v659
        %722 = vrot.lane.b32.xlu0 %v714, 126
        %v723 = vpop.permute.xlu0 %722
        %724 = vrot.lane.b32.xlu0 %v715, 126
        %v725 = vpop.permute.xlu0 %724
        %726 = vrot.lane.b32.xlu0 %v716, 126
        %v727 = vpop.permute.xlu0 %726
        %728 = vrot.lane.b32.xlu0 %v717, 126
        %v729 = vpop.permute.xlu0 %728
        %v734 = vadd.f32 %v682, %v723
        %v735 = vadd.f32 %v683, %v725
        %v736 = vadd.f32 %v684, %v727
        %v737 = vadd.f32 %v685, %v729
        %s738 = sld [smem:[#allocation2 + $0x1a]]
        %v739 = vstv %s738
        %v740 = vmul.f32 %v739, %v656
        %v741 = vmul.f32 %v739, %v657
        %v742 = vmul.f32 %v739, %v658
        %v743 = vmul.f32 %v739, %v659
        %748 = vrot.lane.b32.xlu0 %v740, 126
        %v749 = vpop.permute.xlu0 %748
        %750 = vrot.lane.b32.xlu0 %v741, 126
        %v751 = vpop.permute.xlu0 %750
        %752 = vrot.lane.b32.xlu0 %v742, 126
        %v753 = vpop.permute.xlu0 %752
        %754 = vrot.lane.b32.xlu0 %v743, 126
        %v755 = vpop.permute.xlu0 %754
        %v760 = vadd.f32 %v708, %v749
        %v761 = vadd.f32 %v709, %v751
        %v762 = vadd.f32 %v710, %v753
        %v763 = vadd.f32 %v711, %v755
        %s764 = scalar_lea.vmem %s192, 40
        %v765 = vld [vmem:[%s764] sm:$0xff]
        %v766 = vld [vmem:[%s764 + $0x8] sm:$0xff]
        %v767 = vld [vmem:[%s764 + $0x10] sm:$0xff]
        %v768 = vld [vmem:[%s764 + $0x18] sm:$0xff]
        %v769 = vld [vmem:[%s764 + $0x20] sm:$0x3]
        %s770 = sld [smem:[#allocation2 + $0x9]]
        %v771 = vstv %s770
        %v772 = vmul.f32 %v771, %v765
        %v773 = vmul.f32 %v771, %v766
        %v774 = vmul.f32 %v771, %v767
        %v775 = vmul.f32 %v771, %v768
        %v776 = vadd.f32 %v734, %v772
        %v777 = vadd.f32 %v735, %v773
        %v778 = vadd.f32 %v736, %v774
        %v779 = vadd.f32 %v737, %v775
        %s780 = sld [smem:[#allocation2 + $0x1b]]
        %v781 = vstv %s780
        %v782 = vmul.f32 %v781, %v765
        %v783 = vmul.f32 %v781, %v766
        %v784 = vmul.f32 %v781, %v767
        %v785 = vmul.f32 %v781, %v768
        %v786 = vadd.f32 %v760, %v782
        %v787 = vadd.f32 %v761, %v783
        %v788 = vadd.f32 %v762, %v784
        %v789 = vadd.f32 %v763, %v785
        %790 = vrot.lane.b32.xlu0 %v765, 34
        %v791 = vpop.permute.xlu0 %790
        %v792 = vsel %vm227, %v791, %v765
        %793 = vrot.lane.b32.xlu0 %v766, 34
        %v794 = vpop.permute.xlu0 %793
        %v795 = vsel %vm227, %v794, %v766
        %796 = vrot.lane.b32.xlu0 %v767, 34
        %v797 = vpop.permute.xlu0 %796
        %v798 = vsel %vm227, %v797, %v767
        %799 = vrot.lane.b32.xlu0 %v768, 34
        %v800 = vpop.permute.xlu0 %799
        %v801 = vsel %vm227, %v800, %v768
        %802 = vrot.lane.b32.xlu0 %v792, 34
        %v803 = vpop.permute.xlu0 %802
        %804 = vrot.lane.b32.xlu0 %v795, 34
        %v805 = vpop.permute.xlu0 %804
        %806 = vrot.lane.b32.xlu0 %v798, 34
        %v807 = vpop.permute.xlu0 %806
        %808 = vrot.lane.b32.xlu0 %v801, 34
        %v809 = vpop.permute.xlu0 %808
        %v810 = vsel %vm227, %v803, %v765
        %v811 = vsel %vm227, %v805, %v766
        %v812 = vsel %vm227, %v807, %v767
        %v813 = vsel %vm227, %v809, %v768
        %s814 = sld [smem:[#allocation2 + $0xa]]
        %v815 = vstv %s814
        %v816 = vmul.f32 %v815, %v810
        %v817 = vmul.f32 %v815, %v811
        %v818 = vmul.f32 %v815, %v812
        %v819 = vmul.f32 %v815, %v813
        %824 = vrot.lane.b32.xlu0 %v816, 127
        %v825 = vpop.permute.xlu0 %824
        %826 = vrot.lane.b32.xlu0 %v817, 127
        %v827 = vpop.permute.xlu0 %826
        %828 = vrot.lane.b32.xlu0 %v818, 127
        %v829 = vpop.permute.xlu0 %828
        %830 = vrot.lane.b32.xlu0 %v819, 127
        %v831 = vpop.permute.xlu0 %830
        %v836 = vadd.f32 %v776, %v825
        %v837 = vadd.f32 %v777, %v827
        %v838 = vadd.f32 %v778, %v829
        %v839 = vadd.f32 %v779, %v831
        %s840 = sld [smem:[#allocation2 + $0x1c]]
        %v841 = vstv %s840
        %v842 = vmul.f32 %v841, %v810
        %v843 = vmul.f32 %v841, %v811
        %v844 = vmul.f32 %v841, %v812
        %v845 = vmul.f32 %v841, %v813
        %850 = vrot.lane.b32.xlu0 %v842, 127
        %v851 = vpop.permute.xlu0 %850
        %852 = vrot.lane.b32.xlu0 %v843, 127
        %v853 = vpop.permute.xlu0 %852
        %854 = vrot.lane.b32.xlu0 %v844, 127
        %v855 = vpop.permute.xlu0 %854
        %856 = vrot.lane.b32.xlu0 %v845, 127
        %v857 = vpop.permute.xlu0 %856
        %v862 = vadd.f32 %v786, %v851
        %v863 = vadd.f32 %v787, %v853
        %v864 = vadd.f32 %v788, %v855
        %v865 = vadd.f32 %v789, %v857
        %s866 = sld [smem:[#allocation2 + $0xb]]
        %v867 = vstv %s866
        %v868 = vmul.f32 %v867, %v810
        %v869 = vmul.f32 %v867, %v811
        %v870 = vmul.f32 %v867, %v812
        %v871 = vmul.f32 %v867, %v813
        %876 = vrot.lane.b32.xlu0 %v868, 126
        %v877 = vpop.permute.xlu0 %876
        %878 = vrot.lane.b32.xlu0 %v869, 126
        %v879 = vpop.permute.xlu0 %878
        %880 = vrot.lane.b32.xlu0 %v870, 126
        %v881 = vpop.permute.xlu0 %880
        %882 = vrot.lane.b32.xlu0 %v871, 126
        %v883 = vpop.permute.xlu0 %882
        %v888 = vadd.f32 %v836, %v877
        %v889 = vadd.f32 %v837, %v879
        %v890 = vadd.f32 %v838, %v881
        %v891 = vadd.f32 %v839, %v883
        %s892 = sld [smem:[#allocation2 + $0x1d]]
        %v893 = vstv %s892
        %v894 = vmul.f32 %v893, %v810
        %v895 = vmul.f32 %v893, %v811
        %v896 = vmul.f32 %v893, %v812
        %v897 = vmul.f32 %v893, %v813
        %902 = vrot.lane.b32.xlu0 %v894, 126
        %v903 = vpop.permute.xlu0 %902
        %904 = vrot.lane.b32.xlu0 %v895, 126
        %v905 = vpop.permute.xlu0 %904
        %906 = vrot.lane.b32.xlu0 %v896, 126
        %v907 = vpop.permute.xlu0 %906
        %908 = vrot.lane.b32.xlu0 %v897, 126
        %v909 = vpop.permute.xlu0 %908
        %v914 = vadd.f32 %v862, %v903
        %v915 = vadd.f32 %v863, %v905
        %v916 = vadd.f32 %v864, %v907
        %v917 = vadd.f32 %v865, %v909
        %v918 = vrot.slane %v765, 6
        %v919 = vsel %vm356, %v918, %v769
        %s920 = sld [smem:[#allocation2 + $0xc]]
        %v921 = vstv %s920
        %v922 = vmul.f32 %v921, %v765
        %v923 = vmul.f32 %v921, %v766
        %v924 = vmul.f32 %v921, %v767
        %v925 = vmul.f32 %v921, %v768
        %v926 = vmul.f32 %v921, %v919
        %v932 = vrot.slane %v922, 1
        %v933 = vrot.slane %v923, 1
        %v934 = vsel %vm371, %v932, %v933
        %v935 = vrot.slane %v924, 1
        %v936 = vsel %vm371, %v933, %v935
        %v937 = vrot.slane %v925, 1
        %v938 = vsel %vm371, %v935, %v937
        %v939 = vrot.slane %v926, 1
        %v940 = vsel %vm371, %v937, %v939
        %v945 = vadd.f32 %v888, %v934
        %v946 = vadd.f32 %v889, %v936
        %v947 = vadd.f32 %v890, %v938
        %v948 = vadd.f32 %v891, %v940
        %s949 = sld [smem:[#allocation2 + $0x1e]]
        %v950 = vstv %s949
        %v951 = vmul.f32 %v950, %v765
        %v952 = vmul.f32 %v950, %v766
        %v953 = vmul.f32 %v950, %v767
        %v954 = vmul.f32 %v950, %v768
        %v955 = vmul.f32 %v950, %v919
        %v961 = vrot.slane %v951, 1
        %v962 = vrot.slane %v952, 1
        %v963 = vsel %vm371, %v961, %v962
        %v964 = vrot.slane %v953, 1
        %v965 = vsel %vm371, %v962, %v964
        %v966 = vrot.slane %v954, 1
        %v967 = vsel %vm371, %v964, %v966
        %v968 = vrot.slane %v955, 1
        %v969 = vsel %vm371, %v966, %v968
        %v974 = vadd.f32 %v914, %v963
        %v975 = vadd.f32 %v915, %v965
        %v976 = vadd.f32 %v916, %v967
        %v977 = vadd.f32 %v917, %v969
        %v983 = vrot.slane %v765, 1
        %v984 = vrot.slane %v766, 1
        %v985 = vsel %vm371, %v983, %v984
        %v986 = vrot.slane %v767, 1
        %v987 = vsel %vm371, %v984, %v986
        %v988 = vrot.slane %v768, 1
        %v989 = vsel %vm371, %v986, %v988
        %v990 = vrot.slane %v919, 1
        %v991 = vsel %vm371, %v988, %v990
        %996 = vrot.lane.b32.xlu0 %v985, 34
        %v997 = vpop.permute.xlu0 %996
        %v998 = vsel %vm227, %v997, %v985
        %999 = vrot.lane.b32.xlu0 %v987, 34
        %v1000 = vpop.permute.xlu0 %999
        %v1001 = vsel %vm227, %v1000, %v987
        %1002 = vrot.lane.b32.xlu0 %v989, 34
        %v1003 = vpop.permute.xlu0 %1002
        %v1004 = vsel %vm227, %v1003, %v989
        %1005 = vrot.lane.b32.xlu0 %v991, 34
        %v1006 = vpop.permute.xlu0 %1005
        %v1007 = vsel %vm227, %v1006, %v991
        %1008 = vrot.lane.b32.xlu0 %v998, 34
        %v1009 = vpop.permute.xlu0 %1008
        %1010 = vrot.lane.b32.xlu0 %v1001, 34
        %v1011 = vpop.permute.xlu0 %1010
        %1012 = vrot.lane.b32.xlu0 %v1004, 34
        %v1013 = vpop.permute.xlu0 %1012
        %1014 = vrot.lane.b32.xlu0 %v1007, 34
        %v1015 = vpop.permute.xlu0 %1014
        %v1016 = vsel %vm227, %v1009, %v985
        %v1017 = vsel %vm227, %v1011, %v987
        %v1018 = vsel %vm227, %v1013, %v989
        %v1019 = vsel %vm227, %v1015, %v991
        %s1020 = sld [smem:[#allocation2 + $0xd]]
        %v1021 = vstv %s1020
        %v1022 = vmul.f32 %v1021, %v1016
        %v1023 = vmul.f32 %v1021, %v1017
        %v1024 = vmul.f32 %v1021, %v1018
        %v1025 = vmul.f32 %v1021, %v1019
        %1030 = vrot.lane.b32.xlu0 %v1022, 127
        %v1031 = vpop.permute.xlu0 %1030
        %1032 = vrot.lane.b32.xlu0 %v1023, 127
        %v1033 = vpop.permute.xlu0 %1032
        %1034 = vrot.lane.b32.xlu0 %v1024, 127
        %v1035 = vpop.permute.xlu0 %1034
        %1036 = vrot.lane.b32.xlu0 %v1025, 127
        %v1037 = vpop.permute.xlu0 %1036
        %v1042 = vadd.f32 %v945, %v1031
        %v1043 = vadd.f32 %v946, %v1033
        %v1044 = vadd.f32 %v947, %v1035
        %v1045 = vadd.f32 %v948, %v1037
        %s1046 = sld [smem:[#allocation2 + $0x1f]]
        %v1047 = vstv %s1046
        %v1048 = vmul.f32 %v1047, %v1016
        %v1049 = vmul.f32 %v1047, %v1017
        %v1050 = vmul.f32 %v1047, %v1018
        %v1051 = vmul.f32 %v1047, %v1019
        %1056 = vrot.lane.b32.xlu0 %v1048, 127
        %v1057 = vpop.permute.xlu0 %1056
        %1058 = vrot.lane.b32.xlu0 %v1049, 127
        %v1059 = vpop.permute.xlu0 %1058
        %1060 = vrot.lane.b32.xlu0 %v1050, 127
        %v1061 = vpop.permute.xlu0 %1060
        %1062 = vrot.lane.b32.xlu0 %v1051, 127
        %v1063 = vpop.permute.xlu0 %1062
        %v1068 = vadd.f32 %v974, %v1057
        %v1069 = vadd.f32 %v975, %v1059
        %v1070 = vadd.f32 %v976, %v1061
        %v1071 = vadd.f32 %v977, %v1063
        %s1072 = sld [smem:[#allocation2 + $0xe]]
        %v1073 = vstv %s1072
        %v1074 = vmul.f32 %v1073, %v1016
        %v1075 = vmul.f32 %v1073, %v1017
        %v1076 = vmul.f32 %v1073, %v1018
        %v1077 = vmul.f32 %v1073, %v1019
        %1082 = vrot.lane.b32.xlu0 %v1074, 126
        %v1083 = vpop.permute.xlu0 %1082
        %1084 = vrot.lane.b32.xlu0 %v1075, 126
        %v1085 = vpop.permute.xlu0 %1084
        %1086 = vrot.lane.b32.xlu0 %v1076, 126
        %v1087 = vpop.permute.xlu0 %1086
        %1088 = vrot.lane.b32.xlu0 %v1077, 126
        %v1089 = vpop.permute.xlu0 %1088
        %v1094 = vadd.f32 %v1042, %v1083
        %v1095 = vadd.f32 %v1043, %v1085
        %v1096 = vadd.f32 %v1044, %v1087
        %v1097 = vadd.f32 %v1045, %v1089
        %s1098 = sld [smem:[#allocation2 + $0x20]]
        %v1099 = vstv %s1098
        %v1100 = vmul.f32 %v1099, %v1016
        %v1101 = vmul.f32 %v1099, %v1017
        %v1102 = vmul.f32 %v1099, %v1018
        %v1103 = vmul.f32 %v1099, %v1019
        %1108 = vrot.lane.b32.xlu0 %v1100, 126
        %v1109 = vpop.permute.xlu0 %1108
        %1110 = vrot.lane.b32.xlu0 %v1101, 126
        %v1111 = vpop.permute.xlu0 %1110
        %1112 = vrot.lane.b32.xlu0 %v1102, 126
        %v1113 = vpop.permute.xlu0 %1112
        %1114 = vrot.lane.b32.xlu0 %v1103, 126
        %v1115 = vpop.permute.xlu0 %1114
        %v1120 = vadd.f32 %v1068, %v1109
        %v1121 = vadd.f32 %v1069, %v1111
        %v1122 = vadd.f32 %v1070, %v1113
        %v1123 = vadd.f32 %v1071, %v1115
        %s1124 = sld [smem:[#allocation2 + $0xf]]
        %v1125 = vstv %s1124
        %v1126 = vmul.f32 %v1125, %v765
        %v1127 = vmul.f32 %v1125, %v766
        %v1128 = vmul.f32 %v1125, %v767
        %v1129 = vmul.f32 %v1125, %v768
        %v1130 = vmul.f32 %v1125, %v919
        %v1136 = vrot.slane %v1126, 2
        %v1137 = vrot.slane %v1127, 2
        %v1138 = vsel %vm576, %v1136, %v1137
        %v1139 = vrot.slane %v1128, 2
        %v1140 = vsel %vm576, %v1137, %v1139
        %v1141 = vrot.slane %v1129, 2
        %v1142 = vsel %vm576, %v1139, %v1141
        %v1143 = vrot.slane %v1130, 2
        %v1144 = vsel %vm576, %v1141, %v1143
        %v1149 = vadd.f32 %v1094, %v1138
        %v1150 = vadd.f32 %v1095, %v1140
        %v1151 = vadd.f32 %v1096, %v1142
        %v1152 = vadd.f32 %v1097, %v1144
        %s1153 = sld [smem:[#allocation2 + $0x21]]
        %v1154 = vstv %s1153
        %v1155 = vmul.f32 %v1154, %v765
        %v1156 = vmul.f32 %v1154, %v766
        %v1157 = vmul.f32 %v1154, %v767
        %v1158 = vmul.f32 %v1154, %v768
        %v1159 = vmul.f32 %v1154, %v919
        %v1165 = vrot.slane %v1155, 2
        %v1166 = vrot.slane %v1156, 2
        %v1167 = vsel %vm576, %v1165, %v1166
        %v1168 = vrot.slane %v1157, 2
        %v1169 = vsel %vm576, %v1166, %v1168
        %v1170 = vrot.slane %v1158, 2
        %v1171 = vsel %vm576, %v1168, %v1170
        %v1172 = vrot.slane %v1159, 2
        %v1173 = vsel %vm576, %v1170, %v1172
        %v1178 = vadd.f32 %v1120, %v1167
        %v1179 = vadd.f32 %v1121, %v1169
        %v1180 = vadd.f32 %v1122, %v1171
        %v1181 = vadd.f32 %v1123, %v1173
        %v1182 = vrot.slane %v765, 2
        %v1183 = vrot.slane %v766, 2
        %v1184 = vsel %vm576, %v1182, %v1183
        %v1185 = vrot.slane %v767, 2
        %v1186 = vsel %vm576, %v1183, %v1185
        %v1187 = vrot.slane %v768, 2
        %v1188 = vsel %vm576, %v1185, %v1187
        %v1189 = vrot.slane %v919, 2
        %v1190 = vsel %vm576, %v1187, %v1189
        %1195 = vrot.lane.b32.xlu0 %v1184, 34
        %v1196 = vpop.permute.xlu0 %1195
        %v1197 = vsel %vm227, %v1196, %v1184
        %1198 = vrot.lane.b32.xlu0 %v1186, 34
        %v1199 = vpop.permute.xlu0 %1198
        %v1200 = vsel %vm227, %v1199, %v1186
        %1201 = vrot.lane.b32.xlu0 %v1188, 34
        %v1202 = vpop.permute.xlu0 %1201
        %v1203 = vsel %vm227, %v1202, %v1188
        %1204 = vrot.lane.b32.xlu0 %v1190, 34
        %v1205 = vpop.permute.xlu0 %1204
        %v1206 = vsel %vm227, %v1205, %v1190
        %1207 = vrot.lane.b32.xlu0 %v1197, 34
        %v1208 = vpop.permute.xlu0 %1207
        %1209 = vrot.lane.b32.xlu0 %v1200, 34
        %v1210 = vpop.permute.xlu0 %1209
        %1211 = vrot.lane.b32.xlu0 %v1203, 34
        %v1212 = vpop.permute.xlu0 %1211
        %1213 = vrot.lane.b32.xlu0 %v1206, 34
        %v1214 = vpop.permute.xlu0 %1213
        %v1215 = vsel %vm227, %v1208, %v1184
        %v1216 = vsel %vm227, %v1210, %v1186
        %v1217 = vsel %vm227, %v1212, %v1188
        %v1218 = vsel %vm227, %v1214, %v1190
        %s1219 = sld [smem:[#allocation2 + $0x10]]
        %v1220 = vstv %s1219
        %v1221 = vmul.f32 %v1220, %v1215
        %v1222 = vmul.f32 %v1220, %v1216
        %v1223 = vmul.f32 %v1220, %v1217
        %v1224 = vmul.f32 %v1220, %v1218
        %1229 = vrot.lane.b32.xlu0 %v1221, 127
        %v1230 = vpop.permute.xlu0 %1229
        %1231 = vrot.lane.b32.xlu0 %v1222, 127
        %v1232 = vpop.permute.xlu0 %1231
        %1233 = vrot.lane.b32.xlu0 %v1223, 127
        %v1234 = vpop.permute.xlu0 %1233
        %1235 = vrot.lane.b32.xlu0 %v1224, 127
        %v1236 = vpop.permute.xlu0 %1235
        %v1241 = vadd.f32 %v1149, %v1230
        %v1242 = vadd.f32 %v1150, %v1232
        %v1243 = vadd.f32 %v1151, %v1234
        %v1244 = vadd.f32 %v1152, %v1236
        %s1245 = sld [smem:[#allocation2 + $0x22]]
        %v1246 = vstv %s1245
        %v1247 = vmul.f32 %v1246, %v1215
        %v1248 = vmul.f32 %v1246, %v1216
        %v1249 = vmul.f32 %v1246, %v1217
        %v1250 = vmul.f32 %v1246, %v1218
        %1255 = vrot.lane.b32.xlu0 %v1247, 127
        %v1256 = vpop.permute.xlu0 %1255
        %1257 = vrot.lane.b32.xlu0 %v1248, 127
        %v1258 = vpop.permute.xlu0 %1257
        %1259 = vrot.lane.b32.xlu0 %v1249, 127
        %v1260 = vpop.permute.xlu0 %1259
        %1261 = vrot.lane.b32.xlu0 %v1250, 127
        %v1262 = vpop.permute.xlu0 %1261
        %v1267 = vadd.f32 %v1178, %v1256
        %v1268 = vadd.f32 %v1179, %v1258
        %v1269 = vadd.f32 %v1180, %v1260
        %v1270 = vadd.f32 %v1181, %v1262
        %s1271 = sld [smem:[#allocation2 + $0x11]]
        %v1272 = vstv %s1271
        %v1273 = vmul.f32 %v1272, %v1215
        %v1274 = vmul.f32 %v1272, %v1216
        %v1275 = vmul.f32 %v1272, %v1217
        %v1276 = vmul.f32 %v1272, %v1218
        %1281 = vrot.lane.b32.xlu0 %v1273, 126
        %v1282 = vpop.permute.xlu0 %1281
        %1283 = vrot.lane.b32.xlu0 %v1274, 126
        %v1284 = vpop.permute.xlu0 %1283
        %1285 = vrot.lane.b32.xlu0 %v1275, 126
        %v1286 = vpop.permute.xlu0 %1285
        %1287 = vrot.lane.b32.xlu0 %v1276, 126
        %v1288 = vpop.permute.xlu0 %1287
        %v1293 = vadd.f32 %v1241, %v1282
        %v1294 = vadd.f32 %v1242, %v1284
        %v1295 = vadd.f32 %v1243, %v1286
        %v1296 = vadd.f32 %v1244, %v1288
        %s1297 = sld [smem:[#allocation2 + $0x23]]
        %v1298 = vstv %s1297
        %v1299 = vmul.f32 %v1298, %v1215
        %v1300 = vmul.f32 %v1298, %v1216
        %v1301 = vmul.f32 %v1298, %v1217
        %v1302 = vmul.f32 %v1298, %v1218
        %1307 = vrot.lane.b32.xlu0 %v1299, 126
        %v1308 = vpop.permute.xlu0 %1307
        %1309 = vrot.lane.b32.xlu0 %v1300, 126
        %v1310 = vpop.permute.xlu0 %1309
        %1311 = vrot.lane.b32.xlu0 %v1301, 126
        %v1312 = vpop.permute.xlu0 %1311
        %1313 = vrot.lane.b32.xlu0 %v1302, 126
        %v1314 = vpop.permute.xlu0 %1313
        %v1319 = vadd.f32 %v1267, %v1308
        %v1320 = vadd.f32 %v1268, %v1310
        %v1321 = vadd.f32 %v1269, %v1312
        %v1322 = vadd.f32 %v1270, %v1314
        %vm1323 = vcmask 261120
        %1324 = vst.msk [vmem:[%s197] sm:$0xff] %vm1323, %v1293
        %1325 = vst.msk [vmem:[%s197 + $0x8] sm:$0xff] %vm1323, %v1294
        %1326 = vst.msk [vmem:[%s197 + $0x10] sm:$0xff] %vm1323, %v1295
        %1327 = vst.msk [vmem:[%s197 + $0x18] sm:$0xff] %vm1323, %v1296
        %s1328 = scalar_lea.vmem %s197, 32
        %1329 = vst.msk [vmem:[%s1328] sm:$0xff] %vm1323, %v1319
        %1330 = vst.msk [vmem:[%s1328 + $0x8] sm:$0xff] %vm1323, %v1320
        %1331 = vst.msk [vmem:[%s1328 + $0x10] sm:$0xff] %vm1323, %v1321
        %1332 = vst.msk [vmem:[%s1328 + $0x18] sm:$0xff] %vm1323, %v1322
        %p1333 = scmp.lt.s32.totalorder %s16, 1
        %s1334 = scalar_select %p1333, %s16, 1
        %s1335 = smul.addr %s1334, 8
        %s1336 = smul.addr %s1335, 8
        %s1337 = scalar_lea.vmem %s3, %s1336
        // Predicated region
        $region41: #{feature_predictor_forward.17} parent=31 // pred_check
          %p1338 = pneg %p102
        $region42: #{feature_predictor_forward.17} parent=31 // pred_check_branch
          %1340 = sbr.rel (%p1338) target = $region44
        $region43: #{feature_predictor_forward.17} parent=31 // pred_region
          _
        $region44: #{feature_predictor_forward.17} parent=31 // pred_fallthru
          _
      $region32: #{feature_predictor_forward.17} parent=5 // pred_fallthru
        _
      %p1341 = scmp.le.s32.totalorder 2, %s11
      // Predicated region
      $region45: #{feature_predictor_forward.17} parent=5 // pred_check
        %p1342 = pneg %p1341
      $region46: #{feature_predictor_forward.17} parent=5 // pred_check_branch
        %1344 = sbr.rel (%p1342) target = $region48
      $region47: #{feature_predictor_forward.17} parent=5 // pred_region
        %s1345 = ssub.s32 %s11, 2
        // Predicated region
        $region49: #{feature_predictor_forward.17} parent=47 // pred_check
          %p1346 = pneg %p108
        $region50: #{feature_predictor_forward.17} parent=47 // pred_check_branch
          %1348 = sbr.rel (%p1346) target = $region52
        $region51: #{feature_predictor_forward.17} parent=47 // pred_region
          %p1349 = scmp.lt.s32.totalorder %s17, 1
          %s1350 = scalar_select %p1349, %s17, 1
          %s1351 = smul.addr %s1350, 8
          %s1352 = smul.addr %s1351, 8
          %s1353 = scalar_lea.vmem %s3, %s1352
        $region52: #{feature_predictor_forward.17} parent=47 // pred_fallthru
          _
      $region48: #{feature_predictor_forward.17} parent=5 // pred_fallthru
        _
    $region6: #{feature_predictor_forward.17} parent=1 // loop_footer
      %s15 = sadd.s32 1, %s11
    $region7: #{feature_predictor_forward.17} parent=1 // loop_footer_branch
      %10 = sbr.rel target = $region3
    $region8: #{feature_predictor_forward.17} parent=1 // loop_exit
      _
    %1354 = vsyncpa [#allocation3], 1
    %s1355 = scalar_lea.sflag [#allocation3], 1
    %1356 = vsyncpa %s1355, 1
    %1357 = vsyncpa [#allocation5], 1

// kernel: feature_predictor_forward.18
$region0: #{feature_predictor_forward.18}
  #allocation0 [shape = 'u32[]', space=smem, size = 0x4, offset = 0x4, fixed_abs, tag = 'smem constant byte address 0x4 - core index']
  #allocation1 [shape = 'u32[144,128]{1,0:T(1,128)}', space=vmem, size = 0x12000, scoped, tag = 'internal scratch']
  %s0 = inlined_call_operand.vmem [shape: f32[2,2,66,66], index: 0, kind: input, shape index: {}]
  %s1 = inlined_call_operand.vmem [shape: f32[36], index: 1, kind: input, shape index: {}]
  %s2 = inlined_call_operand.vmem [shape: f32[2], index: 2, kind: input, shape index: {}]
  %s3 = inlined_call_operand.vmem [shape: f32[2,2,64,64], index: 3, kind: output, shape index: {}]
  %s4 = sld [smem:[#allocation0]]
  $region53: #{feature_predictor_forward.18} parent=0
    _
  %s6 = ssub.s32 1, %s4
  %s7 = scalar_select 0, %s6, %s4
  $region1: #{feature_predictor_forward.18} parent=0
    #allocation2 [shape = 'u8[512]{0}', space=smem, size = 0x200, scoped, tag = 'input window, operand 1, single buffered']
    #allocation3 [shape = 's32[2]{0}', space=sflag, size = 0x8, scoped, tag = 'scoped memory for feature_predictor_forward.18']
    #allocation4 [shape = 'u8[512]{0}', space=smem, size = 0x200, scoped, tag = 'input window, operand 2, single buffered']
    #allocation5 [shape = 's32[1]{0}', space=sflag, size = 0x4, scoped, tag = 'scoped memory for feature_predictor_forward.18']
    %8 = vsyncpa [#allocation3], 0
    %9 = vsyncpa [#allocation5], 0
    loop: start=0, step=1, limit=4
    $region2: #{feature_predictor_forward.18} parent=1 // loop_pre_header
      _
    $region3: #{feature_predictor_forward.18} parent=1 // loop_header
      %s11 = sphi 0, %s15
      %p12 = scmp.ge.s32.totalorder %s11, 4
      %s21 = sphi 0, %s23
      %s24 = sphi 0, %s21
      %s25 = sphi 0, %s24
      %s41 = sphi 0, %s25
      %s45 = sphi 0, %s45
      %s47 = sphi 0, %s45
      %s48 = sphi 0, %s47
      %s62 = sphi 0, %s48
      %s66 = sphi 0, %s66
      %s68 = sphi 0, %s66
      %s69 = sphi 0, %s68
      %s83 = sphi 0, %s69
      %s89 = sphi 0, %s91
      %s92 = sphi 0, %s89
      %s93 = sphi 0, %s92
      %s109 = sphi 0, %s93
    $region4: #{feature_predictor_forward.18} parent=1 // loop_header_branch
      %14 = sbr.rel (%p12) target = $region8
    $region5: #{feature_predictor_forward.18} parent=1 // loop_body
      %s16 = ssub.s32 %s11, 1
      %s17 = ssub.s32 %s11, 2
      %s18 = sadd.s32 %s11, 1
      %s19 = ssub.s32 %s11, %s18
      %p20 = scmp.eq.s32.totalorder %s19, 0
      %s22 = sadd.s32 %s21, 1
      %s23 = scalar_select %p20, %s21, %s22
      %p26 = pneg %p20
      %p27 = scmp.eq.s32.totalorder %s11, 1
      %p28 = por %p26, %p27
      %p29 = scmp.ne.s32.totalorder %s21, %s24
      %p30 = scmp.eq.s32.totalorder %s11, 0
      %p31 = por %p29, %p30
      %p32 = scmp.ne.s32.totalorder %s21, %s24
      %p33 = scmp.eq.s32.totalorder %s16, 1
      %p34 = por %p32, %p33
      %p35 = scmp.ne.s32.totalorder %s24, %s25
      %p36 = scmp.eq.s32.totalorder %s16, 0
      %p37 = por %p35, %p36
      %p38 = scmp.ne.s32.totalorder %s24, %s25
      %p39 = scmp.eq.s32.totalorder %s17, 1
      %p40 = por %p38, %p39
      %p42 = scmp.ne.s32.totalorder %s25, %s41
      %p43 = scmp.eq.s32.totalorder %s17, 0
      %p44 = por %p42, %p43
      %s46 = sadd.s32 %s45, 1
      %p49 = scmp.eq.s32.totalorder %s11, 1
      %p50 = scmp.ne.s32.totalorder %s45, %s47
      %p51 = scmp.eq.s32.totalorder %s11, 0
      %p52 = por %p50, %p51
      %p53 = scmp.ne.s32.totalorder %s45, %s47
      %p54 = scmp.eq.s32.totalorder %s16, 1
      %p55 = por %p53, %p54
      %p56 = scmp.ne.s32.totalorder %s47, %s48
      %p57 = scmp.eq.s32.totalorder %s16, 0
      %p58 = por %p56, %p57
      %p59 = scmp.ne.s32.totalorder %s47, %s48
      %p60 = scmp.eq.s32.totalorder %s17, 1
      %p61 = por %p59, %p60
      %p63 = scmp.ne.s32.totalorder %s48, %s62
      %p64 = scmp.eq.s32.totalorder %s17, 0
      %p65 = por %p63, %p64
      %s67 = sadd.s32 %s66, 1
      %p70 = scmp.eq.s32.totalorder %s11, 1
      %p71 = scmp.ne.s32.totalorder %s66, %s68
      %p72 = scmp.eq.s32.totalorder %s11, 0
      %p73 = por %p71, %p72
      %p74 = scmp.ne.s32.totalorder %s66, %s68
      %p75 = scmp.eq.s32.totalorder %s16, 1
      %p76 = por %p74, %p75
      %p77 = scmp.ne.s32.totalorder %s68, %s69
      %p78 = scmp.eq.s32.totalorder %s16, 0
      %p79 = por %p77, %p78
      %p80 = scmp.ne.s32.totalorder %s68, %s69
      %p81 = scmp.eq.s32.totalorder %s17, 1
      %p82 = por %p80, %p81
      %p84 = scmp.ne.s32.totalorder %s69, %s83
      %p85 = scmp.eq.s32.totalorder %s17, 0
      %p86 = por %p84, %p85
      %s87 = ssub.s32 %s11, %s18
      %p88 = scmp.eq.s32.totalorder %s87, 0
      %s90 = sadd.s32 %s89, 1
      %s91 = scalar_select %p88, %s89, %s90
      %p94 = pneg %p88
      %p95 = scmp.eq.s32.totalorder %s11, 1
      %p96 = por %p94, %p95
      %p97 = scmp.ne.s32.totalorder %s89, %s92
      %p98 = scmp.eq.s32.totalorder %s11, 0
      %p99 = por %p97, %p98
      %p100 = scmp.ne.s32.totalorder %s89, %s92
      %p101 = scmp.eq.s32.totalorder %s16, 1
      %p102 = por %p100, %p101
      %p103 = scmp.ne.s32.totalorder %s92, %s93
      %p104 = scmp.eq.s32.totalorder %s16, 0
      %p105 = por %p103, %p104
      %p106 = scmp.ne.s32.totalorder %s92, %s93
      %p107 = scmp.eq.s32.totalorder %s17, 1
      %p108 = por %p106, %p107
      %p110 = scmp.ne.s32.totalorder %s93, %s109
      %p111 = scmp.eq.s32.totalorder %s17, 0
      %p112 = por %p110, %p111
      %p113 = scmp.le.s32.totalorder 1, %s11
      %p114 = scmp.lt.s32.totalorder %s11, 3
      %p115 = pnand %p113, %p114
      %p116 = pneg %p115
      // Predicated region
      $region9: #{feature_predictor_forward.18} parent=5 // pred_check
        _
      $region10: #{feature_predictor_forward.18} parent=5 // pred_check_branch
        %118 = sbr.rel (%p115) target = $region12
      $region11: #{feature_predictor_forward.18} parent=5 // pred_region
        %s119 = ssub.s32 %s11, 1
        // Predicated region
        $region13: #{feature_predictor_forward.18} parent=11 // pred_check
          %p120 = pneg %p58
        $region14: #{feature_predictor_forward.18} parent=11 // pred_check_branch
          %122 = sbr.rel (%p120) target = $region16
        $region15: #{feature_predictor_forward.18} parent=11 // pred_region
          %s124 = ssub.s32 16, 16
          %125 = vsyncadd [#allocation3], %s124
          %s127 = sshll.u32 %s1, 4
          %s128 = int_to_ptr.vmem [resolvable:$true] %s127
          %130 = dma.vmem_to_smem %s128, 16, [#allocation2], [#allocation3]
        $region16: #{feature_predictor_forward.18} parent=11 // pred_fallthru
          _
        // Predicated region
        $region17: #{feature_predictor_forward.18} parent=11 // pred_check
          %p131 = pneg %p79
        $region18: #{feature_predictor_forward.18} parent=11 // pred_check_branch
          %133 = sbr.rel (%p131) target = $region20
        $region19: #{feature_predictor_forward.18} parent=11 // pred_region
          %s135 = ssub.s32 16, 16
          %136 = vsyncadd [#allocation5], %s135
          %s138 = sshll.u32 %s2, 4
          %s139 = int_to_ptr.vmem [resolvable:$true] %s138
          %141 = dma.vmem_to_smem %s139, 16, [#allocation4], [#allocation5]
        $region20: #{feature_predictor_forward.18} parent=11 // pred_fallthru
          _
      $region12: #{feature_predictor_forward.18} parent=5 // pred_fallthru
        _
      %p142 = scmp.lt.s32.totalorder %s11, 2
      // Predicated region
      $region21: #{feature_predictor_forward.18} parent=5 // pred_check
        %p143 = pneg %p142
      $region22: #{feature_predictor_forward.18} parent=5 // pred_check_branch
        %145 = sbr.rel (%p143) target = $region24
      $region23: #{feature_predictor_forward.18} parent=5 // pred_region
        // Predicated region
        $region25: #{feature_predictor_forward.18} parent=23 // pred_check
          %p146 = pneg %p31
        $region26: #{feature_predictor_forward.18} parent=23 // pred_check_branch
          %148 = sbr.rel (%p146) target = $region28
        $region27: #{feature_predictor_forward.18} parent=23 // pred_region
          %p149 = scmp.lt.s32.totalorder %s11, 1
          %s150 = scalar_select %p149, %s11, 1
          %s151 = smul.addr %s150, 18
          %s152 = smul.addr %s151, 8
          %s153 = scalar_lea.vmem %s0, %s152
        $region28: #{feature_predictor_forward.18} parent=23 // pred_fallthru
          _
      $region24: #{feature_predictor_forward.18} parent=5 // pred_fallthru
        _
      %p154 = scmp.le.s32.totalorder 1, %s11
      %p155 = scmp.lt.s32.totalorder %s11, 3
      %p156 = pnand %p154, %p155
      %p157 = pneg %p156
      // Predicated region
      $region29: #{feature_predictor_forward.18} parent=5 // pred_check
        _
      $region30: #{feature_predictor_forward.18} parent=5 // pred_check_branch
        %159 = sbr.rel (%p156) target = $region32
      $region31: #{feature_predictor_forward.18} parent=5 // pred_region
        %s160 = ssub.s32 %s11, 1
        // Predicated region
        $region33: #{feature_predictor_forward.18} parent=31 // pred_check
          %p161 = pneg %p58
        $region34: #{feature_predictor_forward.18} parent=31 // pred_check_branch
          %163 = sbr.rel (%p161) target = $region36
        $region35: #{feature_predictor_forward.18} parent=31 // pred_region
          %164 = dma.done [#allocation3], 16
        $region36: #{feature_predictor_forward.18} parent=31 // pred_fallthru
          _
        // Predicated region
        $region37: #{feature_predictor_forward.18} parent=31 // pred_check
          %p165 = pneg %p79
        $region38: #{feature_predictor_forward.18} parent=31 // pred_check_branch
          %167 = sbr.rel (%p165) target = $region40
        $region39: #{feature_predictor_forward.18} parent=31 // pred_region
          %168 = dma.done [#allocation5], 16
        $region40: #{feature_predictor_forward.18} parent=31 // pred_fallthru
          _
        %169 = sfence
        %p170 = scmp.lt.s32.totalorder %s16, 1
        %s171 = scalar_select %p170, %s16, 1
        %s172 = smul.addr %s171, 18
        %s173 = smul.addr %s172, 8
        %s174 = scalar_lea.vmem %s0, %s173
        %p175 = pneg %p37
        %p176 = pneg %p34
        %p177 = pneg %p58
        %p178 = pneg %p55
        %p179 = pneg %p79
        %p180 = pneg %p76
        %p181 = pneg %p105
        %p182 = pneg %p102
        %p183 = scmp.lt.s32.totalorder %s16, 1
        %s184 = scalar_select %p183, %s16, 1
        %s185 = smul.addr %s184, 16
        %s186 = smul.addr %s185, 8
        %s187 = scalar_lea.vmem %s3, %s186
        %p188 = scmp.lt.s32.totalorder %s16, 1
        %s189 = scalar_select %p188, %s16, 1
        %s190 = smul.addr %s189, 18
        %s191 = smul.addr %s190, 8
        %s192 = scalar_lea.vmem %s0, %s191
        %p193 = scmp.lt.s32.totalorder %s16, 1
        %s194 = scalar_select %p193, %s16, 1
        %s195 = smul.addr %s194, 16
        %s196 = smul.addr %s195, 8
        %s197 = scalar_lea.vmem %s3, %s196
        %s198 = sld [smem:[#allocation4]]
        %v199 = vstv %s198
        %s200 = sld [smem:[#allocation4 + $0x1]]
        %v201 = vstv %s200
        %v202 = vld [vmem:[%s192] sm:$0xff]
        %v203 = vld [vmem:[%s192 + $0x8] sm:$0xff]
        %v204 = vld [vmem:[%s192 + $0x10] sm:$0xff]
        %v205 = vld [vmem:[%s192 + $0x18] sm:$0xff]
        %v206 = vld [vmem:[%s192 + $0x20] sm:$0xff]
        %v207 = vld [vmem:[%s192 + $0x28] sm:$0xff]
        %v208 = vld [vmem:[%s192 + $0x30] sm:$0xff]
        %v209 = vld [vmem:[%s192 + $0x38] sm:$0xff]
        %v210 = vld [vmem:[%s192 + $0x40] sm:$0x3]
        %s211 = sld [smem:[#allocation2]]
        %v212 = vstv %s211
        %v213 = vmul.f32 %v212, %v202
        %v214 = vmul.f32 %v212, %v203
        %v215 = vmul.f32 %v212, %v204
        %v216 = vmul.f32 %v212, %v205
        %v217 = vmul.f32 %v212, %v206
        %v218 = vmul.f32 %v212, %v207
        %v219 = vmul.f32 %v212, %v208
        %v220 = vmul.f32 %v212, %v209
        %v221 = vadd.f32 %v199, %v213
        %v222 = vadd.f32 %v199, %v214
        %v223 = vadd.f32 %v199, %v215
        %v224 = vadd.f32 %v199, %v216
        %v225 = vadd.f32 %v199, %v217
        %v226 = vadd.f32 %v199, %v218
        %v227 = vadd.f32 %v199, %v219
        %v228 = vadd.f32 %v199, %v220
        %s229 = sld [smem:[#allocation2 + $0x12]]
        %v230 = vstv %s229
        %v231 = vmul.f32 %v230, %v202
        %v232 = vmul.f32 %v230, %v203
        %v233 = vmul.f32 %v230, %v204
        %v234 = vmul.f32 %v230, %v205
        %v235 = vmul.f32 %v230, %v206
        %v236 = vmul.f32 %v230, %v207
        %v237 = vmul.f32 %v230, %v208
        %v238 = vmul.f32 %v230, %v209
        %v239 = vadd.f32 %v201, %v231
        %v240 = vadd.f32 %v201, %v232
        %v241 = vadd.f32 %v201, %v233
        %v242 = vadd.f32 %v201, %v234
        %v243 = vadd.f32 %v201, %v235
        %v244 = vadd.f32 %v201, %v236
        %v245 = vadd.f32 %v201, %v237
        %v246 = vadd.f32 %v201, %v238
        %vm247 = vcmask 1048080
        %248 = vrot.lane.b32.xlu0 %v202, 66
        %v249 = vpop.permute.xlu0 %248
        %v250 = vsel %vm247, %v249, %v202
        %251 = vrot.lane.b32.xlu0 %v203, 66
        %v252 = vpop.permute.xlu0 %251
        %v253 = vsel %vm247, %v252, %v203
        %254 = vrot.lane.b32.xlu0 %v204, 66
        %v255 = vpop.permute.xlu0 %254
        %v256 = vsel %vm247, %v255, %v204
        %257 = vrot.lane.b32.xlu0 %v205, 66
        %v258 = vpop.permute.xlu0 %257
        %v259 = vsel %vm247, %v258, %v205
        %260 = vrot.lane.b32.xlu0 %v206, 66
        %v261 = vpop.permute.xlu0 %260
        %v262 = vsel %vm247, %v261, %v206
        %263 = vrot.lane.b32.xlu0 %v207, 66
        %v264 = vpop.permute.xlu0 %263
        %v265 = vsel %vm247, %v264, %v207
        %266 = vrot.lane.b32.xlu0 %v208, 66
        %v267 = vpop.permute.xlu0 %266
        %v268 = vsel %vm247, %v267, %v208
        %269 = vrot.lane.b32.xlu0 %v209, 66
        %v270 = vpop.permute.xlu0 %269
        %v271 = vsel %vm247, %v270, %v209
        %272 = vrot.lane.b32.xlu0 %v250, 66
        %v273 = vpop.permute.xlu0 %272
        %274 = vrot.lane.b32.xlu0 %v253, 66
        %v275 = vpop.permute.xlu0 %274
        %276 = vrot.lane.b32.xlu0 %v256, 66
        %v277 = vpop.permute.xlu0 %276
        %278 = vrot.lane.b32.xlu0 %v259, 66
        %v279 = vpop.permute.xlu0 %278
        %280 = vrot.lane.b32.xlu0 %v262, 66
        %v281 = vpop.permute.xlu0 %280
        %282 = vrot.lane.b32.xlu0 %v265, 66
        %v283 = vpop.permute.xlu0 %282
        %284 = vrot.lane.b32.xlu0 %v268, 66
        %v285 = vpop.permute.xlu0 %284
        %286 = vrot.lane.b32.xlu0 %v271, 66
        %v287 = vpop.permute.xlu0 %286
        %v288 = vsel %vm247, %v273, %v202
        %v289 = vsel %vm247, %v275, %v203
        %v290 = vsel %vm247, %v277, %v204
        %v291 = vsel %vm247, %v279, %v205
        %v292 = vsel %vm247, %v281, %v206
        %v293 = vsel %vm247, %v283, %v207
        %v294 = vsel %vm247, %v285, %v208
        %v295 = vsel %vm247, %v287, %v209
        %s296 = sld [smem:[#allocation2 + $0x1]]
        %v297 = vstv %s296
        %v298 = vmul.f32 %v297, %v288
        %v299 = vmul.f32 %v297, %v289
        %v300 = vmul.f32 %v297, %v290
        %v301 = vmul.f32 %v297, %v291
        %v302 = vmul.f32 %v297, %v292
        %v303 = vmul.f32 %v297, %v293
        %v304 = vmul.f32 %v297, %v294
        %v305 = vmul.f32 %v297, %v295
        %314 = vrot.lane.b32.xlu0 %v298, 127
        %v315 = vpop.permute.xlu0 %314
        %316 = vrot.lane.b32.xlu0 %v299, 127
        %v317 = vpop.permute.xlu0 %316
        %318 = vrot.lane.b32.xlu0 %v300, 127
        %v319 = vpop.permute.xlu0 %318
        %320 = vrot.lane.b32.xlu0 %v301, 127
        %v321 = vpop.permute.xlu0 %320
        %322 = vrot.lane.b32.xlu0 %v302, 127
        %v323 = vpop.permute.xlu0 %322
        %324 = vrot.lane.b32.xlu0 %v303, 127
        %v325 = vpop.permute.xlu0 %324
        %326 = vrot.lane.b32.xlu0 %v304, 127
        %v327 = vpop.permute.xlu0 %326
        %328 = vrot.lane.b32.xlu0 %v305, 127
        %v329 = vpop.permute.xlu0 %328
        %v338 = vadd.f32 %v221, %v315
        %v339 = vadd.f32 %v222, %v317
        %v340 = vadd.f32 %v223, %v319
        %v341 = vadd.f32 %v224, %v321
        %v342 = vadd.f32 %v225, %v323
        %v343 = vadd.f32 %v226, %v325
        %v344 = vadd.f32 %v227, %v327
        %v345 = vadd.f32 %v228, %v329
        %s346 = sld [smem:[#allocation2 + $0x13]]
        %v347 = vstv %s346
        %v348 = vmul.f32 %v347, %v288
        %v349 = vmul.f32 %v347, %v289
        %v350 = vmul.f32 %v347, %v290
        %v351 = vmul.f32 %v347, %v291
        %v352 = vmul.f32 %v347, %v292
        %v353 = vmul.f32 %v347, %v293
        %v354 = vmul.f32 %v347, %v294
        %v355 = vmul.f32 %v347, %v295
        %364 = vrot.lane.b32.xlu0 %v348, 127
        %v365 = vpop.permute.xlu0 %364
        %366 = vrot.lane.b32.xlu0 %v349, 127
        %v367 = vpop.permute.xlu0 %366
        %368 = vrot.lane.b32.xlu0 %v350, 127
        %v369 = vpop.permute.xlu0 %368
        %370 = vrot.lane.b32.xlu0 %v351, 127
        %v371 = vpop.permute.xlu0 %370
        %372 = vrot.lane.b32.xlu0 %v352, 127
        %v373 = vpop.permute.xlu0 %372
        %374 = vrot.lane.b32.xlu0 %v353, 127
        %v375 = vpop.permute.xlu0 %374
        %376 = vrot.lane.b32.xlu0 %v354, 127
        %v377 = vpop.permute.xlu0 %376
        %378 = vrot.lane.b32.xlu0 %v355, 127
        %v379 = vpop.permute.xlu0 %378
        %v388 = vadd.f32 %v239, %v365
        %v389 = vadd.f32 %v240, %v367
        %v390 = vadd.f32 %v241, %v369
        %v391 = vadd.f32 %v242, %v371
        %v392 = vadd.f32 %v243, %v373
        %v393 = vadd.f32 %v244, %v375
        %v394 = vadd.f32 %v245, %v377
        %v395 = vadd.f32 %v246, %v379
        %s396 = sld [smem:[#allocation2 + $0x2]]
        %v397 = vstv %s396
        %v398 = vmul.f32 %v397, %v288
        %v399 = vmul.f32 %v397, %v289
        %v400 = vmul.f32 %v397, %v290
        %v401 = vmul.f32 %v397, %v291
        %v402 = vmul.f32 %v397, %v292
        %v403 = vmul.f32 %v397, %v293
        %v404 = vmul.f32 %v397, %v294
        %v405 = vmul.f32 %v397, %v295
        %414 = vrot.lane.b32.xlu0 %v398, 126
        %v415 = vpop.permute.xlu0 %414
        %416 = vrot.lane.b32.xlu0 %v399, 126
        %v417 = vpop.permute.xlu0 %416
        %418 = vrot.lane.b32.xlu0 %v400, 126
        %v419 = vpop.permute.xlu0 %418
        %420 = vrot.lane.b32.xlu0 %v401, 126
        %v421 = vpop.permute.xlu0 %420
        %422 = vrot.lane.b32.xlu0 %v402, 126
        %v423 = vpop.permute.xlu0 %422
        %424 = vrot.lane.b32.xlu0 %v403, 126
        %v425 = vpop.permute.xlu0 %424
        %426 = vrot.lane.b32.xlu0 %v404, 126
        %v427 = vpop.permute.xlu0 %426
        %428 = vrot.lane.b32.xlu0 %v405, 126
        %v429 = vpop.permute.xlu0 %428
        %v438 = vadd.f32 %v338, %v415
        %v439 = vadd.f32 %v339, %v417
        %v440 = vadd.f32 %v340, %v419
        %v441 = vadd.f32 %v341, %v421
        %v442 = vadd.f32 %v342, %v423
        %v443 = vadd.f32 %v343, %v425
        %v444 = vadd.f32 %v344, %v427
        %v445 = vadd.f32 %v345, %v429
        %s446 = sld [smem:[#allocation2 + $0x14]]
        %v447 = vstv %s446
        %v448 = vmul.f32 %v447, %v288
        %v449 = vmul.f32 %v447, %v289
        %v450 = vmul.f32 %v447, %v290
        %v451 = vmul.f32 %v447, %v291
        %v452 = vmul.f32 %v447, %v292
        %v453 = vmul.f32 %v447, %v293
        %v454 = vmul.f32 %v447, %v294
        %v455 = vmul.f32 %v447, %v295
        %464 = vrot.lane.b32.xlu0 %v448, 126
        %v465 = vpop.permute.xlu0 %464
        %466 = vrot.lane.b32.xlu0 %v449, 126
        %v467 = vpop.permute.xlu0 %466
        %468 = vrot.lane.b32.xlu0 %v450, 126
        %v469 = vpop.permute.xlu0 %468
        %470 = vrot.lane.b32.xlu0 %v451, 126
        %v471 = vpop.permute.xlu0 %470
        %472 = vrot.lane.b32.xlu0 %v452, 126
        %v473 = vpop.permute.xlu0 %472
        %474 = vrot.lane.b32.xlu0 %v453, 126
        %v475 = vpop.permute.xlu0 %474
        %476 = vrot.lane.b32.xlu0 %v454, 126
        %v477 = vpop.permute.xlu0 %476
        %478 = vrot.lane.b32.xlu0 %v455, 126
        %v479 = vpop.permute.xlu0 %478
        %v488 = vadd.f32 %v388, %v465
        %v489 = vadd.f32 %v389, %v467
        %v490 = vadd.f32 %v390, %v469
        %v491 = vadd.f32 %v391, %v471
        %v492 = vadd.f32 %v392, %v473
        %v493 = vadd.f32 %v393, %v475
        %v494 = vadd.f32 %v394, %v477
        %v495 = vadd.f32 %v395, %v479
        %vm496 = vcmask 1047554
        %v497 = vrot.slane %v202, 6
        %v498 = vsel %vm496, %v497, %v210
        %s499 = sld [smem:[#allocation2 + $0x3]]
        %v500 = vstv %s499
        %v501 = vmul.f32 %v500, %v202
        %v502 = vmul.f32 %v500, %v203
        %v503 = vmul.f32 %v500, %v204
        %v504 = vmul.f32 %v500, %v205
        %v505 = vmul.f32 %v500, %v206
        %v506 = vmul.f32 %v500, %v207
        %v507 = vmul.f32 %v500, %v208
        %v508 = vmul.f32 %v500, %v209
        %v509 = vmul.f32 %v500, %v498
        %vm519 = vcmask 1046528
        %v520 = vrot.slane %v501, 1
        %v521 = vrot.slane %v502, 1
        %v522 = vsel %vm519, %v520, %v521
        %v523 = vrot.slane %v503, 1
        %v524 = vsel %vm519, %v521, %v523
        %v525 = vrot.slane %v504, 1
        %v526 = vsel %vm519, %v523, %v525
        %v527 = vrot.slane %v505, 1
        %v528 = vsel %vm519, %v525, %v527
        %v529 = vrot.slane %v506, 1
        %v530 = vsel %vm519, %v527, %v529
        %v531 = vrot.slane %v507, 1
        %v532 = vsel %vm519, %v529, %v531
        %v533 = vrot.slane %v508, 1
        %v534 = vsel %vm519, %v531, %v533
        %v535 = vrot.slane %v509, 1
        %v536 = vsel %vm519, %v533, %v535
        %v545 = vadd.f32 %v438, %v522
        %v546 = vadd.f32 %v439, %v524
        %v547 = vadd.f32 %v440, %v526
        %v548 = vadd.f32 %v441, %v528
        %v549 = vadd.f32 %v442, %v530
        %v550 = vadd.f32 %v443, %v532
        %v551 = vadd.f32 %v444, %v534
        %v552 = vadd.f32 %v445, %v536
        %s553 = sld [smem:[#allocation2 + $0x15]]
        %v554 = vstv %s553
        %v555 = vmul.f32 %v554, %v202
        %v556 = vmul.f32 %v554, %v203
        %v557 = vmul.f32 %v554, %v204
        %v558 = vmul.f32 %v554, %v205
        %v559 = vmul.f32 %v554, %v206
        %v560 = vmul.f32 %v554, %v207
        %v561 = vmul.f32 %v554, %v208
        %v562 = vmul.f32 %v554, %v209
        %v563 = vmul.f32 %v554, %v498
        %v573 = vrot.slane %v555, 1
        %v574 = vrot.slane %v556, 1
        %v575 = vsel %vm519, %v573, %v574
        %v576 = vrot.slane %v557, 1
        %v577 = vsel %vm519, %v574, %v576
        %v578 = vrot.slane %v558, 1
        %v579 = vsel %vm519, %v576, %v578
        %v580 = vrot.slane %v559, 1
        %v581 = vsel %vm519, %v578, %v580
        %v582 = vrot.slane %v560, 1
        %v583 = vsel %vm519, %v580, %v582
        %v584 = vrot.slane %v561, 1
        %v585 = vsel %vm519, %v582, %v584
        %v586 = vrot.slane %v562, 1
        %v587 = vsel %vm519, %v584, %v586
        %v588 = vrot.slane %v563, 1
        %v589 = vsel %vm519, %v586, %v588
        %v598 = vadd.f32 %v488, %v575
        %v599 = vadd.f32 %v489, %v577
        %v600 = vadd.f32 %v490, %v579
        %v601 = vadd.f32 %v491, %v581
        %v602 = vadd.f32 %v492, %v583
        %v603 = vadd.f32 %v493, %v585
        %v604 = vadd.f32 %v494, %v587
        %v605 = vadd.f32 %v495, %v589
        %v615 = vrot.slane %v202, 1
        %v616 = vrot.slane %v203, 1
        %v617 = vsel %vm519, %v615, %v616
        %v618 = vrot.slane %v204, 1
        %v619 = vsel %vm519, %v616, %v618
        %v620 = vrot.slane %v205, 1
        %v621 = vsel %vm519, %v618, %v620
        %v622 = vrot.slane %v206, 1
        %v623 = vsel %vm519, %v620, %v622
        %v624 = vrot.slane %v207, 1
        %v625 = vsel %vm519, %v622, %v624
        %v626 = vrot.slane %v208, 1
        %v627 = vsel %vm519, %v624, %v626
        %v628 = vrot.slane %v209, 1
        %v629 = vsel %vm519, %v626, %v628
        %v630 = vrot.slane %v498, 1
        %v631 = vsel %vm519, %v628, %v630
        %640 = vrot.lane.b32.xlu0 %v617, 66
        %v641 = vpop.permute.xlu0 %640
        %v642 = vsel %vm247, %v641, %v617
        %643 = vrot.lane.b32.xlu0 %v619, 66
        %v644 = vpop.permute.xlu0 %643
        %v645 = vsel %vm247, %v644, %v619
        %646 = vrot.lane.b32.xlu0 %v621, 66
        %v647 = vpop.permute.xlu0 %646
        %v648 = vsel %vm247, %v647, %v621
        %649 = vrot.lane.b32.xlu0 %v623, 66
        %v650 = vpop.permute.xlu0 %649
        %v651 = vsel %vm247, %v650, %v623
        %652 = vrot.lane.b32.xlu0 %v625, 66
        %v653 = vpop.permute.xlu0 %652
        %v654 = vsel %vm247, %v653, %v625
        %655 = vrot.lane.b32.xlu0 %v627, 66
        %v656 = vpop.permute.xlu0 %655
        %v657 = vsel %vm247, %v656, %v627
        %658 = vrot.lane.b32.xlu0 %v629, 66
        %v659 = vpop.permute.xlu0 %658
        %v660 = vsel %vm247, %v659, %v629
        %661 = vrot.lane.b32.xlu0 %v631, 66
        %v662 = vpop.permute.xlu0 %661
        %v663 = vsel %vm247, %v662, %v631
        %664 = vrot.lane.b32.xlu0 %v642, 66
        %v665 = vpop.permute.xlu0 %664
        %666 = vrot.lane.b32.xlu0 %v645, 66
        %v667 = vpop.permute.xlu0 %666
        %668 = vrot.lane.b32.xlu0 %v648, 66
        %v669 = vpop.permute.xlu0 %668
        %670 = vrot.lane.b32.xlu0 %v651, 66
        %v671 = vpop.permute.xlu0 %670
        %672 = vrot.lane.b32.xlu0 %v654, 66
        %v673 = vpop.permute.xlu0 %672
        %674 = vrot.lane.b32.xlu0 %v657, 66
        %v675 = vpop.permute.xlu0 %674
        %676 = vrot.lane.b32.xlu0 %v660, 66
        %v677 = vpop.permute.xlu0 %676
        %678 = vrot.lane.b32.xlu0 %v663, 66
        %v679 = vpop.permute.xlu0 %678
        %v680 = vsel %vm247, %v665, %v617
        %v681 = vsel %vm247, %v667, %v619
        %v682 = vsel %vm247, %v669, %v621
        %v683 = vsel %vm247, %v671, %v623
        %v684 = vsel %vm247, %v673, %v625
        %v685 = vsel %vm247, %v675, %v627
        %v686 = vsel %vm247, %v677, %v629
        %v687 = vsel %vm247, %v679, %v631
        %s688 = sld [smem:[#allocation2 + $0x4]]
        %v689 = vstv %s688
        %v690 = vmul.f32 %v689, %v680
        %v691 = vmul.f32 %v689, %v681
        %v692 = vmul.f32 %v689, %v682
        %v693 = vmul.f32 %v689, %v683
        %v694 = vmul.f32 %v689, %v684
        %v695 = vmul.f32 %v689, %v685
        %v696 = vmul.f32 %v689, %v686
        %v697 = vmul.f32 %v689, %v687
        %706 = vrot.lane.b32.xlu0 %v690, 127
        %v707 = vpop.permute.xlu0 %706
        %708 = vrot.lane.b32.xlu0 %v691, 127
        %v709 = vpop.permute.xlu0 %708
        %710 = vrot.lane.b32.xlu0 %v692, 127
        %v711 = vpop.permute.xlu0 %710
        %712 = vrot.lane.b32.xlu0 %v693, 127
        %v713 = vpop.permute.xlu0 %712
        %714 = vrot.lane.b32.xlu0 %v694, 127
        %v715 = vpop.permute.xlu0 %714
        %716 = vrot.lane.b32.xlu0 %v695, 127
        %v717 = vpop.permute.xlu0 %716
        %718 = vrot.lane.b32.xlu0 %v696, 127
        %v719 = vpop.permute.xlu0 %718
        %720 = vrot.lane.b32.xlu0 %v697, 127
        %v721 = vpop.permute.xlu0 %720
        %v730 = vadd.f32 %v545, %v707
        %v731 = vadd.f32 %v546, %v709
        %v732 = vadd.f32 %v547, %v711
        %v733 = vadd.f32 %v548, %v713
        %v734 = vadd.f32 %v549, %v715
        %v735 = vadd.f32 %v550, %v717
        %v736 = vadd.f32 %v551, %v719
        %v737 = vadd.f32 %v552, %v721
        %s738 = sld [smem:[#allocation2 + $0x16]]
        %v739 = vstv %s738
        %v740 = vmul.f32 %v739, %v680
        %v741 = vmul.f32 %v739, %v681
        %v742 = vmul.f32 %v739, %v682
        %v743 = vmul.f32 %v739, %v683
        %v744 = vmul.f32 %v739, %v684
        %v745 = vmul.f32 %v739, %v685
        %v746 = vmul.f32 %v739, %v686
        %v747 = vmul.f32 %v739, %v687
        %756 = vrot.lane.b32.xlu0 %v740, 127
        %v757 = vpop.permute.xlu0 %756
        %758 = vrot.lane.b32.xlu0 %v741, 127
        %v759 = vpop.permute.xlu0 %758
        %760 = vrot.lane.b32.xlu0 %v742, 127
        %v761 = vpop.permute.xlu0 %760
        %762 = vrot.lane.b32.xlu0 %v743, 127
        %v763 = vpop.permute.xlu0 %762
        %764 = vrot.lane.b32.xlu0 %v744, 127
        %v765 = vpop.permute.xlu0 %764
        %766 = vrot.lane.b32.xlu0 %v745, 127
        %v767 = vpop.permute.xlu0 %766
        %768 = vrot.lane.b32.xlu0 %v746, 127
        %v769 = vpop.permute.xlu0 %768
        %770 = vrot.lane.b32.xlu0 %v747, 127
        %v771 = vpop.permute.xlu0 %770
        %v780 = vadd.f32 %v598, %v757
        %v781 = vadd.f32 %v599, %v759
        %v782 = vadd.f32 %v600, %v761
        %v783 = vadd.f32 %v601, %v763
        %v784 = vadd.f32 %v602, %v765
        %v785 = vadd.f32 %v603, %v767
        %v786 = vadd.f32 %v604, %v769
        %v787 = vadd.f32 %v605, %v771
        %s788 = sld [smem:[#allocation2 + $0x5]]
        %v789 = vstv %s788
        %v790 = vmul.f32 %v789, %v680
        %v791 = vmul.f32 %v789, %v681
        %v792 = vmul.f32 %v789, %v682
        %v793 = vmul.f32 %v789, %v683
        %v794 = vmul.f32 %v789, %v684
        %v795 = vmul.f32 %v789, %v685
        %v796 = vmul.f32 %v789, %v686
        %v797 = vmul.f32 %v789, %v687
        %806 = vrot.lane.b32.xlu0 %v790, 126
        %v807 = vpop.permute.xlu0 %806
        %808 = vrot.lane.b32.xlu0 %v791, 126
        %v809 = vpop.permute.xlu0 %808
        %810 = vrot.lane.b32.xlu0 %v792, 126
        %v811 = vpop.permute.xlu0 %810
        %812 = vrot.lane.b32.xlu0 %v793, 126
        %v813 = vpop.permute.xlu0 %812
        %814 = vrot.lane.b32.xlu0 %v794, 126
        %v815 = vpop.permute.xlu0 %814
        %816 = vrot.lane.b32.xlu0 %v795, 126
        %v817 = vpop.permute.xlu0 %816
        %818 = vrot.lane.b32.xlu0 %v796, 126
        %v819 = vpop.permute.xlu0 %818
        %820 = vrot.lane.b32.xlu0 %v797, 126
        %v821 = vpop.permute.xlu0 %820
        %v830 = vadd.f32 %v730, %v807
        %v831 = vadd.f32 %v731, %v809
        %v832 = vadd.f32 %v732, %v811
        %v833 = vadd.f32 %v733, %v813
        %v834 = vadd.f32 %v734, %v815
        %v835 = vadd.f32 %v735, %v817
        %v836 = vadd.f32 %v736, %v819
        %v837 = vadd.f32 %v737, %v821
        %s838 = sld [smem:[#allocation2 + $0x17]]
        %v839 = vstv %s838
        %v840 = vmul.f32 %v839, %v680
        %v841 = vmul.f32 %v839, %v681
        %v842 = vmul.f32 %v839, %v682
        %v843 = vmul.f32 %v839, %v683
        %v844 = vmul.f32 %v839, %v684
        %v845 = vmul.f32 %v839, %v685
        %v846 = vmul.f32 %v839, %v686
        %v847 = vmul.f32 %v839, %v687
        %856 = vrot.lane.b32.xlu0 %v840, 126
        %v857 = vpop.permute.xlu0 %856
        %858 = vrot.lane.b32.xlu0 %v841, 126
        %v859 = vpop.permute.xlu0 %858
        %860 = vrot.lane.b32.xlu0 %v842, 126
        %v861 = vpop.permute.xlu0 %860
        %862 = vrot.lane.b32.xlu0 %v843, 126
        %v863 = vpop.permute.xlu0 %862
        %864 = vrot.lane.b32.xlu0 %v844, 126
        %v865 = vpop.permute.xlu0 %864
        %866 = vrot.lane.b32.xlu0 %v845, 126
        %v867 = vpop.permute.xlu0 %866
        %868 = vrot.lane.b32.xlu0 %v846, 126
        %v869 = vpop.permute.xlu0 %868
        %870 = vrot.lane.b32.xlu0 %v847, 126
        %v871 = vpop.permute.xlu0 %870
        %v880 = vadd.f32 %v780, %v857
        %v881 = vadd.f32 %v781, %v859
        %v882 = vadd.f32 %v782, %v861
        %v883 = vadd.f32 %v783, %v863
        %v884 = vadd.f32 %v784, %v865
        %v885 = vadd.f32 %v785, %v867
        %v886 = vadd.f32 %v786, %v869
        %v887 = vadd.f32 %v787, %v871
        %s888 = sld [smem:[#allocation2 + $0x6]]
        %v889 = vstv %s888
        %v890 = vmul.f32 %v889, %v202
        %v891 = vmul.f32 %v889, %v203
        %v892 = vmul.f32 %v889, %v204
        %v893 = vmul.f32 %v889, %v205
        %v894 = vmul.f32 %v889, %v206
        %v895 = vmul.f32 %v889, %v207
        %v896 = vmul.f32 %v889, %v208
        %v897 = vmul.f32 %v889, %v209
        %v898 = vmul.f32 %v889, %v498
        %vm908 = vcmask 1045504
        %v909 = vrot.slane %v890, 2
        %v910 = vrot.slane %v891, 2
        %v911 = vsel %vm908, %v909, %v910
        %v912 = vrot.slane %v892, 2
        %v913 = vsel %vm908, %v910, %v912
        %v914 = vrot.slane %v893, 2
        %v915 = vsel %vm908, %v912, %v914
        %v916 = vrot.slane %v894, 2
        %v917 = vsel %vm908, %v914, %v916
        %v918 = vrot.slane %v895, 2
        %v919 = vsel %vm908, %v916, %v918
        %v920 = vrot.slane %v896, 2
        %v921 = vsel %vm908, %v918, %v920
        %v922 = vrot.slane %v897, 2
        %v923 = vsel %vm908, %v920, %v922
        %v924 = vrot.slane %v898, 2
        %v925 = vsel %vm908, %v922, %v924
        %v934 = vadd.f32 %v830, %v911
        %v935 = vadd.f32 %v831, %v913
        %v936 = vadd.f32 %v832, %v915
        %v937 = vadd.f32 %v833, %v917
        %v938 = vadd.f32 %v834, %v919
        %v939 = vadd.f32 %v835, %v921
        %v940 = vadd.f32 %v836, %v923
        %v941 = vadd.f32 %v837, %v925
        %s942 = sld [smem:[#allocation2 + $0x18]]
        %v943 = vstv %s942
        %v944 = vmul.f32 %v943, %v202
        %v945 = vmul.f32 %v943, %v203
        %v946 = vmul.f32 %v943, %v204
        %v947 = vmul.f32 %v943, %v205
        %v948 = vmul.f32 %v943, %v206
        %v949 = vmul.f32 %v943, %v207
        %v950 = vmul.f32 %v943, %v208
        %v951 = vmul.f32 %v943, %v209
        %v952 = vmul.f32 %v943, %v498
        %v962 = vrot.slane %v944, 2
        %v963 = vrot.slane %v945, 2
        %v964 = vsel %vm908, %v962, %v963
        %v965 = vrot.slane %v946, 2
        %v966 = vsel %vm908, %v963, %v965
        %v967 = vrot.slane %v947, 2
        %v968 = vsel %vm908, %v965, %v967
        %v969 = vrot.slane %v948, 2
        %v970 = vsel %vm908, %v967, %v969
        %v971 = vrot.slane %v949, 2
        %v972 = vsel %vm908, %v969, %v971
        %v973 = vrot.slane %v950, 2
        %v974 = vsel %vm908, %v971, %v973
        %v975 = vrot.slane %v951, 2
        %v976 = vsel %vm908, %v973, %v975
        %v977 = vrot.slane %v952, 2
        %v978 = vsel %vm908, %v975, %v977
        %v987 = vadd.f32 %v880, %v964
        %v988 = vadd.f32 %v881, %v966
        %v989 = vadd.f32 %v882, %v968
        %v990 = vadd.f32 %v883, %v970
        %v991 = vadd.f32 %v884, %v972
        %v992 = vadd.f32 %v885, %v974
        %v993 = vadd.f32 %v886, %v976
        %v994 = vadd.f32 %v887, %v978
        %v995 = vrot.slane %v202, 2
        %v996 = vrot.slane %v203, 2
        %v997 = vsel %vm908, %v995, %v996
        %v998 = vrot.slane %v204, 2
        %v999 = vsel %vm908, %v996, %v998
        %v1000 = vrot.slane %v205, 2
        %v1001 = vsel %vm908, %v998, %v1000
        %v1002 = vrot.slane %v206, 2
        %v1003 = vsel %vm908, %v1000, %v1002
        %v1004 = vrot.slane %v207, 2
        %v1005 = vsel %vm908, %v1002, %v1004
        %v1006 = vrot.slane %v208, 2
        %v1007 = vsel %vm908, %v1004, %v1006
        %v1008 = vrot.slane %v209, 2
        %v1009 = vsel %vm908, %v1006, %v1008
        %v1010 = vrot.slane %v498, 2
        %v1011 = vsel %vm908, %v1008, %v1010
        %1020 = vrot.lane.b32.xlu0 %v997, 66
        %v1021 = vpop.permute.xlu0 %1020
        %v1022 = vsel %vm247, %v1021, %v997
        %1023 = vrot.lane.b32.xlu0 %v999, 66
        %v1024 = vpop.permute.xlu0 %1023
        %v1025 = vsel %vm247, %v1024, %v999
        %1026 = vrot.lane.b32.xlu0 %v1001, 66
        %v1027 = vpop.permute.xlu0 %1026
        %v1028 = vsel %vm247, %v1027, %v1001
        %1029 = vrot.lane.b32.xlu0 %v1003, 66
        %v1030 = vpop.permute.xlu0 %1029
        %v1031 = vsel %vm247, %v1030, %v1003
        %1032 = vrot.lane.b32.xlu0 %v1005, 66
        %v1033 = vpop.permute.xlu0 %1032
        %v1034 = vsel %vm247, %v1033, %v1005
        %1035 = vrot.lane.b32.xlu0 %v1007, 66
        %v1036 = vpop.permute.xlu0 %1035
        %v1037 = vsel %vm247, %v1036, %v1007
        %1038 = vrot.lane.b32.xlu0 %v1009, 66
        %v1039 = vpop.permute.xlu0 %1038
        %v1040 = vsel %vm247, %v1039, %v1009
        %1041 = vrot.lane.b32.xlu0 %v1011, 66
        %v1042 = vpop.permute.xlu0 %1041
        %v1043 = vsel %vm247, %v1042, %v1011
        %1044 = vrot.lane.b32.xlu0 %v1022, 66
        %v1045 = vpop.permute.xlu0 %1044
        %1046 = vrot.lane.b32.xlu0 %v1025, 66
        %v1047 = vpop.permute.xlu0 %1046
        %1048 = vrot.lane.b32.xlu0 %v1028, 66
        %v1049 = vpop.permute.xlu0 %1048
        %1050 = vrot.lane.b32.xlu0 %v1031, 66
        %v1051 = vpop.permute.xlu0 %1050
        %1052 = vrot.lane.b32.xlu0 %v1034, 66
        %v1053 = vpop.permute.xlu0 %1052
        %1054 = vrot.lane.b32.xlu0 %v1037, 66
        %v1055 = vpop.permute.xlu0 %1054
        %1056 = vrot.lane.b32.xlu0 %v1040, 66
        %v1057 = vpop.permute.xlu0 %1056
        %1058 = vrot.lane.b32.xlu0 %v1043, 66
        %v1059 = vpop.permute.xlu0 %1058
        %v1060 = vsel %vm247, %v1045, %v997
        %v1061 = vsel %vm247, %v1047, %v999
        %v1062 = vsel %vm247, %v1049, %v1001
        %v1063 = vsel %vm247, %v1051, %v1003
        %v1064 = vsel %vm247, %v1053, %v1005
        %v1065 = vsel %vm247, %v1055, %v1007
        %v1066 = vsel %vm247, %v1057, %v1009
        %v1067 = vsel %vm247, %v1059, %v1011
        %s1068 = sld [smem:[#allocation2 + $0x7]]
        %v1069 = vstv %s1068
        %v1070 = vmul.f32 %v1069, %v1060
        %v1071 = vmul.f32 %v1069, %v1061
        %v1072 = vmul.f32 %v1069, %v1062
        %v1073 = vmul.f32 %v1069, %v1063
        %v1074 = vmul.f32 %v1069, %v1064
        %v1075 = vmul.f32 %v1069, %v1065
        %v1076 = vmul.f32 %v1069, %v1066
        %v1077 = vmul.f32 %v1069, %v1067
        %1086 = vrot.lane.b32.xlu0 %v1070, 127
        %v1087 = vpop.permute.xlu0 %1086
        %1088 = vrot.lane.b32.xlu0 %v1071, 127
        %v1089 = vpop.permute.xlu0 %1088
        %1090 = vrot.lane.b32.xlu0 %v1072, 127
        %v1091 = vpop.permute.xlu0 %1090
        %1092 = vrot.lane.b32.xlu0 %v1073, 127
        %v1093 = vpop.permute.xlu0 %1092
        %1094 = vrot.lane.b32.xlu0 %v1074, 127
        %v1095 = vpop.permute.xlu0 %1094
        %1096 = vrot.lane.b32.xlu0 %v1075, 127
        %v1097 = vpop.permute.xlu0 %1096
        %1098 = vrot.lane.b32.xlu0 %v1076, 127
        %v1099 = vpop.permute.xlu0 %1098
        %1100 = vrot.lane.b32.xlu0 %v1077, 127
        %v1101 = vpop.permute.xlu0 %1100
        %v1110 = vadd.f32 %v934, %v1087
        %v1111 = vadd.f32 %v935, %v1089
        %v1112 = vadd.f32 %v936, %v1091
        %v1113 = vadd.f32 %v937, %v1093
        %v1114 = vadd.f32 %v938, %v1095
        %v1115 = vadd.f32 %v939, %v1097
        %v1116 = vadd.f32 %v940, %v1099
        %v1117 = vadd.f32 %v941, %v1101
        %s1118 = sld [smem:[#allocation2 + $0x19]]
        %v1119 = vstv %s1118
        %v1120 = vmul.f32 %v1119, %v1060
        %v1121 = vmul.f32 %v1119, %v1061
        %v1122 = vmul.f32 %v1119, %v1062
        %v1123 = vmul.f32 %v1119, %v1063
        %v1124 = vmul.f32 %v1119, %v1064
        %v1125 = vmul.f32 %v1119, %v1065
        %v1126 = vmul.f32 %v1119, %v1066
        %v1127 = vmul.f32 %v1119, %v1067
        %1136 = vrot.lane.b32.xlu0 %v1120, 127
        %v1137 = vpop.permute.xlu0 %1136
        %1138 = vrot.lane.b32.xlu0 %v1121, 127
        %v1139 = vpop.permute.xlu0 %1138
        %1140 = vrot.lane.b32.xlu0 %v1122, 127
        %v1141 = vpop.permute.xlu0 %1140
        %1142 = vrot.lane.b32.xlu0 %v1123, 127
        %v1143 = vpop.permute.xlu0 %1142
        %1144 = vrot.lane.b32.xlu0 %v1124, 127
        %v1145 = vpop.permute.xlu0 %1144
        %1146 = vrot.lane.b32.xlu0 %v1125, 127
        %v1147 = vpop.permute.xlu0 %1146
        %1148 = vrot.lane.b32.xlu0 %v1126, 127
        %v1149 = vpop.permute.xlu0 %1148
        %1150 = vrot.lane.b32.xlu0 %v1127, 127
        %v1151 = vpop.permute.xlu0 %1150
        %v1160 = vadd.f32 %v987, %v1137
        %v1161 = vadd.f32 %v988, %v1139
        %v1162 = vadd.f32 %v989, %v1141
        %v1163 = vadd.f32 %v990, %v1143
        %v1164 = vadd.f32 %v991, %v1145
        %v1165 = vadd.f32 %v992, %v1147
        %v1166 = vadd.f32 %v993, %v1149
        %v1167 = vadd.f32 %v994, %v1151
        %s1168 = sld [smem:[#allocation2 + $0x8]]
        %v1169 = vstv %s1168
        %v1170 = vmul.f32 %v1169, %v1060
        %v1171 = vmul.f32 %v1169, %v1061
        %v1172 = vmul.f32 %v1169, %v1062
        %v1173 = vmul.f32 %v1169, %v1063
        %v1174 = vmul.f32 %v1169, %v1064
        %v1175 = vmul.f32 %v1169, %v1065
        %v1176 = vmul.f32 %v1169, %v1066
        %v1177 = vmul.f32 %v1169, %v1067
        %1186 = vrot.lane.b32.xlu0 %v1170, 126
        %v1187 = vpop.permute.xlu0 %1186
        %1188 = vrot.lane.b32.xlu0 %v1171, 126
        %v1189 = vpop.permute.xlu0 %1188
        %1190 = vrot.lane.b32.xlu0 %v1172, 126
        %v1191 = vpop.permute.xlu0 %1190
        %1192 = vrot.lane.b32.xlu0 %v1173, 126
        %v1193 = vpop.permute.xlu0 %1192
        %1194 = vrot.lane.b32.xlu0 %v1174, 126
        %v1195 = vpop.permute.xlu0 %1194
        %1196 = vrot.lane.b32.xlu0 %v1175, 126
        %v1197 = vpop.permute.xlu0 %1196
        %1198 = vrot.lane.b32.xlu0 %v1176, 126
        %v1199 = vpop.permute.xlu0 %1198
        %1200 = vrot.lane.b32.xlu0 %v1177, 126
        %v1201 = vpop.permute.xlu0 %1200
        %v1210 = vadd.f32 %v1110, %v1187
        %v1211 = vadd.f32 %v1111, %v1189
        %v1212 = vadd.f32 %v1112, %v1191
        %v1213 = vadd.f32 %v1113, %v1193
        %v1214 = vadd.f32 %v1114, %v1195
        %v1215 = vadd.f32 %v1115, %v1197
        %v1216 = vadd.f32 %v1116, %v1199
        %v1217 = vadd.f32 %v1117, %v1201
        %s1218 = sld [smem:[#allocation2 + $0x1a]]
        %v1219 = vstv %s1218
        %v1220 = vmul.f32 %v1219, %v1060
        %v1221 = vmul.f32 %v1219, %v1061
        %v1222 = vmul.f32 %v1219, %v1062
        %v1223 = vmul.f32 %v1219, %v1063
        %v1224 = vmul.f32 %v1219, %v1064
        %v1225 = vmul.f32 %v1219, %v1065
        %v1226 = vmul.f32 %v1219, %v1066
        %v1227 = vmul.f32 %v1219, %v1067
        %1236 = vrot.lane.b32.xlu0 %v1220, 126
        %v1237 = vpop.permute.xlu0 %1236
        %1238 = vrot.lane.b32.xlu0 %v1221, 126
        %v1239 = vpop.permute.xlu0 %1238
        %1240 = vrot.lane.b32.xlu0 %v1222, 126
        %v1241 = vpop.permute.xlu0 %1240
        %1242 = vrot.lane.b32.xlu0 %v1223, 126
        %v1243 = vpop.permute.xlu0 %1242
        %1244 = vrot.lane.b32.xlu0 %v1224, 126
        %v1245 = vpop.permute.xlu0 %1244
        %1246 = vrot.lane.b32.xlu0 %v1225, 126
        %v1247 = vpop.permute.xlu0 %1246
        %1248 = vrot.lane.b32.xlu0 %v1226, 126
        %v1249 = vpop.permute.xlu0 %1248
        %1250 = vrot.lane.b32.xlu0 %v1227, 126
        %v1251 = vpop.permute.xlu0 %1250
        %v1260 = vadd.f32 %v1160, %v1237
        %v1261 = vadd.f32 %v1161, %v1239
        %v1262 = vadd.f32 %v1162, %v1241
        %v1263 = vadd.f32 %v1163, %v1243
        %v1264 = vadd.f32 %v1164, %v1245
        %v1265 = vadd.f32 %v1165, %v1247
        %v1266 = vadd.f32 %v1166, %v1249
        %v1267 = vadd.f32 %v1167, %v1251
        %s1268 = scalar_lea.vmem %s192, 72
        %v1269 = vld [vmem:[%s1268] sm:$0xff]
        %v1270 = vld [vmem:[%s1268 + $0x8] sm:$0xff]
        %v1271 = vld [vmem:[%s1268 + $0x10] sm:$0xff]
        %v1272 = vld [vmem:[%s1268 + $0x18] sm:$0xff]
        %v1273 = vld [vmem:[%s1268 + $0x20] sm:$0xff]
        %v1274 = vld [vmem:[%s1268 + $0x28] sm:$0xff]
        %v1275 = vld [vmem:[%s1268 + $0x30] sm:$0xff]
        %v1276 = vld [vmem:[%s1268 + $0x38] sm:$0xff]
        %v1277 = vld [vmem:[%s1268 + $0x40] sm:$0x3]
        %s1278 = sld [smem:[#allocation2 + $0x9]]
        %v1279 = vstv %s1278
        %v1280 = vmul.f32 %v1279, %v1269
        %v1281 = vmul.f32 %v1279, %v1270
        %v1282 = vmul.f32 %v1279, %v1271
        %v1283 = vmul.f32 %v1279, %v1272
        %v1284 = vmul.f32 %v1279, %v1273
        %v1285 = vmul.f32 %v1279, %v1274
        %v1286 = vmul.f32 %v1279, %v1275
        %v1287 = vmul.f32 %v1279, %v1276
        %v1288 = vadd.f32 %v1210, %v1280
        %v1289 = vadd.f32 %v1211, %v1281
        %v1290 = vadd.f32 %v1212, %v1282
        %v1291 = vadd.f32 %v1213, %v1283
        %v1292 = vadd.f32 %v1214, %v1284
        %v1293 = vadd.f32 %v1215, %v1285
        %v1294 = vadd.f32 %v1216, %v1286
        %v1295 = vadd.f32 %v1217, %v1287
        %s1296 = sld [smem:[#allocation2 + $0x1b]]
        %v1297 = vstv %s1296
        %v1298 = vmul.f32 %v1297, %v1269
        %v1299 = vmul.f32 %v1297, %v1270
        %v1300 = vmul.f32 %v1297, %v1271
        %v1301 = vmul.f32 %v1297, %v1272
        %v1302 = vmul.f32 %v1297, %v1273
        %v1303 = vmul.f32 %v1297, %v1274
        %v1304 = vmul.f32 %v1297, %v1275
        %v1305 = vmul.f32 %v1297, %v1276
        %v1306 = vadd.f32 %v1260, %v1298
        %v1307 = vadd.f32 %v1261, %v1299
        %v1308 = vadd.f32 %v1262, %v1300
        %v1309 = vadd.f32 %v1263, %v1301
        %v1310 = vadd.f32 %v1264, %v1302
        %v1311 = vadd.f32 %v1265, %v1303
        %v1312 = vadd.f32 %v1266, %v1304
        %v1313 = vadd.f32 %v1267, %v1305
        %1314 = vrot.lane.b32.xlu0 %v1269, 66
        %v1315 = vpop.permute.xlu0 %1314
        %v1316 = vsel %vm247, %v1315, %v1269
        %1317 = vrot.lane.b32.xlu0 %v1270, 66
        %v1318 = vpop.permute.xlu0 %1317
        %v1319 = vsel %vm247, %v1318, %v1270
        %1320 = vrot.lane.b32.xlu0 %v1271, 66
        %v1321 = vpop.permute.xlu0 %1320
        %v1322 = vsel %vm247, %v1321, %v1271
        %1323 = vrot.lane.b32.xlu0 %v1272, 66
        %v1324 = vpop.permute.xlu0 %1323
        %v1325 = vsel %vm247, %v1324, %v1272
        %1326 = vrot.lane.b32.xlu0 %v1273, 66
        %v1327 = vpop.permute.xlu0 %1326
        %v1328 = vsel %vm247, %v1327, %v1273
        %1329 = vrot.lane.b32.xlu0 %v1274, 66
        %v1330 = vpop.permute.xlu0 %1329
        %v1331 = vsel %vm247, %v1330, %v1274
        %1332 = vrot.lane.b32.xlu0 %v1275, 66
        %v1333 = vpop.permute.xlu0 %1332
        %v1334 = vsel %vm247, %v1333, %v1275
        %1335 = vrot.lane.b32.xlu0 %v1276, 66
        %v1336 = vpop.permute.xlu0 %1335
        %v1337 = vsel %vm247, %v1336, %v1276
        %1338 = vrot.lane.b32.xlu0 %v1316, 66
        %v1339 = vpop.permute.xlu0 %1338
        %1340 = vrot.lane.b32.xlu0 %v1319, 66
        %v1341 = vpop.permute.xlu0 %1340
        %1342 = vrot.lane.b32.xlu0 %v1322, 66
        %v1343 = vpop.permute.xlu0 %1342
        %1344 = vrot.lane.b32.xlu0 %v1325, 66
        %v1345 = vpop.permute.xlu0 %1344
        %1346 = vrot.lane.b32.xlu0 %v1328, 66
        %v1347 = vpop.permute.xlu0 %1346
        %1348 = vrot.lane.b32.xlu0 %v1331, 66
        %v1349 = vpop.permute.xlu0 %1348
        %1350 = vrot.lane.b32.xlu0 %v1334, 66
        %v1351 = vpop.permute.xlu0 %1350
        %1352 = vrot.lane.b32.xlu0 %v1337, 66
        %v1353 = vpop.permute.xlu0 %1352
        %v1354 = vsel %vm247, %v1339, %v1269
        %v1355 = vsel %vm247, %v1341, %v1270
        %v1356 = vsel %vm247, %v1343, %v1271
        %v1357 = vsel %vm247, %v1345, %v1272
        %v1358 = vsel %vm247, %v1347, %v1273
        %v1359 = vsel %vm247, %v1349, %v1274
        %v1360 = vsel %vm247, %v1351, %v1275
        %v1361 = vsel %vm247, %v1353, %v1276
        %s1362 = sld [smem:[#allocation2 + $0xa]]
        %v1363 = vstv %s1362
        %v1364 = vmul.f32 %v1363, %v1354
        %v1365 = vmul.f32 %v1363, %v1355
        %v1366 = vmul.f32 %v1363, %v1356
        %v1367 = vmul.f32 %v1363, %v1357
        %v1368 = vmul.f32 %v1363, %v1358
        %v1369 = vmul.f32 %v1363, %v1359
        %v1370 = vmul.f32 %v1363, %v1360
        %v1371 = vmul.f32 %v1363, %v1361
        %1380 = vrot.lane.b32.xlu0 %v1364, 127
        %v1381 = vpop.permute.xlu0 %1380
        %1382 = vrot.lane.b32.xlu0 %v1365, 127
        %v1383 = vpop.permute.xlu0 %1382
        %1384 = vrot.lane.b32.xlu0 %v1366, 127
        %v1385 = vpop.permute.xlu0 %1384
        %1386 = vrot.lane.b32.xlu0 %v1367, 127
        %v1387 = vpop.permute.xlu0 %1386
        %1388 = vrot.lane.b32.xlu0 %v1368, 127
        %v1389 = vpop.permute.xlu0 %1388
        %1390 = vrot.lane.b32.xlu0 %v1369, 127
        %v1391 = vpop.permute.xlu0 %1390
        %1392 = vrot.lane.b32.xlu0 %v1370, 127
        %v1393 = vpop.permute.xlu0 %1392
        %1394 = vrot.lane.b32.xlu0 %v1371, 127
        %v1395 = vpop.permute.xlu0 %1394
        %v1404 = vadd.f32 %v1288, %v1381
        %v1405 = vadd.f32 %v1289, %v1383
        %v1406 = vadd.f32 %v1290, %v1385
        %v1407 = vadd.f32 %v1291, %v1387
        %v1408 = vadd.f32 %v1292, %v1389
        %v1409 = vadd.f32 %v1293, %v1391
        %v1410 = vadd.f32 %v1294, %v1393
        %v1411 = vadd.f32 %v1295, %v1395
        %s1412 = sld [smem:[#allocation2 + $0x1c]]
        %v1413 = vstv %s1412
        %v1414 = vmul.f32 %v1413, %v1354
        %v1415 = vmul.f32 %v1413, %v1355
        %v1416 = vmul.f32 %v1413, %v1356
        %v1417 = vmul.f32 %v1413, %v1357
        %v1418 = vmul.f32 %v1413, %v1358
        %v1419 = vmul.f32 %v1413, %v1359
        %v1420 = vmul.f32 %v1413, %v1360
        %v1421 = vmul.f32 %v1413, %v1361
        %1430 = vrot.lane.b32.xlu0 %v1414, 127
        %v1431 = vpop.permute.xlu0 %1430
        %1432 = vrot.lane.b32.xlu0 %v1415, 127
        %v1433 = vpop.permute.xlu0 %1432
        %1434 = vrot.lane.b32.xlu0 %v1416, 127
        %v1435 = vpop.permute.xlu0 %1434
        %1436 = vrot.lane.b32.xlu0 %v1417, 127
        %v1437 = vpop.permute.xlu0 %1436
        %1438 = vrot.lane.b32.xlu0 %v1418, 127
        %v1439 = vpop.permute.xlu0 %1438
        %1440 = vrot.lane.b32.xlu0 %v1419, 127
        %v1441 = vpop.permute.xlu0 %1440
        %1442 = vrot.lane.b32.xlu0 %v1420, 127
        %v1443 = vpop.permute.xlu0 %1442
        %1444 = vrot.lane.b32.xlu0 %v1421, 127
        %v1445 = vpop.permute.xlu0 %1444
        %v1454 = vadd.f32 %v1306, %v1431
        %v1455 = vadd.f32 %v1307, %v1433
        %v1456 = vadd.f32 %v1308, %v1435
        %v1457 = vadd.f32 %v1309, %v1437
        %v1458 = vadd.f32 %v1310, %v1439
        %v1459 = vadd.f32 %v1311, %v1441
        %v1460 = vadd.f32 %v1312, %v1443
        %v1461 = vadd.f32 %v1313, %v1445
        %s1462 = sld [smem:[#allocation2 + $0xb]]
        %v1463 = vstv %s1462
        %v1464 = vmul.f32 %v1463, %v1354
        %v1465 = vmul.f32 %v1463, %v1355
        %v1466 = vmul.f32 %v1463, %v1356
        %v1467 = vmul.f32 %v1463, %v1357
        %v1468 = vmul.f32 %v1463, %v1358
        %v1469 = vmul.f32 %v1463, %v1359
        %v1470 = vmul.f32 %v1463, %v1360
        %v1471 = vmul.f32 %v1463, %v1361
        %1480 = vrot.lane.b32.xlu0 %v1464, 126
        %v1481 = vpop.permute.xlu0 %1480
        %1482 = vrot.lane.b32.xlu0 %v1465, 126
        %v1483 = vpop.permute.xlu0 %1482
        %1484 = vrot.lane.b32.xlu0 %v1466, 126
        %v1485 = vpop.permute.xlu0 %1484
        %1486 = vrot.lane.b32.xlu0 %v1467, 126
        %v1487 = vpop.permute.xlu0 %1486
        %1488 = vrot.lane.b32.xlu0 %v1468, 126
        %v1489 = vpop.permute.xlu0 %1488
        %1490 = vrot.lane.b32.xlu0 %v1469, 126
        %v1491 = vpop.permute.xlu0 %1490
        %1492 = vrot.lane.b32.xlu0 %v1470, 126
        %v1493 = vpop.permute.xlu0 %1492
        %1494 = vrot.lane.b32.xlu0 %v1471, 126
        %v1495 = vpop.permute.xlu0 %1494
        %v1504 = vadd.f32 %v1404, %v1481
        %v1505 = vadd.f32 %v1405, %v1483
        %v1506 = vadd.f32 %v1406, %v1485
        %v1507 = vadd.f32 %v1407, %v1487
        %v1508 = vadd.f32 %v1408, %v1489
        %v1509 = vadd.f32 %v1409, %v1491
        %v1510 = vadd.f32 %v1410, %v1493
        %v1511 = vadd.f32 %v1411, %v1495
        %s1512 = sld [smem:[#allocation2 + $0x1d]]
        %v1513 = vstv %s1512
        %v1514 = vmul.f32 %v1513, %v1354
        %v1515 = vmul.f32 %v1513, %v1355
        %v1516 = vmul.f32 %v1513, %v1356
        %v1517 = vmul.f32 %v1513, %v1357
        %v1518 = vmul.f32 %v1513, %v1358
        %v1519 = vmul.f32 %v1513, %v1359
        %v1520 = vmul.f32 %v1513, %v1360
        %v1521 = vmul.f32 %v1513, %v1361
        %1530 = vrot.lane.b32.xlu0 %v1514, 126
        %v1531 = vpop.permute.xlu0 %1530
        %1532 = vrot.lane.b32.xlu0 %v1515, 126
        %v1533 = vpop.permute.xlu0 %1532
        %1534 = vrot.lane.b32.xlu0 %v1516, 126
        %v1535 = vpop.permute.xlu0 %1534
        %1536 = vrot.lane.b32.xlu0 %v1517, 126
        %v1537 = vpop.permute.xlu0 %1536
        %1538 = vrot.lane.b32.xlu0 %v1518, 126
        %v1539 = vpop.permute.xlu0 %1538
        %1540 = vrot.lane.b32.xlu0 %v1519, 126
        %v1541 = vpop.permute.xlu0 %1540
        %1542 = vrot.lane.b32.xlu0 %v1520, 126
        %v1543 = vpop.permute.xlu0 %1542
        %1544 = vrot.lane.b32.xlu0 %v1521, 126
        %v1545 = vpop.permute.xlu0 %1544
        %v1554 = vadd.f32 %v1454, %v1531
        %v1555 = vadd.f32 %v1455, %v1533
        %v1556 = vadd.f32 %v1456, %v1535
        %v1557 = vadd.f32 %v1457, %v1537
        %v1558 = vadd.f32 %v1458, %v1539
        %v1559 = vadd.f32 %v1459, %v1541
        %v1560 = vadd.f32 %v1460, %v1543
        %v1561 = vadd.f32 %v1461, %v1545
        %v1562 = vrot.slane %v1269, 6
        %v1563 = vsel %vm496, %v1562, %v1277
        %s1564 = sld [smem:[#allocation2 + $0xc]]
        %v1565 = vstv %s1564
        %v1566 = vmul.f32 %v1565, %v1269
        %v1567 = vmul.f32 %v1565, %v1270
        %v1568 = vmul.f32 %v1565, %v1271
        %v1569 = vmul.f32 %v1565, %v1272
        %v1570 = vmul.f32 %v1565, %v1273
        %v1571 = vmul.f32 %v1565, %v1274
        %v1572 = vmul.f32 %v1565, %v1275
        %v1573 = vmul.f32 %v1565, %v1276
        %v1574 = vmul.f32 %v1565, %v1563
        %v1584 = vrot.slane %v1566, 1
        %v1585 = vrot.slane %v1567, 1
        %v1586 = vsel %vm519, %v1584, %v1585
        %v1587 = vrot.slane %v1568, 1
        %v1588 = vsel %vm519, %v1585, %v1587
        %v1589 = vrot.slane %v1569, 1
        %v1590 = vsel %vm519, %v1587, %v1589
        %v1591 = vrot.slane %v1570, 1
        %v1592 = vsel %vm519, %v1589, %v1591
        %v1593 = vrot.slane %v1571, 1
        %v1594 = vsel %vm519, %v1591, %v1593
        %v1595 = vrot.slane %v1572, 1
        %v1596 = vsel %vm519, %v1593, %v1595
        %v1597 = vrot.slane %v1573, 1
        %v1598 = vsel %vm519, %v1595, %v1597
        %v1599 = vrot.slane %v1574, 1
        %v1600 = vsel %vm519, %v1597, %v1599
        %v1609 = vadd.f32 %v1504, %v1586
        %v1610 = vadd.f32 %v1505, %v1588
        %v1611 = vadd.f32 %v1506, %v1590
        %v1612 = vadd.f32 %v1507, %v1592
        %v1613 = vadd.f32 %v1508, %v1594
        %v1614 = vadd.f32 %v1509, %v1596
        %v1615 = vadd.f32 %v1510, %v1598
        %v1616 = vadd.f32 %v1511, %v1600
        %s1617 = sld [smem:[#allocation2 + $0x1e]]
        %v1618 = vstv %s1617
        %v1619 = vmul.f32 %v1618, %v1269
        %v1620 = vmul.f32 %v1618, %v1270
        %v1621 = vmul.f32 %v1618, %v1271
        %v1622 = vmul.f32 %v1618, %v1272
        %v1623 = vmul.f32 %v1618, %v1273
        %v1624 = vmul.f32 %v1618, %v1274
        %v1625 = vmul.f32 %v1618, %v1275
        %v1626 = vmul.f32 %v1618, %v1276
        %v1627 = vmul.f32 %v1618, %v1563
        %v1637 = vrot.slane %v1619, 1
        %v1638 = vrot.slane %v1620, 1
        %v1639 = vsel %vm519, %v1637, %v1638
        %v1640 = vrot.slane %v1621, 1
        %v1641 = vsel %vm519, %v1638, %v1640
        %v1642 = vrot.slane %v1622, 1
        %v1643 = vsel %vm519, %v1640, %v1642
        %v1644 = vrot.slane %v1623, 1
        %v1645 = vsel %vm519, %v1642, %v1644
        %v1646 = vrot.slane %v1624, 1
        %v1647 = vsel %vm519, %v1644, %v1646
        %v1648 = vrot.slane %v1625, 1
        %v1649 = vsel %vm519, %v1646, %v1648
        %v1650 = vrot.slane %v1626, 1
        %v1651 = vsel %vm519, %v1648, %v1650
        %v1652 = vrot.slane %v1627, 1
        %v1653 = vsel %vm519, %v1650, %v1652
        %v1662 = vadd.f32 %v1554, %v1639
        %v1663 = vadd.f32 %v1555, %v1641
        %v1664 = vadd.f32 %v1556, %v1643
        %v1665 = vadd.f32 %v1557, %v1645
        %v1666 = vadd.f32 %v1558, %v1647
        %v1667 = vadd.f32 %v1559, %v1649
        %v1668 = vadd.f32 %v1560, %v1651
        %v1669 = vadd.f32 %v1561, %v1653
        %v1679 = vrot.slane %v1269, 1
        %v1680 = vrot.slane %v1270, 1
        %v1681 = vsel %vm519, %v1679, %v1680
        %v1682 = vrot.slane %v1271, 1
        %v1683 = vsel %vm519, %v1680, %v1682
        %v1684 = vrot.slane %v1272, 1
        %v1685 = vsel %vm519, %v1682, %v1684
        %v1686 = vrot.slane %v1273, 1
        %v1687 = vsel %vm519, %v1684, %v1686
        %v1688 = vrot.slane %v1274, 1
        %v1689 = vsel %vm519, %v1686, %v1688
        %v1690 = vrot.slane %v1275, 1
        %v1691 = vsel %vm519, %v1688, %v1690
        %v1692 = vrot.slane %v1276, 1
        %v1693 = vsel %vm519, %v1690, %v1692
        %v1694 = vrot.slane %v1563, 1
        %v1695 = vsel %vm519, %v1692, %v1694
        %1704 = vrot.lane.b32.xlu0 %v1681, 66
        %v1705 = vpop.permute.xlu0 %1704
        %v1706 = vsel %vm247, %v1705, %v1681
        %1707 = vrot.lane.b32.xlu0 %v1683, 66
        %v1708 = vpop.permute.xlu0 %1707
        %v1709 = vsel %vm247, %v1708, %v1683
        %1710 = vrot.lane.b32.xlu0 %v1685, 66
        %v1711 = vpop.permute.xlu0 %1710
        %v1712 = vsel %vm247, %v1711, %v1685
        %1713 = vrot.lane.b32.xlu0 %v1687, 66
        %v1714 = vpop.permute.xlu0 %1713
        %v1715 = vsel %vm247, %v1714, %v1687
        %1716 = vrot.lane.b32.xlu0 %v1689, 66
        %v1717 = vpop.permute.xlu0 %1716
        %v1718 = vsel %vm247, %v1717, %v1689
        %1719 = vrot.lane.b32.xlu0 %v1691, 66
        %v1720 = vpop.permute.xlu0 %1719
        %v1721 = vsel %vm247, %v1720, %v1691
        %1722 = vrot.lane.b32.xlu0 %v1693, 66
        %v1723 = vpop.permute.xlu0 %1722
        %v1724 = vsel %vm247, %v1723, %v1693
        %1725 = vrot.lane.b32.xlu0 %v1695, 66
        %v1726 = vpop.permute.xlu0 %1725
        %v1727 = vsel %vm247, %v1726, %v1695
        %1728 = vrot.lane.b32.xlu0 %v1706, 66
        %v1729 = vpop.permute.xlu0 %1728
        %1730 = vrot.lane.b32.xlu0 %v1709, 66
        %v1731 = vpop.permute.xlu0 %1730
        %1732 = vrot.lane.b32.xlu0 %v1712, 66
        %v1733 = vpop.permute.xlu0 %1732
        %1734 = vrot.lane.b32.xlu0 %v1715, 66
        %v1735 = vpop.permute.xlu0 %1734
        %1736 = vrot.lane.b32.xlu0 %v1718, 66
        %v1737 = vpop.permute.xlu0 %1736
        %1738 = vrot.lane.b32.xlu0 %v1721, 66
        %v1739 = vpop.permute.xlu0 %1738
        %1740 = vrot.lane.b32.xlu0 %v1724, 66
        %v1741 = vpop.permute.xlu0 %1740
        %1742 = vrot.lane.b32.xlu0 %v1727, 66
        %v1743 = vpop.permute.xlu0 %1742
        %v1744 = vsel %vm247, %v1729, %v1681
        %v1745 = vsel %vm247, %v1731, %v1683
        %v1746 = vsel %vm247, %v1733, %v1685
        %v1747 = vsel %vm247, %v1735, %v1687
        %v1748 = vsel %vm247, %v1737, %v1689
        %v1749 = vsel %vm247, %v1739, %v1691
        %v1750 = vsel %vm247, %v1741, %v1693
        %v1751 = vsel %vm247, %v1743, %v1695
        %s1752 = sld [smem:[#allocation2 + $0xd]]
        %v1753 = vstv %s1752
        %v1754 = vmul.f32 %v1753, %v1744
        %v1755 = vmul.f32 %v1753, %v1745
        %v1756 = vmul.f32 %v1753, %v1746
        %v1757 = vmul.f32 %v1753, %v1747
        %v1758 = vmul.f32 %v1753, %v1748
        %v1759 = vmul.f32 %v1753, %v1749
        %v1760 = vmul.f32 %v1753, %v1750
        %v1761 = vmul.f32 %v1753, %v1751
        %1770 = vrot.lane.b32.xlu0 %v1754, 127
        %v1771 = vpop.permute.xlu0 %1770
        %1772 = vrot.lane.b32.xlu0 %v1755, 127
        %v1773 = vpop.permute.xlu0 %1772
        %1774 = vrot.lane.b32.xlu0 %v1756, 127
        %v1775 = vpop.permute.xlu0 %1774
        %1776 = vrot.lane.b32.xlu0 %v1757, 127
        %v1777 = vpop.permute.xlu0 %1776
        %1778 = vrot.lane.b32.xlu0 %v1758, 127
        %v1779 = vpop.permute.xlu0 %1778
        %1780 = vrot.lane.b32.xlu0 %v1759, 127
        %v1781 = vpop.permute.xlu0 %1780
        %1782 = vrot.lane.b32.xlu0 %v1760, 127
        %v1783 = vpop.permute.xlu0 %1782
        %1784 = vrot.lane.b32.xlu0 %v1761, 127
        %v1785 = vpop.permute.xlu0 %1784
        %v1794 = vadd.f32 %v1609, %v1771
        %v1795 = vadd.f32 %v1610, %v1773
        %v1796 = vadd.f32 %v1611, %v1775
        %v1797 = vadd.f32 %v1612, %v1777
        %v1798 = vadd.f32 %v1613, %v1779
        %v1799 = vadd.f32 %v1614, %v1781
        %v1800 = vadd.f32 %v1615, %v1783
        %v1801 = vadd.f32 %v1616, %v1785
        %s1802 = sld [smem:[#allocation2 + $0x1f]]
        %v1803 = vstv %s1802
        %v1804 = vmul.f32 %v1803, %v1744
        %v1805 = vmul.f32 %v1803, %v1745
        %v1806 = vmul.f32 %v1803, %v1746
        %v1807 = vmul.f32 %v1803, %v1747
        %v1808 = vmul.f32 %v1803, %v1748
        %v1809 = vmul.f32 %v1803, %v1749
        %v1810 = vmul.f32 %v1803, %v1750
        %v1811 = vmul.f32 %v1803, %v1751
        %1820 = vrot.lane.b32.xlu0 %v1804, 127
        %v1821 = vpop.permute.xlu0 %1820
        %1822 = vrot.lane.b32.xlu0 %v1805, 127
        %v1823 = vpop.permute.xlu0 %1822
        %1824 = vrot.lane.b32.xlu0 %v1806, 127
        %v1825 = vpop.permute.xlu0 %1824
        %1826 = vrot.lane.b32.xlu0 %v1807, 127
        %v1827 = vpop.permute.xlu0 %1826
        %1828 = vrot.lane.b32.xlu0 %v1808, 127
        %v1829 = vpop.permute.xlu0 %1828
        %1830 = vrot.lane.b32.xlu0 %v1809, 127
        %v1831 = vpop.permute.xlu0 %1830
        %1832 = vrot.lane.b32.xlu0 %v1810, 127
        %v1833 = vpop.permute.xlu0 %1832
        %1834 = vrot.lane.b32.xlu0 %v1811, 127
        %v1835 = vpop.permute.xlu0 %1834
        %v1844 = vadd.f32 %v1662, %v1821
        %v1845 = vadd.f32 %v1663, %v1823
        %v1846 = vadd.f32 %v1664, %v1825
        %v1847 = vadd.f32 %v1665, %v1827
        %v1848 = vadd.f32 %v1666, %v1829
        %v1849 = vadd.f32 %v1667, %v1831
        %v1850 = vadd.f32 %v1668, %v1833
        %v1851 = vadd.f32 %v1669, %v1835
        %s1852 = sld [smem:[#allocation2 + $0xe]]
        %v1853 = vstv %s1852
        %v1854 = vmul.f32 %v1853, %v1744
        %v1855 = vmul.f32 %v1853, %v1745
        %v1856 = vmul.f32 %v1853, %v1746
        %v1857 = vmul.f32 %v1853, %v1747
        %v1858 = vmul.f32 %v1853, %v1748
        %v1859 = vmul.f32 %v1853, %v1749
        %v1860 = vmul.f32 %v1853, %v1750
        %v1861 = vmul.f32 %v1853, %v1751
        %1870 = vrot.lane.b32.xlu0 %v1854, 126
        %v1871 = vpop.permute.xlu0 %1870
        %1872 = vrot.lane.b32.xlu0 %v1855, 126
        %v1873 = vpop.permute.xlu0 %1872
        %1874 = vrot.lane.b32.xlu0 %v1856, 126
        %v1875 = vpop.permute.xlu0 %1874
        %1876 = vrot.lane.b32.xlu0 %v1857, 126
        %v1877 = vpop.permute.xlu0 %1876
        %1878 = vrot.lane.b32.xlu0 %v1858, 126
        %v1879 = vpop.permute.xlu0 %1878
        %1880 = vrot.lane.b32.xlu0 %v1859, 126
        %v1881 = vpop.permute.xlu0 %1880
        %1882 = vrot.lane.b32.xlu0 %v1860, 126
        %v1883 = vpop.permute.xlu0 %1882
        %1884 = vrot.lane.b32.xlu0 %v1861, 126
        %v1885 = vpop.permute.xlu0 %1884
        %v1894 = vadd.f32 %v1794, %v1871
        %v1895 = vadd.f32 %v1795, %v1873
        %v1896 = vadd.f32 %v1796, %v1875
        %v1897 = vadd.f32 %v1797, %v1877
        %v1898 = vadd.f32 %v1798, %v1879
        %v1899 = vadd.f32 %v1799, %v1881
        %v1900 = vadd.f32 %v1800, %v1883
        %v1901 = vadd.f32 %v1801, %v1885
        %s1902 = sld [smem:[#allocation2 + $0x20]]
        %v1903 = vstv %s1902
        %v1904 = vmul.f32 %v1903, %v1744
        %v1905 = vmul.f32 %v1903, %v1745
        %v1906 = vmul.f32 %v1903, %v1746
        %v1907 = vmul.f32 %v1903, %v1747
        %v1908 = vmul.f32 %v1903, %v1748
        %v1909 = vmul.f32 %v1903, %v1749
        %v1910 = vmul.f32 %v1903, %v1750
        %v1911 = vmul.f32 %v1903, %v1751
        %1920 = vrot.lane.b32.xlu0 %v1904, 126
        %v1921 = vpop.permute.xlu0 %1920
        %1922 = vrot.lane.b32.xlu0 %v1905, 126
        %v1923 = vpop.permute.xlu0 %1922
        %1924 = vrot.lane.b32.xlu0 %v1906, 126
        %v1925 = vpop.permute.xlu0 %1924
        %1926 = vrot.lane.b32.xlu0 %v1907, 126
        %v1927 = vpop.permute.xlu0 %1926
        %1928 = vrot.lane.b32.xlu0 %v1908, 126
        %v1929 = vpop.permute.xlu0 %1928
        %1930 = vrot.lane.b32.xlu0 %v1909, 126
        %v1931 = vpop.permute.xlu0 %1930
        %1932 = vrot.lane.b32.xlu0 %v1910, 126
        %v1933 = vpop.permute.xlu0 %1932
        %1934 = vrot.lane.b32.xlu0 %v1911, 126
        %v1935 = vpop.permute.xlu0 %1934
        %v1944 = vadd.f32 %v1844, %v1921
        %v1945 = vadd.f32 %v1845, %v1923
        %v1946 = vadd.f32 %v1846, %v1925
        %v1947 = vadd.f32 %v1847, %v1927
        %v1948 = vadd.f32 %v1848, %v1929
        %v1949 = vadd.f32 %v1849, %v1931
        %v1950 = vadd.f32 %v1850, %v1933
        %v1951 = vadd.f32 %v1851, %v1935
        %s1952 = sld [smem:[#allocation2 + $0xf]]
        %v1953 = vstv %s1952
        %v1954 = vmul.f32 %v1953, %v1269
        %v1955 = vmul.f32 %v1953, %v1270
        %v1956 = vmul.f32 %v1953, %v1271
        %v1957 = vmul.f32 %v1953, %v1272
        %v1958 = vmul.f32 %v1953, %v1273
        %v1959 = vmul.f32 %v1953, %v1274
        %v1960 = vmul.f32 %v1953, %v1275
        %v1961 = vmul.f32 %v1953, %v1276
        %v1962 = vmul.f32 %v1953, %v1563
        %v1972 = vrot.slane %v1954, 2
        %v1973 = vrot.slane %v1955, 2
        %v1974 = vsel %vm908, %v1972, %v1973
        %v1975 = vrot.slane %v1956, 2
        %v1976 = vsel %vm908, %v1973, %v1975
        %v1977 = vrot.slane %v1957, 2
        %v1978 = vsel %vm908, %v1975, %v1977
        %v1979 = vrot.slane %v1958, 2
        %v1980 = vsel %vm908, %v1977, %v1979
        %v1981 = vrot.slane %v1959, 2
        %v1982 = vsel %vm908, %v1979, %v1981
        %v1983 = vrot.slane %v1960, 2
        %v1984 = vsel %vm908, %v1981, %v1983
        %v1985 = vrot.slane %v1961, 2
        %v1986 = vsel %vm908, %v1983, %v1985
        %v1987 = vrot.slane %v1962, 2
        %v1988 = vsel %vm908, %v1985, %v1987
        %v1997 = vadd.f32 %v1894, %v1974
        %v1998 = vadd.f32 %v1895, %v1976
        %v1999 = vadd.f32 %v1896, %v1978
        %v2000 = vadd.f32 %v1897, %v1980
        %v2001 = vadd.f32 %v1898, %v1982
        %v2002 = vadd.f32 %v1899, %v1984
        %v2003 = vadd.f32 %v1900, %v1986
        %v2004 = vadd.f32 %v1901, %v1988
        %s2005 = sld [smem:[#allocation2 + $0x21]]
        %v2006 = vstv %s2005
        %v2007 = vmul.f32 %v2006, %v1269
        %v2008 = vmul.f32 %v2006, %v1270
        %v2009 = vmul.f32 %v2006, %v1271
        %v2010 = vmul.f32 %v2006, %v1272
        %v2011 = vmul.f32 %v2006, %v1273
        %v2012 = vmul.f32 %v2006, %v1274
        %v2013 = vmul.f32 %v2006, %v1275
        %v2014 = vmul.f32 %v2006, %v1276
        %v2015 = vmul.f32 %v2006, %v1563
        %v2025 = vrot.slane %v2007, 2
        %v2026 = vrot.slane %v2008, 2
        %v2027 = vsel %vm908, %v2025, %v2026
        %v2028 = vrot.slane %v2009, 2
        %v2029 = vsel %vm908, %v2026, %v2028
        %v2030 = vrot.slane %v2010, 2
        %v2031 = vsel %vm908, %v2028, %v2030
        %v2032 = vrot.slane %v2011, 2
        %v2033 = vsel %vm908, %v2030, %v2032
        %v2034 = vrot.slane %v2012, 2
        %v2035 = vsel %vm908, %v2032, %v2034
        %v2036 = vrot.slane %v2013, 2
        %v2037 = vsel %vm908, %v2034, %v2036
        %v2038 = vrot.slane %v2014, 2
        %v2039 = vsel %vm908, %v2036, %v2038
        %v2040 = vrot.slane %v2015, 2
        %v2041 = vsel %vm908, %v2038, %v2040
        %v2050 = vadd.f32 %v1944, %v2027
        %v2051 = vadd.f32 %v1945, %v2029
        %v2052 = vadd.f32 %v1946, %v2031
        %v2053 = vadd.f32 %v1947, %v2033
        %v2054 = vadd.f32 %v1948, %v2035
        %v2055 = vadd.f32 %v1949, %v2037
        %v2056 = vadd.f32 %v1950, %v2039
        %v2057 = vadd.f32 %v1951, %v2041
        %v2058 = vrot.slane %v1269, 2
        %v2059 = vrot.slane %v1270, 2
        %v2060 = vsel %vm908, %v2058, %v2059
        %v2061 = vrot.slane %v1271, 2
        %v2062 = vsel %vm908, %v2059, %v2061
        %v2063 = vrot.slane %v1272, 2
        %v2064 = vsel %vm908, %v2061, %v2063
        %v2065 = vrot.slane %v1273, 2
        %v2066 = vsel %vm908, %v2063, %v2065
        %v2067 = vrot.slane %v1274, 2
        %v2068 = vsel %vm908, %v2065, %v2067
        %v2069 = vrot.slane %v1275, 2
        %v2070 = vsel %vm908, %v2067, %v2069
        %v2071 = vrot.slane %v1276, 2
        %v2072 = vsel %vm908, %v2069, %v2071
        %v2073 = vrot.slane %v1563, 2
        %v2074 = vsel %vm908, %v2071, %v2073
        %2083 = vrot.lane.b32.xlu0 %v2060, 66
        %v2084 = vpop.permute.xlu0 %2083
        %v2085 = vsel %vm247, %v2084, %v2060
        %2086 = vrot.lane.b32.xlu0 %v2062, 66
        %v2087 = vpop.permute.xlu0 %2086
        %v2088 = vsel %vm247, %v2087, %v2062
        %2089 = vrot.lane.b32.xlu0 %v2064, 66
        %v2090 = vpop.permute.xlu0 %2089
        %v2091 = vsel %vm247, %v2090, %v2064
        %2092 = vrot.lane.b32.xlu0 %v2066, 66
        %v2093 = vpop.permute.xlu0 %2092
        %v2094 = vsel %vm247, %v2093, %v2066
        %2095 = vrot.lane.b32.xlu0 %v2068, 66
        %v2096 = vpop.permute.xlu0 %2095
        %v2097 = vsel %vm247, %v2096, %v2068
        %2098 = vrot.lane.b32.xlu0 %v2070, 66
        %v2099 = vpop.permute.xlu0 %2098
        %v2100 = vsel %vm247, %v2099, %v2070
        %2101 = vrot.lane.b32.xlu0 %v2072, 66
        %v2102 = vpop.permute.xlu0 %2101
        %v2103 = vsel %vm247, %v2102, %v2072
        %2104 = vrot.lane.b32.xlu0 %v2074, 66
        %v2105 = vpop.permute.xlu0 %2104
        %v2106 = vsel %vm247, %v2105, %v2074
        %2107 = vrot.lane.b32.xlu0 %v2085, 66
        %v2108 = vpop.permute.xlu0 %2107
        %2109 = vrot.lane.b32.xlu0 %v2088, 66
        %v2110 = vpop.permute.xlu0 %2109
        %2111 = vrot.lane.b32.xlu0 %v2091, 66
        %v2112 = vpop.permute.xlu0 %2111
        %2113 = vrot.lane.b32.xlu0 %v2094, 66
        %v2114 = vpop.permute.xlu0 %2113
        %2115 = vrot.lane.b32.xlu0 %v2097, 66
        %v2116 = vpop.permute.xlu0 %2115
        %2117 = vrot.lane.b32.xlu0 %v2100, 66
        %v2118 = vpop.permute.xlu0 %2117
        %2119 = vrot.lane.b32.xlu0 %v2103, 66
        %v2120 = vpop.permute.xlu0 %2119
        %2121 = vrot.lane.b32.xlu0 %v2106, 66
        %v2122 = vpop.permute.xlu0 %2121
        %v2123 = vsel %vm247, %v2108, %v2060
        %v2124 = vsel %vm247, %v2110, %v2062
        %v2125 = vsel %vm247, %v2112, %v2064
        %v2126 = vsel %vm247, %v2114, %v2066
        %v2127 = vsel %vm247, %v2116, %v2068
        %v2128 = vsel %vm247, %v2118, %v2070
        %v2129 = vsel %vm247, %v2120, %v2072
        %v2130 = vsel %vm247, %v2122, %v2074
        %s2131 = sld [smem:[#allocation2 + $0x10]]
        %v2132 = vstv %s2131
        %v2133 = vmul.f32 %v2132, %v2123
        %v2134 = vmul.f32 %v2132, %v2124
        %v2135 = vmul.f32 %v2132, %v2125
        %v2136 = vmul.f32 %v2132, %v2126
        %v2137 = vmul.f32 %v2132, %v2127
        %v2138 = vmul.f32 %v2132, %v2128
        %v2139 = vmul.f32 %v2132, %v2129
        %v2140 = vmul.f32 %v2132, %v2130
        %2149 = vrot.lane.b32.xlu0 %v2133, 127
        %v2150 = vpop.permute.xlu0 %2149
        %2151 = vrot.lane.b32.xlu0 %v2134, 127
        %v2152 = vpop.permute.xlu0 %2151
        %2153 = vrot.lane.b32.xlu0 %v2135, 127
        %v2154 = vpop.permute.xlu0 %2153
        %2155 = vrot.lane.b32.xlu0 %v2136, 127
        %v2156 = vpop.permute.xlu0 %2155
        %2157 = vrot.lane.b32.xlu0 %v2137, 127
        %v2158 = vpop.permute.xlu0 %2157
        %2159 = vrot.lane.b32.xlu0 %v2138, 127
        %v2160 = vpop.permute.xlu0 %2159
        %2161 = vrot.lane.b32.xlu0 %v2139, 127
        %v2162 = vpop.permute.xlu0 %2161
        %2163 = vrot.lane.b32.xlu0 %v2140, 127
        %v2164 = vpop.permute.xlu0 %2163
        %v2173 = vadd.f32 %v1997, %v2150
        %v2174 = vadd.f32 %v1998, %v2152
        %v2175 = vadd.f32 %v1999, %v2154
        %v2176 = vadd.f32 %v2000, %v2156
        %v2177 = vadd.f32 %v2001, %v2158
        %v2178 = vadd.f32 %v2002, %v2160
        %v2179 = vadd.f32 %v2003, %v2162
        %v2180 = vadd.f32 %v2004, %v2164
        %s2181 = sld [smem:[#allocation2 + $0x22]]
        %v2182 = vstv %s2181
        %v2183 = vmul.f32 %v2182, %v2123
        %v2184 = vmul.f32 %v2182, %v2124
        %v2185 = vmul.f32 %v2182, %v2125
        %v2186 = vmul.f32 %v2182, %v2126
        %v2187 = vmul.f32 %v2182, %v2127
        %v2188 = vmul.f32 %v2182, %v2128
        %v2189 = vmul.f32 %v2182, %v2129
        %v2190 = vmul.f32 %v2182, %v2130
        %2199 = vrot.lane.b32.xlu0 %v2183, 127
        %v2200 = vpop.permute.xlu0 %2199
        %2201 = vrot.lane.b32.xlu0 %v2184, 127
        %v2202 = vpop.permute.xlu0 %2201
        %2203 = vrot.lane.b32.xlu0 %v2185, 127
        %v2204 = vpop.permute.xlu0 %2203
        %2205 = vrot.lane.b32.xlu0 %v2186, 127
        %v2206 = vpop.permute.xlu0 %2205
        %2207 = vrot.lane.b32.xlu0 %v2187, 127
        %v2208 = vpop.permute.xlu0 %2207
        %2209 = vrot.lane.b32.xlu0 %v2188, 127
        %v2210 = vpop.permute.xlu0 %2209
        %2211 = vrot.lane.b32.xlu0 %v2189, 127
        %v2212 = vpop.permute.xlu0 %2211
        %2213 = vrot.lane.b32.xlu0 %v2190, 127
        %v2214 = vpop.permute.xlu0 %2213
        %v2223 = vadd.f32 %v2050, %v2200
        %v2224 = vadd.f32 %v2051, %v2202
        %v2225 = vadd.f32 %v2052, %v2204
        %v2226 = vadd.f32 %v2053, %v2206
        %v2227 = vadd.f32 %v2054, %v2208
        %v2228 = vadd.f32 %v2055, %v2210
        %v2229 = vadd.f32 %v2056, %v2212
        %v2230 = vadd.f32 %v2057, %v2214
        %s2231 = sld [smem:[#allocation2 + $0x11]]
        %v2232 = vstv %s2231
        %v2233 = vmul.f32 %v2232, %v2123
        %v2234 = vmul.f32 %v2232, %v2124
        %v2235 = vmul.f32 %v2232, %v2125
        %v2236 = vmul.f32 %v2232, %v2126
        %v2237 = vmul.f32 %v2232, %v2127
        %v2238 = vmul.f32 %v2232, %v2128
        %v2239 = vmul.f32 %v2232, %v2129
        %v2240 = vmul.f32 %v2232, %v2130
        %2249 = vrot.lane.b32.xlu0 %v2233, 126
        %v2250 = vpop.permute.xlu0 %2249
        %2251 = vrot.lane.b32.xlu0 %v2234, 126
        %v2252 = vpop.permute.xlu0 %2251
        %2253 = vrot.lane.b32.xlu0 %v2235, 126
        %v2254 = vpop.permute.xlu0 %2253
        %2255 = vrot.lane.b32.xlu0 %v2236, 126
        %v2256 = vpop.permute.xlu0 %2255
        %2257 = vrot.lane.b32.xlu0 %v2237, 126
        %v2258 = vpop.permute.xlu0 %2257
        %2259 = vrot.lane.b32.xlu0 %v2238, 126
        %v2260 = vpop.permute.xlu0 %2259
        %2261 = vrot.lane.b32.xlu0 %v2239, 126
        %v2262 = vpop.permute.xlu0 %2261
        %2263 = vrot.lane.b32.xlu0 %v2240, 126
        %v2264 = vpop.permute.xlu0 %2263
        %v2273 = vadd.f32 %v2173, %v2250
        %v2274 = vadd.f32 %v2174, %v2252
        %v2275 = vadd.f32 %v2175, %v2254
        %v2276 = vadd.f32 %v2176, %v2256
        %v2277 = vadd.f32 %v2177, %v2258
        %v2278 = vadd.f32 %v2178, %v2260
        %v2279 = vadd.f32 %v2179, %v2262
        %v2280 = vadd.f32 %v2180, %v2264
        %s2281 = sld [smem:[#allocation2 + $0x23]]
        %v2282 = vstv %s2281
        %v2283 = vmul.f32 %v2282, %v2123
        %v2284 = vmul.f32 %v2282, %v2124
        %v2285 = vmul.f32 %v2282, %v2125
        %v2286 = vmul.f32 %v2282, %v2126
        %v2287 = vmul.f32 %v2282, %v2127
        %v2288 = vmul.f32 %v2282, %v2128
        %v2289 = vmul.f32 %v2282, %v2129
        %v2290 = vmul.f32 %v2282, %v2130
        %2299 = vrot.lane.b32.xlu0 %v2283, 126
        %v2300 = vpop.permute.xlu0 %2299
        %2301 = vrot.lane.b32.xlu0 %v2284, 126
        %v2302 = vpop.permute.xlu0 %2301
        %2303 = vrot.lane.b32.xlu0 %v2285, 126
        %v2304 = vpop.permute.xlu0 %2303
        %2305 = vrot.lane.b32.xlu0 %v2286, 126
        %v2306 = vpop.permute.xlu0 %2305
        %2307 = vrot.lane.b32.xlu0 %v2287, 126
        %v2308 = vpop.permute.xlu0 %2307
        %2309 = vrot.lane.b32.xlu0 %v2288, 126
        %v2310 = vpop.permute.xlu0 %2309
        %2311 = vrot.lane.b32.xlu0 %v2289, 126
        %v2312 = vpop.permute.xlu0 %2311
        %2313 = vrot.lane.b32.xlu0 %v2290, 126
        %v2314 = vpop.permute.xlu0 %2313
        %v2323 = vadd.f32 %v2223, %v2300
        %v2324 = vadd.f32 %v2224, %v2302
        %v2325 = vadd.f32 %v2225, %v2304
        %v2326 = vadd.f32 %v2226, %v2306
        %v2327 = vadd.f32 %v2227, %v2308
        %v2328 = vadd.f32 %v2228, %v2310
        %v2329 = vadd.f32 %v2229, %v2312
        %v2330 = vadd.f32 %v2230, %v2314
        %vm2331 = vcmask 523264
        %2332 = vst.msk [vmem:[%s197] sm:$0xff] %vm2331, %v2273
        %2333 = vst.msk [vmem:[%s197 + $0x8] sm:$0xff] %vm2331, %v2274
        %2334 = vst.msk [vmem:[%s197 + $0x10] sm:$0xff] %vm2331, %v2275
        %2335 = vst.msk [vmem:[%s197 + $0x18] sm:$0xff] %vm2331, %v2276
        %2336 = vst.msk [vmem:[%s197 + $0x20] sm:$0xff] %vm2331, %v2277
        %2337 = vst.msk [vmem:[%s197 + $0x28] sm:$0xff] %vm2331, %v2278
        %2338 = vst.msk [vmem:[%s197 + $0x30] sm:$0xff] %vm2331, %v2279
        %2339 = vst.msk [vmem:[%s197 + $0x38] sm:$0xff] %vm2331, %v2280
        %s2340 = scalar_lea.vmem %s197, 64
        %2341 = vst.msk [vmem:[%s2340] sm:$0xff] %vm2331, %v2323
        %2342 = vst.msk [vmem:[%s2340 + $0x8] sm:$0xff] %vm2331, %v2324
        %2343 = vst.msk [vmem:[%s2340 + $0x10] sm:$0xff] %vm2331, %v2325
        %2344 = vst.msk [vmem:[%s2340 + $0x18] sm:$0xff] %vm2331, %v2326
        %2345 = vst.msk [vmem:[%s2340 + $0x20] sm:$0xff] %vm2331, %v2327
        %2346 = vst.msk [vmem:[%s2340 + $0x28] sm:$0xff] %vm2331, %v2328
        %2347 = vst.msk [vmem:[%s2340 + $0x30] sm:$0xff] %vm2331, %v2329
        %2348 = vst.msk [vmem:[%s2340 + $0x38] sm:$0xff] %vm2331, %v2330
        %p2349 = scmp.lt.s32.totalorder %s16, 1
        %s2350 = scalar_select %p2349, %s16, 1
        %s2351 = smul.addr %s2350, 16
        %s2352 = smul.addr %s2351, 8
        %s2353 = scalar_lea.vmem %s3, %s2352
        // Predicated region
        $region41: #{feature_predictor_forward.18} parent=31 // pred_check
          %p2354 = pneg %p102
        $region42: #{feature_predictor_forward.18} parent=31 // pred_check_branch
          %2356 = sbr.rel (%p2354) target = $region44
        $region43: #{feature_predictor_forward.18} parent=31 // pred_region
          _
        $region44: #{feature_predictor_forward.18} parent=31 // pred_fallthru
          _
      $region32: #{feature_predictor_forward.18} parent=5 // pred_fallthru
        _
      %p2357 = scmp.le.s32.totalorder 2, %s11
      // Predicated region
      $region45: #{feature_predictor_forward.18} parent=5 // pred_check
        %p2358 = pneg %p2357
      $region46: #{feature_predictor_forward.18} parent=5 // pred_check_branch
        %2360 = sbr.rel (%p2358) target = $region48
      $region47: #{feature_predictor_forward.18} parent=5 // pred_region
        %s2361 = ssub.s32 %s11, 2
        // Predicated region
        $region49: #{feature_predictor_forward.18} parent=47 // pred_check
          %p2362 = pneg %p108
        $region50: #{feature_predictor_forward.18} parent=47 // pred_check_branch
          %2364 = sbr.rel (%p2362) target = $region52
        $region51: #{feature_predictor_forward.18} parent=47 // pred_region
          %p2365 = scmp.lt.s32.totalorder %s17, 1
          %s2366 = scalar_select %p2365, %s17, 1
          %s2367 = smul.addr %s2366, 16
          %s2368 = smul.addr %s2367, 8
          %s2369 = scalar_lea.vmem %s3, %s2368
        $region52: #{feature_predictor_forward.18} parent=47 // pred_fallthru
          _
      $region48: #{feature_predictor_forward.18} parent=5 // pred_fallthru
        _
    $region6: #{feature_predictor_forward.18} parent=1 // loop_footer
      %s15 = sadd.s32 1, %s11
    $region7: #{feature_predictor_forward.18} parent=1 // loop_footer_branch
      %10 = sbr.rel target = $region3
    $region8: #{feature_predictor_forward.18} parent=1 // loop_exit
      _
    %2370 = vsyncpa [#allocation3], 1
    %s2371 = scalar_lea.sflag [#allocation3], 1
    %2372 = vsyncpa %s2371, 1
    %2373 = vsyncpa [#allocation5], 1

// kernel: feature_predictor_forward.19
$region0: #{feature_predictor_forward.19}
  #allocation0 [shape = 'u32[]', space=smem, size = 0x4, offset = 0x4, fixed_abs, tag = 'smem constant byte address 0x4 - core index']
  #allocation1 [shape = 'u32[144,128]{1,0:T(1,128)}', space=vmem, size = 0x12000, scoped, tag = 'internal scratch']
  %s0 = inlined_call_operand.vmem [shape: f32[8,128], index: 0, kind: input, shape index: {}]
  %s1 = inlined_call_operand.vmem [shape: f32[8,128], index: 1, kind: input, shape index: {}]
  %s2 = inlined_call_operand.vmem [shape: f32[8,128], index: 2, kind: input, shape index: {}]
  %s3 = inlined_call_operand.vmem [shape: f32[8,128], index: 3, kind: output, shape index: {}]
  %s4 = sld [smem:[#allocation0]]
  $region22: #{feature_predictor_forward.19} parent=0
    _
  %s6 = ssub.s32 1, %s4
  %s7 = scalar_select 0, %s6, %s4
  // Predicated region
  $region2: #{feature_predictor_forward.19} parent=0 // pred_check
    _
  $region3: #{feature_predictor_forward.19} parent=0 // pred_check_branch
    %9 = sbr.rel (0) target = $region5
  $region4: #{feature_predictor_forward.19} parent=0 // pred_region
    _
  $region5: #{feature_predictor_forward.19} parent=0 // pred_fallthru
    _
  // Predicated region
  $region6: #{feature_predictor_forward.19} parent=0 // pred_check
    _
  $region7: #{feature_predictor_forward.19} parent=0 // pred_check_branch
    %11 = sbr.rel (0) target = $region9
  $region8: #{feature_predictor_forward.19} parent=0 // pred_region
    _
  $region9: #{feature_predictor_forward.19} parent=0 // pred_fallthru
    _
  // Predicated region
  $region10: #{feature_predictor_forward.19} parent=0 // pred_check
    _
  $region11: #{feature_predictor_forward.19} parent=0 // pred_check_branch
    %13 = sbr.rel (0) target = $region13
  $region12: #{feature_predictor_forward.19} parent=0 // pred_region
    _
  $region13: #{feature_predictor_forward.19} parent=0 // pred_fallthru
    _
  %v14 = vld [vmem:[%s0] sm:$0xff]
  %v15 = vmul.f32 %v14, 0.4
  %v16 = vld [vmem:[%s1] sm:$0xff]
  %v17 = vmul.f32 %v16, 0.2
  %v18 = vadd.f32 %v15, %v17
  %v19 = vld [vmem:[%s2] sm:$0xff]
  %v20 = vmul.f32 %v19, 0.4
  %v21 = vadd.f32 %v18, %v20
  %22 = vst [vmem:[%s3] sm:$0xff] %v21
  // Predicated region
  $region14: #{feature_predictor_forward.19} parent=0 // pred_check
    _
  $region15: #{feature_predictor_forward.19} parent=0 // pred_check_branch
    %24 = sbr.rel (0) target = $region17
  $region16: #{feature_predictor_forward.19} parent=0 // pred_region
    _
  $region17: #{feature_predictor_forward.19} parent=0 // pred_fallthru
    _
  // Predicated region
  $region18: #{feature_predictor_forward.19} parent=0 // pred_check
    _
  $region19: #{feature_predictor_forward.19} parent=0 // pred_check_branch
    %26 = sbr.rel (0) target = $region21
  $region20: #{feature_predictor_forward.19} parent=0 // pred_region
    _
  $region21: #{feature_predictor_forward.19} parent=0 // pred_fallthru
    _

</llo_original>
